<compile_context>
chip_gen: v5e
topology: v5e:2x2
jax: 0.10.0
libtpu: 0.0.40
codegen_flags: <defaults>
</compile_context>

<pallas_src>
import functools

import numpy as np
import jax
import jax.numpy as jnp
from jax.experimental import pallas as pl
from jax.experimental.pallas import tpu as pltpu

Z_DIM = 4096          # BetaVAE_H default; required so z.view(-1, 64, 8, 8) works
NC = 3                # default number of input channels
IMG = 32              # 32 -> 16 -> 8 -> 4 -> 1 spatial, matching View((-1, 256))
HEAD_TILE = 2048      # z-axis tile (multiple of 128; 2 tiles -> 1 per TC on v7x)

# (stride, pad, cin_pad_to) per conv layer; every kernel is 4x4.
_CONV_CFG = ((2, 1, 4), (2, 1, None), (2, 1, None), (1, 0, None))


# ----------------------------------------------------------------------------
# Pallas kernels
# ----------------------------------------------------------------------------
def _encoder_kernel(x_ref,
                    s1_ref, w1_ref, b1_ref,
                    s2_ref, w2_ref, b2_ref,
                    s3_ref, w3_ref, b3_ref,
                    s4_ref, w4_ref, b4_ref,
                    h_ref):
    """Fused per-sample encoder: 4x (conv4x4 + ReLU) on 2D (H, W*C) activations."""

    def conv_relu(x, s_ref, w_ref, b_ref):
        # Gather the 4 kh taps (rows of x, with stride + H zero-pad folded into
        # the tiny 0/1 S matrices), lane-concatenate them, and apply the whole
        # conv as a single weight matmul:
        #   out = relu( [S_0@x | S_1@x | S_2@x | S_3@x] @ W_cat + b )
        parts = [jnp.dot(s_ref[kh], x, preferred_element_type=jnp.float32)
                 for kh in range(4)]                       # 4 x (OH, W*Cin)
        g = jnp.concatenate(parts, axis=1)                 # (OH, 4*W*Cin)
        w = w_ref[...].astype(jnp.float32)                 # bf16 -> f32 (in VMEM)
        acc = jnp.dot(g, w, preferred_element_type=jnp.float32)
        return jnp.maximum(acc + b_ref[...], 0.0)

    h = conv_relu(x_ref[...], s1_ref, w1_ref, b1_ref)      # (16, 16*32)
    h = conv_relu(h, s2_ref, w2_ref, b2_ref)               # (8,   8*32)
    h = conv_relu(h, s3_ref, w3_ref, b3_ref)               # (4,   4*64)
    h_ref[...] = conv_relu(h, s4_ref, w4_ref, b4_ref)      # (1,    256)


def _vae_head_kernel(h_ref, wmu_ref, wlv_ref, bmu_ref, blv_ref, eps_ref,
                     z_ref, mu_ref, lv_ref, kld_ref, *, inv_batch):
    """One z-tile of Linear head + reparametrize + KL partial sum."""
    h = h_ref[...]
    wmu = wmu_ref[...].astype(jnp.float32)    # bf16 storage, f32 accumulate
    wlv = wlv_ref[...].astype(jnp.float32)
    mu = jnp.dot(h, wmu, preferred_element_type=jnp.float32) + bmu_ref[...]
    lv = jnp.dot(h, wlv, preferred_element_type=jnp.float32) + blv_ref[...]
    std = jnp.exp(0.5 * lv)                   # single EUP pass; exp(lv) == std*std
    z_ref[...] = mu + std * eps_ref[...]
    mu_ref[...] = mu
    lv_ref[...] = lv
    klds = -0.5 * (1.0 + lv - mu * mu - std * std)
    part = jnp.sum(klds, axis=1, keepdims=True)               # (B, 1)
    part = jnp.sum(part, axis=0, keepdims=True) * inv_batch   # (1, 1)
    kld_ref[...] = jnp.broadcast_to(part, kld_ref.shape)      # (1, 128) per tile


# ----------------------------------------------------------------------------
# One-time weight lowering (pure parameter preprocessing, hoisted out of jit)
# ----------------------------------------------------------------------------
def _lower_conv_layer(w_pt, bias, hin, win, stride, pad, cin_pad_to=None):
    """Lower a 4x4 conv (PyTorch OIHW weight) to (S, W_cat, b) matrices.

    S     : (4, OH, HIN) f32   per-sample 0/1 row selection (stride + H pad folded)
    W_cat : (4*WIN*Cin, OW*Cout) bf16  per-kh tap weights, kh-major concat along
            the contraction dim (stride + W zero-pad + kw selection folded in)
    b     : (1, OW*Cout) f32   bias tiled over OW
    """
    cout, cin = int(w_pt.shape[0]), int(w_pt.shape[1])
    if cin_pad_to is not None and cin_pad_to > cin:
        w_pt = jnp.pad(w_pt, ((0, 0), (0, cin_pad_to - cin), (0, 0), (0, 0)))
        cin = cin_pad_to
    oh = (hin + 2 * pad - 4) // stride + 1
    ow = (win + 2 * pad - 4) // stride + 1

    # Fold kw selection + W zero-padding into the weights (exact gather):
    #   W_low[kh, w*Cin+ci, ow*Cout+co] = w[co, ci, kh, w - stride*ow + pad]
    kw_idx = np.zeros((win, ow), np.int32)
    kw_ok = np.zeros((win, ow), np.float32)
    for o in range(ow):
        for q in range(4):
            w = stride * o + q - pad
            if 0 <= w < win:
                kw_idx[w, o] = q
                kw_ok[w, o] = 1.0
    w_sel = w_pt[:, :, :, jnp.asarray(kw_idx)]               # (co, ci, kh, w, ow)
    w_sel = w_sel * jnp.asarray(kw_ok)[None, None, None]
    w_low = jnp.transpose(w_sel, (2, 3, 1, 4, 0)).reshape(4, win * cin, ow * cout)
    # kh-major concat along the contraction dim, matching the in-kernel lane
    # concat [S_0@x | S_1@x | S_2@x | S_3@x]; store in bf16 (HBM streaming).
    w_cat = w_low.reshape(4 * win * cin, ow * cout).astype(jnp.bfloat16)

    # Per-sample kh-tap row selection (H zero-padding folded in as zero rows).
    s = np.zeros((4, oh, hin), np.float32)
    for kh in range(4):
        for o in range(oh):
            h = stride * o + kh - pad
            if 0 <= h < hin:
                s[kh, o, h] = 1.0

    b_tiled = jnp.tile(bias, ow).reshape(1, ow * cout)
    return jnp.asarray(s), w_cat, b_tiled, oh, ow


def prepare_params(params):
    """Pre-lower the PyTorch-layout parameters for the fused kernels."""
    enc = {}
    hin = win = IMG
    for idx, (stride, pad, cpad) in enumerate(_CONV_CFG, start=1):
        s, w_cat, b_t, hin, win = _lower_conv_layer(
            params[f"w{idx}"], params[f"b{idx}"], hin, win, stride, pad,
            cin_pad_to=cpad)
        enc[f"s{idx}"] = s
        enc[f"w{idx}"] = w_cat
        enc[f"b{idx}"] = b_t
    wl, bl = params["wl"], params["bl"]          # wl: (256, 2*Z)
    zdim = wl.shape[1] // 2
    head = dict(w_mu=wl[:, :zdim].astype(jnp.bfloat16),
                w_lv=wl[:, zdim:].astype(jnp.bfloat16),
                b_mu=bl[:zdim].reshape(1, zdim),
                b_lv=bl[zdim:].reshape(1, zdim))
    return dict(enc=enc, head=head)


# ----------------------------------------------------------------------------
# pallas_call wrappers
# ----------------------------------------------------------------------------
def _resident_spec(arr):
    """Full-array block with a constant index map: stays VMEM-resident across
    grid steps (DMA'd once per core)."""
    nd = arr.ndim
    return pl.BlockSpec(arr.shape, lambda *_: (0,) * nd)


def _encode(x2d, enc, batch):
    in_specs = [pl.BlockSpec((IMG, IMG * 4), lambda b: (b, 0))]   # per-sample x tile
    args = [x2d]
    for i in range(1, 5):
        for k in ("s", "w", "b"):
            a = enc[f"{k}{i}"]
            in_specs.append(_resident_spec(a))
            args.append(a)
    h_lane = pl.pallas_call(
        _encoder_kernel,
        grid=(batch,),
        in_specs=in_specs,
        # Lane-dense output row: one (1, 256) block per sample.
        out_specs=pl.BlockSpec((1, 256), lambda b: (0, b)),
        out_shape=jax.ShapeDtypeStruct((1, batch * 256), jnp.float32),
        compiler_params=pltpu.CompilerParams(
            dimension_semantics=("parallel",),      # megacore batch split on v7x
            vmem_limit_bytes=32 << 20),
    )(*args)
    return h_lane.reshape(batch, 256)


def _vae_head(h, head, eps, tile=HEAD_TILE):
    batch, zdim = eps.shape
    assert zdim % tile == 0
    nt = zdim // tile
    d = h.shape[1]
    z, mu, lv, kparts = pl.pallas_call(
        functools.partial(_vae_head_kernel, inv_batch=1.0 / batch),
        grid=(nt,),
        in_specs=[
            pl.BlockSpec((batch, d), lambda i: (0, 0)),      # h (stays resident)
            pl.BlockSpec((d, tile), lambda i: (0, i)),       # w_mu tile (bf16 stream)
            pl.BlockSpec((d, tile), lambda i: (0, i)),       # w_lv tile (bf16 stream)
            pl.BlockSpec((1, tile), lambda i: (0, i)),       # b_mu tile
            pl.BlockSpec((1, tile), lambda i: (0, i)),       # b_lv tile
            pl.BlockSpec((batch, tile), lambda i: (0, i)),   # eps tile
        ],
        out_specs=(
            pl.BlockSpec((batch, tile), lambda i: (0, i)),   # z
            pl.BlockSpec((batch, tile), lambda i: (0, i)),   # mu
            pl.BlockSpec((batch, tile), lambda i: (0, i)),   # logvar
            pl.BlockSpec((1, 128), lambda i: (0, i)),        # KLD partial per tile
        ),
        out_shape=(
            jax.ShapeDtypeStruct((batch, zdim), jnp.float32),
            jax.ShapeDtypeStruct((batch, zdim), jnp.float32),
            jax.ShapeDtypeStruct((batch, zdim), jnp.float32),
            jax.ShapeDtypeStruct((1, nt * 128), jnp.float32),
        ),
        compiler_params=pltpu.CompilerParams(
            dimension_semantics=("parallel",),      # megacore z split on v7x
            vmem_limit_bytes=32 << 20),
    )(h, head["w_mu"], head["w_lv"], head["b_mu"], head["b_lv"], eps)
    total_kld = jnp.sum(kparts[0, ::128]).reshape(1)
    return z, mu, lv, total_kld


def betavae_h_forward(prepared, x_nchw, eps):
    """Forward of BetaVAE_H: returns (z, mu, logvar, total_kld)."""
    enc, head = prepared["enc"], prepared["head"]
    batch = x_nchw.shape[0]
    x = jnp.transpose(x_nchw, (0, 2, 3, 1)).astype(jnp.float32)     # NCHW -> NHWC
    x = jnp.pad(x, ((0, 0), (0, 0), (0, 0), (0, 4 - x.shape[3])))   # Cin 3 -> 4 (128 lanes)
    x2d = x.reshape(batch * IMG, IMG * 4)                           # (B*H, W*C)
    h = _encode(x2d, enc, batch)                                    # (B, 256)
    z_flat, mu, logvar, total_kld = _vae_head(h, head, eps)
    z = z_flat.reshape(-1, 64, 8, 8)                                # .view(-1, 64, 8, 8)
    return z, mu, logvar, total_kld


# ----------------------------------------------------------------------------
# Deterministic parameter init (kaiming_normal for weights, zero biases)
# ----------------------------------------------------------------------------
def init_params(key, z_dim=Z_DIM, nc=NC):
    ks = jax.random.split(key, 5)

    def kconv(k, cout, cin, kh, kw):
        std = (2.0 / (cin * kh * kw)) ** 0.5
        return std * jax.random.normal(k, (cout, cin, kh, kw), jnp.float32)

    def klinear(k, out_f, in_f):
        std = (2.0 / in_f) ** 0.5
        return std * jax.random.normal(k, (out_f, in_f), jnp.float32)

    return dict(
        w1=kconv(ks[0], 32, nc, 4, 4),  b1=jnp.zeros((32,), jnp.float32),
        w2=kconv(ks[1], 32, 32, 4, 4),  b2=jnp.zeros((32,), jnp.float32),
        w3=kconv(ks[2], 64, 32, 4, 4),  b3=jnp.zeros((64,), jnp.float32),
        w4=kconv(ks[3], 256, 64, 4, 4), b4=jnp.zeros((256,), jnp.float32),
        # nn.Linear(256, 2*z_dim): weight stored pre-transposed as (256, 2*z_dim)
        wl=klinear(ks[4], 2 * z_dim, 256).T,
        bl=jnp.zeros((2 * z_dim,), jnp.float32),
    )


def _bf16_weights(params):
    """Round-trip the weights through bf16 (the kernels' storage precision) so
    the reference comparison is apples-to-apples; biases stay f32."""
    q = dict(params)
    for k in ("w1", "w2", "w3", "w4", "wl"):
        q[k] = params[k].astype(jnp.bfloat16).astype(jnp.float32)
    return q


def _reference_forward(params, x_nchw, eps):
    """Pure-JAX/XLA reference of the PyTorch module (high precision)."""
    hp = jax.lax.Precision.HIGHEST
    h = x_nchw.astype(jnp.float32)
    for idx, (stride, pad, _) in enumerate(_CONV_CFG, start=1):
        h = jax.lax.conv_general_dilated(
            h, params[f"w{idx}"], (stride, stride), [(pad, pad), (pad, pad)],
            dimension_numbers=("NCHW", "OIHW", "NCHW"), precision=hp)
        h = jnp.maximum(h + params[f"b{idx}"].reshape(1, -1, 1, 1), 0.0)
    hb = h.reshape(h.shape[0], 256)
    dist = jnp.dot(hb, params["wl"], precision=hp) + params["bl"]
    mu, lv = dist[:, :Z_DIM], dist[:, Z_DIM:]
    z = (mu + jnp.exp(lv / 2) * eps).reshape(-1, 64, 8, 8)
    klds = -0.5 * (1 + lv - mu ** 2 - jnp.exp(lv))
    return z, mu, lv, klds.sum(1).mean(0, keepdims=True)


if __name__ == "__main__":
    key = jax.random.PRNGKey(0)
    kp, kx, ke = jax.random.split(key, 3)

    params = init_params(kp)
    B = 2
    x = jax.random.normal(kx, (B, NC, IMG, IMG), jnp.float32)
    # TODO(synk): torch's runtime .normal_() RNG has no in-kernel equivalent;
    # eps is drawn deterministically with jax.random and passed in.
    eps = jax.random.normal(ke, (B, Z_DIM), jnp.float32)

    prepared = prepare_params(params)   # one-time weight lowering (hoisted)
    fwd = jax.jit(betavae_h_forward)
    z, mu, logvar, kld = fwd(prepared, x, eps)
    jax.block_until_ready((z, mu, logvar, kld))

    assert z.shape == (B, 64, 8, 8)
    assert mu.shape == (B, Z_DIM) and logvar.shape == (B, Z_DIM)
    assert kld.shape == (1,)

    # Numerical check against a pure-JAX reference of the PyTorch module.
    # Weights are deliberately stored in bf16 in the kernels (perf), so the
    # reference uses the same bf16-rounded weights; accumulation is f32 on
    # both sides, so the tight tolerance still applies.
    params_ref = _bf16_weights(params)
    z_r, mu_r, lv_r, kld_r = _reference_forward(params_ref, x, eps)
    np.testing.assert_allclose(np.asarray(mu), np.asarray(mu_r), rtol=3e-3, atol=3e-3)
    np.testing.assert_allclose(np.asarray(logvar), np.asarray(lv_r), rtol=3e-3, atol=3e-3)
    np.testing.assert_allclose(np.asarray(z), np.asarray(z_r), rtol=3e-3, atol=3e-3)
    np.testing.assert_allclose(np.asarray(kld), np.asarray(kld_r), rtol=3e-3, atol=3e-3)

    print("KERNEL_OK")
</pallas_src>

<mosaic_0001>
module attributes {stable_mosaic.version = 11 : i64} {
  func.func @_vae_head_kernel(%arg0: i32, %arg1: memref<2x256xf32, #tpu.memory_space<vmem>>, %arg2: memref<256x2048xbf16, #tpu.memory_space<vmem>>, %arg3: memref<256x2048xbf16, #tpu.memory_space<vmem>>, %arg4: memref<1x2048xf32, #tpu.memory_space<vmem>>, %arg5: memref<1x2048xf32, #tpu.memory_space<vmem>>, %arg6: memref<2x2048xf32, #tpu.memory_space<vmem>>, %arg7: memref<2x2048xf32, #tpu.memory_space<vmem>>, %arg8: memref<2x2048xf32, #tpu.memory_space<vmem>>, %arg9: memref<2x2048xf32, #tpu.memory_space<vmem>>, %arg10: memref<1x128xf32, #tpu.memory_space<vmem>>) attributes {dimension_semantics = [#tpu.dimension_semantics<parallel>], iteration_bounds = array<i64: 2>, scalar_prefetch = 0 : i64, scratch_operands = 0 : i64, tpu.core_type = #tpu.core_type<tc>, window_params = [{pipeline_mode = #tpu.pipeline_mode<synchronous>, transform_indices = @transform_0, window_bounds = array<i64: 2, 256>}, {transform_indices = @transform_1, window_bounds = array<i64: 256, 2048>}, {transform_indices = @transform_2, window_bounds = array<i64: 256, 2048>}, {transform_indices = @transform_3, window_bounds = array<i64: 1, 2048>}, {transform_indices = @transform_4, window_bounds = array<i64: 1, 2048>}, {transform_indices = @transform_5, window_bounds = array<i64: 2, 2048>}, {transform_indices = @transform_6, window_bounds = array<i64: 2, 2048>}, {transform_indices = @transform_7, window_bounds = array<i64: 2, 2048>}, {transform_indices = @transform_8, window_bounds = array<i64: 2, 2048>}, {transform_indices = @transform_9, window_bounds = array<i64: 1, 128>}]} {
    %c0 = arith.constant 0 : index
    %c0_0 = arith.constant 0 : index
    %0 = vector.load %arg1[%c0, %c0_0] : memref<2x256xf32, #tpu.memory_space<vmem>>, vector<2x256xf32>
    %c0_1 = arith.constant 0 : index
    %c0_2 = arith.constant 0 : index
    %1 = vector.load %arg2[%c0_1, %c0_2] : memref<256x2048xbf16, #tpu.memory_space<vmem>>, vector<256x2048xbf16>
    %2 = arith.extf %1 : vector<256x2048xbf16> to vector<256x2048xf32>
    %c0_3 = arith.constant 0 : index
    %c0_4 = arith.constant 0 : index
    %3 = vector.load %arg3[%c0_3, %c0_4] : memref<256x2048xbf16, #tpu.memory_space<vmem>>, vector<256x2048xbf16>
    %4 = arith.extf %3 : vector<256x2048xbf16> to vector<256x2048xf32>
    %cst = arith.constant dense<0.000000e+00> : vector<2x2048xf32>
    %5 = tpu.matmul %0, %2, %cst {dimension_numbers = #tpu.dot_dimension_numbers<[1], [0], [0], [1], [0, 0, 1, 1], [], []>} : vector<2x256xf32>, vector<256x2048xf32>, vector<2x2048xf32> -> vector<2x2048xf32>
    %c0_5 = arith.constant 0 : index
    %c0_6 = arith.constant 0 : index
    %6 = vector.load %arg4[%c0_5, %c0_6] : memref<1x2048xf32, #tpu.memory_space<vmem>>, vector<1x2048xf32>
    %7 = vector.broadcast %6 : vector<1x2048xf32> to vector<2x2048xf32>
    %8 = arith.addf %5, %7 : vector<2x2048xf32>
    %cst_7 = arith.constant dense<0.000000e+00> : vector<2x2048xf32>
    %9 = tpu.matmul %0, %4, %cst_7 {dimension_numbers = #tpu.dot_dimension_numbers<[1], [0], [0], [1], [0, 0, 1, 1], [], []>} : vector<2x256xf32>, vector<256x2048xf32>, vector<2x2048xf32> -> vector<2x2048xf32>
    %c0_8 = arith.constant 0 : index
    %c0_9 = arith.constant 0 : index
    %10 = vector.load %arg5[%c0_8, %c0_9] : memref<1x2048xf32, #tpu.memory_space<vmem>>, vector<1x2048xf32>
    %11 = vector.broadcast %10 : vector<1x2048xf32> to vector<2x2048xf32>
    %12 = arith.addf %9, %11 : vector<2x2048xf32>
    %cst_10 = arith.constant 5.000000e-01 : f32
    %13 = vector.broadcast %cst_10 : f32 to vector<2x2048xf32>
    %14 = arith.mulf %13, %12 : vector<2x2048xf32>
    %15 = math.exp %14 : vector<2x2048xf32>
    %c0_11 = arith.constant 0 : index
    %c0_12 = arith.constant 0 : index
    %16 = vector.load %arg6[%c0_11, %c0_12] : memref<2x2048xf32, #tpu.memory_space<vmem>>, vector<2x2048xf32>
    %17 = arith.mulf %15, %16 : vector<2x2048xf32>
    %18 = arith.addf %8, %17 : vector<2x2048xf32>
    %c0_13 = arith.constant 0 : index
    %c0_14 = arith.constant 0 : index
    %19 = vector.load %arg7[%c0_13, %c0_14] : memref<2x2048xf32, #tpu.memory_space<vmem>>, vector<2x2048xf32>
    tpu.vector_store %arg7[%c0_13, %c0_14], %18 {strides = array<i32>} : memref<2x2048xf32, #tpu.memory_space<vmem>>, vector<2x2048xf32>,
    %c0_15 = arith.constant 0 : index
    %c0_16 = arith.constant 0 : index
    %20 = vector.load %arg8[%c0_15, %c0_16] : memref<2x2048xf32, #tpu.memory_space<vmem>>, vector<2x2048xf32>
    tpu.vector_store %arg8[%c0_15, %c0_16], %8 {strides = array<i32>} : memref<2x2048xf32, #tpu.memory_space<vmem>>, vector<2x2048xf32>,
    %c0_17 = arith.constant 0 : index
    %c0_18 = arith.constant 0 : index
    %21 = vector.load %arg9[%c0_17, %c0_18] : memref<2x2048xf32, #tpu.memory_space<vmem>>, vector<2x2048xf32>
    tpu.vector_store %arg9[%c0_17, %c0_18], %12 {strides = array<i32>} : memref<2x2048xf32, #tpu.memory_space<vmem>>, vector<2x2048xf32>,
    %cst_19 = arith.constant 1.000000e+00 : f32
    %22 = vector.broadcast %cst_19 : f32 to vector<2x2048xf32>
    %23 = arith.addf %22, %12 : vector<2x2048xf32>
    %24 = arith.mulf %8, %8 : vector<2x2048xf32>
    %25 = arith.subf %23, %24 : vector<2x2048xf32>
    %26 = arith.mulf %15, %15 : vector<2x2048xf32>
    %27 = arith.subf %25, %26 : vector<2x2048xf32>
    %cst_20 = arith.constant -5.000000e-01 : f32
    %28 = vector.broadcast %cst_20 : f32 to vector<2x2048xf32>
    %29 = arith.mulf %28, %27 : vector<2x2048xf32>
    %cst_21 = arith.constant dense<0.000000e+00> : vector<2xf32>
    %30 = vector.multi_reduction <add>, %29, %cst_21 [1] : vector<2x2048xf32> to vector<2xf32>
    %31 = vector.shape_cast %30 : vector<2xf32> to vector<2x1xf32>
    %cst_22 = arith.constant dense<0.000000e+00> : vector<1xf32>
    %32 = vector.multi_reduction <add>, %31, %cst_22 [0] : vector<2x1xf32> to vector<1xf32>
    %33 = vector.shape_cast %32 : vector<1xf32> to vector<1x1xf32>
    %cst_23 = arith.constant 5.000000e-01 : f32
    %34 = vector.broadcast %cst_23 : f32 to vector<1x1xf32>
    %35 = arith.mulf %33, %34 : vector<1x1xf32>
    %36 = vector.shape_cast %35 : vector<1x1xf32> to vector<1x1xf32>
    %37 = vector.broadcast %36 : vector<1x1xf32> to vector<1x128xf32>
    %c0_24 = arith.constant 0 : index
    %c0_25 = arith.constant 0 : index
    %38 = vector.load %arg10[%c0_24, %c0_25] : memref<1x128xf32, #tpu.memory_space<vmem>>, vector<1x128xf32>
    tpu.vector_store %arg10[%c0_24, %c0_25], %37 {strides = array<i32>} : memref<1x128xf32, #tpu.memory_space<vmem>>, vector<1x128xf32>,
    return
  }
  func.func @transform_0(%arg0: i32) -> (i32, i32) {
    %c0_i32 = arith.constant 0 : i32
    %c0_i32_0 = arith.constant 0 : i32
    %c0_i32_1 = arith.constant 0 : i32
    return %c0_i32, %c0_i32_0 : i32, i32
  }
  func.func @transform_1(%arg0: i32) -> (i32, i32) {
    %c0_i32 = arith.constant 0 : i32
    %c0_i32_0 = arith.constant 0 : i32
    return %c0_i32, %arg0 : i32, i32
  }
  func.func @transform_2(%arg0: i32) -> (i32, i32) {
    %c0_i32 = arith.constant 0 : i32
    %c0_i32_0 = arith.constant 0 : i32
    return %c0_i32, %arg0 : i32, i32
  }
  func.func @transform_3(%arg0: i32) -> (i32, i32) {
    %c0_i32 = arith.constant 0 : i32
    %c0_i32_0 = arith.constant 0 : i32
    return %c0_i32, %arg0 : i32, i32
  }
  func.func @transform_4(%arg0: i32) -> (i32, i32) {
    %c0_i32 = arith.constant 0 : i32
    %c0_i32_0 = arith.constant 0 : i32
    return %c0_i32, %arg0 : i32, i32
  }
  func.func @transform_5(%arg0: i32) -> (i32, i32) {
    %c0_i32 = arith.constant 0 : i32
    %c0_i32_0 = arith.constant 0 : i32
    return %c0_i32, %arg0 : i32, i32
  }
  func.func @transform_6(%arg0: i32) -> (i32, i32) {
    %c0_i32 = arith.constant 0 : i32
    %c0_i32_0 = arith.constant 0 : i32
    return %c0_i32, %arg0 : i32, i32
  }
  func.func @transform_7(%arg0: i32) -> (i32, i32) {
    %c0_i32 = arith.constant 0 : i32
    %c0_i32_0 = arith.constant 0 : i32
    return %c0_i32, %arg0 : i32, i32
  }
  func.func @transform_8(%arg0: i32) -> (i32, i32) {
    %c0_i32 = arith.constant 0 : i32
    %c0_i32_0 = arith.constant 0 : i32
    return %c0_i32, %arg0 : i32, i32
  }
  func.func @transform_9(%arg0: i32) -> (i32, i32) {
    %c0_i32 = arith.constant 0 : i32
    %c0_i32_0 = arith.constant 0 : i32
    return %c0_i32, %arg0 : i32, i32
  }
}

module attributes {stable_mosaic.version = 11 : i64} {
  func.func @_encoder_kernel(%arg0: i32, %arg1: memref<32x128xf32, #tpu.memory_space<vmem>>, %arg2: memref<4x16x32xf32, #tpu.memory_space<vmem>>, %arg3: memref<512x512xbf16, #tpu.memory_space<vmem>>, %arg4: memref<1x512xf32, #tpu.memory_space<vmem>>, %arg5: memref<4x8x16xf32, #tpu.memory_space<vmem>>, %arg6: memref<2048x256xbf16, #tpu.memory_space<vmem>>, %arg7: memref<1x256xf32, #tpu.memory_space<vmem>>, %arg8: memref<4x4x8xf32, #tpu.memory_space<vmem>>, %arg9: memref<1024x256xbf16, #tpu.memory_space<vmem>>, %arg10: memref<1x256xf32, #tpu.memory_space<vmem>>, %arg11: memref<4x1x4xf32, #tpu.memory_space<vmem>>, %arg12: memref<1024x256xbf16, #tpu.memory_space<vmem>>, %arg13: memref<1x256xf32, #tpu.memory_space<vmem>>, %arg14: memref<1x256xf32, #tpu.memory_space<vmem>>) attributes {dimension_semantics = [#tpu.dimension_semantics<parallel>], iteration_bounds = array<i64: 2>, scalar_prefetch = 0 : i64, scratch_operands = 0 : i64, tpu.core_type = #tpu.core_type<tc>, window_params = [{transform_indices = @transform_0, window_bounds = array<i64: 32, 128>}, {pipeline_mode = #tpu.pipeline_mode<synchronous>, transform_indices = @transform_1, window_bounds = array<i64: 4, 16, 32>}, {pipeline_mode = #tpu.pipeline_mode<synchronous>, transform_indices = @transform_2, window_bounds = array<i64: 512, 512>}, {pipeline_mode = #tpu.pipeline_mode<synchronous>, transform_indices = @transform_3, window_bounds = array<i64: 1, 512>}, {pipeline_mode = #tpu.pipeline_mode<synchronous>, transform_indices = @transform_4, window_bounds = array<i64: 4, 8, 16>}, {pipeline_mode = #tpu.pipeline_mode<synchronous>, transform_indices = @transform_5, window_bounds = array<i64: 2048, 256>}, {pipeline_mode = #tpu.pipeline_mode<synchronous>, transform_indices = @transform_6, window_bounds = array<i64: 1, 256>}, {pipeline_mode = #tpu.pipeline_mode<synchronous>, transform_indices = @transform_7, window_bounds = array<i64: 4, 4, 8>}, {pipeline_mode = #tpu.pipeline_mode<synchronous>, transform_indices = @transform_8, window_bounds = array<i64: 1024, 256>}, {pipeline_mode = #tpu.pipeline_mode<synchronous>, transform_indices = @transform_9, window_bounds = array<i64: 1, 256>}, {pipeline_mode = #tpu.pipeline_mode<synchronous>, transform_indices = @transform_10, window_bounds = array<i64: 4, 1, 4>}, {pipeline_mode = #tpu.pipeline_mode<synchronous>, transform_indices = @transform_11, window_bounds = array<i64: 1024, 256>}, {pipeline_mode = #tpu.pipeline_mode<synchronous>, transform_indices = @transform_12, window_bounds = array<i64: 1, 256>}, {transform_indices = @transform_13, window_bounds = array<i64: 1, 256>}]} {
    %c0 = arith.constant 0 : index
    %c0_0 = arith.constant 0 : index
    %0 = vector.load %arg1[%c0, %c0_0] : memref<32x128xf32, #tpu.memory_space<vmem>>, vector<32x128xf32>
    %c0_1 = arith.constant 0 : index
    %c0_2 = arith.constant 0 : index
    %c0_3 = arith.constant 0 : index
    %1 = vector.load %arg2[%c0_1, %c0_2, %c0_3] : memref<4x16x32xf32, #tpu.memory_space<vmem>>, vector<1x16x32xf32>
    %2 = vector.shape_cast %1 : vector<1x16x32xf32> to vector<16x32xf32>
    %cst = arith.constant dense<0.000000e+00> : vector<16x128xf32>
    %3 = tpu.matmul %2, %0, %cst {dimension_numbers = #tpu.dot_dimension_numbers<[1], [0], [0], [1], [0, 0, 1, 1], [], []>} : vector<16x32xf32>, vector<32x128xf32>, vector<16x128xf32> -> vector<16x128xf32>
    %c1 = arith.constant 1 : index
    %c0_4 = arith.constant 0 : index
    %c0_5 = arith.constant 0 : index
    %4 = vector.load %arg2[%c1, %c0_4, %c0_5] : memref<4x16x32xf32, #tpu.memory_space<vmem>>, vector<1x16x32xf32>
    %5 = vector.shape_cast %4 : vector<1x16x32xf32> to vector<16x32xf32>
    %cst_6 = arith.constant dense<0.000000e+00> : vector<16x128xf32>
    %6 = tpu.matmul %5, %0, %cst_6 {dimension_numbers = #tpu.dot_dimension_numbers<[1], [0], [0], [1], [0, 0, 1, 1], [], []>} : vector<16x32xf32>, vector<32x128xf32>, vector<16x128xf32> -> vector<16x128xf32>
    %c2 = arith.constant 2 : index
    %c0_7 = arith.constant 0 : index
    %c0_8 = arith.constant 0 : index
    %7 = vector.load %arg2[%c2, %c0_7, %c0_8] : memref<4x16x32xf32, #tpu.memory_space<vmem>>, vector<1x16x32xf32>
    %8 = vector.shape_cast %7 : vector<1x16x32xf32> to vector<16x32xf32>
    %cst_9 = arith.constant dense<0.000000e+00> : vector<16x128xf32>
    %9 = tpu.matmul %8, %0, %cst_9 {dimension_numbers = #tpu.dot_dimension_numbers<[1], [0], [0], [1], [0, 0, 1, 1], [], []>} : vector<16x32xf32>, vector<32x128xf32>, vector<16x128xf32> -> vector<16x128xf32>
    %c3 = arith.constant 3 : index
    %c0_10 = arith.constant 0 : index
    %c0_11 = arith.constant 0 : index
    %10 = vector.load %arg2[%c3, %c0_10, %c0_11] : memref<4x16x32xf32, #tpu.memory_space<vmem>>, vector<1x16x32xf32>
    %11 = vector.shape_cast %10 : vector<1x16x32xf32> to vector<16x32xf32>
    %cst_12 = arith.constant dense<0.000000e+00> : vector<16x128xf32>
    %12 = tpu.matmul %11, %0, %cst_12 {dimension_numbers = #tpu.dot_dimension_numbers<[1], [0], [0], [1], [0, 0, 1, 1], [], []>} : vector<16x32xf32>, vector<32x128xf32>, vector<16x128xf32> -> vector<16x128xf32>
    %13 = tpu.concatenate %3, %6, %9, %12 in 1 : vector<16x128xf32>, vector<16x128xf32>, vector<16x128xf32>, vector<16x128xf32> -> vector<16x512xf32>
    %c0_13 = arith.constant 0 : index
    %c0_14 = arith.constant 0 : index
    %14 = vector.load %arg3[%c0_13, %c0_14] : memref<512x512xbf16, #tpu.memory_space<vmem>>, vector<512x512xbf16>
    %15 = arith.extf %14 : vector<512x512xbf16> to vector<512x512xf32>
    %cst_15 = arith.constant dense<0.000000e+00> : vector<16x512xf32>
    %16 = tpu.matmul %13, %15, %cst_15 {dimension_numbers = #tpu.dot_dimension_numbers<[1], [0], [0], [1], [0, 0, 1, 1], [], []>} : vector<16x512xf32>, vector<512x512xf32>, vector<16x512xf32> -> vector<16x512xf32>
    %c0_16 = arith.constant 0 : index
    %c0_17 = arith.constant 0 : index
    %17 = vector.load %arg4[%c0_16, %c0_17] : memref<1x512xf32, #tpu.memory_space<vmem>>, vector<1x512xf32>
    %18 = vector.broadcast %17 : vector<1x512xf32> to vector<16x512xf32>
    %19 = arith.addf %16, %18 : vector<16x512xf32>
    %cst_18 = arith.constant 0.000000e+00 : f32
    %20 = vector.broadcast %cst_18 : f32 to vector<16x512xf32>
    %21 = arith.maximumf %19, %20 : vector<16x512xf32>
    %c0_19 = arith.constant 0 : index
    %c0_20 = arith.constant 0 : index
    %c0_21 = arith.constant 0 : index
    %22 = vector.load %arg5[%c0_19, %c0_20, %c0_21] : memref<4x8x16xf32, #tpu.memory_space<vmem>>, vector<1x8x16xf32>
    %23 = vector.shape_cast %22 : vector<1x8x16xf32> to vector<8x16xf32>
    %cst_22 = arith.constant dense<0.000000e+00> : vector<8x512xf32>
    %24 = tpu.matmul %23, %21, %cst_22 {dimension_numbers = #tpu.dot_dimension_numbers<[1], [0], [0], [1], [0, 0, 1, 1], [], []>} : vector<8x16xf32>, vector<16x512xf32>, vector<8x512xf32> -> vector<8x512xf32>
    %c1_23 = arith.constant 1 : index
    %c0_24 = arith.constant 0 : index
    %c0_25 = arith.constant 0 : index
    %25 = vector.load %arg5[%c1_23, %c0_24, %c0_25] : memref<4x8x16xf32, #tpu.memory_space<vmem>>, vector<1x8x16xf32>
    %26 = vector.shape_cast %25 : vector<1x8x16xf32> to vector<8x16xf32>
    %cst_26 = arith.constant dense<0.000000e+00> : vector<8x512xf32>
    %27 = tpu.matmul %26, %21, %cst_26 {dimension_numbers = #tpu.dot_dimension_numbers<[1], [0], [0], [1], [0, 0, 1, 1], [], []>} : vector<8x16xf32>, vector<16x512xf32>, vector<8x512xf32> -> vector<8x512xf32>
    %c2_27 = arith.constant 2 : index
    %c0_28 = arith.constant 0 : index
    %c0_29 = arith.constant 0 : index
    %28 = vector.load %arg5[%c2_27, %c0_28, %c0_29] : memref<4x8x16xf32, #tpu.memory_space<vmem>>, vector<1x8x16xf32>
    %29 = vector.shape_cast %28 : vector<1x8x16xf32> to vector<8x16xf32>
    %cst_30 = arith.constant dense<0.000000e+00> : vector<8x512xf32>
    %30 = tpu.matmul %29, %21, %cst_30 {dimension_numbers = #tpu.dot_dimension_numbers<[1], [0], [0], [1], [0, 0, 1, 1], [], []>} : vector<8x16xf32>, vector<16x512xf32>, vector<8x512xf32> -> vector<8x512xf32>
    %c3_31 = arith.constant 3 : index
    %c0_32 = arith.constant 0 : index
    %c0_33 = arith.constant 0 : index
    %31 = vector.load %arg5[%c3_31, %c0_32, %c0_33] : memref<4x8x16xf32, #tpu.memory_space<vmem>>, vector<1x8x16xf32>
    %32 = vector.shape_cast %31 : vector<1x8x16xf32> to vector<8x16xf32>
    %cst_34 = arith.constant dense<0.000000e+00> : vector<8x512xf32>
    %33 = tpu.matmul %32, %21, %cst_34 {dimension_numbers = #tpu.dot_dimension_numbers<[1], [0], [0], [1], [0, 0, 1, 1], [], []>} : vector<8x16xf32>, vector<16x512xf32>, vector<8x512xf32> -> vector<8x512xf32>
    %34 = tpu.concatenate %24, %27, %30, %33 in 1 : vector<8x512xf32>, vector<8x512xf32>, vector<8x512xf32>, vector<8x512xf32> -> vector<8x2048xf32>
    %c0_35 = arith.constant 0 : index
    %c0_36 = arith.constant 0 : index
    %35 = vector.load %arg6[%c0_35, %c0_36] : memref<2048x256xbf16, #tpu.memory_space<vmem>>, vector<2048x256xbf16>
    %36 = arith.extf %35 : vector<2048x256xbf16> to vector<2048x256xf32>
    %cst_37 = arith.constant dense<0.000000e+00> : vector<8x256xf32>
    %37 = tpu.matmul %34, %36, %cst_37 {dimension_numbers = #tpu.dot_dimension_numbers<[1], [0], [0], [1], [0, 0, 1, 1], [], []>} : vector<8x2048xf32>, vector<2048x256xf32>, vector<8x256xf32> -> vector<8x256xf32>
    %c0_38 = arith.constant 0 : index
    %c0_39 = arith.constant 0 : index
    %38 = vector.load %arg7[%c0_38, %c0_39] : memref<1x256xf32, #tpu.memory_space<vmem>>, vector<1x256xf32>
    %39 = vector.broadcast %38 : vector<1x256xf32> to vector<8x256xf32>
    %40 = arith.addf %37, %39 : vector<8x256xf32>
    %cst_40 = arith.constant 0.000000e+00 : f32
    %41 = vector.broadcast %cst_40 : f32 to vector<8x256xf32>
    %42 = arith.maximumf %40, %41 : vector<8x256xf32>
    %c0_41 = arith.constant 0 : index
    %c0_42 = arith.constant 0 : index
    %c0_43 = arith.constant 0 : index
    %43 = vector.load %arg8[%c0_41, %c0_42, %c0_43] : memref<4x4x8xf32, #tpu.memory_space<vmem>>, vector<1x4x8xf32>
    %44 = vector.shape_cast %43 : vector<1x4x8xf32> to vector<4x8xf32>
    %cst_44 = arith.constant dense<0.000000e+00> : vector<4x256xf32>
    %45 = tpu.matmul %44, %42, %cst_44 {dimension_numbers = #tpu.dot_dimension_numbers<[1], [0], [0], [1], [0, 0, 1, 1], [], []>} : vector<4x8xf32>, vector<8x256xf32>, vector<4x256xf32> -> vector<4x256xf32>
    %c1_45 = arith.constant 1 : index
    %c0_46 = arith.constant 0 : index
    %c0_47 = arith.constant 0 : index
    %46 = vector.load %arg8[%c1_45, %c0_46, %c0_47] : memref<4x4x8xf32, #tpu.memory_space<vmem>>, vector<1x4x8xf32>
    %47 = vector.shape_cast %46 : vector<1x4x8xf32> to vector<4x8xf32>
    %cst_48 = arith.constant dense<0.000000e+00> : vector<4x256xf32>
    %48 = tpu.matmul %47, %42, %cst_48 {dimension_numbers = #tpu.dot_dimension_numbers<[1], [0], [0], [1], [0, 0, 1, 1], [], []>} : vector<4x8xf32>, vector<8x256xf32>, vector<4x256xf32> -> vector<4x256xf32>
    %c2_49 = arith.constant 2 : index
    %c0_50 = arith.constant 0 : index
    %c0_51 = arith.constant 0 : index
    %49 = vector.load %arg8[%c2_49, %c0_50, %c0_51] : memref<4x4x8xf32, #tpu.memory_space<vmem>>, vector<1x4x8xf32>
    %50 = vector.shape_cast %49 : vector<1x4x8xf32> to vector<4x8xf32>
    %cst_52 = arith.constant dense<0.000000e+00> : vector<4x256xf32>
    %51 = tpu.matmul %50, %42, %cst_52 {dimension_numbers = #tpu.dot_dimension_numbers<[1], [0], [0], [1], [0, 0, 1, 1], [], []>} : vector<4x8xf32>, vector<8x256xf32>, vector<4x256xf32> -> vector<4x256xf32>
    %c3_53 = arith.constant 3 : index
    %c0_54 = arith.constant 0 : index
    %c0_55 = arith.constant 0 : index
    %52 = vector.load %arg8[%c3_53, %c0_54, %c0_55] : memref<4x4x8xf32, #tpu.memory_space<vmem>>, vector<1x4x8xf32>
    %53 = vector.shape_cast %52 : vector<1x4x8xf32> to vector<4x8xf32>
    %cst_56 = arith.constant dense<0.000000e+00> : vector<4x256xf32>
    %54 = tpu.matmul %53, %42, %cst_56 {dimension_numbers = #tpu.dot_dimension_numbers<[1], [0], [0], [1], [0, 0, 1, 1], [], []>} : vector<4x8xf32>, vector<8x256xf32>, vector<4x256xf32> -> vector<4x256xf32>
    %55 = tpu.concatenate %45, %48, %51, %54 in 1 : vector<4x256xf32>, vector<4x256xf32>, vector<4x256xf32>, vector<4x256xf32> -> vector<4x1024xf32>
    %c0_57 = arith.constant 0 : index
    %c0_58 = arith.constant 0 : index
    %56 = vector.load %arg9[%c0_57, %c0_58] : memref<1024x256xbf16, #tpu.memory_space<vmem>>, vector<1024x256xbf16>
    %57 = arith.extf %56 : vector<1024x256xbf16> to vector<1024x256xf32>
    %cst_59 = arith.constant dense<0.000000e+00> : vector<4x256xf32>
    %58 = tpu.matmul %55, %57, %cst_59 {dimension_numbers = #tpu.dot_dimension_numbers<[1], [0], [0], [1], [0, 0, 1, 1], [], []>} : vector<4x1024xf32>, vector<1024x256xf32>, vector<4x256xf32> -> vector<4x256xf32>
    %c0_60 = arith.constant 0 : index
    %c0_61 = arith.constant 0 : index
    %59 = vector.load %arg10[%c0_60, %c0_61] : memref<1x256xf32, #tpu.memory_space<vmem>>, vector<1x256xf32>
    %60 = vector.broadcast %59 : vector<1x256xf32> to vector<4x256xf32>
    %61 = arith.addf %58, %60 : vector<4x256xf32>
    %cst_62 = arith.constant 0.000000e+00 : f32
    %62 = vector.broadcast %cst_62 : f32 to vector<4x256xf32>
    %63 = arith.maximumf %61, %62 : vector<4x256xf32>
    %c0_63 = arith.constant 0 : index
    %c0_64 = arith.constant 0 : index
    %c0_65 = arith.constant 0 : index
    %64 = vector.load %arg11[%c0_63, %c0_64, %c0_65] : memref<4x1x4xf32, #tpu.memory_space<vmem>>, vector<1x1x4xf32>
    %65 = vector.shape_cast %64 : vector<1x1x4xf32> to vector<1x4xf32>
    %cst_66 = arith.constant dense<0.000000e+00> : vector<1x256xf32>
    %66 = tpu.matmul %65, %63, %cst_66 {dimension_numbers = #tpu.dot_dimension_numbers<[1], [0], [0], [1], [0, 0, 1, 1], [], []>} : vector<1x4xf32>, vector<4x256xf32>, vector<1x256xf32> -> vector<1x256xf32>
    %c1_67 = arith.constant 1 : index
    %c0_68 = arith.constant 0 : index
    %c0_69 = arith.constant 0 : index
    %67 = vector.load %arg11[%c1_67, %c0_68, %c0_69] : memref<4x1x4xf32, #tpu.memory_space<vmem>>, vector<1x1x4xf32>
    %68 = vector.shape_cast %67 : vector<1x1x4xf32> to vector<1x4xf32>
    %cst_70 = arith.constant dense<0.000000e+00> : vector<1x256xf32>
    %69 = tpu.matmul %68, %63, %cst_70 {dimension_numbers = #tpu.dot_dimension_numbers<[1], [0], [0], [1], [0, 0, 1, 1], [], []>} : vector<1x4xf32>, vector<4x256xf32>, vector<1x256xf32> -> vector<1x256xf32>
    %c2_71 = arith.constant 2 : index
    %c0_72 = arith.constant 0 : index
    %c0_73 = arith.constant 0 : index
    %70 = vector.load %arg11[%c2_71, %c0_72, %c0_73] : memref<4x1x4xf32, #tpu.memory_space<vmem>>, vector<1x1x4xf32>
    %71 = vector.shape_cast %70 : vector<1x1x4xf32> to vector<1x4xf32>
    %cst_74 = arith.constant dense<0.000000e+00> : vector<1x256xf32>
    %72 = tpu.matmul %71, %63, %cst_74 {dimension_numbers = #tpu.dot_dimension_numbers<[1], [0], [0], [1], [0, 0, 1, 1], [], []>} : vector<1x4xf32>, vector<4x256xf32>, vector<1x256xf32> -> vector<1x256xf32>
    %c3_75 = arith.constant 3 : index
    %c0_76 = arith.constant 0 : index
    %c0_77 = arith.constant 0 : index
    %73 = vector.load %arg11[%c3_75, %c0_76, %c0_77] : memref<4x1x4xf32, #tpu.memory_space<vmem>>, vector<1x1x4xf32>
    %74 = vector.shape_cast %73 : vector<1x1x4xf32> to vector<1x4xf32>
    %cst_78 = arith.constant dense<0.000000e+00> : vector<1x256xf32>
    %75 = tpu.matmul %74, %63, %cst_78 {dimension_numbers = #tpu.dot_dimension_numbers<[1], [0], [0], [1], [0, 0, 1, 1], [], []>} : vector<1x4xf32>, vector<4x256xf32>, vector<1x256xf32> -> vector<1x256xf32>
    %76 = tpu.concatenate %66, %69, %72, %75 in 1 : vector<1x256xf32>, vector<1x256xf32>, vector<1x256xf32>, vector<1x256xf32> -> vector<1x1024xf32>
    %c0_79 = arith.constant 0 : index
    %c0_80 = arith.constant 0 : index
    %77 = vector.load %arg12[%c0_79, %c0_80] : memref<1024x256xbf16, #tpu.memory_space<vmem>>, vector<1024x256xbf16>
    %78 = arith.extf %77 : vector<1024x256xbf16> to vector<1024x256xf32>
    %cst_81 = arith.constant dense<0.000000e+00> : vector<1x256xf32>
    %79 = tpu.matmul %76, %78, %cst_81 {dimension_numbers = #tpu.dot_dimension_numbers<[1], [0], [0], [1], [0, 0, 1, 1], [], []>} : vector<1x1024xf32>, vector<1024x256xf32>, vector<1x256xf32> -> vector<1x256xf32>
    %c0_82 = arith.constant 0 : index
    %c0_83 = arith.constant 0 : index
    %80 = vector.load %arg13[%c0_82, %c0_83] : memref<1x256xf32, #tpu.memory_space<vmem>>, vector<1x256xf32>
    %81 = arith.addf %79, %80 : vector<1x256xf32>
    %cst_84 = arith.constant 0.000000e+00 : f32
    %82 = vector.broadcast %cst_84 : f32 to vector<1x256xf32>
    %83 = arith.maximumf %81, %82 : vector<1x256xf32>
    %c0_85 = arith.constant 0 : index
    %c0_86 = arith.constant 0 : index
    %84 = vector.load %arg14[%c0_85, %c0_86] : memref<1x256xf32, #tpu.memory_space<vmem>>, vector<1x256xf32>
    tpu.vector_store %arg14[%c0_85, %c0_86], %83 {strides = array<i32>} : memref<1x256xf32, #tpu.memory_space<vmem>>, vector<1x256xf32>,
    return
  }
  func.func @transform_0(%arg0: i32) -> (i32, i32) {
    %c0_i32 = arith.constant 0 : i32
    %c0_i32_0 = arith.constant 0 : i32
    return %arg0, %c0_i32 : i32, i32
  }
  func.func @transform_1(%arg0: i32) -> (i32, i32, i32) {
    %c0_i32 = arith.constant 0 : i32
    %c0_i32_0 = arith.constant 0 : i32
    %c0_i32_1 = arith.constant 0 : i32
    %c0_i32_2 = arith.constant 0 : i32
    return %c0_i32, %c0_i32_0, %c0_i32_1 : i32, i32, i32
  }
  func.func @transform_2(%arg0: i32) -> (i32, i32) {
    %c0_i32 = arith.constant 0 : i32
    %c0_i32_0 = arith.constant 0 : i32
    %c0_i32_1 = arith.constant 0 : i32
    return %c0_i32, %c0_i32_0 : i32, i32
  }
  func.func @transform_3(%arg0: i32) -> (i32, i32) {
    %c0_i32 = arith.constant 0 : i32
    %c0_i32_0 = arith.constant 0 : i32
    %c0_i32_1 = arith.constant 0 : i32
    return %c0_i32, %c0_i32_0 : i32, i32
  }
  func.func @transform_4(%arg0: i32) -> (i32, i32, i32) {
    %c0_i32 = arith.constant 0 : i32
    %c0_i32_0 = arith.constant 0 : i32
    %c0_i32_1 = arith.constant 0 : i32
    %c0_i32_2 = arith.constant 0 : i32
    return %c0_i32, %c0_i32_0, %c0_i32_1 : i32, i32, i32
  }
  func.func @transform_5(%arg0: i32) -> (i32, i32) {
    %c0_i32 = arith.constant 0 : i32
    %c0_i32_0 = arith.constant 0 : i32
    %c0_i32_1 = arith.constant 0 : i32
    return %c0_i32, %c0_i32_0 : i32, i32
  }
  func.func @transform_6(%arg0: i32) -> (i32, i32) {
    %c0_i32 = arith.constant 0 : i32
    %c0_i32_0 = arith.constant 0 : i32
    %c0_i32_1 = arith.constant 0 : i32
    return %c0_i32, %c0_i32_0 : i32, i32
  }
  func.func @transform_7(%arg0: i32) -> (i32, i32, i32) {
    %c0_i32 = arith.constant 0 : i32
    %c0_i32_0 = arith.constant 0 : i32
    %c0_i32_1 = arith.constant 0 : i32
    %c0_i32_2 = arith.constant 0 : i32
    return %c0_i32, %c0_i32_0, %c0_i32_1 : i32, i32, i32
  }
  func.func @transform_8(%arg0: i32) -> (i32, i32) {
    %c0_i32 = arith.constant 0 : i32
    %c0_i32_0 = arith.constant 0 : i32
    %c0_i32_1 = arith.constant 0 : i32
    return %c0_i32, %c0_i32_0 : i32, i32
  }
  func.func @transform_9(%arg0: i32) -> (i32, i32) {
    %c0_i32 = arith.constant 0 : i32
    %c0_i32_0 = arith.constant 0 : i32
    %c0_i32_1 = arith.constant 0 : i32
    return %c0_i32, %c0_i32_0 : i32, i32
  }
  func.func @transform_10(%arg0: i32) -> (i32, i32, i32) {
    %c0_i32 = arith.constant 0 : i32
    %c0_i32_0 = arith.constant 0 : i32
    %c0_i32_1 = arith.constant 0 : i32
    %c0_i32_2 = arith.constant 0 : i32
    return %c0_i32, %c0_i32_0, %c0_i32_1 : i32, i32, i32
  }
  func.func @transform_11(%arg0: i32) -> (i32, i32) {
    %c0_i32 = arith.constant 0 : i32
    %c0_i32_0 = arith.constant 0 : i32
    %c0_i32_1 = arith.constant 0 : i32
    return %c0_i32, %c0_i32_0 : i32, i32
  }
  func.func @transform_12(%arg0: i32) -> (i32, i32) {
    %c0_i32 = arith.constant 0 : i32
    %c0_i32_0 = arith.constant 0 : i32
    %c0_i32_1 = arith.constant 0 : i32
    return %c0_i32, %c0_i32_0 : i32, i32
  }
  func.func @transform_13(%arg0: i32) -> (i32, i32) {
    %c0_i32 = arith.constant 0 : i32
    %c0_i32_0 = arith.constant 0 : i32
    return %c0_i32, %arg0 : i32, i32
  }
}

</mosaic_0001>

<llo_original>
// kernel: betavae_h_forward.3
$region0: #{betavae_h_forward.3}
  #allocation0 [shape = 'u32[]', space=smem, size = 0x4, offset = 0x4, fixed_abs, tag = 'smem constant byte address 0x4 - core index']
  #allocation1 [shape = 'u32[72,128]{1,0:T(1,128)}', space=vmem, size = 0x9000, scoped, tag = 'internal scratch']
  %s0 = inlined_call_operand.vmem [shape: f32[2,256], index: 0, kind: input, shape index: {}]
  %s1 = inlined_call_operand.hbm [shape: bf16[256,4096], index: 1, kind: input, shape index: {}]
  %s2 = inlined_call_operand.hbm [shape: bf16[256,4096], index: 2, kind: input, shape index: {}]
  %s3 = inlined_call_operand.hbm [shape: f32[1,4096], index: 3, kind: input, shape index: {}]
  %s4 = inlined_call_operand.hbm [shape: f32[1,4096], index: 4, kind: input, shape index: {}]
  %s5 = inlined_call_operand.hbm [shape: f32[2,4096], index: 5, kind: input, shape index: {}]
  %s6 = inlined_call_operand.vmem [shape: f32[2,4096], index: 6, kind: output, shape index: {0}]
  %s7 = inlined_call_operand.hbm [shape: f32[2,4096], index: 7, kind: output, shape index: {1}]
  %s8 = inlined_call_operand.hbm [shape: f32[2,4096], index: 8, kind: output, shape index: {2}]
  %s9 = inlined_call_operand.vmem [shape: f32[1,256], index: 9, kind: output, shape index: {3}]
  %10 = xla_tuple %s6, %s7, %s8, %s9
  %s11 = sld [smem:[#allocation0]]
  $region101: #{betavae_h_forward.3} parent=0
    _
  %s13 = ssub.s32 1, %s11
  %s14 = scalar_select 0, %s13, %s11
  $region1: #{betavae_h_forward.3} parent=0
    #allocation2 [shape = 'u8[2097152]{0}', space=vmem, size = 0x200000, scoped, tag = 'input window, operand 1']
    #allocation3 [shape = 's32[2]{0}', space=sflag, size = 0x8, scoped, tag = 'scoped memory for betavae_h_forward.3']
    #allocation4 [shape = 's32[2]{0}', space=sflag, size = 0x8, scoped, tag = 'scoped memory for betavae_h_forward.3']
    #allocation5 [shape = 'u8[2097152]{0}', space=vmem, size = 0x200000, scoped, tag = 'input window, operand 2']
    #allocation6 [shape = 's32[2]{0}', space=sflag, size = 0x8, scoped, tag = 'scoped memory for betavae_h_forward.3']
    #allocation7 [shape = 'u8[16384]{0}', space=vmem, size = 0x4000, scoped, tag = 'input window, operand 3']
    #allocation8 [shape = 'u8[16384]{0}', space=vmem, size = 0x4000, scoped, tag = 'input window, operand 4']
    #allocation9 [shape = 's32[2]{0}', space=sflag, size = 0x8, scoped, tag = 'scoped memory for betavae_h_forward.3']
    #allocation10 [shape = 'u8[32768]{0}', space=vmem, size = 0x8000, scoped, tag = 'input window, operand 5']
    #allocation11 [shape = 'u8[32768]{0}', space=vmem, size = 0x8000, scoped, tag = 'output window, operand 1']
    #allocation12 [shape = 'u8[32768]{0}', space=vmem, size = 0x8000, scoped, tag = 'output window, operand 2']
    #allocation13 [shape = 's32[2]{0}', space=sflag, size = 0x8, scoped, tag = 'scoped memory for betavae_h_forward.3']
    %15 = vsyncpa [#allocation3], 0
    %s16 = scalar_lea.sflag [#allocation3], 1
    %17 = vsyncpa %s16, 0
    %18 = vsyncpa [#allocation6], 0
    %s19 = scalar_lea.sflag [#allocation6], 1
    %20 = vsyncpa %s19, 0
    %21 = vsyncpa [#allocation9], 0
    %s22 = scalar_lea.sflag [#allocation9], 1
    %23 = vsyncpa %s22, 0
    %24 = vsyncpa [#allocation4], 0
    %s25 = scalar_lea.sflag [#allocation4], 1
    %26 = vsyncpa %s25, 0
    %27 = vsyncpa [#allocation13], 0
    %s28 = scalar_lea.sflag [#allocation13], 1
    %29 = vsyncpa %s28, 0
    loop: start=0, step=1, limit=4
    $region2: #{betavae_h_forward.3} parent=1 // loop_pre_header
      _
    $region3: #{betavae_h_forward.3} parent=1 // loop_header
      %s31 = sphi 0, %s35
      %p32 = scmp.ge.s32.totalorder %s31, 4
      %s39 = sphi 0, %s39
      %s41 = sphi 0, %s39
      %s42 = sphi 0, %s41
      %s56 = sphi 0, %s42
      %s62 = sphi 0, %s64
      %s65 = sphi 0, %s62
      %s66 = sphi 0, %s65
      %s82 = sphi 0, %s66
      %s88 = sphi 0, %s90
      %s91 = sphi 0, %s88
      %s92 = sphi 0, %s91
      %s108 = sphi 0, %s92
      %s114 = sphi 0, %s116
      %s117 = sphi 0, %s114
      %s118 = sphi 0, %s117
      %s134 = sphi 0, %s118
      %s140 = sphi 0, %s142
      %s143 = sphi 0, %s140
      %s144 = sphi 0, %s143
      %s160 = sphi 0, %s144
      %s166 = sphi 0, %s168
      %s169 = sphi 0, %s166
      %s170 = sphi 0, %s169
      %s186 = sphi 0, %s170
      %s192 = sphi 0, %s194
      %s195 = sphi 0, %s192
      %s196 = sphi 0, %s195
      %s212 = sphi 0, %s196
      %s218 = sphi 0, %s220
      %s221 = sphi 0, %s218
      %s222 = sphi 0, %s221
      %s238 = sphi 0, %s222
      %s244 = sphi 0, %s246
      %s247 = sphi 0, %s244
      %s248 = sphi 0, %s247
      %s264 = sphi 0, %s248
      %s270 = sphi 0, %s272
      %s273 = sphi 0, %s270
      %s274 = sphi 0, %s273
      %s290 = sphi 0, %s274
    $region4: #{betavae_h_forward.3} parent=1 // loop_header_branch
      %34 = sbr.rel (%p32) target = $region8
    $region5: #{betavae_h_forward.3} parent=1 // loop_body
      %s36 = ssub.s32 %s31, 1
      %s37 = ssub.s32 %s31, 2
      %s38 = sadd.s32 %s31, 1
      %s40 = sadd.s32 %s39, 1
      %p43 = scmp.eq.s32.totalorder %s31, 1
      %p44 = scmp.ne.s32.totalorder %s39, %s41
      %p45 = scmp.eq.s32.totalorder %s31, 0
      %p46 = por %p44, %p45
      %p47 = scmp.ne.s32.totalorder %s39, %s41
      %p48 = scmp.eq.s32.totalorder %s36, 1
      %p49 = por %p47, %p48
      %p50 = scmp.ne.s32.totalorder %s41, %s42
      %p51 = scmp.eq.s32.totalorder %s36, 0
      %p52 = por %p50, %p51
      %p53 = scmp.ne.s32.totalorder %s41, %s42
      %p54 = scmp.eq.s32.totalorder %s37, 1
      %p55 = por %p53, %p54
      %p57 = scmp.ne.s32.totalorder %s42, %s56
      %p58 = scmp.eq.s32.totalorder %s37, 0
      %p59 = por %p57, %p58
      %s60 = ssub.s32 %s31, %s38
      %p61 = scmp.eq.s32.totalorder %s60, 0
      %s63 = sadd.s32 %s62, 1
      %s64 = scalar_select %p61, %s62, %s63
      %p67 = pneg %p61
      %p68 = scmp.eq.s32.totalorder %s31, 1
      %p69 = por %p67, %p68
      %p70 = scmp.ne.s32.totalorder %s62, %s65
      %p71 = scmp.eq.s32.totalorder %s31, 0
      %p72 = por %p70, %p71
      %p73 = scmp.ne.s32.totalorder %s62, %s65
      %p74 = scmp.eq.s32.totalorder %s36, 1
      %p75 = por %p73, %p74
      %p76 = scmp.ne.s32.totalorder %s65, %s66
      %p77 = scmp.eq.s32.totalorder %s36, 0
      %p78 = por %p76, %p77
      %p79 = scmp.ne.s32.totalorder %s65, %s66
      %p80 = scmp.eq.s32.totalorder %s37, 1
      %p81 = por %p79, %p80
      %p83 = scmp.ne.s32.totalorder %s66, %s82
      %p84 = scmp.eq.s32.totalorder %s37, 0
      %p85 = por %p83, %p84
      %s86 = ssub.s32 %s31, %s38
      %p87 = scmp.eq.s32.totalorder %s86, 0
      %s89 = sadd.s32 %s88, 1
      %s90 = scalar_select %p87, %s88, %s89
      %p93 = pneg %p87
      %p94 = scmp.eq.s32.totalorder %s31, 1
      %p95 = por %p93, %p94
      %p96 = scmp.ne.s32.totalorder %s88, %s91
      %p97 = scmp.eq.s32.totalorder %s31, 0
      %p98 = por %p96, %p97
      %p99 = scmp.ne.s32.totalorder %s88, %s91
      %p100 = scmp.eq.s32.totalorder %s36, 1
      %p101 = por %p99, %p100
      %p102 = scmp.ne.s32.totalorder %s91, %s92
      %p103 = scmp.eq.s32.totalorder %s36, 0
      %p104 = por %p102, %p103
      %p105 = scmp.ne.s32.totalorder %s91, %s92
      %p106 = scmp.eq.s32.totalorder %s37, 1
      %p107 = por %p105, %p106
      %p109 = scmp.ne.s32.totalorder %s92, %s108
      %p110 = scmp.eq.s32.totalorder %s37, 0
      %p111 = por %p109, %p110
      %s112 = ssub.s32 %s31, %s38
      %p113 = scmp.eq.s32.totalorder %s112, 0
      %s115 = sadd.s32 %s114, 1
      %s116 = scalar_select %p113, %s114, %s115
      %p119 = pneg %p113
      %p120 = scmp.eq.s32.totalorder %s31, 1
      %p121 = por %p119, %p120
      %p122 = scmp.ne.s32.totalorder %s114, %s117
      %p123 = scmp.eq.s32.totalorder %s31, 0
      %p124 = por %p122, %p123
      %p125 = scmp.ne.s32.totalorder %s114, %s117
      %p126 = scmp.eq.s32.totalorder %s36, 1
      %p127 = por %p125, %p126
      %p128 = scmp.ne.s32.totalorder %s117, %s118
      %p129 = scmp.eq.s32.totalorder %s36, 0
      %p130 = por %p128, %p129
      %p131 = scmp.ne.s32.totalorder %s117, %s118
      %p132 = scmp.eq.s32.totalorder %s37, 1
      %p133 = por %p131, %p132
      %p135 = scmp.ne.s32.totalorder %s118, %s134
      %p136 = scmp.eq.s32.totalorder %s37, 0
      %p137 = por %p135, %p136
      %s138 = ssub.s32 %s31, %s38
      %p139 = scmp.eq.s32.totalorder %s138, 0
      %s141 = sadd.s32 %s140, 1
      %s142 = scalar_select %p139, %s140, %s141
      %p145 = pneg %p139
      %p146 = scmp.eq.s32.totalorder %s31, 1
      %p147 = por %p145, %p146
      %p148 = scmp.ne.s32.totalorder %s140, %s143
      %p149 = scmp.eq.s32.totalorder %s31, 0
      %p150 = por %p148, %p149
      %p151 = scmp.ne.s32.totalorder %s140, %s143
      %p152 = scmp.eq.s32.totalorder %s36, 1
      %p153 = por %p151, %p152
      %p154 = scmp.ne.s32.totalorder %s143, %s144
      %p155 = scmp.eq.s32.totalorder %s36, 0
      %p156 = por %p154, %p155
      %p157 = scmp.ne.s32.totalorder %s143, %s144
      %p158 = scmp.eq.s32.totalorder %s37, 1
      %p159 = por %p157, %p158
      %p161 = scmp.ne.s32.totalorder %s144, %s160
      %p162 = scmp.eq.s32.totalorder %s37, 0
      %p163 = por %p161, %p162
      %s164 = ssub.s32 %s31, %s38
      %p165 = scmp.eq.s32.totalorder %s164, 0
      %s167 = sadd.s32 %s166, 1
      %s168 = scalar_select %p165, %s166, %s167
      %p171 = pneg %p165
      %p172 = scmp.eq.s32.totalorder %s31, 1
      %p173 = por %p171, %p172
      %p174 = scmp.ne.s32.totalorder %s166, %s169
      %p175 = scmp.eq.s32.totalorder %s31, 0
      %p176 = por %p174, %p175
      %p177 = scmp.ne.s32.totalorder %s166, %s169
      %p178 = scmp.eq.s32.totalorder %s36, 1
      %p179 = por %p177, %p178
      %p180 = scmp.ne.s32.totalorder %s169, %s170
      %p181 = scmp.eq.s32.totalorder %s36, 0
      %p182 = por %p180, %p181
      %p183 = scmp.ne.s32.totalorder %s169, %s170
      %p184 = scmp.eq.s32.totalorder %s37, 1
      %p185 = por %p183, %p184
      %p187 = scmp.ne.s32.totalorder %s170, %s186
      %p188 = scmp.eq.s32.totalorder %s37, 0
      %p189 = por %p187, %p188
      %s190 = ssub.s32 %s31, %s38
      %p191 = scmp.eq.s32.totalorder %s190, 0
      %s193 = sadd.s32 %s192, 1
      %s194 = scalar_select %p191, %s192, %s193
      %p197 = pneg %p191
      %p198 = scmp.eq.s32.totalorder %s31, 1
      %p199 = por %p197, %p198
      %p200 = scmp.ne.s32.totalorder %s192, %s195
      %p201 = scmp.eq.s32.totalorder %s31, 0
      %p202 = por %p200, %p201
      %p203 = scmp.ne.s32.totalorder %s192, %s195
      %p204 = scmp.eq.s32.totalorder %s36, 1
      %p205 = por %p203, %p204
      %p206 = scmp.ne.s32.totalorder %s195, %s196
      %p207 = scmp.eq.s32.totalorder %s36, 0
      %p208 = por %p206, %p207
      %p209 = scmp.ne.s32.totalorder %s195, %s196
      %p210 = scmp.eq.s32.totalorder %s37, 1
      %p211 = por %p209, %p210
      %p213 = scmp.ne.s32.totalorder %s196, %s212
      %p214 = scmp.eq.s32.totalorder %s37, 0
      %p215 = por %p213, %p214
      %s216 = ssub.s32 %s31, %s38
      %p217 = scmp.eq.s32.totalorder %s216, 0
      %s219 = sadd.s32 %s218, 1
      %s220 = scalar_select %p217, %s218, %s219
      %p223 = pneg %p217
      %p224 = scmp.eq.s32.totalorder %s31, 1
      %p225 = por %p223, %p224
      %p226 = scmp.ne.s32.totalorder %s218, %s221
      %p227 = scmp.eq.s32.totalorder %s31, 0
      %p228 = por %p226, %p227
      %p229 = scmp.ne.s32.totalorder %s218, %s221
      %p230 = scmp.eq.s32.totalorder %s36, 1
      %p231 = por %p229, %p230
      %p232 = scmp.ne.s32.totalorder %s221, %s222
      %p233 = scmp.eq.s32.totalorder %s36, 0
      %p234 = por %p232, %p233
      %p235 = scmp.ne.s32.totalorder %s221, %s222
      %p236 = scmp.eq.s32.totalorder %s37, 1
      %p237 = por %p235, %p236
      %p239 = scmp.ne.s32.totalorder %s222, %s238
      %p240 = scmp.eq.s32.totalorder %s37, 0
      %p241 = por %p239, %p240
      %s242 = ssub.s32 %s31, %s38
      %p243 = scmp.eq.s32.totalorder %s242, 0
      %s245 = sadd.s32 %s244, 1
      %s246 = scalar_select %p243, %s244, %s245
      %p249 = pneg %p243
      %p250 = scmp.eq.s32.totalorder %s31, 1
      %p251 = por %p249, %p250
      %p252 = scmp.ne.s32.totalorder %s244, %s247
      %p253 = scmp.eq.s32.totalorder %s31, 0
      %p254 = por %p252, %p253
      %p255 = scmp.ne.s32.totalorder %s244, %s247
      %p256 = scmp.eq.s32.totalorder %s36, 1
      %p257 = por %p255, %p256
      %p258 = scmp.ne.s32.totalorder %s247, %s248
      %p259 = scmp.eq.s32.totalorder %s36, 0
      %p260 = por %p258, %p259
      %p261 = scmp.ne.s32.totalorder %s247, %s248
      %p262 = scmp.eq.s32.totalorder %s37, 1
      %p263 = por %p261, %p262
      %p265 = scmp.ne.s32.totalorder %s248, %s264
      %p266 = scmp.eq.s32.totalorder %s37, 0
      %p267 = por %p265, %p266
      %s268 = ssub.s32 %s31, %s38
      %p269 = scmp.eq.s32.totalorder %s268, 0
      %s271 = sadd.s32 %s270, 1
      %s272 = scalar_select %p269, %s270, %s271
      %p275 = pneg %p269
      %p276 = scmp.eq.s32.totalorder %s31, 1
      %p277 = por %p275, %p276
      %p278 = scmp.ne.s32.totalorder %s270, %s273
      %p279 = scmp.eq.s32.totalorder %s31, 0
      %p280 = por %p278, %p279
      %p281 = scmp.ne.s32.totalorder %s270, %s273
      %p282 = scmp.eq.s32.totalorder %s36, 1
      %p283 = por %p281, %p282
      %p284 = scmp.ne.s32.totalorder %s273, %s274
      %p285 = scmp.eq.s32.totalorder %s36, 0
      %p286 = por %p284, %p285
      %p287 = scmp.ne.s32.totalorder %s273, %s274
      %p288 = scmp.eq.s32.totalorder %s37, 1
      %p289 = por %p287, %p288
      %p291 = scmp.ne.s32.totalorder %s274, %s290
      %p292 = scmp.eq.s32.totalorder %s37, 0
      %p293 = por %p291, %p292
      %p294 = scmp.le.s32.totalorder 1, %s31
      %p295 = scmp.lt.s32.totalorder %s31, 3
      %p296 = pnand %p294, %p295
      %p297 = pneg %p296
      // Predicated region
      $region9: #{betavae_h_forward.3} parent=5 // pred_check
        _
      $region10: #{betavae_h_forward.3} parent=5 // pred_check_branch
        %299 = sbr.rel (%p296) target = $region12
      $region11: #{betavae_h_forward.3} parent=5 // pred_region
        %s300 = ssub.s32 %s31, 1
        // Predicated region
        $region13: #{betavae_h_forward.3} parent=11 // pred_check
          %p301 = pneg %p52
        $region14: #{betavae_h_forward.3} parent=11 // pred_check_branch
          %303 = sbr.rel (%p301) target = $region16
        $region15: #{betavae_h_forward.3} parent=11 // pred_region
          _
        $region16: #{betavae_h_forward.3} parent=11 // pred_fallthru
          _
      $region12: #{betavae_h_forward.3} parent=5 // pred_fallthru
        _
      %p304 = scmp.lt.s32.totalorder %s31, 2
      // Predicated region
      $region17: #{betavae_h_forward.3} parent=5 // pred_check
        %p305 = pneg %p304
      $region18: #{betavae_h_forward.3} parent=5 // pred_check_branch
        %307 = sbr.rel (%p305) target = $region20
      $region19: #{betavae_h_forward.3} parent=5 // pred_region
        // Predicated region
        $region21: #{betavae_h_forward.3} parent=19 // pred_check
          %p308 = pneg %p72
        $region22: #{betavae_h_forward.3} parent=19 // pred_check_branch
          %310 = sbr.rel (%p308) target = $region24
        $region23: #{betavae_h_forward.3} parent=19 // pred_region
          %s311 = sand.u32 %s62, 1
          %s312 = scalar_lea.sflag [#allocation3], %s311
          %s313 = sand.u32 %s62, 1
          %s314 = smul.addr %s313, 2048
          %s315 = scalar_lea.vmem [#allocation2], %s314
          %s316 = smul.u32 16, %s31
          %318 = vsyncadd %s312, 0
          %s319 = smul.addr %s316, 4
          %s320 = scalar_lea.hbm %s1, %s319
          %s321 = sshll.u32 %s320, 4
          %s322 = int_to_ptr.hbm [resolvable:$true] %s321
          %s323 = sshll.u32 %s315, 4
          %s324 = int_to_ptr.vmem [resolvable:$true] %s323
          %329 = dma.hbm_to_vmem [thread:$0]  %s322, 32768, %s324, %s312, 2048, 1024, 64
        $region24: #{betavae_h_forward.3} parent=19 // pred_fallthru
          _
        // Predicated region
        $region25: #{betavae_h_forward.3} parent=19 // pred_check
          %p330 = pneg %p98
        $region26: #{betavae_h_forward.3} parent=19 // pred_check_branch
          %332 = sbr.rel (%p330) target = $region28
        $region27: #{betavae_h_forward.3} parent=19 // pred_region
          %s333 = sand.u32 %s31, 1
          %s334 = scalar_lea.sflag [#allocation6], %s333
          %s335 = sand.u32 %s88, 1
          %s336 = smul.addr %s335, 2048
          %s337 = scalar_lea.vmem [#allocation5], %s336
          %s338 = smul.u32 16, %s31
          %340 = vsyncadd %s334, 0
          %s341 = smul.addr %s338, 4
          %s342 = scalar_lea.hbm %s2, %s341
          %s343 = sshll.u32 %s342, 4
          %s344 = int_to_ptr.hbm [resolvable:$true] %s343
          %s345 = sshll.u32 %s337, 4
          %s346 = int_to_ptr.vmem [resolvable:$true] %s345
          %351 = dma.hbm_to_vmem [thread:$0]  %s344, 32768, %s346, %s334, 2048, 1024, 64
        $region28: #{betavae_h_forward.3} parent=19 // pred_fallthru
          _
        // Predicated region
        $region29: #{betavae_h_forward.3} parent=19 // pred_check
          %p352 = pneg %p124
        $region30: #{betavae_h_forward.3} parent=19 // pred_check_branch
          %354 = sbr.rel (%p352) target = $region32
        $region31: #{betavae_h_forward.3} parent=19 // pred_region
          %s355 = sand.u32 %s31, 1
          %s356 = scalar_lea.sflag [#allocation6], %s355
          %s357 = sand.u32 %s114, 1
          %s358 = smul.addr %s357, 16
          %s359 = scalar_lea.vmem [#allocation7], %s358
          %s360 = smul.u32 16, %s31
          %362 = vsyncadd %s356, 0
          %s363 = scalar_lea.hbm %s3, %s360
          %s365 = sshll.u32 %s363, 4
          %s366 = int_to_ptr.hbm [resolvable:$true] %s365
          %s367 = sshll.u32 %s359, 4
          %s368 = int_to_ptr.vmem [resolvable:$true] %s367
          %370 = dma.hbm_to_vmem [thread:$0]  %s366, 256, %s368, %s356
        $region32: #{betavae_h_forward.3} parent=19 // pred_fallthru
          _
        // Predicated region
        $region33: #{betavae_h_forward.3} parent=19 // pred_check
          %p371 = pneg %p150
        $region34: #{betavae_h_forward.3} parent=19 // pred_check_branch
          %373 = sbr.rel (%p371) target = $region36
        $region35: #{betavae_h_forward.3} parent=19 // pred_region
          %s374 = sand.u32 %s31, 1
          %s375 = scalar_lea.sflag [#allocation9], %s374
          %s376 = sand.u32 %s140, 1
          %s377 = smul.addr %s376, 16
          %s378 = scalar_lea.vmem [#allocation8], %s377
          %s379 = smul.u32 16, %s31
          %381 = vsyncadd %s375, 0
          %s382 = scalar_lea.hbm %s4, %s379
          %s384 = sshll.u32 %s382, 4
          %s385 = int_to_ptr.hbm [resolvable:$true] %s384
          %s386 = sshll.u32 %s378, 4
          %s387 = int_to_ptr.vmem [resolvable:$true] %s386
          %389 = dma.hbm_to_vmem [thread:$0]  %s385, 256, %s387, %s375
        $region36: #{betavae_h_forward.3} parent=19 // pred_fallthru
          _
        // Predicated region
        $region37: #{betavae_h_forward.3} parent=19 // pred_check
          %p390 = pneg %p176
        $region38: #{betavae_h_forward.3} parent=19 // pred_check_branch
          %392 = sbr.rel (%p390) target = $region40
        $region39: #{betavae_h_forward.3} parent=19 // pred_region
          %s393 = sand.u32 %s31, 1
          %s394 = scalar_lea.sflag [#allocation9], %s393
          %s395 = sand.u32 %s166, 1
          %s396 = smul.addr %s395, 32
          %s397 = scalar_lea.vmem [#allocation10], %s396
          %s398 = smul.u32 16, %s31
          %400 = vsyncadd %s394, 0
          %s401 = smul.addr %s398, 2
          %s402 = scalar_lea.hbm %s5, %s401
          %s404 = sshll.u32 %s402, 4
          %s405 = int_to_ptr.hbm [resolvable:$true] %s404
          %s406 = sshll.u32 %s397, 4
          %s407 = int_to_ptr.vmem [resolvable:$true] %s406
          %409 = dma.hbm_to_vmem [thread:$0]  %s405, 512, %s407, %s394
        $region40: #{betavae_h_forward.3} parent=19 // pred_fallthru
          _
      $region20: #{betavae_h_forward.3} parent=5 // pred_fallthru
        _
      %p410 = scmp.le.s32.totalorder 1, %s31
      %p411 = scmp.lt.s32.totalorder %s31, 3
      %p412 = pnand %p410, %p411
      %p413 = pneg %p412
      // Predicated region
      $region41: #{betavae_h_forward.3} parent=5 // pred_check
        _
      $region42: #{betavae_h_forward.3} parent=5 // pred_check_branch
        %415 = sbr.rel (%p412) target = $region44
      $region43: #{betavae_h_forward.3} parent=5 // pred_region
        %s416 = ssub.s32 %s31, 1
        %s417 = sand.u32 %s65, 1
        %s418 = scalar_lea.sflag [#allocation3], %s417
        %s419 = sand.u32 %s65, 1
        %s420 = smul.addr %s419, 2048
        %s421 = scalar_lea.vmem [#allocation2], %s420
        // Predicated region
        $region45: #{betavae_h_forward.3} parent=43 // pred_check
          %p422 = pneg %p78
        $region46: #{betavae_h_forward.3} parent=43 // pred_check_branch
          %424 = sbr.rel (%p422) target = $region48
        $region47: #{betavae_h_forward.3} parent=43 // pred_region
          %426 = dma.done %s418, 32768
        $region48: #{betavae_h_forward.3} parent=43 // pred_fallthru
          _
        %s427 = sand.u32 %s36, 1
        %s428 = scalar_lea.sflag [#allocation6], %s427
        %s429 = sand.u32 %s91, 1
        %s430 = smul.addr %s429, 2048
        %s431 = scalar_lea.vmem [#allocation5], %s430
        // Predicated region
        $region49: #{betavae_h_forward.3} parent=43 // pred_check
          %p432 = pneg %p104
        $region50: #{betavae_h_forward.3} parent=43 // pred_check_branch
          %434 = sbr.rel (%p432) target = $region52
        $region51: #{betavae_h_forward.3} parent=43 // pred_region
          %436 = dma.done %s428, 32768
        $region52: #{betavae_h_forward.3} parent=43 // pred_fallthru
          _
        %s437 = sand.u32 %s36, 1
        %s438 = scalar_lea.sflag [#allocation6], %s437
        %s439 = sand.u32 %s117, 1
        %s440 = smul.addr %s439, 16
        %s441 = scalar_lea.vmem [#allocation7], %s440
        // Predicated region
        $region53: #{betavae_h_forward.3} parent=43 // pred_check
          %p442 = pneg %p130
        $region54: #{betavae_h_forward.3} parent=43 // pred_check_branch
          %444 = sbr.rel (%p442) target = $region56
        $region55: #{betavae_h_forward.3} parent=43 // pred_region
          %446 = dma.done %s438, 256
        $region56: #{betavae_h_forward.3} parent=43 // pred_fallthru
          _
        %s447 = sand.u32 %s36, 1
        %s448 = scalar_lea.sflag [#allocation9], %s447
        %s449 = sand.u32 %s143, 1
        %s450 = smul.addr %s449, 16
        %s451 = scalar_lea.vmem [#allocation8], %s450
        // Predicated region
        $region57: #{betavae_h_forward.3} parent=43 // pred_check
          %p452 = pneg %p156
        $region58: #{betavae_h_forward.3} parent=43 // pred_check_branch
          %454 = sbr.rel (%p452) target = $region60
        $region59: #{betavae_h_forward.3} parent=43 // pred_region
          %456 = dma.done %s448, 256
        $region60: #{betavae_h_forward.3} parent=43 // pred_fallthru
          _
        %s457 = sand.u32 %s36, 1
        %s458 = scalar_lea.sflag [#allocation9], %s457
        %s459 = sand.u32 %s169, 1
        %s460 = smul.addr %s459, 32
        %s461 = scalar_lea.vmem [#allocation10], %s460
        // Predicated region
        $region61: #{betavae_h_forward.3} parent=43 // pred_check
          %p462 = pneg %p182
        $region62: #{betavae_h_forward.3} parent=43 // pred_check_branch
          %464 = sbr.rel (%p462) target = $region64
        $region63: #{betavae_h_forward.3} parent=43 // pred_region
          %466 = dma.done %s458, 512
        $region64: #{betavae_h_forward.3} parent=43 // pred_fallthru
          _
        %p467 = pneg %p52
        %p468 = pneg %p49
        %s469 = sand.u32 %s65, 1
        %s470 = scalar_lea.sflag [#allocation3], %s469
        %s471 = sand.u32 %s65, 1
        %s472 = smul.addr %s471, 2048
        %s473 = scalar_lea.vmem [#allocation2], %s472
        %p474 = pneg %p78
        %p475 = pneg %p75
        %s476 = sand.u32 %s36, 1
        %s477 = scalar_lea.sflag [#allocation6], %s476
        %s478 = sand.u32 %s91, 1
        %s479 = smul.addr %s478, 2048
        %s480 = scalar_lea.vmem [#allocation5], %s479
        %p481 = pneg %p104
        %p482 = pneg %p101
        %s483 = sand.u32 %s36, 1
        %s484 = scalar_lea.sflag [#allocation6], %s483
        %s485 = sand.u32 %s117, 1
        %s486 = smul.addr %s485, 16
        %s487 = scalar_lea.vmem [#allocation7], %s486
        %p488 = pneg %p130
        %p489 = pneg %p127
        %s490 = sand.u32 %s36, 1
        %s491 = scalar_lea.sflag [#allocation9], %s490
        %s492 = sand.u32 %s143, 1
        %s493 = smul.addr %s492, 16
        %s494 = scalar_lea.vmem [#allocation8], %s493
        %p495 = pneg %p156
        %p496 = pneg %p153
        %s497 = sand.u32 %s36, 1
        %s498 = scalar_lea.sflag [#allocation9], %s497
        %s499 = sand.u32 %s169, 1
        %s500 = smul.addr %s499, 32
        %s501 = scalar_lea.vmem [#allocation10], %s500
        %p502 = pneg %p182
        %p503 = pneg %p179
        %p504 = pneg %p208
        %p505 = pneg %p205
        %s506 = smul.u32 16, %s36
        %p507 = scmp.lt.s32.totalorder %s506, 31
        %s508 = scalar_select %p507, %s506, 31
        %s509 = smul.addr %s508, 2
        %s510 = scalar_lea.vmem %s6, %s509
        %p511 = pneg %p234
        %p512 = pneg %p231
        %s513 = sand.u32 %s221, 1
        %s514 = scalar_lea.sflag [#allocation4], %s513
        %s515 = sand.u32 %s221, 1
        %s516 = smul.addr %s515, 32
        %s517 = scalar_lea.vmem [#allocation11], %s516
        %p518 = pneg %p260
        %p519 = pneg %p257
        %s520 = sand.u32 %s247, 1
        %s521 = scalar_lea.sflag [#allocation13], %s520
        %s522 = sand.u32 %s247, 1
        %s523 = smul.addr %s522, 32
        %s524 = scalar_lea.vmem [#allocation12], %s523
        %p525 = pneg %p286
        %p526 = pneg %p283
        %p527 = scmp.lt.s32.totalorder %s36, 1
        %s528 = scalar_select %p527, %s36, 1
        %s529 = scalar_lea.vmem %s9, %s528
        %s530 = smul.u32 16, %s36
        %s531 = smul.u32 16, %s36
        %s532 = smul.u32 16, %s36
        %s533 = smul.u32 16, %s36
        %s534 = smul.u32 16, %s36
        %s535 = smul.u32 16, %s36
        %p536 = scmp.lt.s32.totalorder %s535, 31
        %s537 = scalar_select %p536, %s535, 31
        %s538 = smul.addr %s537, 2
        %s539 = scalar_lea.vmem %s6, %s538
        %s540 = smul.u32 16, %s36
        %s541 = smul.u32 16, %s36
        %s542 = smul.u32 16, %s36
        %p543 = scmp.lt.s32.totalorder %s36, 1
        %s544 = scalar_select %p543, %s36, 1
        %s545 = scalar_lea.vmem %s9, %s544
        %v546 = vld [vmem:[%s0] sm:$0xf]
        %v547 = vld [vmem:[%s421] sm:$0xff]
        %v548 = vld [vmem:[%s421 + $0x8] sm:$0xff]
        %v549 = vld [vmem:[%s421 + $0x10] sm:$0xff]
        %v550 = vld [vmem:[%s421 + $0x18] sm:$0xff]
        %v551 = vld [vmem:[%s421 + $0x20] sm:$0xff]
        %v552 = vld [vmem:[%s421 + $0x28] sm:$0xff]
        %v553 = vld [vmem:[%s421 + $0x30] sm:$0xff]
        %v554 = vld [vmem:[%s421 + $0x38] sm:$0xff]
        %v555 = vld [vmem:[%s421 + $0x40] sm:$0xff]
        %v556 = vld [vmem:[%s421 + $0x48] sm:$0xff]
        %v557 = vld [vmem:[%s421 + $0x50] sm:$0xff]
        %v558 = vld [vmem:[%s421 + $0x58] sm:$0xff]
        %v559 = vld [vmem:[%s421 + $0x60] sm:$0xff]
        %v560 = vld [vmem:[%s421 + $0x68] sm:$0xff]
        %v561 = vld [vmem:[%s421 + $0x70] sm:$0xff]
        %v562 = vld [vmem:[%s421 + $0x78] sm:$0xff]
        %v563 = vld [vmem:[%s421 + $0x80] sm:$0xff]
        %v564 = vld [vmem:[%s421 + $0x88] sm:$0xff]
        %v565 = vld [vmem:[%s421 + $0x90] sm:$0xff]
        %v566 = vld [vmem:[%s421 + $0x98] sm:$0xff]
        %v567 = vld [vmem:[%s421 + $0xa0] sm:$0xff]
        %v568 = vld [vmem:[%s421 + $0xa8] sm:$0xff]
        %v569 = vld [vmem:[%s421 + $0xb0] sm:$0xff]
        %v570 = vld [vmem:[%s421 + $0xb8] sm:$0xff]
        %v571 = vld [vmem:[%s421 + $0xc0] sm:$0xff]
        %v572 = vld [vmem:[%s421 + $0xc8] sm:$0xff]
        %v573 = vld [vmem:[%s421 + $0xd0] sm:$0xff]
        %v574 = vld [vmem:[%s421 + $0xd8] sm:$0xff]
        %v575 = vld [vmem:[%s421 + $0xe0] sm:$0xff]
        %v576 = vld [vmem:[%s421 + $0xe8] sm:$0xff]
        %v577 = vld [vmem:[%s421 + $0xf0] sm:$0xff]
        %v578 = vld [vmem:[%s421 + $0xf8] sm:$0xff]
        %v579 = vld [vmem:[%s421 + $0x100] sm:$0xff]
        %v580 = vld [vmem:[%s421 + $0x108] sm:$0xff]
        %v581 = vld [vmem:[%s421 + $0x110] sm:$0xff]
        %v582 = vld [vmem:[%s421 + $0x118] sm:$0xff]
        %v583 = vld [vmem:[%s421 + $0x120] sm:$0xff]
        %v584 = vld [vmem:[%s421 + $0x128] sm:$0xff]
        %v585 = vld [vmem:[%s421 + $0x130] sm:$0xff]
        %v586 = vld [vmem:[%s421 + $0x138] sm:$0xff]
        %v587 = vld [vmem:[%s421 + $0x140] sm:$0xff]
        %v588 = vld [vmem:[%s421 + $0x148] sm:$0xff]
        %v589 = vld [vmem:[%s421 + $0x150] sm:$0xff]
        %v590 = vld [vmem:[%s421 + $0x158] sm:$0xff]
        %v591 = vld [vmem:[%s421 + $0x160] sm:$0xff]
        %v592 = vld [vmem:[%s421 + $0x168] sm:$0xff]
        %v593 = vld [vmem:[%s421 + $0x170] sm:$0xff]
        %v594 = vld [vmem:[%s421 + $0x178] sm:$0xff]
        %v595 = vld [vmem:[%s421 + $0x180] sm:$0xff]
        %v596 = vld [vmem:[%s421 + $0x188] sm:$0xff]
        %v597 = vld [vmem:[%s421 + $0x190] sm:$0xff]
        %v598 = vld [vmem:[%s421 + $0x198] sm:$0xff]
        %v599 = vld [vmem:[%s421 + $0x1a0] sm:$0xff]
        %v600 = vld [vmem:[%s421 + $0x1a8] sm:$0xff]
        %v601 = vld [vmem:[%s421 + $0x1b0] sm:$0xff]
        %v602 = vld [vmem:[%s421 + $0x1b8] sm:$0xff]
        %v603 = vld [vmem:[%s421 + $0x1c0] sm:$0xff]
        %v604 = vld [vmem:[%s421 + $0x1c8] sm:$0xff]
        %v605 = vld [vmem:[%s421 + $0x1d0] sm:$0xff]
        %v606 = vld [vmem:[%s421 + $0x1d8] sm:$0xff]
        %v607 = vld [vmem:[%s421 + $0x1e0] sm:$0xff]
        %v608 = vld [vmem:[%s421 + $0x1e8] sm:$0xff]
        %v609 = vld [vmem:[%s421 + $0x1f0] sm:$0xff]
        %v610 = vld [vmem:[%s421 + $0x1f8] sm:$0xff]
        %v611 = vld [vmem:[%s421 + $0x200] sm:$0xff]
        %v612 = vld [vmem:[%s421 + $0x208] sm:$0xff]
        %v613 = vld [vmem:[%s421 + $0x210] sm:$0xff]
        %v614 = vld [vmem:[%s421 + $0x218] sm:$0xff]
        %v615 = vld [vmem:[%s421 + $0x220] sm:$0xff]
        %v616 = vld [vmem:[%s421 + $0x228] sm:$0xff]
        %v617 = vld [vmem:[%s421 + $0x230] sm:$0xff]
        %v618 = vld [vmem:[%s421 + $0x238] sm:$0xff]
        %v619 = vld [vmem:[%s421 + $0x240] sm:$0xff]
        %v620 = vld [vmem:[%s421 + $0x248] sm:$0xff]
        %v621 = vld [vmem:[%s421 + $0x250] sm:$0xff]
        %v622 = vld [vmem:[%s421 + $0x258] sm:$0xff]
        %v623 = vld [vmem:[%s421 + $0x260] sm:$0xff]
        %v624 = vld [vmem:[%s421 + $0x268] sm:$0xff]
        %v625 = vld [vmem:[%s421 + $0x270] sm:$0xff]
        %v626 = vld [vmem:[%s421 + $0x278] sm:$0xff]
        %v627 = vld [vmem:[%s421 + $0x280] sm:$0xff]
        %v628 = vld [vmem:[%s421 + $0x288] sm:$0xff]
        %v629 = vld [vmem:[%s421 + $0x290] sm:$0xff]
        %v630 = vld [vmem:[%s421 + $0x298] sm:$0xff]
        %v631 = vld [vmem:[%s421 + $0x2a0] sm:$0xff]
        %v632 = vld [vmem:[%s421 + $0x2a8] sm:$0xff]
        %v633 = vld [vmem:[%s421 + $0x2b0] sm:$0xff]
        %v634 = vld [vmem:[%s421 + $0x2b8] sm:$0xff]
        %v635 = vld [vmem:[%s421 + $0x2c0] sm:$0xff]
        %v636 = vld [vmem:[%s421 + $0x2c8] sm:$0xff]
        %v637 = vld [vmem:[%s421 + $0x2d0] sm:$0xff]
        %v638 = vld [vmem:[%s421 + $0x2d8] sm:$0xff]
        %v639 = vld [vmem:[%s421 + $0x2e0] sm:$0xff]
        %v640 = vld [vmem:[%s421 + $0x2e8] sm:$0xff]
        %v641 = vld [vmem:[%s421 + $0x2f0] sm:$0xff]
        %v642 = vld [vmem:[%s421 + $0x2f8] sm:$0xff]
        %v643 = vld [vmem:[%s421 + $0x300] sm:$0xff]
        %v644 = vld [vmem:[%s421 + $0x308] sm:$0xff]
        %v645 = vld [vmem:[%s421 + $0x310] sm:$0xff]
        %v646 = vld [vmem:[%s421 + $0x318] sm:$0xff]
        %v647 = vld [vmem:[%s421 + $0x320] sm:$0xff]
        %v648 = vld [vmem:[%s421 + $0x328] sm:$0xff]
        %v649 = vld [vmem:[%s421 + $0x330] sm:$0xff]
        %v650 = vld [vmem:[%s421 + $0x338] sm:$0xff]
        %v651 = vld [vmem:[%s421 + $0x340] sm:$0xff]
        %v652 = vld [vmem:[%s421 + $0x348] sm:$0xff]
        %v653 = vld [vmem:[%s421 + $0x350] sm:$0xff]
        %v654 = vld [vmem:[%s421 + $0x358] sm:$0xff]
        %v655 = vld [vmem:[%s421 + $0x360] sm:$0xff]
        %v656 = vld [vmem:[%s421 + $0x368] sm:$0xff]
        %v657 = vld [vmem:[%s421 + $0x370] sm:$0xff]
        %v658 = vld [vmem:[%s421 + $0x378] sm:$0xff]
        %v659 = vld [vmem:[%s421 + $0x380] sm:$0xff]
        %v660 = vld [vmem:[%s421 + $0x388] sm:$0xff]
        %v661 = vld [vmem:[%s421 + $0x390] sm:$0xff]
        %v662 = vld [vmem:[%s421 + $0x398] sm:$0xff]
        %v663 = vld [vmem:[%s421 + $0x3a0] sm:$0xff]
        %v664 = vld [vmem:[%s421 + $0x3a8] sm:$0xff]
        %v665 = vld [vmem:[%s421 + $0x3b0] sm:$0xff]
        %v666 = vld [vmem:[%s421 + $0x3b8] sm:$0xff]
        %v667 = vld [vmem:[%s421 + $0x3c0] sm:$0xff]
        %v668 = vld [vmem:[%s421 + $0x3c8] sm:$0xff]
        %v669 = vld [vmem:[%s421 + $0x3d0] sm:$0xff]
        %v670 = vld [vmem:[%s421 + $0x3d8] sm:$0xff]
        %v671 = vld [vmem:[%s421 + $0x3e0] sm:$0xff]
        %v672 = vld [vmem:[%s421 + $0x3e8] sm:$0xff]
        %v673 = vld [vmem:[%s421 + $0x3f0] sm:$0xff]
        %v674 = vld [vmem:[%s421 + $0x3f8] sm:$0xff]
        %v675 = vld [vmem:[%s421 + $0x400] sm:$0xff]
        %v676 = vld [vmem:[%s421 + $0x408] sm:$0xff]
        %v677 = vld [vmem:[%s421 + $0x410] sm:$0xff]
        %v678 = vld [vmem:[%s421 + $0x418] sm:$0xff]
        %v679 = vld [vmem:[%s421 + $0x420] sm:$0xff]
        %v680 = vld [vmem:[%s421 + $0x428] sm:$0xff]
        %v681 = vld [vmem:[%s421 + $0x430] sm:$0xff]
        %v682 = vld [vmem:[%s421 + $0x438] sm:$0xff]
        %v683 = vld [vmem:[%s421 + $0x440] sm:$0xff]
        %v684 = vld [vmem:[%s421 + $0x448] sm:$0xff]
        %v685 = vld [vmem:[%s421 + $0x450] sm:$0xff]
        %v686 = vld [vmem:[%s421 + $0x458] sm:$0xff]
        %v687 = vld [vmem:[%s421 + $0x460] sm:$0xff]
        %v688 = vld [vmem:[%s421 + $0x468] sm:$0xff]
        %v689 = vld [vmem:[%s421 + $0x470] sm:$0xff]
        %v690 = vld [vmem:[%s421 + $0x478] sm:$0xff]
        %v691 = vld [vmem:[%s421 + $0x480] sm:$0xff]
        %v692 = vld [vmem:[%s421 + $0x488] sm:$0xff]
        %v693 = vld [vmem:[%s421 + $0x490] sm:$0xff]
        %v694 = vld [vmem:[%s421 + $0x498] sm:$0xff]
        %v695 = vld [vmem:[%s421 + $0x4a0] sm:$0xff]
        %v696 = vld [vmem:[%s421 + $0x4a8] sm:$0xff]
        %v697 = vld [vmem:[%s421 + $0x4b0] sm:$0xff]
        %v698 = vld [vmem:[%s421 + $0x4b8] sm:$0xff]
        %v699 = vld [vmem:[%s421 + $0x4c0] sm:$0xff]
        %v700 = vld [vmem:[%s421 + $0x4c8] sm:$0xff]
        %v701 = vld [vmem:[%s421 + $0x4d0] sm:$0xff]
        %v702 = vld [vmem:[%s421 + $0x4d8] sm:$0xff]
        %v703 = vld [vmem:[%s421 + $0x4e0] sm:$0xff]
        %v704 = vld [vmem:[%s421 + $0x4e8] sm:$0xff]
        %v705 = vld [vmem:[%s421 + $0x4f0] sm:$0xff]
        %v706 = vld [vmem:[%s421 + $0x4f8] sm:$0xff]
        %v707 = vld [vmem:[%s421 + $0x500] sm:$0xff]
        %v708 = vld [vmem:[%s421 + $0x508] sm:$0xff]
        %v709 = vld [vmem:[%s421 + $0x510] sm:$0xff]
        %v710 = vld [vmem:[%s421 + $0x518] sm:$0xff]
        %v711 = vld [vmem:[%s421 + $0x520] sm:$0xff]
        %v712 = vld [vmem:[%s421 + $0x528] sm:$0xff]
        %v713 = vld [vmem:[%s421 + $0x530] sm:$0xff]
        %v714 = vld [vmem:[%s421 + $0x538] sm:$0xff]
        %v715 = vld [vmem:[%s421 + $0x540] sm:$0xff]
        %v716 = vld [vmem:[%s421 + $0x548] sm:$0xff]
        %v717 = vld [vmem:[%s421 + $0x550] sm:$0xff]
        %v718 = vld [vmem:[%s421 + $0x558] sm:$0xff]
        %v719 = vld [vmem:[%s421 + $0x560] sm:$0xff]
        %v720 = vld [vmem:[%s421 + $0x568] sm:$0xff]
        %v721 = vld [vmem:[%s421 + $0x570] sm:$0xff]
        %v722 = vld [vmem:[%s421 + $0x578] sm:$0xff]
        %v723 = vld [vmem:[%s421 + $0x580] sm:$0xff]
        %v724 = vld [vmem:[%s421 + $0x588] sm:$0xff]
        %v725 = vld [vmem:[%s421 + $0x590] sm:$0xff]
        %v726 = vld [vmem:[%s421 + $0x598] sm:$0xff]
        %v727 = vld [vmem:[%s421 + $0x5a0] sm:$0xff]
        %v728 = vld [vmem:[%s421 + $0x5a8] sm:$0xff]
        %v729 = vld [vmem:[%s421 + $0x5b0] sm:$0xff]
        %v730 = vld [vmem:[%s421 + $0x5b8] sm:$0xff]
        %v731 = vld [vmem:[%s421 + $0x5c0] sm:$0xff]
        %v732 = vld [vmem:[%s421 + $0x5c8] sm:$0xff]
        %v733 = vld [vmem:[%s421 + $0x5d0] sm:$0xff]
        %v734 = vld [vmem:[%s421 + $0x5d8] sm:$0xff]
        %v735 = vld [vmem:[%s421 + $0x5e0] sm:$0xff]
        %v736 = vld [vmem:[%s421 + $0x5e8] sm:$0xff]
        %v737 = vld [vmem:[%s421 + $0x5f0] sm:$0xff]
        %v738 = vld [vmem:[%s421 + $0x5f8] sm:$0xff]
        %v739 = vld [vmem:[%s421 + $0x600] sm:$0xff]
        %v740 = vld [vmem:[%s421 + $0x608] sm:$0xff]
        %v741 = vld [vmem:[%s421 + $0x610] sm:$0xff]
        %v742 = vld [vmem:[%s421 + $0x618] sm:$0xff]
        %v743 = vld [vmem:[%s421 + $0x620] sm:$0xff]
        %v744 = vld [vmem:[%s421 + $0x628] sm:$0xff]
        %v745 = vld [vmem:[%s421 + $0x630] sm:$0xff]
        %v746 = vld [vmem:[%s421 + $0x638] sm:$0xff]
        %v747 = vld [vmem:[%s421 + $0x640] sm:$0xff]
        %v748 = vld [vmem:[%s421 + $0x648] sm:$0xff]
        %v749 = vld [vmem:[%s421 + $0x650] sm:$0xff]
        %v750 = vld [vmem:[%s421 + $0x658] sm:$0xff]
        %v751 = vld [vmem:[%s421 + $0x660] sm:$0xff]
        %v752 = vld [vmem:[%s421 + $0x668] sm:$0xff]
        %v753 = vld [vmem:[%s421 + $0x670] sm:$0xff]
        %v754 = vld [vmem:[%s421 + $0x678] sm:$0xff]
        %v755 = vld [vmem:[%s421 + $0x680] sm:$0xff]
        %v756 = vld [vmem:[%s421 + $0x688] sm:$0xff]
        %v757 = vld [vmem:[%s421 + $0x690] sm:$0xff]
        %v758 = vld [vmem:[%s421 + $0x698] sm:$0xff]
        %v759 = vld [vmem:[%s421 + $0x6a0] sm:$0xff]
        %v760 = vld [vmem:[%s421 + $0x6a8] sm:$0xff]
        %v761 = vld [vmem:[%s421 + $0x6b0] sm:$0xff]
        %v762 = vld [vmem:[%s421 + $0x6b8] sm:$0xff]
        %v763 = vld [vmem:[%s421 + $0x6c0] sm:$0xff]
        %v764 = vld [vmem:[%s421 + $0x6c8] sm:$0xff]
        %v765 = vld [vmem:[%s421 + $0x6d0] sm:$0xff]
        %v766 = vld [vmem:[%s421 + $0x6d8] sm:$0xff]
        %v767 = vld [vmem:[%s421 + $0x6e0] sm:$0xff]
        %v768 = vld [vmem:[%s421 + $0x6e8] sm:$0xff]
        %v769 = vld [vmem:[%s421 + $0x6f0] sm:$0xff]
        %v770 = vld [vmem:[%s421 + $0x6f8] sm:$0xff]
        %v771 = vld [vmem:[%s421 + $0x700] sm:$0xff]
        %v772 = vld [vmem:[%s421 + $0x708] sm:$0xff]
        %v773 = vld [vmem:[%s421 + $0x710] sm:$0xff]
        %v774 = vld [vmem:[%s421 + $0x718] sm:$0xff]
        %v775 = vld [vmem:[%s421 + $0x720] sm:$0xff]
        %v776 = vld [vmem:[%s421 + $0x728] sm:$0xff]
        %v777 = vld [vmem:[%s421 + $0x730] sm:$0xff]
        %v778 = vld [vmem:[%s421 + $0x738] sm:$0xff]
        %v779 = vld [vmem:[%s421 + $0x740] sm:$0xff]
        %v780 = vld [vmem:[%s421 + $0x748] sm:$0xff]
        %v781 = vld [vmem:[%s421 + $0x750] sm:$0xff]
        %v782 = vld [vmem:[%s421 + $0x758] sm:$0xff]
        %v783 = vld [vmem:[%s421 + $0x760] sm:$0xff]
        %v784 = vld [vmem:[%s421 + $0x768] sm:$0xff]
        %v785 = vld [vmem:[%s421 + $0x770] sm:$0xff]
        %v786 = vld [vmem:[%s421 + $0x778] sm:$0xff]
        %v787 = vld [vmem:[%s421 + $0x780] sm:$0xff]
        %v788 = vld [vmem:[%s421 + $0x788] sm:$0xff]
        %v789 = vld [vmem:[%s421 + $0x790] sm:$0xff]
        %v790 = vld [vmem:[%s421 + $0x798] sm:$0xff]
        %v791 = vld [vmem:[%s421 + $0x7a0] sm:$0xff]
        %v792 = vld [vmem:[%s421 + $0x7a8] sm:$0xff]
        %v793 = vld [vmem:[%s421 + $0x7b0] sm:$0xff]
        %v794 = vld [vmem:[%s421 + $0x7b8] sm:$0xff]
        %v795 = vld [vmem:[%s421 + $0x7c0] sm:$0xff]
        %v796 = vld [vmem:[%s421 + $0x7c8] sm:$0xff]
        %v797 = vld [vmem:[%s421 + $0x7d0] sm:$0xff]
        %v798 = vld [vmem:[%s421 + $0x7d8] sm:$0xff]
        %v799 = vld [vmem:[%s421 + $0x7e0] sm:$0xff]
        %v800 = vld [vmem:[%s421 + $0x7e8] sm:$0xff]
        %v801 = vld [vmem:[%s421 + $0x7f0] sm:$0xff]
        %v802 = vld [vmem:[%s421 + $0x7f8] sm:$0xff]
        %v803 = vunpack.c.l.bf16 %v547
        %v804 = vunpack.c.h.bf16 %v547
        %v805 = vunpack.c.l.bf16 %v548
        %v806 = vunpack.c.h.bf16 %v548
        %v807 = vunpack.c.l.bf16 %v549
        %v808 = vunpack.c.h.bf16 %v549
        %v809 = vunpack.c.l.bf16 %v550
        %v810 = vunpack.c.h.bf16 %v550
        %v811 = vunpack.c.l.bf16 %v551
        %v812 = vunpack.c.h.bf16 %v551
        %v813 = vunpack.c.l.bf16 %v552
        %v814 = vunpack.c.h.bf16 %v552
        %v815 = vunpack.c.l.bf16 %v553
        %v816 = vunpack.c.h.bf16 %v553
        %v817 = vunpack.c.l.bf16 %v554
        %v818 = vunpack.c.h.bf16 %v554
        %v819 = vunpack.c.l.bf16 %v555
        %v820 = vunpack.c.h.bf16 %v555
        %v821 = vunpack.c.l.bf16 %v556
        %v822 = vunpack.c.h.bf16 %v556
        %v823 = vunpack.c.l.bf16 %v557
        %v824 = vunpack.c.h.bf16 %v557
        %v825 = vunpack.c.l.bf16 %v558
        %v826 = vunpack.c.h.bf16 %v558
        %v827 = vunpack.c.l.bf16 %v559
        %v828 = vunpack.c.h.bf16 %v559
        %v829 = vunpack.c.l.bf16 %v560
        %v830 = vunpack.c.h.bf16 %v560
        %v831 = vunpack.c.l.bf16 %v561
        %v832 = vunpack.c.h.bf16 %v561
        %v833 = vunpack.c.l.bf16 %v562
        %v834 = vunpack.c.h.bf16 %v562
        %v835 = vunpack.c.l.bf16 %v563
        %v836 = vunpack.c.h.bf16 %v563
        %v837 = vunpack.c.l.bf16 %v564
        %v838 = vunpack.c.h.bf16 %v564
        %v839 = vunpack.c.l.bf16 %v565
        %v840 = vunpack.c.h.bf16 %v565
        %v841 = vunpack.c.l.bf16 %v566
        %v842 = vunpack.c.h.bf16 %v566
        %v843 = vunpack.c.l.bf16 %v567
        %v844 = vunpack.c.h.bf16 %v567
        %v845 = vunpack.c.l.bf16 %v568
        %v846 = vunpack.c.h.bf16 %v568
        %v847 = vunpack.c.l.bf16 %v569
        %v848 = vunpack.c.h.bf16 %v569
        %v849 = vunpack.c.l.bf16 %v570
        %v850 = vunpack.c.h.bf16 %v570
        %v851 = vunpack.c.l.bf16 %v571
        %v852 = vunpack.c.h.bf16 %v571
        %v853 = vunpack.c.l.bf16 %v572
        %v854 = vunpack.c.h.bf16 %v572
        %v855 = vunpack.c.l.bf16 %v573
        %v856 = vunpack.c.h.bf16 %v573
        %v857 = vunpack.c.l.bf16 %v574
        %v858 = vunpack.c.h.bf16 %v574
        %v859 = vunpack.c.l.bf16 %v575
        %v860 = vunpack.c.h.bf16 %v575
        %v861 = vunpack.c.l.bf16 %v576
        %v862 = vunpack.c.h.bf16 %v576
        %v863 = vunpack.c.l.bf16 %v577
        %v864 = vunpack.c.h.bf16 %v577
        %v865 = vunpack.c.l.bf16 %v578
        %v866 = vunpack.c.h.bf16 %v578
        %v867 = vunpack.c.l.bf16 %v579
        %v868 = vunpack.c.h.bf16 %v579
        %v869 = vunpack.c.l.bf16 %v580
        %v870 = vunpack.c.h.bf16 %v580
        %v871 = vunpack.c.l.bf16 %v581
        %v872 = vunpack.c.h.bf16 %v581
        %v873 = vunpack.c.l.bf16 %v582
        %v874 = vunpack.c.h.bf16 %v582
        %v875 = vunpack.c.l.bf16 %v583
        %v876 = vunpack.c.h.bf16 %v583
        %v877 = vunpack.c.l.bf16 %v584
        %v878 = vunpack.c.h.bf16 %v584
        %v879 = vunpack.c.l.bf16 %v585
        %v880 = vunpack.c.h.bf16 %v585
        %v881 = vunpack.c.l.bf16 %v586
        %v882 = vunpack.c.h.bf16 %v586
        %v883 = vunpack.c.l.bf16 %v587
        %v884 = vunpack.c.h.bf16 %v587
        %v885 = vunpack.c.l.bf16 %v588
        %v886 = vunpack.c.h.bf16 %v588
        %v887 = vunpack.c.l.bf16 %v589
        %v888 = vunpack.c.h.bf16 %v589
        %v889 = vunpack.c.l.bf16 %v590
        %v890 = vunpack.c.h.bf16 %v590
        %v891 = vunpack.c.l.bf16 %v591
        %v892 = vunpack.c.h.bf16 %v591
        %v893 = vunpack.c.l.bf16 %v592
        %v894 = vunpack.c.h.bf16 %v592
        %v895 = vunpack.c.l.bf16 %v593
        %v896 = vunpack.c.h.bf16 %v593
        %v897 = vunpack.c.l.bf16 %v594
        %v898 = vunpack.c.h.bf16 %v594
        %v899 = vunpack.c.l.bf16 %v595
        %v900 = vunpack.c.h.bf16 %v595
        %v901 = vunpack.c.l.bf16 %v596
        %v902 = vunpack.c.h.bf16 %v596
        %v903 = vunpack.c.l.bf16 %v597
        %v904 = vunpack.c.h.bf16 %v597
        %v905 = vunpack.c.l.bf16 %v598
        %v906 = vunpack.c.h.bf16 %v598
        %v907 = vunpack.c.l.bf16 %v599
        %v908 = vunpack.c.h.bf16 %v599
        %v909 = vunpack.c.l.bf16 %v600
        %v910 = vunpack.c.h.bf16 %v600
        %v911 = vunpack.c.l.bf16 %v601
        %v912 = vunpack.c.h.bf16 %v601
        %v913 = vunpack.c.l.bf16 %v602
        %v914 = vunpack.c.h.bf16 %v602
        %v915 = vunpack.c.l.bf16 %v603
        %v916 = vunpack.c.h.bf16 %v603
        %v917 = vunpack.c.l.bf16 %v604
        %v918 = vunpack.c.h.bf16 %v604
        %v919 = vunpack.c.l.bf16 %v605
        %v920 = vunpack.c.h.bf16 %v605
        %v921 = vunpack.c.l.bf16 %v606
        %v922 = vunpack.c.h.bf16 %v606
        %v923 = vunpack.c.l.bf16 %v607
        %v924 = vunpack.c.h.bf16 %v607
        %v925 = vunpack.c.l.bf16 %v608
        %v926 = vunpack.c.h.bf16 %v608
        %v927 = vunpack.c.l.bf16 %v609
        %v928 = vunpack.c.h.bf16 %v609
        %v929 = vunpack.c.l.bf16 %v610
        %v930 = vunpack.c.h.bf16 %v610
        %v931 = vunpack.c.l.bf16 %v611
        %v932 = vunpack.c.h.bf16 %v611
        %v933 = vunpack.c.l.bf16 %v612
        %v934 = vunpack.c.h.bf16 %v612
        %v935 = vunpack.c.l.bf16 %v613
        %v936 = vunpack.c.h.bf16 %v613
        %v937 = vunpack.c.l.bf16 %v614
        %v938 = vunpack.c.h.bf16 %v614
        %v939 = vunpack.c.l.bf16 %v615
        %v940 = vunpack.c.h.bf16 %v615
        %v941 = vunpack.c.l.bf16 %v616
        %v942 = vunpack.c.h.bf16 %v616
        %v943 = vunpack.c.l.bf16 %v617
        %v944 = vunpack.c.h.bf16 %v617
        %v945 = vunpack.c.l.bf16 %v618
        %v946 = vunpack.c.h.bf16 %v618
        %v947 = vunpack.c.l.bf16 %v619
        %v948 = vunpack.c.h.bf16 %v619
        %v949 = vunpack.c.l.bf16 %v620
        %v950 = vunpack.c.h.bf16 %v620
        %v951 = vunpack.c.l.bf16 %v621
        %v952 = vunpack.c.h.bf16 %v621
        %v953 = vunpack.c.l.bf16 %v622
        %v954 = vunpack.c.h.bf16 %v622
        %v955 = vunpack.c.l.bf16 %v623
        %v956 = vunpack.c.h.bf16 %v623
        %v957 = vunpack.c.l.bf16 %v624
        %v958 = vunpack.c.h.bf16 %v624
        %v959 = vunpack.c.l.bf16 %v625
        %v960 = vunpack.c.h.bf16 %v625
        %v961 = vunpack.c.l.bf16 %v626
        %v962 = vunpack.c.h.bf16 %v626
        %v963 = vunpack.c.l.bf16 %v627
        %v964 = vunpack.c.h.bf16 %v627
        %v965 = vunpack.c.l.bf16 %v628
        %v966 = vunpack.c.h.bf16 %v628
        %v967 = vunpack.c.l.bf16 %v629
        %v968 = vunpack.c.h.bf16 %v629
        %v969 = vunpack.c.l.bf16 %v630
        %v970 = vunpack.c.h.bf16 %v630
        %v971 = vunpack.c.l.bf16 %v631
        %v972 = vunpack.c.h.bf16 %v631
        %v973 = vunpack.c.l.bf16 %v632
        %v974 = vunpack.c.h.bf16 %v632
        %v975 = vunpack.c.l.bf16 %v633
        %v976 = vunpack.c.h.bf16 %v633
        %v977 = vunpack.c.l.bf16 %v634
        %v978 = vunpack.c.h.bf16 %v634
        %v979 = vunpack.c.l.bf16 %v635
        %v980 = vunpack.c.h.bf16 %v635
        %v981 = vunpack.c.l.bf16 %v636
        %v982 = vunpack.c.h.bf16 %v636
        %v983 = vunpack.c.l.bf16 %v637
        %v984 = vunpack.c.h.bf16 %v637
        %v985 = vunpack.c.l.bf16 %v638
        %v986 = vunpack.c.h.bf16 %v638
        %v987 = vunpack.c.l.bf16 %v639
        %v988 = vunpack.c.h.bf16 %v639
        %v989 = vunpack.c.l.bf16 %v640
        %v990 = vunpack.c.h.bf16 %v640
        %v991 = vunpack.c.l.bf16 %v641
        %v992 = vunpack.c.h.bf16 %v641
        %v993 = vunpack.c.l.bf16 %v642
        %v994 = vunpack.c.h.bf16 %v642
        %v995 = vunpack.c.l.bf16 %v643
        %v996 = vunpack.c.h.bf16 %v643
        %v997 = vunpack.c.l.bf16 %v644
        %v998 = vunpack.c.h.bf16 %v644
        %v999 = vunpack.c.l.bf16 %v645
        %v1000 = vunpack.c.h.bf16 %v645
        %v1001 = vunpack.c.l.bf16 %v646
        %v1002 = vunpack.c.h.bf16 %v646
        %v1003 = vunpack.c.l.bf16 %v647
        %v1004 = vunpack.c.h.bf16 %v647
        %v1005 = vunpack.c.l.bf16 %v648
        %v1006 = vunpack.c.h.bf16 %v648
        %v1007 = vunpack.c.l.bf16 %v649
        %v1008 = vunpack.c.h.bf16 %v649
        %v1009 = vunpack.c.l.bf16 %v650
        %v1010 = vunpack.c.h.bf16 %v650
        %v1011 = vunpack.c.l.bf16 %v651
        %v1012 = vunpack.c.h.bf16 %v651
        %v1013 = vunpack.c.l.bf16 %v652
        %v1014 = vunpack.c.h.bf16 %v652
        %v1015 = vunpack.c.l.bf16 %v653
        %v1016 = vunpack.c.h.bf16 %v653
        %v1017 = vunpack.c.l.bf16 %v654
        %v1018 = vunpack.c.h.bf16 %v654
        %v1019 = vunpack.c.l.bf16 %v655
        %v1020 = vunpack.c.h.bf16 %v655
        %v1021 = vunpack.c.l.bf16 %v656
        %v1022 = vunpack.c.h.bf16 %v656
        %v1023 = vunpack.c.l.bf16 %v657
        %v1024 = vunpack.c.h.bf16 %v657
        %v1025 = vunpack.c.l.bf16 %v658
        %v1026 = vunpack.c.h.bf16 %v658
        %v1027 = vunpack.c.l.bf16 %v659
        %v1028 = vunpack.c.h.bf16 %v659
        %v1029 = vunpack.c.l.bf16 %v660
        %v1030 = vunpack.c.h.bf16 %v660
        %v1031 = vunpack.c.l.bf16 %v661
        %v1032 = vunpack.c.h.bf16 %v661
        %v1033 = vunpack.c.l.bf16 %v662
        %v1034 = vunpack.c.h.bf16 %v662
        %v1035 = vunpack.c.l.bf16 %v663
        %v1036 = vunpack.c.h.bf16 %v663
        %v1037 = vunpack.c.l.bf16 %v664
        %v1038 = vunpack.c.h.bf16 %v664
        %v1039 = vunpack.c.l.bf16 %v665
        %v1040 = vunpack.c.h.bf16 %v665
        %v1041 = vunpack.c.l.bf16 %v666
        %v1042 = vunpack.c.h.bf16 %v666
        %v1043 = vunpack.c.l.bf16 %v667
        %v1044 = vunpack.c.h.bf16 %v667
        %v1045 = vunpack.c.l.bf16 %v668
        %v1046 = vunpack.c.h.bf16 %v668
        %v1047 = vunpack.c.l.bf16 %v669
        %v1048 = vunpack.c.h.bf16 %v669
        %v1049 = vunpack.c.l.bf16 %v670
        %v1050 = vunpack.c.h.bf16 %v670
        %v1051 = vunpack.c.l.bf16 %v671
        %v1052 = vunpack.c.h.bf16 %v671
        %v1053 = vunpack.c.l.bf16 %v672
        %v1054 = vunpack.c.h.bf16 %v672
        %v1055 = vunpack.c.l.bf16 %v673
        %v1056 = vunpack.c.h.bf16 %v673
        %v1057 = vunpack.c.l.bf16 %v674
        %v1058 = vunpack.c.h.bf16 %v674
        %v1059 = vunpack.c.l.bf16 %v675
        %v1060 = vunpack.c.h.bf16 %v675
        %v1061 = vunpack.c.l.bf16 %v676
        %v1062 = vunpack.c.h.bf16 %v676
        %v1063 = vunpack.c.l.bf16 %v677
        %v1064 = vunpack.c.h.bf16 %v677
        %v1065 = vunpack.c.l.bf16 %v678
        %v1066 = vunpack.c.h.bf16 %v678
        %v1067 = vunpack.c.l.bf16 %v679
        %v1068 = vunpack.c.h.bf16 %v679
        %v1069 = vunpack.c.l.bf16 %v680
        %v1070 = vunpack.c.h.bf16 %v680
        %v1071 = vunpack.c.l.bf16 %v681
        %v1072 = vunpack.c.h.bf16 %v681
        %v1073 = vunpack.c.l.bf16 %v682
        %v1074 = vunpack.c.h.bf16 %v682
        %v1075 = vunpack.c.l.bf16 %v683
        %v1076 = vunpack.c.h.bf16 %v683
        %v1077 = vunpack.c.l.bf16 %v684
        %v1078 = vunpack.c.h.bf16 %v684
        %v1079 = vunpack.c.l.bf16 %v685
        %v1080 = vunpack.c.h.bf16 %v685
        %v1081 = vunpack.c.l.bf16 %v686
        %v1082 = vunpack.c.h.bf16 %v686
        %v1083 = vunpack.c.l.bf16 %v687
        %v1084 = vunpack.c.h.bf16 %v687
        %v1085 = vunpack.c.l.bf16 %v688
        %v1086 = vunpack.c.h.bf16 %v688
        %v1087 = vunpack.c.l.bf16 %v689
        %v1088 = vunpack.c.h.bf16 %v689
        %v1089 = vunpack.c.l.bf16 %v690
        %v1090 = vunpack.c.h.bf16 %v690
        %v1091 = vunpack.c.l.bf16 %v691
        %v1092 = vunpack.c.h.bf16 %v691
        %v1093 = vunpack.c.l.bf16 %v692
        %v1094 = vunpack.c.h.bf16 %v692
        %v1095 = vunpack.c.l.bf16 %v693
        %v1096 = vunpack.c.h.bf16 %v693
        %v1097 = vunpack.c.l.bf16 %v694
        %v1098 = vunpack.c.h.bf16 %v694
        %v1099 = vunpack.c.l.bf16 %v695
        %v1100 = vunpack.c.h.bf16 %v695
        %v1101 = vunpack.c.l.bf16 %v696
        %v1102 = vunpack.c.h.bf16 %v696
        %v1103 = vunpack.c.l.bf16 %v697
        %v1104 = vunpack.c.h.bf16 %v697
        %v1105 = vunpack.c.l.bf16 %v698
        %v1106 = vunpack.c.h.bf16 %v698
        %v1107 = vunpack.c.l.bf16 %v699
        %v1108 = vunpack.c.h.bf16 %v699
        %v1109 = vunpack.c.l.bf16 %v700
        %v1110 = vunpack.c.h.bf16 %v700
        %v1111 = vunpack.c.l.bf16 %v701
        %v1112 = vunpack.c.h.bf16 %v701
        %v1113 = vunpack.c.l.bf16 %v702
        %v1114 = vunpack.c.h.bf16 %v702
        %v1115 = vunpack.c.l.bf16 %v703
        %v1116 = vunpack.c.h.bf16 %v703
        %v1117 = vunpack.c.l.bf16 %v704
        %v1118 = vunpack.c.h.bf16 %v704
        %v1119 = vunpack.c.l.bf16 %v705
        %v1120 = vunpack.c.h.bf16 %v705
        %v1121 = vunpack.c.l.bf16 %v706
        %v1122 = vunpack.c.h.bf16 %v706
        %v1123 = vunpack.c.l.bf16 %v707
        %v1124 = vunpack.c.h.bf16 %v707
        %v1125 = vunpack.c.l.bf16 %v708
        %v1126 = vunpack.c.h.bf16 %v708
        %v1127 = vunpack.c.l.bf16 %v709
        %v1128 = vunpack.c.h.bf16 %v709
        %v1129 = vunpack.c.l.bf16 %v710
        %v1130 = vunpack.c.h.bf16 %v710
        %v1131 = vunpack.c.l.bf16 %v711
        %v1132 = vunpack.c.h.bf16 %v711
        %v1133 = vunpack.c.l.bf16 %v712
        %v1134 = vunpack.c.h.bf16 %v712
        %v1135 = vunpack.c.l.bf16 %v713
        %v1136 = vunpack.c.h.bf16 %v713
        %v1137 = vunpack.c.l.bf16 %v714
        %v1138 = vunpack.c.h.bf16 %v714
        %v1139 = vunpack.c.l.bf16 %v715
        %v1140 = vunpack.c.h.bf16 %v715
        %v1141 = vunpack.c.l.bf16 %v716
        %v1142 = vunpack.c.h.bf16 %v716
        %v1143 = vunpack.c.l.bf16 %v717
        %v1144 = vunpack.c.h.bf16 %v717
        %v1145 = vunpack.c.l.bf16 %v718
        %v1146 = vunpack.c.h.bf16 %v718
        %v1147 = vunpack.c.l.bf16 %v719
        %v1148 = vunpack.c.h.bf16 %v719
        %v1149 = vunpack.c.l.bf16 %v720
        %v1150 = vunpack.c.h.bf16 %v720
        %v1151 = vunpack.c.l.bf16 %v721
        %v1152 = vunpack.c.h.bf16 %v721
        %v1153 = vunpack.c.l.bf16 %v722
        %v1154 = vunpack.c.h.bf16 %v722
        %v1155 = vunpack.c.l.bf16 %v723
        %v1156 = vunpack.c.h.bf16 %v723
        %v1157 = vunpack.c.l.bf16 %v724
        %v1158 = vunpack.c.h.bf16 %v724
        %v1159 = vunpack.c.l.bf16 %v725
        %v1160 = vunpack.c.h.bf16 %v725
        %v1161 = vunpack.c.l.bf16 %v726
        %v1162 = vunpack.c.h.bf16 %v726
        %v1163 = vunpack.c.l.bf16 %v727
        %v1164 = vunpack.c.h.bf16 %v727
        %v1165 = vunpack.c.l.bf16 %v728
        %v1166 = vunpack.c.h.bf16 %v728
        %v1167 = vunpack.c.l.bf16 %v729
        %v1168 = vunpack.c.h.bf16 %v729
        %v1169 = vunpack.c.l.bf16 %v730
        %v1170 = vunpack.c.h.bf16 %v730
        %v1171 = vunpack.c.l.bf16 %v731
        %v1172 = vunpack.c.h.bf16 %v731
        %v1173 = vunpack.c.l.bf16 %v732
        %v1174 = vunpack.c.h.bf16 %v732
        %v1175 = vunpack.c.l.bf16 %v733
        %v1176 = vunpack.c.h.bf16 %v733
        %v1177 = vunpack.c.l.bf16 %v734
        %v1178 = vunpack.c.h.bf16 %v734
        %v1179 = vunpack.c.l.bf16 %v735
        %v1180 = vunpack.c.h.bf16 %v735
        %v1181 = vunpack.c.l.bf16 %v736
        %v1182 = vunpack.c.h.bf16 %v736
        %v1183 = vunpack.c.l.bf16 %v737
        %v1184 = vunpack.c.h.bf16 %v737
        %v1185 = vunpack.c.l.bf16 %v738
        %v1186 = vunpack.c.h.bf16 %v738
        %v1187 = vunpack.c.l.bf16 %v739
        %v1188 = vunpack.c.h.bf16 %v739
        %v1189 = vunpack.c.l.bf16 %v740
        %v1190 = vunpack.c.h.bf16 %v740
        %v1191 = vunpack.c.l.bf16 %v741
        %v1192 = vunpack.c.h.bf16 %v741
        %v1193 = vunpack.c.l.bf16 %v742
        %v1194 = vunpack.c.h.bf16 %v742
        %v1195 = vunpack.c.l.bf16 %v743
        %v1196 = vunpack.c.h.bf16 %v743
        %v1197 = vunpack.c.l.bf16 %v744
        %v1198 = vunpack.c.h.bf16 %v744
        %v1199 = vunpack.c.l.bf16 %v745
        %v1200 = vunpack.c.h.bf16 %v745
        %v1201 = vunpack.c.l.bf16 %v746
        %v1202 = vunpack.c.h.bf16 %v746
        %v1203 = vunpack.c.l.bf16 %v747
        %v1204 = vunpack.c.h.bf16 %v747
        %v1205 = vunpack.c.l.bf16 %v748
        %v1206 = vunpack.c.h.bf16 %v748
        %v1207 = vunpack.c.l.bf16 %v749
        %v1208 = vunpack.c.h.bf16 %v749
        %v1209 = vunpack.c.l.bf16 %v750
        %v1210 = vunpack.c.h.bf16 %v750
        %v1211 = vunpack.c.l.bf16 %v751
        %v1212 = vunpack.c.h.bf16 %v751
        %v1213 = vunpack.c.l.bf16 %v752
        %v1214 = vunpack.c.h.bf16 %v752
        %v1215 = vunpack.c.l.bf16 %v753
        %v1216 = vunpack.c.h.bf16 %v753
        %v1217 = vunpack.c.l.bf16 %v754
        %v1218 = vunpack.c.h.bf16 %v754
        %v1219 = vunpack.c.l.bf16 %v755
        %v1220 = vunpack.c.h.bf16 %v755
        %v1221 = vunpack.c.l.bf16 %v756
        %v1222 = vunpack.c.h.bf16 %v756
        %v1223 = vunpack.c.l.bf16 %v757
        %v1224 = vunpack.c.h.bf16 %v757
        %v1225 = vunpack.c.l.bf16 %v758
        %v1226 = vunpack.c.h.bf16 %v758
        %v1227 = vunpack.c.l.bf16 %v759
        %v1228 = vunpack.c.h.bf16 %v759
        %v1229 = vunpack.c.l.bf16 %v760
        %v1230 = vunpack.c.h.bf16 %v760
        %v1231 = vunpack.c.l.bf16 %v761
        %v1232 = vunpack.c.h.bf16 %v761
        %v1233 = vunpack.c.l.bf16 %v762
        %v1234 = vunpack.c.h.bf16 %v762
        %v1235 = vunpack.c.l.bf16 %v763
        %v1236 = vunpack.c.h.bf16 %v763
        %v1237 = vunpack.c.l.bf16 %v764
        %v1238 = vunpack.c.h.bf16 %v764
        %v1239 = vunpack.c.l.bf16 %v765
        %v1240 = vunpack.c.h.bf16 %v765
        %v1241 = vunpack.c.l.bf16 %v766
        %v1242 = vunpack.c.h.bf16 %v766
        %v1243 = vunpack.c.l.bf16 %v767
        %v1244 = vunpack.c.h.bf16 %v767
        %v1245 = vunpack.c.l.bf16 %v768
        %v1246 = vunpack.c.h.bf16 %v768
        %v1247 = vunpack.c.l.bf16 %v769
        %v1248 = vunpack.c.h.bf16 %v769
        %v1249 = vunpack.c.l.bf16 %v770
        %v1250 = vunpack.c.h.bf16 %v770
        %v1251 = vunpack.c.l.bf16 %v771
        %v1252 = vunpack.c.h.bf16 %v771
        %v1253 = vunpack.c.l.bf16 %v772
        %v1254 = vunpack.c.h.bf16 %v772
        %v1255 = vunpack.c.l.bf16 %v773
        %v1256 = vunpack.c.h.bf16 %v773
        %v1257 = vunpack.c.l.bf16 %v774
        %v1258 = vunpack.c.h.bf16 %v774
        %v1259 = vunpack.c.l.bf16 %v775
        %v1260 = vunpack.c.h.bf16 %v775
        %v1261 = vunpack.c.l.bf16 %v776
        %v1262 = vunpack.c.h.bf16 %v776
        %v1263 = vunpack.c.l.bf16 %v777
        %v1264 = vunpack.c.h.bf16 %v777
        %v1265 = vunpack.c.l.bf16 %v778
        %v1266 = vunpack.c.h.bf16 %v778
        %v1267 = vunpack.c.l.bf16 %v779
        %v1268 = vunpack.c.h.bf16 %v779
        %v1269 = vunpack.c.l.bf16 %v780
        %v1270 = vunpack.c.h.bf16 %v780
        %v1271 = vunpack.c.l.bf16 %v781
        %v1272 = vunpack.c.h.bf16 %v781
        %v1273 = vunpack.c.l.bf16 %v782
        %v1274 = vunpack.c.h.bf16 %v782
        %v1275 = vunpack.c.l.bf16 %v783
        %v1276 = vunpack.c.h.bf16 %v783
        %v1277 = vunpack.c.l.bf16 %v784
        %v1278 = vunpack.c.h.bf16 %v784
        %v1279 = vunpack.c.l.bf16 %v785
        %v1280 = vunpack.c.h.bf16 %v785
        %v1281 = vunpack.c.l.bf16 %v786
        %v1282 = vunpack.c.h.bf16 %v786
        %v1283 = vunpack.c.l.bf16 %v787
        %v1284 = vunpack.c.h.bf16 %v787
        %v1285 = vunpack.c.l.bf16 %v788
        %v1286 = vunpack.c.h.bf16 %v788
        %v1287 = vunpack.c.l.bf16 %v789
        %v1288 = vunpack.c.h.bf16 %v789
        %v1289 = vunpack.c.l.bf16 %v790
        %v1290 = vunpack.c.h.bf16 %v790
        %v1291 = vunpack.c.l.bf16 %v791
        %v1292 = vunpack.c.h.bf16 %v791
        %v1293 = vunpack.c.l.bf16 %v792
        %v1294 = vunpack.c.h.bf16 %v792
        %v1295 = vunpack.c.l.bf16 %v793
        %v1296 = vunpack.c.h.bf16 %v793
        %v1297 = vunpack.c.l.bf16 %v794
        %v1298 = vunpack.c.h.bf16 %v794
        %v1299 = vunpack.c.l.bf16 %v795
        %v1300 = vunpack.c.h.bf16 %v795
        %v1301 = vunpack.c.l.bf16 %v796
        %v1302 = vunpack.c.h.bf16 %v796
        %v1303 = vunpack.c.l.bf16 %v797
        %v1304 = vunpack.c.h.bf16 %v797
        %v1305 = vunpack.c.l.bf16 %v798
        %v1306 = vunpack.c.h.bf16 %v798
        %v1307 = vunpack.c.l.bf16 %v799
        %v1308 = vunpack.c.h.bf16 %v799
        %v1309 = vunpack.c.l.bf16 %v800
        %v1310 = vunpack.c.h.bf16 %v800
        %v1311 = vunpack.c.l.bf16 %v801
        %v1312 = vunpack.c.h.bf16 %v801
        %v1313 = vunpack.c.l.bf16 %v802
        %v1314 = vunpack.c.h.bf16 %v802
        %v1315 = vld [vmem:[%s431] sm:$0xff]
        %v1316 = vld [vmem:[%s431 + $0x8] sm:$0xff]
        %v1317 = vld [vmem:[%s431 + $0x10] sm:$0xff]
        %v1318 = vld [vmem:[%s431 + $0x18] sm:$0xff]
        %v1319 = vld [vmem:[%s431 + $0x20] sm:$0xff]
        %v1320 = vld [vmem:[%s431 + $0x28] sm:$0xff]
        %v1321 = vld [vmem:[%s431 + $0x30] sm:$0xff]
        %v1322 = vld [vmem:[%s431 + $0x38] sm:$0xff]
        %v1323 = vld [vmem:[%s431 + $0x40] sm:$0xff]
        %v1324 = vld [vmem:[%s431 + $0x48] sm:$0xff]
        %v1325 = vld [vmem:[%s431 + $0x50] sm:$0xff]
        %v1326 = vld [vmem:[%s431 + $0x58] sm:$0xff]
        %v1327 = vld [vmem:[%s431 + $0x60] sm:$0xff]
        %v1328 = vld [vmem:[%s431 + $0x68] sm:$0xff]
        %v1329 = vld [vmem:[%s431 + $0x70] sm:$0xff]
        %v1330 = vld [vmem:[%s431 + $0x78] sm:$0xff]
        %v1331 = vld [vmem:[%s431 + $0x80] sm:$0xff]
        %v1332 = vld [vmem:[%s431 + $0x88] sm:$0xff]
        %v1333 = vld [vmem:[%s431 + $0x90] sm:$0xff]
        %v1334 = vld [vmem:[%s431 + $0x98] sm:$0xff]
        %v1335 = vld [vmem:[%s431 + $0xa0] sm:$0xff]
        %v1336 = vld [vmem:[%s431 + $0xa8] sm:$0xff]
        %v1337 = vld [vmem:[%s431 + $0xb0] sm:$0xff]
        %v1338 = vld [vmem:[%s431 + $0xb8] sm:$0xff]
        %v1339 = vld [vmem:[%s431 + $0xc0] sm:$0xff]
        %v1340 = vld [vmem:[%s431 + $0xc8] sm:$0xff]
        %v1341 = vld [vmem:[%s431 + $0xd0] sm:$0xff]
        %v1342 = vld [vmem:[%s431 + $0xd8] sm:$0xff]
        %v1343 = vld [vmem:[%s431 + $0xe0] sm:$0xff]
        %v1344 = vld [vmem:[%s431 + $0xe8] sm:$0xff]
        %v1345 = vld [vmem:[%s431 + $0xf0] sm:$0xff]
        %v1346 = vld [vmem:[%s431 + $0xf8] sm:$0xff]
        %v1347 = vld [vmem:[%s431 + $0x100] sm:$0xff]
        %v1348 = vld [vmem:[%s431 + $0x108] sm:$0xff]
        %v1349 = vld [vmem:[%s431 + $0x110] sm:$0xff]
        %v1350 = vld [vmem:[%s431 + $0x118] sm:$0xff]
        %v1351 = vld [vmem:[%s431 + $0x120] sm:$0xff]
        %v1352 = vld [vmem:[%s431 + $0x128] sm:$0xff]
        %v1353 = vld [vmem:[%s431 + $0x130] sm:$0xff]
        %v1354 = vld [vmem:[%s431 + $0x138] sm:$0xff]
        %v1355 = vld [vmem:[%s431 + $0x140] sm:$0xff]
        %v1356 = vld [vmem:[%s431 + $0x148] sm:$0xff]
        %v1357 = vld [vmem:[%s431 + $0x150] sm:$0xff]
        %v1358 = vld [vmem:[%s431 + $0x158] sm:$0xff]
        %v1359 = vld [vmem:[%s431 + $0x160] sm:$0xff]
        %v1360 = vld [vmem:[%s431 + $0x168] sm:$0xff]
        %v1361 = vld [vmem:[%s431 + $0x170] sm:$0xff]
        %v1362 = vld [vmem:[%s431 + $0x178] sm:$0xff]
        %v1363 = vld [vmem:[%s431 + $0x180] sm:$0xff]
        %v1364 = vld [vmem:[%s431 + $0x188] sm:$0xff]
        %v1365 = vld [vmem:[%s431 + $0x190] sm:$0xff]
        %v1366 = vld [vmem:[%s431 + $0x198] sm:$0xff]
        %v1367 = vld [vmem:[%s431 + $0x1a0] sm:$0xff]
        %v1368 = vld [vmem:[%s431 + $0x1a8] sm:$0xff]
        %v1369 = vld [vmem:[%s431 + $0x1b0] sm:$0xff]
        %v1370 = vld [vmem:[%s431 + $0x1b8] sm:$0xff]
        %v1371 = vld [vmem:[%s431 + $0x1c0] sm:$0xff]
        %v1372 = vld [vmem:[%s431 + $0x1c8] sm:$0xff]
        %v1373 = vld [vmem:[%s431 + $0x1d0] sm:$0xff]
        %v1374 = vld [vmem:[%s431 + $0x1d8] sm:$0xff]
        %v1375 = vld [vmem:[%s431 + $0x1e0] sm:$0xff]
        %v1376 = vld [vmem:[%s431 + $0x1e8] sm:$0xff]
        %v1377 = vld [vmem:[%s431 + $0x1f0] sm:$0xff]
        %v1378 = vld [vmem:[%s431 + $0x1f8] sm:$0xff]
        %v1379 = vld [vmem:[%s431 + $0x200] sm:$0xff]
        %v1380 = vld [vmem:[%s431 + $0x208] sm:$0xff]
        %v1381 = vld [vmem:[%s431 + $0x210] sm:$0xff]
        %v1382 = vld [vmem:[%s431 + $0x218] sm:$0xff]
        %v1383 = vld [vmem:[%s431 + $0x220] sm:$0xff]
        %v1384 = vld [vmem:[%s431 + $0x228] sm:$0xff]
        %v1385 = vld [vmem:[%s431 + $0x230] sm:$0xff]
        %v1386 = vld [vmem:[%s431 + $0x238] sm:$0xff]
        %v1387 = vld [vmem:[%s431 + $0x240] sm:$0xff]
        %v1388 = vld [vmem:[%s431 + $0x248] sm:$0xff]
        %v1389 = vld [vmem:[%s431 + $0x250] sm:$0xff]
        %v1390 = vld [vmem:[%s431 + $0x258] sm:$0xff]
        %v1391 = vld [vmem:[%s431 + $0x260] sm:$0xff]
        %v1392 = vld [vmem:[%s431 + $0x268] sm:$0xff]
        %v1393 = vld [vmem:[%s431 + $0x270] sm:$0xff]
        %v1394 = vld [vmem:[%s431 + $0x278] sm:$0xff]
        %v1395 = vld [vmem:[%s431 + $0x280] sm:$0xff]
        %v1396 = vld [vmem:[%s431 + $0x288] sm:$0xff]
        %v1397 = vld [vmem:[%s431 + $0x290] sm:$0xff]
        %v1398 = vld [vmem:[%s431 + $0x298] sm:$0xff]
        %v1399 = vld [vmem:[%s431 + $0x2a0] sm:$0xff]
        %v1400 = vld [vmem:[%s431 + $0x2a8] sm:$0xff]
        %v1401 = vld [vmem:[%s431 + $0x2b0] sm:$0xff]
        %v1402 = vld [vmem:[%s431 + $0x2b8] sm:$0xff]
        %v1403 = vld [vmem:[%s431 + $0x2c0] sm:$0xff]
        %v1404 = vld [vmem:[%s431 + $0x2c8] sm:$0xff]
        %v1405 = vld [vmem:[%s431 + $0x2d0] sm:$0xff]
        %v1406 = vld [vmem:[%s431 + $0x2d8] sm:$0xff]
        %v1407 = vld [vmem:[%s431 + $0x2e0] sm:$0xff]
        %v1408 = vld [vmem:[%s431 + $0x2e8] sm:$0xff]
        %v1409 = vld [vmem:[%s431 + $0x2f0] sm:$0xff]
        %v1410 = vld [vmem:[%s431 + $0x2f8] sm:$0xff]
        %v1411 = vld [vmem:[%s431 + $0x300] sm:$0xff]
        %v1412 = vld [vmem:[%s431 + $0x308] sm:$0xff]
        %v1413 = vld [vmem:[%s431 + $0x310] sm:$0xff]
        %v1414 = vld [vmem:[%s431 + $0x318] sm:$0xff]
        %v1415 = vld [vmem:[%s431 + $0x320] sm:$0xff]
        %v1416 = vld [vmem:[%s431 + $0x328] sm:$0xff]
        %v1417 = vld [vmem:[%s431 + $0x330] sm:$0xff]
        %v1418 = vld [vmem:[%s431 + $0x338] sm:$0xff]
        %v1419 = vld [vmem:[%s431 + $0x340] sm:$0xff]
        %v1420 = vld [vmem:[%s431 + $0x348] sm:$0xff]
        %v1421 = vld [vmem:[%s431 + $0x350] sm:$0xff]
        %v1422 = vld [vmem:[%s431 + $0x358] sm:$0xff]
        %v1423 = vld [vmem:[%s431 + $0x360] sm:$0xff]
        %v1424 = vld [vmem:[%s431 + $0x368] sm:$0xff]
        %v1425 = vld [vmem:[%s431 + $0x370] sm:$0xff]
        %v1426 = vld [vmem:[%s431 + $0x378] sm:$0xff]
        %v1427 = vld [vmem:[%s431 + $0x380] sm:$0xff]
        %v1428 = vld [vmem:[%s431 + $0x388] sm:$0xff]
        %v1429 = vld [vmem:[%s431 + $0x390] sm:$0xff]
        %v1430 = vld [vmem:[%s431 + $0x398] sm:$0xff]
        %v1431 = vld [vmem:[%s431 + $0x3a0] sm:$0xff]
        %v1432 = vld [vmem:[%s431 + $0x3a8] sm:$0xff]
        %v1433 = vld [vmem:[%s431 + $0x3b0] sm:$0xff]
        %v1434 = vld [vmem:[%s431 + $0x3b8] sm:$0xff]
        %v1435 = vld [vmem:[%s431 + $0x3c0] sm:$0xff]
        %v1436 = vld [vmem:[%s431 + $0x3c8] sm:$0xff]
        %v1437 = vld [vmem:[%s431 + $0x3d0] sm:$0xff]
        %v1438 = vld [vmem:[%s431 + $0x3d8] sm:$0xff]
        %v1439 = vld [vmem:[%s431 + $0x3e0] sm:$0xff]
        %v1440 = vld [vmem:[%s431 + $0x3e8] sm:$0xff]
        %v1441 = vld [vmem:[%s431 + $0x3f0] sm:$0xff]
        %v1442 = vld [vmem:[%s431 + $0x3f8] sm:$0xff]
        %v1443 = vld [vmem:[%s431 + $0x400] sm:$0xff]
        %v1444 = vld [vmem:[%s431 + $0x408] sm:$0xff]
        %v1445 = vld [vmem:[%s431 + $0x410] sm:$0xff]
        %v1446 = vld [vmem:[%s431 + $0x418] sm:$0xff]
        %v1447 = vld [vmem:[%s431 + $0x420] sm:$0xff]
        %v1448 = vld [vmem:[%s431 + $0x428] sm:$0xff]
        %v1449 = vld [vmem:[%s431 + $0x430] sm:$0xff]
        %v1450 = vld [vmem:[%s431 + $0x438] sm:$0xff]
        %v1451 = vld [vmem:[%s431 + $0x440] sm:$0xff]
        %v1452 = vld [vmem:[%s431 + $0x448] sm:$0xff]
        %v1453 = vld [vmem:[%s431 + $0x450] sm:$0xff]
        %v1454 = vld [vmem:[%s431 + $0x458] sm:$0xff]
        %v1455 = vld [vmem:[%s431 + $0x460] sm:$0xff]
        %v1456 = vld [vmem:[%s431 + $0x468] sm:$0xff]
        %v1457 = vld [vmem:[%s431 + $0x470] sm:$0xff]
        %v1458 = vld [vmem:[%s431 + $0x478] sm:$0xff]
        %v1459 = vld [vmem:[%s431 + $0x480] sm:$0xff]
        %v1460 = vld [vmem:[%s431 + $0x488] sm:$0xff]
        %v1461 = vld [vmem:[%s431 + $0x490] sm:$0xff]
        %v1462 = vld [vmem:[%s431 + $0x498] sm:$0xff]
        %v1463 = vld [vmem:[%s431 + $0x4a0] sm:$0xff]
        %v1464 = vld [vmem:[%s431 + $0x4a8] sm:$0xff]
        %v1465 = vld [vmem:[%s431 + $0x4b0] sm:$0xff]
        %v1466 = vld [vmem:[%s431 + $0x4b8] sm:$0xff]
        %v1467 = vld [vmem:[%s431 + $0x4c0] sm:$0xff]
        %v1468 = vld [vmem:[%s431 + $0x4c8] sm:$0xff]
        %v1469 = vld [vmem:[%s431 + $0x4d0] sm:$0xff]
        %v1470 = vld [vmem:[%s431 + $0x4d8] sm:$0xff]
        %v1471 = vld [vmem:[%s431 + $0x4e0] sm:$0xff]
        %v1472 = vld [vmem:[%s431 + $0x4e8] sm:$0xff]
        %v1473 = vld [vmem:[%s431 + $0x4f0] sm:$0xff]
        %v1474 = vld [vmem:[%s431 + $0x4f8] sm:$0xff]
        %v1475 = vld [vmem:[%s431 + $0x500] sm:$0xff]
        %v1476 = vld [vmem:[%s431 + $0x508] sm:$0xff]
        %v1477 = vld [vmem:[%s431 + $0x510] sm:$0xff]
        %v1478 = vld [vmem:[%s431 + $0x518] sm:$0xff]
        %v1479 = vld [vmem:[%s431 + $0x520] sm:$0xff]
        %v1480 = vld [vmem:[%s431 + $0x528] sm:$0xff]
        %v1481 = vld [vmem:[%s431 + $0x530] sm:$0xff]
        %v1482 = vld [vmem:[%s431 + $0x538] sm:$0xff]
        %v1483 = vld [vmem:[%s431 + $0x540] sm:$0xff]
        %v1484 = vld [vmem:[%s431 + $0x548] sm:$0xff]
        %v1485 = vld [vmem:[%s431 + $0x550] sm:$0xff]
        %v1486 = vld [vmem:[%s431 + $0x558] sm:$0xff]
        %v1487 = vld [vmem:[%s431 + $0x560] sm:$0xff]
        %v1488 = vld [vmem:[%s431 + $0x568] sm:$0xff]
        %v1489 = vld [vmem:[%s431 + $0x570] sm:$0xff]
        %v1490 = vld [vmem:[%s431 + $0x578] sm:$0xff]
        %v1491 = vld [vmem:[%s431 + $0x580] sm:$0xff]
        %v1492 = vld [vmem:[%s431 + $0x588] sm:$0xff]
        %v1493 = vld [vmem:[%s431 + $0x590] sm:$0xff]
        %v1494 = vld [vmem:[%s431 + $0x598] sm:$0xff]
        %v1495 = vld [vmem:[%s431 + $0x5a0] sm:$0xff]
        %v1496 = vld [vmem:[%s431 + $0x5a8] sm:$0xff]
        %v1497 = vld [vmem:[%s431 + $0x5b0] sm:$0xff]
        %v1498 = vld [vmem:[%s431 + $0x5b8] sm:$0xff]
        %v1499 = vld [vmem:[%s431 + $0x5c0] sm:$0xff]
        %v1500 = vld [vmem:[%s431 + $0x5c8] sm:$0xff]
        %v1501 = vld [vmem:[%s431 + $0x5d0] sm:$0xff]
        %v1502 = vld [vmem:[%s431 + $0x5d8] sm:$0xff]
        %v1503 = vld [vmem:[%s431 + $0x5e0] sm:$0xff]
        %v1504 = vld [vmem:[%s431 + $0x5e8] sm:$0xff]
        %v1505 = vld [vmem:[%s431 + $0x5f0] sm:$0xff]
        %v1506 = vld [vmem:[%s431 + $0x5f8] sm:$0xff]
        %v1507 = vld [vmem:[%s431 + $0x600] sm:$0xff]
        %v1508 = vld [vmem:[%s431 + $0x608] sm:$0xff]
        %v1509 = vld [vmem:[%s431 + $0x610] sm:$0xff]
        %v1510 = vld [vmem:[%s431 + $0x618] sm:$0xff]
        %v1511 = vld [vmem:[%s431 + $0x620] sm:$0xff]
        %v1512 = vld [vmem:[%s431 + $0x628] sm:$0xff]
        %v1513 = vld [vmem:[%s431 + $0x630] sm:$0xff]
        %v1514 = vld [vmem:[%s431 + $0x638] sm:$0xff]
        %v1515 = vld [vmem:[%s431 + $0x640] sm:$0xff]
        %v1516 = vld [vmem:[%s431 + $0x648] sm:$0xff]
        %v1517 = vld [vmem:[%s431 + $0x650] sm:$0xff]
        %v1518 = vld [vmem:[%s431 + $0x658] sm:$0xff]
        %v1519 = vld [vmem:[%s431 + $0x660] sm:$0xff]
        %v1520 = vld [vmem:[%s431 + $0x668] sm:$0xff]
        %v1521 = vld [vmem:[%s431 + $0x670] sm:$0xff]
        %v1522 = vld [vmem:[%s431 + $0x678] sm:$0xff]
        %v1523 = vld [vmem:[%s431 + $0x680] sm:$0xff]
        %v1524 = vld [vmem:[%s431 + $0x688] sm:$0xff]
        %v1525 = vld [vmem:[%s431 + $0x690] sm:$0xff]
        %v1526 = vld [vmem:[%s431 + $0x698] sm:$0xff]
        %v1527 = vld [vmem:[%s431 + $0x6a0] sm:$0xff]
        %v1528 = vld [vmem:[%s431 + $0x6a8] sm:$0xff]
        %v1529 = vld [vmem:[%s431 + $0x6b0] sm:$0xff]
        %v1530 = vld [vmem:[%s431 + $0x6b8] sm:$0xff]
        %v1531 = vld [vmem:[%s431 + $0x6c0] sm:$0xff]
        %v1532 = vld [vmem:[%s431 + $0x6c8] sm:$0xff]
        %v1533 = vld [vmem:[%s431 + $0x6d0] sm:$0xff]
        %v1534 = vld [vmem:[%s431 + $0x6d8] sm:$0xff]
        %v1535 = vld [vmem:[%s431 + $0x6e0] sm:$0xff]
        %v1536 = vld [vmem:[%s431 + $0x6e8] sm:$0xff]
        %v1537 = vld [vmem:[%s431 + $0x6f0] sm:$0xff]
        %v1538 = vld [vmem:[%s431 + $0x6f8] sm:$0xff]
        %v1539 = vld [vmem:[%s431 + $0x700] sm:$0xff]
        %v1540 = vld [vmem:[%s431 + $0x708] sm:$0xff]
        %v1541 = vld [vmem:[%s431 + $0x710] sm:$0xff]
        %v1542 = vld [vmem:[%s431 + $0x718] sm:$0xff]
        %v1543 = vld [vmem:[%s431 + $0x720] sm:$0xff]
        %v1544 = vld [vmem:[%s431 + $0x728] sm:$0xff]
        %v1545 = vld [vmem:[%s431 + $0x730] sm:$0xff]
        %v1546 = vld [vmem:[%s431 + $0x738] sm:$0xff]
        %v1547 = vld [vmem:[%s431 + $0x740] sm:$0xff]
        %v1548 = vld [vmem:[%s431 + $0x748] sm:$0xff]
        %v1549 = vld [vmem:[%s431 + $0x750] sm:$0xff]
        %v1550 = vld [vmem:[%s431 + $0x758] sm:$0xff]
        %v1551 = vld [vmem:[%s431 + $0x760] sm:$0xff]
        %v1552 = vld [vmem:[%s431 + $0x768] sm:$0xff]
        %v1553 = vld [vmem:[%s431 + $0x770] sm:$0xff]
        %v1554 = vld [vmem:[%s431 + $0x778] sm:$0xff]
        %v1555 = vld [vmem:[%s431 + $0x780] sm:$0xff]
        %v1556 = vld [vmem:[%s431 + $0x788] sm:$0xff]
        %v1557 = vld [vmem:[%s431 + $0x790] sm:$0xff]
        %v1558 = vld [vmem:[%s431 + $0x798] sm:$0xff]
        %v1559 = vld [vmem:[%s431 + $0x7a0] sm:$0xff]
        %v1560 = vld [vmem:[%s431 + $0x7a8] sm:$0xff]
        %v1561 = vld [vmem:[%s431 + $0x7b0] sm:$0xff]
        %v1562 = vld [vmem:[%s431 + $0x7b8] sm:$0xff]
        %v1563 = vld [vmem:[%s431 + $0x7c0] sm:$0xff]
        %v1564 = vld [vmem:[%s431 + $0x7c8] sm:$0xff]
        %v1565 = vld [vmem:[%s431 + $0x7d0] sm:$0xff]
        %v1566 = vld [vmem:[%s431 + $0x7d8] sm:$0xff]
        %v1567 = vld [vmem:[%s431 + $0x7e0] sm:$0xff]
        %v1568 = vld [vmem:[%s431 + $0x7e8] sm:$0xff]
        %v1569 = vld [vmem:[%s431 + $0x7f0] sm:$0xff]
        %v1570 = vld [vmem:[%s431 + $0x7f8] sm:$0xff]
        %v1571 = vunpack.c.l.bf16 %v1315
        %v1572 = vunpack.c.h.bf16 %v1315
        %v1573 = vunpack.c.l.bf16 %v1316
        %v1574 = vunpack.c.h.bf16 %v1316
        %v1575 = vunpack.c.l.bf16 %v1317
        %v1576 = vunpack.c.h.bf16 %v1317
        %v1577 = vunpack.c.l.bf16 %v1318
        %v1578 = vunpack.c.h.bf16 %v1318
        %v1579 = vunpack.c.l.bf16 %v1319
        %v1580 = vunpack.c.h.bf16 %v1319
        %v1581 = vunpack.c.l.bf16 %v1320
        %v1582 = vunpack.c.h.bf16 %v1320
        %v1583 = vunpack.c.l.bf16 %v1321
        %v1584 = vunpack.c.h.bf16 %v1321
        %v1585 = vunpack.c.l.bf16 %v1322
        %v1586 = vunpack.c.h.bf16 %v1322
        %v1587 = vunpack.c.l.bf16 %v1323
        %v1588 = vunpack.c.h.bf16 %v1323
        %v1589 = vunpack.c.l.bf16 %v1324
        %v1590 = vunpack.c.h.bf16 %v1324
        %v1591 = vunpack.c.l.bf16 %v1325
        %v1592 = vunpack.c.h.bf16 %v1325
        %v1593 = vunpack.c.l.bf16 %v1326
        %v1594 = vunpack.c.h.bf16 %v1326
        %v1595 = vunpack.c.l.bf16 %v1327
        %v1596 = vunpack.c.h.bf16 %v1327
        %v1597 = vunpack.c.l.bf16 %v1328
        %v1598 = vunpack.c.h.bf16 %v1328
        %v1599 = vunpack.c.l.bf16 %v1329
        %v1600 = vunpack.c.h.bf16 %v1329
        %v1601 = vunpack.c.l.bf16 %v1330
        %v1602 = vunpack.c.h.bf16 %v1330
        %v1603 = vunpack.c.l.bf16 %v1331
        %v1604 = vunpack.c.h.bf16 %v1331
        %v1605 = vunpack.c.l.bf16 %v1332
        %v1606 = vunpack.c.h.bf16 %v1332
        %v1607 = vunpack.c.l.bf16 %v1333
        %v1608 = vunpack.c.h.bf16 %v1333
        %v1609 = vunpack.c.l.bf16 %v1334
        %v1610 = vunpack.c.h.bf16 %v1334
        %v1611 = vunpack.c.l.bf16 %v1335
        %v1612 = vunpack.c.h.bf16 %v1335
        %v1613 = vunpack.c.l.bf16 %v1336
        %v1614 = vunpack.c.h.bf16 %v1336
        %v1615 = vunpack.c.l.bf16 %v1337
        %v1616 = vunpack.c.h.bf16 %v1337
        %v1617 = vunpack.c.l.bf16 %v1338
        %v1618 = vunpack.c.h.bf16 %v1338
        %v1619 = vunpack.c.l.bf16 %v1339
        %v1620 = vunpack.c.h.bf16 %v1339
        %v1621 = vunpack.c.l.bf16 %v1340
        %v1622 = vunpack.c.h.bf16 %v1340
        %v1623 = vunpack.c.l.bf16 %v1341
        %v1624 = vunpack.c.h.bf16 %v1341
        %v1625 = vunpack.c.l.bf16 %v1342
        %v1626 = vunpack.c.h.bf16 %v1342
        %v1627 = vunpack.c.l.bf16 %v1343
        %v1628 = vunpack.c.h.bf16 %v1343
        %v1629 = vunpack.c.l.bf16 %v1344
        %v1630 = vunpack.c.h.bf16 %v1344
        %v1631 = vunpack.c.l.bf16 %v1345
        %v1632 = vunpack.c.h.bf16 %v1345
        %v1633 = vunpack.c.l.bf16 %v1346
        %v1634 = vunpack.c.h.bf16 %v1346
        %v1635 = vunpack.c.l.bf16 %v1347
        %v1636 = vunpack.c.h.bf16 %v1347
        %v1637 = vunpack.c.l.bf16 %v1348
        %v1638 = vunpack.c.h.bf16 %v1348
        %v1639 = vunpack.c.l.bf16 %v1349
        %v1640 = vunpack.c.h.bf16 %v1349
        %v1641 = vunpack.c.l.bf16 %v1350
        %v1642 = vunpack.c.h.bf16 %v1350
        %v1643 = vunpack.c.l.bf16 %v1351
        %v1644 = vunpack.c.h.bf16 %v1351
        %v1645 = vunpack.c.l.bf16 %v1352
        %v1646 = vunpack.c.h.bf16 %v1352
        %v1647 = vunpack.c.l.bf16 %v1353
        %v1648 = vunpack.c.h.bf16 %v1353
        %v1649 = vunpack.c.l.bf16 %v1354
        %v1650 = vunpack.c.h.bf16 %v1354
        %v1651 = vunpack.c.l.bf16 %v1355
        %v1652 = vunpack.c.h.bf16 %v1355
        %v1653 = vunpack.c.l.bf16 %v1356
        %v1654 = vunpack.c.h.bf16 %v1356
        %v1655 = vunpack.c.l.bf16 %v1357
        %v1656 = vunpack.c.h.bf16 %v1357
        %v1657 = vunpack.c.l.bf16 %v1358
        %v1658 = vunpack.c.h.bf16 %v1358
        %v1659 = vunpack.c.l.bf16 %v1359
        %v1660 = vunpack.c.h.bf16 %v1359
        %v1661 = vunpack.c.l.bf16 %v1360
        %v1662 = vunpack.c.h.bf16 %v1360
        %v1663 = vunpack.c.l.bf16 %v1361
        %v1664 = vunpack.c.h.bf16 %v1361
        %v1665 = vunpack.c.l.bf16 %v1362
        %v1666 = vunpack.c.h.bf16 %v1362
        %v1667 = vunpack.c.l.bf16 %v1363
        %v1668 = vunpack.c.h.bf16 %v1363
        %v1669 = vunpack.c.l.bf16 %v1364
        %v1670 = vunpack.c.h.bf16 %v1364
        %v1671 = vunpack.c.l.bf16 %v1365
        %v1672 = vunpack.c.h.bf16 %v1365
        %v1673 = vunpack.c.l.bf16 %v1366
        %v1674 = vunpack.c.h.bf16 %v1366
        %v1675 = vunpack.c.l.bf16 %v1367
        %v1676 = vunpack.c.h.bf16 %v1367
        %v1677 = vunpack.c.l.bf16 %v1368
        %v1678 = vunpack.c.h.bf16 %v1368
        %v1679 = vunpack.c.l.bf16 %v1369
        %v1680 = vunpack.c.h.bf16 %v1369
        %v1681 = vunpack.c.l.bf16 %v1370
        %v1682 = vunpack.c.h.bf16 %v1370
        %v1683 = vunpack.c.l.bf16 %v1371
        %v1684 = vunpack.c.h.bf16 %v1371
        %v1685 = vunpack.c.l.bf16 %v1372
        %v1686 = vunpack.c.h.bf16 %v1372
        %v1687 = vunpack.c.l.bf16 %v1373
        %v1688 = vunpack.c.h.bf16 %v1373
        %v1689 = vunpack.c.l.bf16 %v1374
        %v1690 = vunpack.c.h.bf16 %v1374
        %v1691 = vunpack.c.l.bf16 %v1375
        %v1692 = vunpack.c.h.bf16 %v1375
        %v1693 = vunpack.c.l.bf16 %v1376
        %v1694 = vunpack.c.h.bf16 %v1376
        %v1695 = vunpack.c.l.bf16 %v1377
        %v1696 = vunpack.c.h.bf16 %v1377
        %v1697 = vunpack.c.l.bf16 %v1378
        %v1698 = vunpack.c.h.bf16 %v1378
        %v1699 = vunpack.c.l.bf16 %v1379
        %v1700 = vunpack.c.h.bf16 %v1379
        %v1701 = vunpack.c.l.bf16 %v1380
        %v1702 = vunpack.c.h.bf16 %v1380
        %v1703 = vunpack.c.l.bf16 %v1381
        %v1704 = vunpack.c.h.bf16 %v1381
        %v1705 = vunpack.c.l.bf16 %v1382
        %v1706 = vunpack.c.h.bf16 %v1382
        %v1707 = vunpack.c.l.bf16 %v1383
        %v1708 = vunpack.c.h.bf16 %v1383
        %v1709 = vunpack.c.l.bf16 %v1384
        %v1710 = vunpack.c.h.bf16 %v1384
        %v1711 = vunpack.c.l.bf16 %v1385
        %v1712 = vunpack.c.h.bf16 %v1385
        %v1713 = vunpack.c.l.bf16 %v1386
        %v1714 = vunpack.c.h.bf16 %v1386
        %v1715 = vunpack.c.l.bf16 %v1387
        %v1716 = vunpack.c.h.bf16 %v1387
        %v1717 = vunpack.c.l.bf16 %v1388
        %v1718 = vunpack.c.h.bf16 %v1388
        %v1719 = vunpack.c.l.bf16 %v1389
        %v1720 = vunpack.c.h.bf16 %v1389
        %v1721 = vunpack.c.l.bf16 %v1390
        %v1722 = vunpack.c.h.bf16 %v1390
        %v1723 = vunpack.c.l.bf16 %v1391
        %v1724 = vunpack.c.h.bf16 %v1391
        %v1725 = vunpack.c.l.bf16 %v1392
        %v1726 = vunpack.c.h.bf16 %v1392
        %v1727 = vunpack.c.l.bf16 %v1393
        %v1728 = vunpack.c.h.bf16 %v1393
        %v1729 = vunpack.c.l.bf16 %v1394
        %v1730 = vunpack.c.h.bf16 %v1394
        %v1731 = vunpack.c.l.bf16 %v1395
        %v1732 = vunpack.c.h.bf16 %v1395
        %v1733 = vunpack.c.l.bf16 %v1396
        %v1734 = vunpack.c.h.bf16 %v1396
        %v1735 = vunpack.c.l.bf16 %v1397
        %v1736 = vunpack.c.h.bf16 %v1397
        %v1737 = vunpack.c.l.bf16 %v1398
        %v1738 = vunpack.c.h.bf16 %v1398
        %v1739 = vunpack.c.l.bf16 %v1399
        %v1740 = vunpack.c.h.bf16 %v1399
        %v1741 = vunpack.c.l.bf16 %v1400
        %v1742 = vunpack.c.h.bf16 %v1400
        %v1743 = vunpack.c.l.bf16 %v1401
        %v1744 = vunpack.c.h.bf16 %v1401
        %v1745 = vunpack.c.l.bf16 %v1402
        %v1746 = vunpack.c.h.bf16 %v1402
        %v1747 = vunpack.c.l.bf16 %v1403
        %v1748 = vunpack.c.h.bf16 %v1403
        %v1749 = vunpack.c.l.bf16 %v1404
        %v1750 = vunpack.c.h.bf16 %v1404
        %v1751 = vunpack.c.l.bf16 %v1405
        %v1752 = vunpack.c.h.bf16 %v1405
        %v1753 = vunpack.c.l.bf16 %v1406
        %v1754 = vunpack.c.h.bf16 %v1406
        %v1755 = vunpack.c.l.bf16 %v1407
        %v1756 = vunpack.c.h.bf16 %v1407
        %v1757 = vunpack.c.l.bf16 %v1408
        %v1758 = vunpack.c.h.bf16 %v1408
        %v1759 = vunpack.c.l.bf16 %v1409
        %v1760 = vunpack.c.h.bf16 %v1409
        %v1761 = vunpack.c.l.bf16 %v1410
        %v1762 = vunpack.c.h.bf16 %v1410
        %v1763 = vunpack.c.l.bf16 %v1411
        %v1764 = vunpack.c.h.bf16 %v1411
        %v1765 = vunpack.c.l.bf16 %v1412
        %v1766 = vunpack.c.h.bf16 %v1412
        %v1767 = vunpack.c.l.bf16 %v1413
        %v1768 = vunpack.c.h.bf16 %v1413
        %v1769 = vunpack.c.l.bf16 %v1414
        %v1770 = vunpack.c.h.bf16 %v1414
        %v1771 = vunpack.c.l.bf16 %v1415
        %v1772 = vunpack.c.h.bf16 %v1415
        %v1773 = vunpack.c.l.bf16 %v1416
        %v1774 = vunpack.c.h.bf16 %v1416
        %v1775 = vunpack.c.l.bf16 %v1417
        %v1776 = vunpack.c.h.bf16 %v1417
        %v1777 = vunpack.c.l.bf16 %v1418
        %v1778 = vunpack.c.h.bf16 %v1418
        %v1779 = vunpack.c.l.bf16 %v1419
        %v1780 = vunpack.c.h.bf16 %v1419
        %v1781 = vunpack.c.l.bf16 %v1420
        %v1782 = vunpack.c.h.bf16 %v1420
        %v1783 = vunpack.c.l.bf16 %v1421
        %v1784 = vunpack.c.h.bf16 %v1421
        %v1785 = vunpack.c.l.bf16 %v1422
        %v1786 = vunpack.c.h.bf16 %v1422
        %v1787 = vunpack.c.l.bf16 %v1423
        %v1788 = vunpack.c.h.bf16 %v1423
        %v1789 = vunpack.c.l.bf16 %v1424
        %v1790 = vunpack.c.h.bf16 %v1424
        %v1791 = vunpack.c.l.bf16 %v1425
        %v1792 = vunpack.c.h.bf16 %v1425
        %v1793 = vunpack.c.l.bf16 %v1426
        %v1794 = vunpack.c.h.bf16 %v1426
        %v1795 = vunpack.c.l.bf16 %v1427
        %v1796 = vunpack.c.h.bf16 %v1427
        %v1797 = vunpack.c.l.bf16 %v1428
        %v1798 = vunpack.c.h.bf16 %v1428
        %v1799 = vunpack.c.l.bf16 %v1429
        %v1800 = vunpack.c.h.bf16 %v1429
        %v1801 = vunpack.c.l.bf16 %v1430
        %v1802 = vunpack.c.h.bf16 %v1430
        %v1803 = vunpack.c.l.bf16 %v1431
        %v1804 = vunpack.c.h.bf16 %v1431
        %v1805 = vunpack.c.l.bf16 %v1432
        %v1806 = vunpack.c.h.bf16 %v1432
        %v1807 = vunpack.c.l.bf16 %v1433
        %v1808 = vunpack.c.h.bf16 %v1433
        %v1809 = vunpack.c.l.bf16 %v1434
        %v1810 = vunpack.c.h.bf16 %v1434
        %v1811 = vunpack.c.l.bf16 %v1435
        %v1812 = vunpack.c.h.bf16 %v1435
        %v1813 = vunpack.c.l.bf16 %v1436
        %v1814 = vunpack.c.h.bf16 %v1436
        %v1815 = vunpack.c.l.bf16 %v1437
        %v1816 = vunpack.c.h.bf16 %v1437
        %v1817 = vunpack.c.l.bf16 %v1438
        %v1818 = vunpack.c.h.bf16 %v1438
        %v1819 = vunpack.c.l.bf16 %v1439
        %v1820 = vunpack.c.h.bf16 %v1439
        %v1821 = vunpack.c.l.bf16 %v1440
        %v1822 = vunpack.c.h.bf16 %v1440
        %v1823 = vunpack.c.l.bf16 %v1441
        %v1824 = vunpack.c.h.bf16 %v1441
        %v1825 = vunpack.c.l.bf16 %v1442
        %v1826 = vunpack.c.h.bf16 %v1442
        %v1827 = vunpack.c.l.bf16 %v1443
        %v1828 = vunpack.c.h.bf16 %v1443
        %v1829 = vunpack.c.l.bf16 %v1444
        %v1830 = vunpack.c.h.bf16 %v1444
        %v1831 = vunpack.c.l.bf16 %v1445
        %v1832 = vunpack.c.h.bf16 %v1445
        %v1833 = vunpack.c.l.bf16 %v1446
        %v1834 = vunpack.c.h.bf16 %v1446
        %v1835 = vunpack.c.l.bf16 %v1447
        %v1836 = vunpack.c.h.bf16 %v1447
        %v1837 = vunpack.c.l.bf16 %v1448
        %v1838 = vunpack.c.h.bf16 %v1448
        %v1839 = vunpack.c.l.bf16 %v1449
        %v1840 = vunpack.c.h.bf16 %v1449
        %v1841 = vunpack.c.l.bf16 %v1450
        %v1842 = vunpack.c.h.bf16 %v1450
        %v1843 = vunpack.c.l.bf16 %v1451
        %v1844 = vunpack.c.h.bf16 %v1451
        %v1845 = vunpack.c.l.bf16 %v1452
        %v1846 = vunpack.c.h.bf16 %v1452
        %v1847 = vunpack.c.l.bf16 %v1453
        %v1848 = vunpack.c.h.bf16 %v1453
        %v1849 = vunpack.c.l.bf16 %v1454
        %v1850 = vunpack.c.h.bf16 %v1454
        %v1851 = vunpack.c.l.bf16 %v1455
        %v1852 = vunpack.c.h.bf16 %v1455
        %v1853 = vunpack.c.l.bf16 %v1456
        %v1854 = vunpack.c.h.bf16 %v1456
        %v1855 = vunpack.c.l.bf16 %v1457
        %v1856 = vunpack.c.h.bf16 %v1457
        %v1857 = vunpack.c.l.bf16 %v1458
        %v1858 = vunpack.c.h.bf16 %v1458
        %v1859 = vunpack.c.l.bf16 %v1459
        %v1860 = vunpack.c.h.bf16 %v1459
        %v1861 = vunpack.c.l.bf16 %v1460
        %v1862 = vunpack.c.h.bf16 %v1460
        %v1863 = vunpack.c.l.bf16 %v1461
        %v1864 = vunpack.c.h.bf16 %v1461
        %v1865 = vunpack.c.l.bf16 %v1462
        %v1866 = vunpack.c.h.bf16 %v1462
        %v1867 = vunpack.c.l.bf16 %v1463
        %v1868 = vunpack.c.h.bf16 %v1463
        %v1869 = vunpack.c.l.bf16 %v1464
        %v1870 = vunpack.c.h.bf16 %v1464
        %v1871 = vunpack.c.l.bf16 %v1465
        %v1872 = vunpack.c.h.bf16 %v1465
        %v1873 = vunpack.c.l.bf16 %v1466
        %v1874 = vunpack.c.h.bf16 %v1466
        %v1875 = vunpack.c.l.bf16 %v1467
        %v1876 = vunpack.c.h.bf16 %v1467
        %v1877 = vunpack.c.l.bf16 %v1468
        %v1878 = vunpack.c.h.bf16 %v1468
        %v1879 = vunpack.c.l.bf16 %v1469
        %v1880 = vunpack.c.h.bf16 %v1469
        %v1881 = vunpack.c.l.bf16 %v1470
        %v1882 = vunpack.c.h.bf16 %v1470
        %v1883 = vunpack.c.l.bf16 %v1471
        %v1884 = vunpack.c.h.bf16 %v1471
        %v1885 = vunpack.c.l.bf16 %v1472
        %v1886 = vunpack.c.h.bf16 %v1472
        %v1887 = vunpack.c.l.bf16 %v1473
        %v1888 = vunpack.c.h.bf16 %v1473
        %v1889 = vunpack.c.l.bf16 %v1474
        %v1890 = vunpack.c.h.bf16 %v1474
        %v1891 = vunpack.c.l.bf16 %v1475
        %v1892 = vunpack.c.h.bf16 %v1475
        %v1893 = vunpack.c.l.bf16 %v1476
        %v1894 = vunpack.c.h.bf16 %v1476
        %v1895 = vunpack.c.l.bf16 %v1477
        %v1896 = vunpack.c.h.bf16 %v1477
        %v1897 = vunpack.c.l.bf16 %v1478
        %v1898 = vunpack.c.h.bf16 %v1478
        %v1899 = vunpack.c.l.bf16 %v1479
        %v1900 = vunpack.c.h.bf16 %v1479
        %v1901 = vunpack.c.l.bf16 %v1480
        %v1902 = vunpack.c.h.bf16 %v1480
        %v1903 = vunpack.c.l.bf16 %v1481
        %v1904 = vunpack.c.h.bf16 %v1481
        %v1905 = vunpack.c.l.bf16 %v1482
        %v1906 = vunpack.c.h.bf16 %v1482
        %v1907 = vunpack.c.l.bf16 %v1483
        %v1908 = vunpack.c.h.bf16 %v1483
        %v1909 = vunpack.c.l.bf16 %v1484
        %v1910 = vunpack.c.h.bf16 %v1484
        %v1911 = vunpack.c.l.bf16 %v1485
        %v1912 = vunpack.c.h.bf16 %v1485
        %v1913 = vunpack.c.l.bf16 %v1486
        %v1914 = vunpack.c.h.bf16 %v1486
        %v1915 = vunpack.c.l.bf16 %v1487
        %v1916 = vunpack.c.h.bf16 %v1487
        %v1917 = vunpack.c.l.bf16 %v1488
        %v1918 = vunpack.c.h.bf16 %v1488
        %v1919 = vunpack.c.l.bf16 %v1489
        %v1920 = vunpack.c.h.bf16 %v1489
        %v1921 = vunpack.c.l.bf16 %v1490
        %v1922 = vunpack.c.h.bf16 %v1490
        %v1923 = vunpack.c.l.bf16 %v1491
        %v1924 = vunpack.c.h.bf16 %v1491
        %v1925 = vunpack.c.l.bf16 %v1492
        %v1926 = vunpack.c.h.bf16 %v1492
        %v1927 = vunpack.c.l.bf16 %v1493
        %v1928 = vunpack.c.h.bf16 %v1493
        %v1929 = vunpack.c.l.bf16 %v1494
        %v1930 = vunpack.c.h.bf16 %v1494
        %v1931 = vunpack.c.l.bf16 %v1495
        %v1932 = vunpack.c.h.bf16 %v1495
        %v1933 = vunpack.c.l.bf16 %v1496
        %v1934 = vunpack.c.h.bf16 %v1496
        %v1935 = vunpack.c.l.bf16 %v1497
        %v1936 = vunpack.c.h.bf16 %v1497
        %v1937 = vunpack.c.l.bf16 %v1498
        %v1938 = vunpack.c.h.bf16 %v1498
        %v1939 = vunpack.c.l.bf16 %v1499
        %v1940 = vunpack.c.h.bf16 %v1499
        %v1941 = vunpack.c.l.bf16 %v1500
        %v1942 = vunpack.c.h.bf16 %v1500
        %v1943 = vunpack.c.l.bf16 %v1501
        %v1944 = vunpack.c.h.bf16 %v1501
        %v1945 = vunpack.c.l.bf16 %v1502
        %v1946 = vunpack.c.h.bf16 %v1502
        %v1947 = vunpack.c.l.bf16 %v1503
        %v1948 = vunpack.c.h.bf16 %v1503
        %v1949 = vunpack.c.l.bf16 %v1504
        %v1950 = vunpack.c.h.bf16 %v1504
        %v1951 = vunpack.c.l.bf16 %v1505
        %v1952 = vunpack.c.h.bf16 %v1505
        %v1953 = vunpack.c.l.bf16 %v1506
        %v1954 = vunpack.c.h.bf16 %v1506
        %v1955 = vunpack.c.l.bf16 %v1507
        %v1956 = vunpack.c.h.bf16 %v1507
        %v1957 = vunpack.c.l.bf16 %v1508
        %v1958 = vunpack.c.h.bf16 %v1508
        %v1959 = vunpack.c.l.bf16 %v1509
        %v1960 = vunpack.c.h.bf16 %v1509
        %v1961 = vunpack.c.l.bf16 %v1510
        %v1962 = vunpack.c.h.bf16 %v1510
        %v1963 = vunpack.c.l.bf16 %v1511
        %v1964 = vunpack.c.h.bf16 %v1511
        %v1965 = vunpack.c.l.bf16 %v1512
        %v1966 = vunpack.c.h.bf16 %v1512
        %v1967 = vunpack.c.l.bf16 %v1513
        %v1968 = vunpack.c.h.bf16 %v1513
        %v1969 = vunpack.c.l.bf16 %v1514
        %v1970 = vunpack.c.h.bf16 %v1514
        %v1971 = vunpack.c.l.bf16 %v1515
        %v1972 = vunpack.c.h.bf16 %v1515
        %v1973 = vunpack.c.l.bf16 %v1516
        %v1974 = vunpack.c.h.bf16 %v1516
        %v1975 = vunpack.c.l.bf16 %v1517
        %v1976 = vunpack.c.h.bf16 %v1517
        %v1977 = vunpack.c.l.bf16 %v1518
        %v1978 = vunpack.c.h.bf16 %v1518
        %v1979 = vunpack.c.l.bf16 %v1519
        %v1980 = vunpack.c.h.bf16 %v1519
        %v1981 = vunpack.c.l.bf16 %v1520
        %v1982 = vunpack.c.h.bf16 %v1520
        %v1983 = vunpack.c.l.bf16 %v1521
        %v1984 = vunpack.c.h.bf16 %v1521
        %v1985 = vunpack.c.l.bf16 %v1522
        %v1986 = vunpack.c.h.bf16 %v1522
        %v1987 = vunpack.c.l.bf16 %v1523
        %v1988 = vunpack.c.h.bf16 %v1523
        %v1989 = vunpack.c.l.bf16 %v1524
        %v1990 = vunpack.c.h.bf16 %v1524
        %v1991 = vunpack.c.l.bf16 %v1525
        %v1992 = vunpack.c.h.bf16 %v1525
        %v1993 = vunpack.c.l.bf16 %v1526
        %v1994 = vunpack.c.h.bf16 %v1526
        %v1995 = vunpack.c.l.bf16 %v1527
        %v1996 = vunpack.c.h.bf16 %v1527
        %v1997 = vunpack.c.l.bf16 %v1528
        %v1998 = vunpack.c.h.bf16 %v1528
        %v1999 = vunpack.c.l.bf16 %v1529
        %v2000 = vunpack.c.h.bf16 %v1529
        %v2001 = vunpack.c.l.bf16 %v1530
        %v2002 = vunpack.c.h.bf16 %v1530
        %v2003 = vunpack.c.l.bf16 %v1531
        %v2004 = vunpack.c.h.bf16 %v1531
        %v2005 = vunpack.c.l.bf16 %v1532
        %v2006 = vunpack.c.h.bf16 %v1532
        %v2007 = vunpack.c.l.bf16 %v1533
        %v2008 = vunpack.c.h.bf16 %v1533
        %v2009 = vunpack.c.l.bf16 %v1534
        %v2010 = vunpack.c.h.bf16 %v1534
        %v2011 = vunpack.c.l.bf16 %v1535
        %v2012 = vunpack.c.h.bf16 %v1535
        %v2013 = vunpack.c.l.bf16 %v1536
        %v2014 = vunpack.c.h.bf16 %v1536
        %v2015 = vunpack.c.l.bf16 %v1537
        %v2016 = vunpack.c.h.bf16 %v1537
        %v2017 = vunpack.c.l.bf16 %v1538
        %v2018 = vunpack.c.h.bf16 %v1538
        %v2019 = vunpack.c.l.bf16 %v1539
        %v2020 = vunpack.c.h.bf16 %v1539
        %v2021 = vunpack.c.l.bf16 %v1540
        %v2022 = vunpack.c.h.bf16 %v1540
        %v2023 = vunpack.c.l.bf16 %v1541
        %v2024 = vunpack.c.h.bf16 %v1541
        %v2025 = vunpack.c.l.bf16 %v1542
        %v2026 = vunpack.c.h.bf16 %v1542
        %v2027 = vunpack.c.l.bf16 %v1543
        %v2028 = vunpack.c.h.bf16 %v1543
        %v2029 = vunpack.c.l.bf16 %v1544
        %v2030 = vunpack.c.h.bf16 %v1544
        %v2031 = vunpack.c.l.bf16 %v1545
        %v2032 = vunpack.c.h.bf16 %v1545
        %v2033 = vunpack.c.l.bf16 %v1546
        %v2034 = vunpack.c.h.bf16 %v1546
        %v2035 = vunpack.c.l.bf16 %v1547
        %v2036 = vunpack.c.h.bf16 %v1547
        %v2037 = vunpack.c.l.bf16 %v1548
        %v2038 = vunpack.c.h.bf16 %v1548
        %v2039 = vunpack.c.l.bf16 %v1549
        %v2040 = vunpack.c.h.bf16 %v1549
        %v2041 = vunpack.c.l.bf16 %v1550
        %v2042 = vunpack.c.h.bf16 %v1550
        %v2043 = vunpack.c.l.bf16 %v1551
        %v2044 = vunpack.c.h.bf16 %v1551
        %v2045 = vunpack.c.l.bf16 %v1552
        %v2046 = vunpack.c.h.bf16 %v1552
        %v2047 = vunpack.c.l.bf16 %v1553
        %v2048 = vunpack.c.h.bf16 %v1553
        %v2049 = vunpack.c.l.bf16 %v1554
        %v2050 = vunpack.c.h.bf16 %v1554
        %v2051 = vunpack.c.l.bf16 %v1555
        %v2052 = vunpack.c.h.bf16 %v1555
        %v2053 = vunpack.c.l.bf16 %v1556
        %v2054 = vunpack.c.h.bf16 %v1556
        %v2055 = vunpack.c.l.bf16 %v1557
        %v2056 = vunpack.c.h.bf16 %v1557
        %v2057 = vunpack.c.l.bf16 %v1558
        %v2058 = vunpack.c.h.bf16 %v1558
        %v2059 = vunpack.c.l.bf16 %v1559
        %v2060 = vunpack.c.h.bf16 %v1559
        %v2061 = vunpack.c.l.bf16 %v1560
        %v2062 = vunpack.c.h.bf16 %v1560
        %v2063 = vunpack.c.l.bf16 %v1561
        %v2064 = vunpack.c.h.bf16 %v1561
        %v2065 = vunpack.c.l.bf16 %v1562
        %v2066 = vunpack.c.h.bf16 %v1562
        %v2067 = vunpack.c.l.bf16 %v1563
        %v2068 = vunpack.c.h.bf16 %v1563
        %v2069 = vunpack.c.l.bf16 %v1564
        %v2070 = vunpack.c.h.bf16 %v1564
        %v2071 = vunpack.c.l.bf16 %v1565
        %v2072 = vunpack.c.h.bf16 %v1565
        %v2073 = vunpack.c.l.bf16 %v1566
        %v2074 = vunpack.c.h.bf16 %v1566
        %v2075 = vunpack.c.l.bf16 %v1567
        %v2076 = vunpack.c.h.bf16 %v1567
        %v2077 = vunpack.c.l.bf16 %v1568
        %v2078 = vunpack.c.h.bf16 %v1568
        %v2079 = vunpack.c.l.bf16 %v1569
        %v2080 = vunpack.c.h.bf16 %v1569
        %v2081 = vunpack.c.l.bf16 %v1570
        %v2082 = vunpack.c.h.bf16 %v1570
        %v2083 = vld [vmem:[%s441] sm:$0xff]
        %v2084 = vld [vmem:[%s441 + $0x8] sm:$0xff]
        %v2087 = vperm.slane %v2083, 0
        %v2088 = vperm.slane %v2083, 1
        %v2089 = vperm.slane %v2083, 2
        %v2090 = vperm.slane %v2083, 3
        %v2091 = vperm.slane %v2083, 4
        %v2092 = vperm.slane %v2083, 5
        %v2093 = vperm.slane %v2083, 6
        %v2094 = vperm.slane %v2083, 7
        %v2095 = vperm.slane %v2084, 0
        %v2096 = vperm.slane %v2084, 1
        %v2097 = vperm.slane %v2084, 2
        %v2098 = vperm.slane %v2084, 3
        %v2099 = vperm.slane %v2084, 4
        %v2100 = vperm.slane %v2084, 5
        %v2101 = vperm.slane %v2084, 6
        %v2102 = vperm.slane %v2084, 7
        %2120 = vst [vmem:[#allocation1] ss:$4 sm:$0xff] %v546
        %v2121 = vld.sshfl [vmem:[#allocation1] sm:$0xff pattern:$0x73625140]
        %v2122 = vld.sshfl [vmem:[#allocation1 + $0x8] sm:$0xff pattern:$0x73625140]
        %2125 = vmatpush.msra.mxu0 %v1043
        %2126 = vmatpush.msra.mxu0 %v1027
        %2127 = vmatpush.msra.mxu0 %v1011
        %2128 = vmatpush.msra.mxu0 %v995
        %2129 = vmatpush.msra.mxu0 %v979
        %2130 = vmatpush.msra.mxu0 %v963
        %2131 = vmatpush.msra.mxu0 %v947
        %2132 = vmatpush.msra.mxu0 %v931
        %2133 = vmatpush.msra.mxu0 %v915
        %2134 = vmatpush.msra.mxu0 %v899
        %2135 = vmatpush.msra.mxu0 %v883
        %2136 = vmatpush.msra.mxu0 %v867
        %2137 = vmatpush.msra.mxu0 %v851
        %2138 = vmatpush.msra.mxu0 %v835
        %2139 = vmatpush.msra.mxu0 %v819
        %2140 = vmatpush.msra.mxu0 %v803
        %2141 = vmatmul.f32.gmra.mxu0 %v2121
        %v2142 = vpop.f32.mrf.mxu0
        %v2143 = vadd.f32 %v2087, %v2142
        %2144 = vdwg.mxu0
        %2145 = vmatpush.msra.mxu0 %v1299
        %2146 = vmatpush.msra.mxu0 %v1283
        %2147 = vmatpush.msra.mxu0 %v1267
        %2148 = vmatpush.msra.mxu0 %v1251
        %2149 = vmatpush.msra.mxu0 %v1235
        %2150 = vmatpush.msra.mxu0 %v1219
        %2151 = vmatpush.msra.mxu0 %v1203
        %2152 = vmatpush.msra.mxu0 %v1187
        %2153 = vmatpush.msra.mxu0 %v1171
        %2154 = vmatpush.msra.mxu0 %v1155
        %2155 = vmatpush.msra.mxu0 %v1139
        %2156 = vmatpush.msra.mxu0 %v1123
        %2157 = vmatpush.msra.mxu0 %v1107
        %2158 = vmatpush.msra.mxu0 %v1091
        %2159 = vmatpush.msra.mxu0 %v1075
        %2160 = vmatpush.msra.mxu0 %v1059
        %2161 = vmatmul.f32.gmra.mxu0 %v2122
        %v2162 = vpop.f32.mrf.mxu0
        %v2163 = vadd.f32 %v2143, %v2162
        %2164 = vdwg.mxu0
        %2165 = vmatpush.msra.mxu0 %v1044
        %2166 = vmatpush.msra.mxu0 %v1028
        %2167 = vmatpush.msra.mxu0 %v1012
        %2168 = vmatpush.msra.mxu0 %v996
        %2169 = vmatpush.msra.mxu0 %v980
        %2170 = vmatpush.msra.mxu0 %v964
        %2171 = vmatpush.msra.mxu0 %v948
        %2172 = vmatpush.msra.mxu0 %v932
        %2173 = vmatpush.msra.mxu0 %v916
        %2174 = vmatpush.msra.mxu0 %v900
        %2175 = vmatpush.msra.mxu0 %v884
        %2176 = vmatpush.msra.mxu0 %v868
        %2177 = vmatpush.msra.mxu0 %v852
        %2178 = vmatpush.msra.mxu0 %v836
        %2179 = vmatpush.msra.mxu0 %v820
        %2180 = vmatpush.msra.mxu0 %v804
        %2181 = vmatmul.f32.gmra.mxu0 %v2121
        %v2182 = vpop.f32.mrf.mxu0
        %v2183 = vadd.f32 %v2088, %v2182
        %2184 = vdwg.mxu0
        %2185 = vmatpush.msra.mxu0 %v1300
        %2186 = vmatpush.msra.mxu0 %v1284
        %2187 = vmatpush.msra.mxu0 %v1268
        %2188 = vmatpush.msra.mxu0 %v1252
        %2189 = vmatpush.msra.mxu0 %v1236
        %2190 = vmatpush.msra.mxu0 %v1220
        %2191 = vmatpush.msra.mxu0 %v1204
        %2192 = vmatpush.msra.mxu0 %v1188
        %2193 = vmatpush.msra.mxu0 %v1172
        %2194 = vmatpush.msra.mxu0 %v1156
        %2195 = vmatpush.msra.mxu0 %v1140
        %2196 = vmatpush.msra.mxu0 %v1124
        %2197 = vmatpush.msra.mxu0 %v1108
        %2198 = vmatpush.msra.mxu0 %v1092
        %2199 = vmatpush.msra.mxu0 %v1076
        %2200 = vmatpush.msra.mxu0 %v1060
        %2201 = vmatmul.f32.gmra.mxu0 %v2122
        %v2202 = vpop.f32.mrf.mxu0
        %v2203 = vadd.f32 %v2183, %v2202
        %2204 = vdwg.mxu0
        %2205 = vmatpush.msra.mxu0 %v1045
        %2206 = vmatpush.msra.mxu0 %v1029
        %2207 = vmatpush.msra.mxu0 %v1013
        %2208 = vmatpush.msra.mxu0 %v997
        %2209 = vmatpush.msra.mxu0 %v981
        %2210 = vmatpush.msra.mxu0 %v965
        %2211 = vmatpush.msra.mxu0 %v949
        %2212 = vmatpush.msra.mxu0 %v933
        %2213 = vmatpush.msra.mxu0 %v917
        %2214 = vmatpush.msra.mxu0 %v901
        %2215 = vmatpush.msra.mxu0 %v885
        %2216 = vmatpush.msra.mxu0 %v869
        %2217 = vmatpush.msra.mxu0 %v853
        %2218 = vmatpush.msra.mxu0 %v837
        %2219 = vmatpush.msra.mxu0 %v821
        %2220 = vmatpush.msra.mxu0 %v805
        %2221 = vmatmul.f32.gmra.mxu0 %v2121
        %v2222 = vpop.f32.mrf.mxu0
        %v2223 = vadd.f32 %v2089, %v2222
        %2224 = vdwg.mxu0
        %2225 = vmatpush.msra.mxu0 %v1301
        %2226 = vmatpush.msra.mxu0 %v1285
        %2227 = vmatpush.msra.mxu0 %v1269
        %2228 = vmatpush.msra.mxu0 %v1253
        %2229 = vmatpush.msra.mxu0 %v1237
        %2230 = vmatpush.msra.mxu0 %v1221
        %2231 = vmatpush.msra.mxu0 %v1205
        %2232 = vmatpush.msra.mxu0 %v1189
        %2233 = vmatpush.msra.mxu0 %v1173
        %2234 = vmatpush.msra.mxu0 %v1157
        %2235 = vmatpush.msra.mxu0 %v1141
        %2236 = vmatpush.msra.mxu0 %v1125
        %2237 = vmatpush.msra.mxu0 %v1109
        %2238 = vmatpush.msra.mxu0 %v1093
        %2239 = vmatpush.msra.mxu0 %v1077
        %2240 = vmatpush.msra.mxu0 %v1061
        %2241 = vmatmul.f32.gmra.mxu0 %v2122
        %v2242 = vpop.f32.mrf.mxu0
        %v2243 = vadd.f32 %v2223, %v2242
        %2244 = vdwg.mxu0
        %2245 = vmatpush.msra.mxu0 %v1046
        %2246 = vmatpush.msra.mxu0 %v1030
        %2247 = vmatpush.msra.mxu0 %v1014
        %2248 = vmatpush.msra.mxu0 %v998
        %2249 = vmatpush.msra.mxu0 %v982
        %2250 = vmatpush.msra.mxu0 %v966
        %2251 = vmatpush.msra.mxu0 %v950
        %2252 = vmatpush.msra.mxu0 %v934
        %2253 = vmatpush.msra.mxu0 %v918
        %2254 = vmatpush.msra.mxu0 %v902
        %2255 = vmatpush.msra.mxu0 %v886
        %2256 = vmatpush.msra.mxu0 %v870
        %2257 = vmatpush.msra.mxu0 %v854
        %2258 = vmatpush.msra.mxu0 %v838
        %2259 = vmatpush.msra.mxu0 %v822
        %2260 = vmatpush.msra.mxu0 %v806
        %2261 = vmatmul.f32.gmra.mxu0 %v2121
        %v2262 = vpop.f32.mrf.mxu0
        %v2263 = vadd.f32 %v2090, %v2262
        %2264 = vdwg.mxu0
        %2265 = vmatpush.msra.mxu0 %v1302
        %2266 = vmatpush.msra.mxu0 %v1286
        %2267 = vmatpush.msra.mxu0 %v1270
        %2268 = vmatpush.msra.mxu0 %v1254
        %2269 = vmatpush.msra.mxu0 %v1238
        %2270 = vmatpush.msra.mxu0 %v1222
        %2271 = vmatpush.msra.mxu0 %v1206
        %2272 = vmatpush.msra.mxu0 %v1190
        %2273 = vmatpush.msra.mxu0 %v1174
        %2274 = vmatpush.msra.mxu0 %v1158
        %2275 = vmatpush.msra.mxu0 %v1142
        %2276 = vmatpush.msra.mxu0 %v1126
        %2277 = vmatpush.msra.mxu0 %v1110
        %2278 = vmatpush.msra.mxu0 %v1094
        %2279 = vmatpush.msra.mxu0 %v1078
        %2280 = vmatpush.msra.mxu0 %v1062
        %2281 = vmatmul.f32.gmra.mxu0 %v2122
        %v2282 = vpop.f32.mrf.mxu0
        %v2283 = vadd.f32 %v2263, %v2282
        %2284 = vdwg.mxu0
        %2285 = vmatpush.msra.mxu0 %v1047
        %2286 = vmatpush.msra.mxu0 %v1031
        %2287 = vmatpush.msra.mxu0 %v1015
        %2288 = vmatpush.msra.mxu0 %v999
        %2289 = vmatpush.msra.mxu0 %v983
        %2290 = vmatpush.msra.mxu0 %v967
        %2291 = vmatpush.msra.mxu0 %v951
        %2292 = vmatpush.msra.mxu0 %v935
        %2293 = vmatpush.msra.mxu0 %v919
        %2294 = vmatpush.msra.mxu0 %v903
        %2295 = vmatpush.msra.mxu0 %v887
        %2296 = vmatpush.msra.mxu0 %v871
        %2297 = vmatpush.msra.mxu0 %v855
        %2298 = vmatpush.msra.mxu0 %v839
        %2299 = vmatpush.msra.mxu0 %v823
        %2300 = vmatpush.msra.mxu0 %v807
        %2301 = vmatmul.f32.gmra.mxu0 %v2121
        %v2302 = vpop.f32.mrf.mxu0
        %v2303 = vadd.f32 %v2091, %v2302
        %2304 = vdwg.mxu0
        %2305 = vmatpush.msra.mxu0 %v1303
        %2306 = vmatpush.msra.mxu0 %v1287
        %2307 = vmatpush.msra.mxu0 %v1271
        %2308 = vmatpush.msra.mxu0 %v1255
        %2309 = vmatpush.msra.mxu0 %v1239
        %2310 = vmatpush.msra.mxu0 %v1223
        %2311 = vmatpush.msra.mxu0 %v1207
        %2312 = vmatpush.msra.mxu0 %v1191
        %2313 = vmatpush.msra.mxu0 %v1175
        %2314 = vmatpush.msra.mxu0 %v1159
        %2315 = vmatpush.msra.mxu0 %v1143
        %2316 = vmatpush.msra.mxu0 %v1127
        %2317 = vmatpush.msra.mxu0 %v1111
        %2318 = vmatpush.msra.mxu0 %v1095
        %2319 = vmatpush.msra.mxu0 %v1079
        %2320 = vmatpush.msra.mxu0 %v1063
        %2321 = vmatmul.f32.gmra.mxu0 %v2122
        %v2322 = vpop.f32.mrf.mxu0
        %v2323 = vadd.f32 %v2303, %v2322
        %2324 = vdwg.mxu0
        %2325 = vmatpush.msra.mxu0 %v1048
        %2326 = vmatpush.msra.mxu0 %v1032
        %2327 = vmatpush.msra.mxu0 %v1016
        %2328 = vmatpush.msra.mxu0 %v1000
        %2329 = vmatpush.msra.mxu0 %v984
        %2330 = vmatpush.msra.mxu0 %v968
        %2331 = vmatpush.msra.mxu0 %v952
        %2332 = vmatpush.msra.mxu0 %v936
        %2333 = vmatpush.msra.mxu0 %v920
        %2334 = vmatpush.msra.mxu0 %v904
        %2335 = vmatpush.msra.mxu0 %v888
        %2336 = vmatpush.msra.mxu0 %v872
        %2337 = vmatpush.msra.mxu0 %v856
        %2338 = vmatpush.msra.mxu0 %v840
        %2339 = vmatpush.msra.mxu0 %v824
        %2340 = vmatpush.msra.mxu0 %v808
        %2341 = vmatmul.f32.gmra.mxu0 %v2121
        %v2342 = vpop.f32.mrf.mxu0
        %v2343 = vadd.f32 %v2092, %v2342
        %2344 = vdwg.mxu0
        %2345 = vmatpush.msra.mxu0 %v1304
        %2346 = vmatpush.msra.mxu0 %v1288
        %2347 = vmatpush.msra.mxu0 %v1272
        %2348 = vmatpush.msra.mxu0 %v1256
        %2349 = vmatpush.msra.mxu0 %v1240
        %2350 = vmatpush.msra.mxu0 %v1224
        %2351 = vmatpush.msra.mxu0 %v1208
        %2352 = vmatpush.msra.mxu0 %v1192
        %2353 = vmatpush.msra.mxu0 %v1176
        %2354 = vmatpush.msra.mxu0 %v1160
        %2355 = vmatpush.msra.mxu0 %v1144
        %2356 = vmatpush.msra.mxu0 %v1128
        %2357 = vmatpush.msra.mxu0 %v1112
        %2358 = vmatpush.msra.mxu0 %v1096
        %2359 = vmatpush.msra.mxu0 %v1080
        %2360 = vmatpush.msra.mxu0 %v1064
        %2361 = vmatmul.f32.gmra.mxu0 %v2122
        %v2362 = vpop.f32.mrf.mxu0
        %v2363 = vadd.f32 %v2343, %v2362
        %2364 = vdwg.mxu0
        %2365 = vmatpush.msra.mxu0 %v1049
        %2366 = vmatpush.msra.mxu0 %v1033
        %2367 = vmatpush.msra.mxu0 %v1017
        %2368 = vmatpush.msra.mxu0 %v1001
        %2369 = vmatpush.msra.mxu0 %v985
        %2370 = vmatpush.msra.mxu0 %v969
        %2371 = vmatpush.msra.mxu0 %v953
        %2372 = vmatpush.msra.mxu0 %v937
        %2373 = vmatpush.msra.mxu0 %v921
        %2374 = vmatpush.msra.mxu0 %v905
        %2375 = vmatpush.msra.mxu0 %v889
        %2376 = vmatpush.msra.mxu0 %v873
        %2377 = vmatpush.msra.mxu0 %v857
        %2378 = vmatpush.msra.mxu0 %v841
        %2379 = vmatpush.msra.mxu0 %v825
        %2380 = vmatpush.msra.mxu0 %v809
        %2381 = vmatmul.f32.gmra.mxu0 %v2121
        %v2382 = vpop.f32.mrf.mxu0
        %v2383 = vadd.f32 %v2093, %v2382
        %2384 = vdwg.mxu0
        %2385 = vmatpush.msra.mxu0 %v1305
        %2386 = vmatpush.msra.mxu0 %v1289
        %2387 = vmatpush.msra.mxu0 %v1273
        %2388 = vmatpush.msra.mxu0 %v1257
        %2389 = vmatpush.msra.mxu0 %v1241
        %2390 = vmatpush.msra.mxu0 %v1225
        %2391 = vmatpush.msra.mxu0 %v1209
        %2392 = vmatpush.msra.mxu0 %v1193
        %2393 = vmatpush.msra.mxu0 %v1177
        %2394 = vmatpush.msra.mxu0 %v1161
        %2395 = vmatpush.msra.mxu0 %v1145
        %2396 = vmatpush.msra.mxu0 %v1129
        %2397 = vmatpush.msra.mxu0 %v1113
        %2398 = vmatpush.msra.mxu0 %v1097
        %2399 = vmatpush.msra.mxu0 %v1081
        %2400 = vmatpush.msra.mxu0 %v1065
        %2401 = vmatmul.f32.gmra.mxu0 %v2122
        %v2402 = vpop.f32.mrf.mxu0
        %v2403 = vadd.f32 %v2383, %v2402
        %2404 = vdwg.mxu0
        %2405 = vmatpush.msra.mxu0 %v1050
        %2406 = vmatpush.msra.mxu0 %v1034
        %2407 = vmatpush.msra.mxu0 %v1018
        %2408 = vmatpush.msra.mxu0 %v1002
        %2409 = vmatpush.msra.mxu0 %v986
        %2410 = vmatpush.msra.mxu0 %v970
        %2411 = vmatpush.msra.mxu0 %v954
        %2412 = vmatpush.msra.mxu0 %v938
        %2413 = vmatpush.msra.mxu0 %v922
        %2414 = vmatpush.msra.mxu0 %v906
        %2415 = vmatpush.msra.mxu0 %v890
        %2416 = vmatpush.msra.mxu0 %v874
        %2417 = vmatpush.msra.mxu0 %v858
        %2418 = vmatpush.msra.mxu0 %v842
        %2419 = vmatpush.msra.mxu0 %v826
        %2420 = vmatpush.msra.mxu0 %v810
        %2421 = vmatmul.f32.gmra.mxu0 %v2121
        %v2422 = vpop.f32.mrf.mxu0
        %v2423 = vadd.f32 %v2094, %v2422
        %2424 = vdwg.mxu0
        %2425 = vmatpush.msra.mxu0 %v1306
        %2426 = vmatpush.msra.mxu0 %v1290
        %2427 = vmatpush.msra.mxu0 %v1274
        %2428 = vmatpush.msra.mxu0 %v1258
        %2429 = vmatpush.msra.mxu0 %v1242
        %2430 = vmatpush.msra.mxu0 %v1226
        %2431 = vmatpush.msra.mxu0 %v1210
        %2432 = vmatpush.msra.mxu0 %v1194
        %2433 = vmatpush.msra.mxu0 %v1178
        %2434 = vmatpush.msra.mxu0 %v1162
        %2435 = vmatpush.msra.mxu0 %v1146
        %2436 = vmatpush.msra.mxu0 %v1130
        %2437 = vmatpush.msra.mxu0 %v1114
        %2438 = vmatpush.msra.mxu0 %v1098
        %2439 = vmatpush.msra.mxu0 %v1082
        %2440 = vmatpush.msra.mxu0 %v1066
        %2441 = vmatmul.f32.gmra.mxu0 %v2122
        %v2442 = vpop.f32.mrf.mxu0
        %v2443 = vadd.f32 %v2423, %v2442
        %2444 = vdwg.mxu0
        %2445 = vmatpush.msra.mxu0 %v1051
        %2446 = vmatpush.msra.mxu0 %v1035
        %2447 = vmatpush.msra.mxu0 %v1019
        %2448 = vmatpush.msra.mxu0 %v1003
        %2449 = vmatpush.msra.mxu0 %v987
        %2450 = vmatpush.msra.mxu0 %v971
        %2451 = vmatpush.msra.mxu0 %v955
        %2452 = vmatpush.msra.mxu0 %v939
        %2453 = vmatpush.msra.mxu0 %v923
        %2454 = vmatpush.msra.mxu0 %v907
        %2455 = vmatpush.msra.mxu0 %v891
        %2456 = vmatpush.msra.mxu0 %v875
        %2457 = vmatpush.msra.mxu0 %v859
        %2458 = vmatpush.msra.mxu0 %v843
        %2459 = vmatpush.msra.mxu0 %v827
        %2460 = vmatpush.msra.mxu0 %v811
        %2461 = vmatmul.f32.gmra.mxu0 %v2121
        %v2462 = vpop.f32.mrf.mxu0
        %v2463 = vadd.f32 %v2095, %v2462
        %2464 = vdwg.mxu0
        %2465 = vmatpush.msra.mxu0 %v1307
        %2466 = vmatpush.msra.mxu0 %v1291
        %2467 = vmatpush.msra.mxu0 %v1275
        %2468 = vmatpush.msra.mxu0 %v1259
        %2469 = vmatpush.msra.mxu0 %v1243
        %2470 = vmatpush.msra.mxu0 %v1227
        %2471 = vmatpush.msra.mxu0 %v1211
        %2472 = vmatpush.msra.mxu0 %v1195
        %2473 = vmatpush.msra.mxu0 %v1179
        %2474 = vmatpush.msra.mxu0 %v1163
        %2475 = vmatpush.msra.mxu0 %v1147
        %2476 = vmatpush.msra.mxu0 %v1131
        %2477 = vmatpush.msra.mxu0 %v1115
        %2478 = vmatpush.msra.mxu0 %v1099
        %2479 = vmatpush.msra.mxu0 %v1083
        %2480 = vmatpush.msra.mxu0 %v1067
        %2481 = vmatmul.f32.gmra.mxu0 %v2122
        %v2482 = vpop.f32.mrf.mxu0
        %v2483 = vadd.f32 %v2463, %v2482
        %2484 = vdwg.mxu0
        %2485 = vmatpush.msra.mxu0 %v1052
        %2486 = vmatpush.msra.mxu0 %v1036
        %2487 = vmatpush.msra.mxu0 %v1020
        %2488 = vmatpush.msra.mxu0 %v1004
        %2489 = vmatpush.msra.mxu0 %v988
        %2490 = vmatpush.msra.mxu0 %v972
        %2491 = vmatpush.msra.mxu0 %v956
        %2492 = vmatpush.msra.mxu0 %v940
        %2493 = vmatpush.msra.mxu0 %v924
        %2494 = vmatpush.msra.mxu0 %v908
        %2495 = vmatpush.msra.mxu0 %v892
        %2496 = vmatpush.msra.mxu0 %v876
        %2497 = vmatpush.msra.mxu0 %v860
        %2498 = vmatpush.msra.mxu0 %v844
        %2499 = vmatpush.msra.mxu0 %v828
        %2500 = vmatpush.msra.mxu0 %v812
        %2501 = vmatmul.f32.gmra.mxu0 %v2121
        %v2502 = vpop.f32.mrf.mxu0
        %v2503 = vadd.f32 %v2096, %v2502
        %2504 = vdwg.mxu0
        %2505 = vmatpush.msra.mxu0 %v1308
        %2506 = vmatpush.msra.mxu0 %v1292
        %2507 = vmatpush.msra.mxu0 %v1276
        %2508 = vmatpush.msra.mxu0 %v1260
        %2509 = vmatpush.msra.mxu0 %v1244
        %2510 = vmatpush.msra.mxu0 %v1228
        %2511 = vmatpush.msra.mxu0 %v1212
        %2512 = vmatpush.msra.mxu0 %v1196
        %2513 = vmatpush.msra.mxu0 %v1180
        %2514 = vmatpush.msra.mxu0 %v1164
        %2515 = vmatpush.msra.mxu0 %v1148
        %2516 = vmatpush.msra.mxu0 %v1132
        %2517 = vmatpush.msra.mxu0 %v1116
        %2518 = vmatpush.msra.mxu0 %v1100
        %2519 = vmatpush.msra.mxu0 %v1084
        %2520 = vmatpush.msra.mxu0 %v1068
        %2521 = vmatmul.f32.gmra.mxu0 %v2122
        %v2522 = vpop.f32.mrf.mxu0
        %v2523 = vadd.f32 %v2503, %v2522
        %2524 = vdwg.mxu0
        %2525 = vmatpush.msra.mxu0 %v1053
        %2526 = vmatpush.msra.mxu0 %v1037
        %2527 = vmatpush.msra.mxu0 %v1021
        %2528 = vmatpush.msra.mxu0 %v1005
        %2529 = vmatpush.msra.mxu0 %v989
        %2530 = vmatpush.msra.mxu0 %v973
        %2531 = vmatpush.msra.mxu0 %v957
        %2532 = vmatpush.msra.mxu0 %v941
        %2533 = vmatpush.msra.mxu0 %v925
        %2534 = vmatpush.msra.mxu0 %v909
        %2535 = vmatpush.msra.mxu0 %v893
        %2536 = vmatpush.msra.mxu0 %v877
        %2537 = vmatpush.msra.mxu0 %v861
        %2538 = vmatpush.msra.mxu0 %v845
        %2539 = vmatpush.msra.mxu0 %v829
        %2540 = vmatpush.msra.mxu0 %v813
        %2541 = vmatmul.f32.gmra.mxu0 %v2121
        %v2542 = vpop.f32.mrf.mxu0
        %v2543 = vadd.f32 %v2097, %v2542
        %2544 = vdwg.mxu0
        %2545 = vmatpush.msra.mxu0 %v1309
        %2546 = vmatpush.msra.mxu0 %v1293
        %2547 = vmatpush.msra.mxu0 %v1277
        %2548 = vmatpush.msra.mxu0 %v1261
        %2549 = vmatpush.msra.mxu0 %v1245
        %2550 = vmatpush.msra.mxu0 %v1229
        %2551 = vmatpush.msra.mxu0 %v1213
        %2552 = vmatpush.msra.mxu0 %v1197
        %2553 = vmatpush.msra.mxu0 %v1181
        %2554 = vmatpush.msra.mxu0 %v1165
        %2555 = vmatpush.msra.mxu0 %v1149
        %2556 = vmatpush.msra.mxu0 %v1133
        %2557 = vmatpush.msra.mxu0 %v1117
        %2558 = vmatpush.msra.mxu0 %v1101
        %2559 = vmatpush.msra.mxu0 %v1085
        %2560 = vmatpush.msra.mxu0 %v1069
        %2561 = vmatmul.f32.gmra.mxu0 %v2122
        %v2562 = vpop.f32.mrf.mxu0
        %v2563 = vadd.f32 %v2543, %v2562
        %2564 = vdwg.mxu0
        %2565 = vmatpush.msra.mxu0 %v1054
        %2566 = vmatpush.msra.mxu0 %v1038
        %2567 = vmatpush.msra.mxu0 %v1022
        %2568 = vmatpush.msra.mxu0 %v1006
        %2569 = vmatpush.msra.mxu0 %v990
        %2570 = vmatpush.msra.mxu0 %v974
        %2571 = vmatpush.msra.mxu0 %v958
        %2572 = vmatpush.msra.mxu0 %v942
        %2573 = vmatpush.msra.mxu0 %v926
        %2574 = vmatpush.msra.mxu0 %v910
        %2575 = vmatpush.msra.mxu0 %v894
        %2576 = vmatpush.msra.mxu0 %v878
        %2577 = vmatpush.msra.mxu0 %v862
        %2578 = vmatpush.msra.mxu0 %v846
        %2579 = vmatpush.msra.mxu0 %v830
        %2580 = vmatpush.msra.mxu0 %v814
        %2581 = vmatmul.f32.gmra.mxu0 %v2121
        %v2582 = vpop.f32.mrf.mxu0
        %v2583 = vadd.f32 %v2098, %v2582
        %2584 = vdwg.mxu0
        %2585 = vmatpush.msra.mxu0 %v1310
        %2586 = vmatpush.msra.mxu0 %v1294
        %2587 = vmatpush.msra.mxu0 %v1278
        %2588 = vmatpush.msra.mxu0 %v1262
        %2589 = vmatpush.msra.mxu0 %v1246
        %2590 = vmatpush.msra.mxu0 %v1230
        %2591 = vmatpush.msra.mxu0 %v1214
        %2592 = vmatpush.msra.mxu0 %v1198
        %2593 = vmatpush.msra.mxu0 %v1182
        %2594 = vmatpush.msra.mxu0 %v1166
        %2595 = vmatpush.msra.mxu0 %v1150
        %2596 = vmatpush.msra.mxu0 %v1134
        %2597 = vmatpush.msra.mxu0 %v1118
        %2598 = vmatpush.msra.mxu0 %v1102
        %2599 = vmatpush.msra.mxu0 %v1086
        %2600 = vmatpush.msra.mxu0 %v1070
        %2601 = vmatmul.f32.gmra.mxu0 %v2122
        %v2602 = vpop.f32.mrf.mxu0
        %v2603 = vadd.f32 %v2583, %v2602
        %2604 = vdwg.mxu0
        %2605 = vmatpush.msra.mxu0 %v1055
        %2606 = vmatpush.msra.mxu0 %v1039
        %2607 = vmatpush.msra.mxu0 %v1023
        %2608 = vmatpush.msra.mxu0 %v1007
        %2609 = vmatpush.msra.mxu0 %v991
        %2610 = vmatpush.msra.mxu0 %v975
        %2611 = vmatpush.msra.mxu0 %v959
        %2612 = vmatpush.msra.mxu0 %v943
        %2613 = vmatpush.msra.mxu0 %v927
        %2614 = vmatpush.msra.mxu0 %v911
        %2615 = vmatpush.msra.mxu0 %v895
        %2616 = vmatpush.msra.mxu0 %v879
        %2617 = vmatpush.msra.mxu0 %v863
        %2618 = vmatpush.msra.mxu0 %v847
        %2619 = vmatpush.msra.mxu0 %v831
        %2620 = vmatpush.msra.mxu0 %v815
        %2621 = vmatmul.f32.gmra.mxu0 %v2121
        %v2622 = vpop.f32.mrf.mxu0
        %v2623 = vadd.f32 %v2099, %v2622
        %2624 = vdwg.mxu0
        %2625 = vmatpush.msra.mxu0 %v1311
        %2626 = vmatpush.msra.mxu0 %v1295
        %2627 = vmatpush.msra.mxu0 %v1279
        %2628 = vmatpush.msra.mxu0 %v1263
        %2629 = vmatpush.msra.mxu0 %v1247
        %2630 = vmatpush.msra.mxu0 %v1231
        %2631 = vmatpush.msra.mxu0 %v1215
        %2632 = vmatpush.msra.mxu0 %v1199
        %2633 = vmatpush.msra.mxu0 %v1183
        %2634 = vmatpush.msra.mxu0 %v1167
        %2635 = vmatpush.msra.mxu0 %v1151
        %2636 = vmatpush.msra.mxu0 %v1135
        %2637 = vmatpush.msra.mxu0 %v1119
        %2638 = vmatpush.msra.mxu0 %v1103
        %2639 = vmatpush.msra.mxu0 %v1087
        %2640 = vmatpush.msra.mxu0 %v1071
        %2641 = vmatmul.f32.gmra.mxu0 %v2122
        %v2642 = vpop.f32.mrf.mxu0
        %v2643 = vadd.f32 %v2623, %v2642
        %2644 = vdwg.mxu0
        %2645 = vmatpush.msra.mxu0 %v1056
        %2646 = vmatpush.msra.mxu0 %v1040
        %2647 = vmatpush.msra.mxu0 %v1024
        %2648 = vmatpush.msra.mxu0 %v1008
        %2649 = vmatpush.msra.mxu0 %v992
        %2650 = vmatpush.msra.mxu0 %v976
        %2651 = vmatpush.msra.mxu0 %v960
        %2652 = vmatpush.msra.mxu0 %v944
        %2653 = vmatpush.msra.mxu0 %v928
        %2654 = vmatpush.msra.mxu0 %v912
        %2655 = vmatpush.msra.mxu0 %v896
        %2656 = vmatpush.msra.mxu0 %v880
        %2657 = vmatpush.msra.mxu0 %v864
        %2658 = vmatpush.msra.mxu0 %v848
        %2659 = vmatpush.msra.mxu0 %v832
        %2660 = vmatpush.msra.mxu0 %v816
        %2661 = vmatmul.f32.gmra.mxu0 %v2121
        %v2662 = vpop.f32.mrf.mxu0
        %v2663 = vadd.f32 %v2100, %v2662
        %2664 = vdwg.mxu0
        %2665 = vmatpush.msra.mxu0 %v1312
        %2666 = vmatpush.msra.mxu0 %v1296
        %2667 = vmatpush.msra.mxu0 %v1280
        %2668 = vmatpush.msra.mxu0 %v1264
        %2669 = vmatpush.msra.mxu0 %v1248
        %2670 = vmatpush.msra.mxu0 %v1232
        %2671 = vmatpush.msra.mxu0 %v1216
        %2672 = vmatpush.msra.mxu0 %v1200
        %2673 = vmatpush.msra.mxu0 %v1184
        %2674 = vmatpush.msra.mxu0 %v1168
        %2675 = vmatpush.msra.mxu0 %v1152
        %2676 = vmatpush.msra.mxu0 %v1136
        %2677 = vmatpush.msra.mxu0 %v1120
        %2678 = vmatpush.msra.mxu0 %v1104
        %2679 = vmatpush.msra.mxu0 %v1088
        %2680 = vmatpush.msra.mxu0 %v1072
        %2681 = vmatmul.f32.gmra.mxu0 %v2122
        %v2682 = vpop.f32.mrf.mxu0
        %v2683 = vadd.f32 %v2663, %v2682
        %2684 = vdwg.mxu0
        %2685 = vmatpush.msra.mxu0 %v1057
        %2686 = vmatpush.msra.mxu0 %v1041
        %2687 = vmatpush.msra.mxu0 %v1025
        %2688 = vmatpush.msra.mxu0 %v1009
        %2689 = vmatpush.msra.mxu0 %v993
        %2690 = vmatpush.msra.mxu0 %v977
        %2691 = vmatpush.msra.mxu0 %v961
        %2692 = vmatpush.msra.mxu0 %v945
        %2693 = vmatpush.msra.mxu0 %v929
        %2694 = vmatpush.msra.mxu0 %v913
        %2695 = vmatpush.msra.mxu0 %v897
        %2696 = vmatpush.msra.mxu0 %v881
        %2697 = vmatpush.msra.mxu0 %v865
        %2698 = vmatpush.msra.mxu0 %v849
        %2699 = vmatpush.msra.mxu0 %v833
        %2700 = vmatpush.msra.mxu0 %v817
        %2701 = vmatmul.f32.gmra.mxu0 %v2121
        %v2702 = vpop.f32.mrf.mxu0
        %v2703 = vadd.f32 %v2101, %v2702
        %2704 = vdwg.mxu0
        %2705 = vmatpush.msra.mxu0 %v1313
        %2706 = vmatpush.msra.mxu0 %v1297
        %2707 = vmatpush.msra.mxu0 %v1281
        %2708 = vmatpush.msra.mxu0 %v1265
        %2709 = vmatpush.msra.mxu0 %v1249
        %2710 = vmatpush.msra.mxu0 %v1233
        %2711 = vmatpush.msra.mxu0 %v1217
        %2712 = vmatpush.msra.mxu0 %v1201
        %2713 = vmatpush.msra.mxu0 %v1185
        %2714 = vmatpush.msra.mxu0 %v1169
        %2715 = vmatpush.msra.mxu0 %v1153
        %2716 = vmatpush.msra.mxu0 %v1137
        %2717 = vmatpush.msra.mxu0 %v1121
        %2718 = vmatpush.msra.mxu0 %v1105
        %2719 = vmatpush.msra.mxu0 %v1089
        %2720 = vmatpush.msra.mxu0 %v1073
        %2721 = vmatmul.f32.gmra.mxu0 %v2122
        %v2722 = vpop.f32.mrf.mxu0
        %v2723 = vadd.f32 %v2703, %v2722
        %2724 = vdwg.mxu0
        %2725 = vmatpush.msra.mxu0 %v1058
        %2726 = vmatpush.msra.mxu0 %v1042
        %2727 = vmatpush.msra.mxu0 %v1026
        %2728 = vmatpush.msra.mxu0 %v1010
        %2729 = vmatpush.msra.mxu0 %v994
        %2730 = vmatpush.msra.mxu0 %v978
        %2731 = vmatpush.msra.mxu0 %v962
        %2732 = vmatpush.msra.mxu0 %v946
        %2733 = vmatpush.msra.mxu0 %v930
        %2734 = vmatpush.msra.mxu0 %v914
        %2735 = vmatpush.msra.mxu0 %v898
        %2736 = vmatpush.msra.mxu0 %v882
        %2737 = vmatpush.msra.mxu0 %v866
        %2738 = vmatpush.msra.mxu0 %v850
        %2739 = vmatpush.msra.mxu0 %v834
        %2740 = vmatpush.msra.mxu0 %v818
        %2741 = vmatmul.f32.gmra.mxu0 %v2121
        %v2742 = vpop.f32.mrf.mxu0
        %v2743 = vadd.f32 %v2102, %v2742
        %2744 = vdwg.mxu0
        %2745 = vmatpush.msra.mxu0 %v1314
        %2746 = vmatpush.msra.mxu0 %v1298
        %2747 = vmatpush.msra.mxu0 %v1282
        %2748 = vmatpush.msra.mxu0 %v1266
        %2749 = vmatpush.msra.mxu0 %v1250
        %2750 = vmatpush.msra.mxu0 %v1234
        %2751 = vmatpush.msra.mxu0 %v1218
        %2752 = vmatpush.msra.mxu0 %v1202
        %2753 = vmatpush.msra.mxu0 %v1186
        %2754 = vmatpush.msra.mxu0 %v1170
        %2755 = vmatpush.msra.mxu0 %v1154
        %2756 = vmatpush.msra.mxu0 %v1138
        %2757 = vmatpush.msra.mxu0 %v1122
        %2758 = vmatpush.msra.mxu0 %v1106
        %2759 = vmatpush.msra.mxu0 %v1090
        %2760 = vmatpush.msra.mxu0 %v1074
        %2761 = vmatmul.f32.gmra.mxu0 %v2122
        %v2762 = vpop.f32.mrf.mxu0
        %v2763 = vadd.f32 %v2743, %v2762
        %2764 = vdwg.mxu0
        %v2765 = vld [vmem:[%s451] sm:$0xff]
        %v2766 = vld [vmem:[%s451 + $0x8] sm:$0xff]
        %v2769 = vperm.slane %v2765, 0
        %v2770 = vperm.slane %v2765, 1
        %v2771 = vperm.slane %v2765, 2
        %v2772 = vperm.slane %v2765, 3
        %v2773 = vperm.slane %v2765, 4
        %v2774 = vperm.slane %v2765, 5
        %v2775 = vperm.slane %v2765, 6
        %v2776 = vperm.slane %v2765, 7
        %v2777 = vperm.slane %v2766, 0
        %v2778 = vperm.slane %v2766, 1
        %v2779 = vperm.slane %v2766, 2
        %v2780 = vperm.slane %v2766, 3
        %v2781 = vperm.slane %v2766, 4
        %v2782 = vperm.slane %v2766, 5
        %v2783 = vperm.slane %v2766, 6
        %v2784 = vperm.slane %v2766, 7
        %2801 = vst [vmem:[#allocation1] ss:$4 sm:$0xff] %v546
        %v2802 = vld.sshfl [vmem:[#allocation1] sm:$0xff pattern:$0x73625140]
        %v2803 = vld.sshfl [vmem:[#allocation1 + $0x8] sm:$0xff pattern:$0x73625140]
        %2806 = vmatpush.msra.mxu0 %v1811
        %2807 = vmatpush.msra.mxu0 %v1795
        %2808 = vmatpush.msra.mxu0 %v1779
        %2809 = vmatpush.msra.mxu0 %v1763
        %2810 = vmatpush.msra.mxu0 %v1747
        %2811 = vmatpush.msra.mxu0 %v1731
        %2812 = vmatpush.msra.mxu0 %v1715
        %2813 = vmatpush.msra.mxu0 %v1699
        %2814 = vmatpush.msra.mxu0 %v1683
        %2815 = vmatpush.msra.mxu0 %v1667
        %2816 = vmatpush.msra.mxu0 %v1651
        %2817 = vmatpush.msra.mxu0 %v1635
        %2818 = vmatpush.msra.mxu0 %v1619
        %2819 = vmatpush.msra.mxu0 %v1603
        %2820 = vmatpush.msra.mxu0 %v1587
        %2821 = vmatpush.msra.mxu0 %v1571
        %2822 = vmatmul.f32.gmra.mxu0 %v2802
        %v2823 = vpop.f32.mrf.mxu0
        %v2824 = vadd.f32 %v2769, %v2823
        %2825 = vdwg.mxu0
        %2826 = vmatpush.msra.mxu0 %v2067
        %2827 = vmatpush.msra.mxu0 %v2051
        %2828 = vmatpush.msra.mxu0 %v2035
        %2829 = vmatpush.msra.mxu0 %v2019
        %2830 = vmatpush.msra.mxu0 %v2003
        %2831 = vmatpush.msra.mxu0 %v1987
        %2832 = vmatpush.msra.mxu0 %v1971
        %2833 = vmatpush.msra.mxu0 %v1955
        %2834 = vmatpush.msra.mxu0 %v1939
        %2835 = vmatpush.msra.mxu0 %v1923
        %2836 = vmatpush.msra.mxu0 %v1907
        %2837 = vmatpush.msra.mxu0 %v1891
        %2838 = vmatpush.msra.mxu0 %v1875
        %2839 = vmatpush.msra.mxu0 %v1859
        %2840 = vmatpush.msra.mxu0 %v1843
        %2841 = vmatpush.msra.mxu0 %v1827
        %2842 = vmatmul.f32.gmra.mxu0 %v2803
        %v2843 = vpop.f32.mrf.mxu0
        %v2844 = vadd.f32 %v2824, %v2843
        %2845 = vdwg.mxu0
        %2846 = vmatpush.msra.mxu0 %v1812
        %2847 = vmatpush.msra.mxu0 %v1796
        %2848 = vmatpush.msra.mxu0 %v1780
        %2849 = vmatpush.msra.mxu0 %v1764
        %2850 = vmatpush.msra.mxu0 %v1748
        %2851 = vmatpush.msra.mxu0 %v1732
        %2852 = vmatpush.msra.mxu0 %v1716
        %2853 = vmatpush.msra.mxu0 %v1700
        %2854 = vmatpush.msra.mxu0 %v1684
        %2855 = vmatpush.msra.mxu0 %v1668
        %2856 = vmatpush.msra.mxu0 %v1652
        %2857 = vmatpush.msra.mxu0 %v1636
        %2858 = vmatpush.msra.mxu0 %v1620
        %2859 = vmatpush.msra.mxu0 %v1604
        %2860 = vmatpush.msra.mxu0 %v1588
        %2861 = vmatpush.msra.mxu0 %v1572
        %2862 = vmatmul.f32.gmra.mxu0 %v2802
        %v2863 = vpop.f32.mrf.mxu0
        %v2864 = vadd.f32 %v2770, %v2863
        %2865 = vdwg.mxu0
        %2866 = vmatpush.msra.mxu0 %v2068
        %2867 = vmatpush.msra.mxu0 %v2052
        %2868 = vmatpush.msra.mxu0 %v2036
        %2869 = vmatpush.msra.mxu0 %v2020
        %2870 = vmatpush.msra.mxu0 %v2004
        %2871 = vmatpush.msra.mxu0 %v1988
        %2872 = vmatpush.msra.mxu0 %v1972
        %2873 = vmatpush.msra.mxu0 %v1956
        %2874 = vmatpush.msra.mxu0 %v1940
        %2875 = vmatpush.msra.mxu0 %v1924
        %2876 = vmatpush.msra.mxu0 %v1908
        %2877 = vmatpush.msra.mxu0 %v1892
        %2878 = vmatpush.msra.mxu0 %v1876
        %2879 = vmatpush.msra.mxu0 %v1860
        %2880 = vmatpush.msra.mxu0 %v1844
        %2881 = vmatpush.msra.mxu0 %v1828
        %2882 = vmatmul.f32.gmra.mxu0 %v2803
        %v2883 = vpop.f32.mrf.mxu0
        %v2884 = vadd.f32 %v2864, %v2883
        %2885 = vdwg.mxu0
        %2886 = vmatpush.msra.mxu0 %v1813
        %2887 = vmatpush.msra.mxu0 %v1797
        %2888 = vmatpush.msra.mxu0 %v1781
        %2889 = vmatpush.msra.mxu0 %v1765
        %2890 = vmatpush.msra.mxu0 %v1749
        %2891 = vmatpush.msra.mxu0 %v1733
        %2892 = vmatpush.msra.mxu0 %v1717
        %2893 = vmatpush.msra.mxu0 %v1701
        %2894 = vmatpush.msra.mxu0 %v1685
        %2895 = vmatpush.msra.mxu0 %v1669
        %2896 = vmatpush.msra.mxu0 %v1653
        %2897 = vmatpush.msra.mxu0 %v1637
        %2898 = vmatpush.msra.mxu0 %v1621
        %2899 = vmatpush.msra.mxu0 %v1605
        %2900 = vmatpush.msra.mxu0 %v1589
        %2901 = vmatpush.msra.mxu0 %v1573
        %2902 = vmatmul.f32.gmra.mxu0 %v2802
        %v2903 = vpop.f32.mrf.mxu0
        %v2904 = vadd.f32 %v2771, %v2903
        %2905 = vdwg.mxu0
        %2906 = vmatpush.msra.mxu0 %v2069
        %2907 = vmatpush.msra.mxu0 %v2053
        %2908 = vmatpush.msra.mxu0 %v2037
        %2909 = vmatpush.msra.mxu0 %v2021
        %2910 = vmatpush.msra.mxu0 %v2005
        %2911 = vmatpush.msra.mxu0 %v1989
        %2912 = vmatpush.msra.mxu0 %v1973
        %2913 = vmatpush.msra.mxu0 %v1957
        %2914 = vmatpush.msra.mxu0 %v1941
        %2915 = vmatpush.msra.mxu0 %v1925
        %2916 = vmatpush.msra.mxu0 %v1909
        %2917 = vmatpush.msra.mxu0 %v1893
        %2918 = vmatpush.msra.mxu0 %v1877
        %2919 = vmatpush.msra.mxu0 %v1861
        %2920 = vmatpush.msra.mxu0 %v1845
        %2921 = vmatpush.msra.mxu0 %v1829
        %2922 = vmatmul.f32.gmra.mxu0 %v2803
        %v2923 = vpop.f32.mrf.mxu0
        %v2924 = vadd.f32 %v2904, %v2923
        %2925 = vdwg.mxu0
        %2926 = vmatpush.msra.mxu0 %v1814
        %2927 = vmatpush.msra.mxu0 %v1798
        %2928 = vmatpush.msra.mxu0 %v1782
        %2929 = vmatpush.msra.mxu0 %v1766
        %2930 = vmatpush.msra.mxu0 %v1750
        %2931 = vmatpush.msra.mxu0 %v1734
        %2932 = vmatpush.msra.mxu0 %v1718
        %2933 = vmatpush.msra.mxu0 %v1702
        %2934 = vmatpush.msra.mxu0 %v1686
        %2935 = vmatpush.msra.mxu0 %v1670
        %2936 = vmatpush.msra.mxu0 %v1654
        %2937 = vmatpush.msra.mxu0 %v1638
        %2938 = vmatpush.msra.mxu0 %v1622
        %2939 = vmatpush.msra.mxu0 %v1606
        %2940 = vmatpush.msra.mxu0 %v1590
        %2941 = vmatpush.msra.mxu0 %v1574
        %2942 = vmatmul.f32.gmra.mxu0 %v2802
        %v2943 = vpop.f32.mrf.mxu0
        %v2944 = vadd.f32 %v2772, %v2943
        %2945 = vdwg.mxu0
        %2946 = vmatpush.msra.mxu0 %v2070
        %2947 = vmatpush.msra.mxu0 %v2054
        %2948 = vmatpush.msra.mxu0 %v2038
        %2949 = vmatpush.msra.mxu0 %v2022
        %2950 = vmatpush.msra.mxu0 %v2006
        %2951 = vmatpush.msra.mxu0 %v1990
        %2952 = vmatpush.msra.mxu0 %v1974
        %2953 = vmatpush.msra.mxu0 %v1958
        %2954 = vmatpush.msra.mxu0 %v1942
        %2955 = vmatpush.msra.mxu0 %v1926
        %2956 = vmatpush.msra.mxu0 %v1910
        %2957 = vmatpush.msra.mxu0 %v1894
        %2958 = vmatpush.msra.mxu0 %v1878
        %2959 = vmatpush.msra.mxu0 %v1862
        %2960 = vmatpush.msra.mxu0 %v1846
        %2961 = vmatpush.msra.mxu0 %v1830
        %2962 = vmatmul.f32.gmra.mxu0 %v2803
        %v2963 = vpop.f32.mrf.mxu0
        %v2964 = vadd.f32 %v2944, %v2963
        %2965 = vdwg.mxu0
        %2966 = vmatpush.msra.mxu0 %v1815
        %2967 = vmatpush.msra.mxu0 %v1799
        %2968 = vmatpush.msra.mxu0 %v1783
        %2969 = vmatpush.msra.mxu0 %v1767
        %2970 = vmatpush.msra.mxu0 %v1751
        %2971 = vmatpush.msra.mxu0 %v1735
        %2972 = vmatpush.msra.mxu0 %v1719
        %2973 = vmatpush.msra.mxu0 %v1703
        %2974 = vmatpush.msra.mxu0 %v1687
        %2975 = vmatpush.msra.mxu0 %v1671
        %2976 = vmatpush.msra.mxu0 %v1655
        %2977 = vmatpush.msra.mxu0 %v1639
        %2978 = vmatpush.msra.mxu0 %v1623
        %2979 = vmatpush.msra.mxu0 %v1607
        %2980 = vmatpush.msra.mxu0 %v1591
        %2981 = vmatpush.msra.mxu0 %v1575
        %2982 = vmatmul.f32.gmra.mxu0 %v2802
        %v2983 = vpop.f32.mrf.mxu0
        %v2984 = vadd.f32 %v2773, %v2983
        %2985 = vdwg.mxu0
        %2986 = vmatpush.msra.mxu0 %v2071
        %2987 = vmatpush.msra.mxu0 %v2055
        %2988 = vmatpush.msra.mxu0 %v2039
        %2989 = vmatpush.msra.mxu0 %v2023
        %2990 = vmatpush.msra.mxu0 %v2007
        %2991 = vmatpush.msra.mxu0 %v1991
        %2992 = vmatpush.msra.mxu0 %v1975
        %2993 = vmatpush.msra.mxu0 %v1959
        %2994 = vmatpush.msra.mxu0 %v1943
        %2995 = vmatpush.msra.mxu0 %v1927
        %2996 = vmatpush.msra.mxu0 %v1911
        %2997 = vmatpush.msra.mxu0 %v1895
        %2998 = vmatpush.msra.mxu0 %v1879
        %2999 = vmatpush.msra.mxu0 %v1863
        %3000 = vmatpush.msra.mxu0 %v1847
        %3001 = vmatpush.msra.mxu0 %v1831
        %3002 = vmatmul.f32.gmra.mxu0 %v2803
        %v3003 = vpop.f32.mrf.mxu0
        %v3004 = vadd.f32 %v2984, %v3003
        %3005 = vdwg.mxu0
        %3006 = vmatpush.msra.mxu0 %v1816
        %3007 = vmatpush.msra.mxu0 %v1800
        %3008 = vmatpush.msra.mxu0 %v1784
        %3009 = vmatpush.msra.mxu0 %v1768
        %3010 = vmatpush.msra.mxu0 %v1752
        %3011 = vmatpush.msra.mxu0 %v1736
        %3012 = vmatpush.msra.mxu0 %v1720
        %3013 = vmatpush.msra.mxu0 %v1704
        %3014 = vmatpush.msra.mxu0 %v1688
        %3015 = vmatpush.msra.mxu0 %v1672
        %3016 = vmatpush.msra.mxu0 %v1656
        %3017 = vmatpush.msra.mxu0 %v1640
        %3018 = vmatpush.msra.mxu0 %v1624
        %3019 = vmatpush.msra.mxu0 %v1608
        %3020 = vmatpush.msra.mxu0 %v1592
        %3021 = vmatpush.msra.mxu0 %v1576
        %3022 = vmatmul.f32.gmra.mxu0 %v2802
        %v3023 = vpop.f32.mrf.mxu0
        %v3024 = vadd.f32 %v2774, %v3023
        %3025 = vdwg.mxu0
        %3026 = vmatpush.msra.mxu0 %v2072
        %3027 = vmatpush.msra.mxu0 %v2056
        %3028 = vmatpush.msra.mxu0 %v2040
        %3029 = vmatpush.msra.mxu0 %v2024
        %3030 = vmatpush.msra.mxu0 %v2008
        %3031 = vmatpush.msra.mxu0 %v1992
        %3032 = vmatpush.msra.mxu0 %v1976
        %3033 = vmatpush.msra.mxu0 %v1960
        %3034 = vmatpush.msra.mxu0 %v1944
        %3035 = vmatpush.msra.mxu0 %v1928
        %3036 = vmatpush.msra.mxu0 %v1912
        %3037 = vmatpush.msra.mxu0 %v1896
        %3038 = vmatpush.msra.mxu0 %v1880
        %3039 = vmatpush.msra.mxu0 %v1864
        %3040 = vmatpush.msra.mxu0 %v1848
        %3041 = vmatpush.msra.mxu0 %v1832
        %3042 = vmatmul.f32.gmra.mxu0 %v2803
        %v3043 = vpop.f32.mrf.mxu0
        %v3044 = vadd.f32 %v3024, %v3043
        %3045 = vdwg.mxu0
        %3046 = vmatpush.msra.mxu0 %v1817
        %3047 = vmatpush.msra.mxu0 %v1801
        %3048 = vmatpush.msra.mxu0 %v1785
        %3049 = vmatpush.msra.mxu0 %v1769
        %3050 = vmatpush.msra.mxu0 %v1753
        %3051 = vmatpush.msra.mxu0 %v1737
        %3052 = vmatpush.msra.mxu0 %v1721
        %3053 = vmatpush.msra.mxu0 %v1705
        %3054 = vmatpush.msra.mxu0 %v1689
        %3055 = vmatpush.msra.mxu0 %v1673
        %3056 = vmatpush.msra.mxu0 %v1657
        %3057 = vmatpush.msra.mxu0 %v1641
        %3058 = vmatpush.msra.mxu0 %v1625
        %3059 = vmatpush.msra.mxu0 %v1609
        %3060 = vmatpush.msra.mxu0 %v1593
        %3061 = vmatpush.msra.mxu0 %v1577
        %3062 = vmatmul.f32.gmra.mxu0 %v2802
        %v3063 = vpop.f32.mrf.mxu0
        %v3064 = vadd.f32 %v2775, %v3063
        %3065 = vdwg.mxu0
        %3066 = vmatpush.msra.mxu0 %v2073
        %3067 = vmatpush.msra.mxu0 %v2057
        %3068 = vmatpush.msra.mxu0 %v2041
        %3069 = vmatpush.msra.mxu0 %v2025
        %3070 = vmatpush.msra.mxu0 %v2009
        %3071 = vmatpush.msra.mxu0 %v1993
        %3072 = vmatpush.msra.mxu0 %v1977
        %3073 = vmatpush.msra.mxu0 %v1961
        %3074 = vmatpush.msra.mxu0 %v1945
        %3075 = vmatpush.msra.mxu0 %v1929
        %3076 = vmatpush.msra.mxu0 %v1913
        %3077 = vmatpush.msra.mxu0 %v1897
        %3078 = vmatpush.msra.mxu0 %v1881
        %3079 = vmatpush.msra.mxu0 %v1865
        %3080 = vmatpush.msra.mxu0 %v1849
        %3081 = vmatpush.msra.mxu0 %v1833
        %3082 = vmatmul.f32.gmra.mxu0 %v2803
        %v3083 = vpop.f32.mrf.mxu0
        %v3084 = vadd.f32 %v3064, %v3083
        %3085 = vdwg.mxu0
        %3086 = vmatpush.msra.mxu0 %v1818
        %3087 = vmatpush.msra.mxu0 %v1802
        %3088 = vmatpush.msra.mxu0 %v1786
        %3089 = vmatpush.msra.mxu0 %v1770
        %3090 = vmatpush.msra.mxu0 %v1754
        %3091 = vmatpush.msra.mxu0 %v1738
        %3092 = vmatpush.msra.mxu0 %v1722
        %3093 = vmatpush.msra.mxu0 %v1706
        %3094 = vmatpush.msra.mxu0 %v1690
        %3095 = vmatpush.msra.mxu0 %v1674
        %3096 = vmatpush.msra.mxu0 %v1658
        %3097 = vmatpush.msra.mxu0 %v1642
        %3098 = vmatpush.msra.mxu0 %v1626
        %3099 = vmatpush.msra.mxu0 %v1610
        %3100 = vmatpush.msra.mxu0 %v1594
        %3101 = vmatpush.msra.mxu0 %v1578
        %3102 = vmatmul.f32.gmra.mxu0 %v2802
        %v3103 = vpop.f32.mrf.mxu0
        %v3104 = vadd.f32 %v2776, %v3103
        %3105 = vdwg.mxu0
        %3106 = vmatpush.msra.mxu0 %v2074
        %3107 = vmatpush.msra.mxu0 %v2058
        %3108 = vmatpush.msra.mxu0 %v2042
        %3109 = vmatpush.msra.mxu0 %v2026
        %3110 = vmatpush.msra.mxu0 %v2010
        %3111 = vmatpush.msra.mxu0 %v1994
        %3112 = vmatpush.msra.mxu0 %v1978
        %3113 = vmatpush.msra.mxu0 %v1962
        %3114 = vmatpush.msra.mxu0 %v1946
        %3115 = vmatpush.msra.mxu0 %v1930
        %3116 = vmatpush.msra.mxu0 %v1914
        %3117 = vmatpush.msra.mxu0 %v1898
        %3118 = vmatpush.msra.mxu0 %v1882
        %3119 = vmatpush.msra.mxu0 %v1866
        %3120 = vmatpush.msra.mxu0 %v1850
        %3121 = vmatpush.msra.mxu0 %v1834
        %3122 = vmatmul.f32.gmra.mxu0 %v2803
        %v3123 = vpop.f32.mrf.mxu0
        %v3124 = vadd.f32 %v3104, %v3123
        %3125 = vdwg.mxu0
        %3126 = vmatpush.msra.mxu0 %v1819
        %3127 = vmatpush.msra.mxu0 %v1803
        %3128 = vmatpush.msra.mxu0 %v1787
        %3129 = vmatpush.msra.mxu0 %v1771
        %3130 = vmatpush.msra.mxu0 %v1755
        %3131 = vmatpush.msra.mxu0 %v1739
        %3132 = vmatpush.msra.mxu0 %v1723
        %3133 = vmatpush.msra.mxu0 %v1707
        %3134 = vmatpush.msra.mxu0 %v1691
        %3135 = vmatpush.msra.mxu0 %v1675
        %3136 = vmatpush.msra.mxu0 %v1659
        %3137 = vmatpush.msra.mxu0 %v1643
        %3138 = vmatpush.msra.mxu0 %v1627
        %3139 = vmatpush.msra.mxu0 %v1611
        %3140 = vmatpush.msra.mxu0 %v1595
        %3141 = vmatpush.msra.mxu0 %v1579
        %3142 = vmatmul.f32.gmra.mxu0 %v2802
        %v3143 = vpop.f32.mrf.mxu0
        %v3144 = vadd.f32 %v2777, %v3143
        %3145 = vdwg.mxu0
        %3146 = vmatpush.msra.mxu0 %v2075
        %3147 = vmatpush.msra.mxu0 %v2059
        %3148 = vmatpush.msra.mxu0 %v2043
        %3149 = vmatpush.msra.mxu0 %v2027
        %3150 = vmatpush.msra.mxu0 %v2011
        %3151 = vmatpush.msra.mxu0 %v1995
        %3152 = vmatpush.msra.mxu0 %v1979
        %3153 = vmatpush.msra.mxu0 %v1963
        %3154 = vmatpush.msra.mxu0 %v1947
        %3155 = vmatpush.msra.mxu0 %v1931
        %3156 = vmatpush.msra.mxu0 %v1915
        %3157 = vmatpush.msra.mxu0 %v1899
        %3158 = vmatpush.msra.mxu0 %v1883
        %3159 = vmatpush.msra.mxu0 %v1867
        %3160 = vmatpush.msra.mxu0 %v1851
        %3161 = vmatpush.msra.mxu0 %v1835
        %3162 = vmatmul.f32.gmra.mxu0 %v2803
        %v3163 = vpop.f32.mrf.mxu0
        %v3164 = vadd.f32 %v3144, %v3163
        %3165 = vdwg.mxu0
        %3166 = vmatpush.msra.mxu0 %v1820
        %3167 = vmatpush.msra.mxu0 %v1804
        %3168 = vmatpush.msra.mxu0 %v1788
        %3169 = vmatpush.msra.mxu0 %v1772
        %3170 = vmatpush.msra.mxu0 %v1756
        %3171 = vmatpush.msra.mxu0 %v1740
        %3172 = vmatpush.msra.mxu0 %v1724
        %3173 = vmatpush.msra.mxu0 %v1708
        %3174 = vmatpush.msra.mxu0 %v1692
        %3175 = vmatpush.msra.mxu0 %v1676
        %3176 = vmatpush.msra.mxu0 %v1660
        %3177 = vmatpush.msra.mxu0 %v1644
        %3178 = vmatpush.msra.mxu0 %v1628
        %3179 = vmatpush.msra.mxu0 %v1612
        %3180 = vmatpush.msra.mxu0 %v1596
        %3181 = vmatpush.msra.mxu0 %v1580
        %3182 = vmatmul.f32.gmra.mxu0 %v2802
        %v3183 = vpop.f32.mrf.mxu0
        %v3184 = vadd.f32 %v2778, %v3183
        %3185 = vdwg.mxu0
        %3186 = vmatpush.msra.mxu0 %v2076
        %3187 = vmatpush.msra.mxu0 %v2060
        %3188 = vmatpush.msra.mxu0 %v2044
        %3189 = vmatpush.msra.mxu0 %v2028
        %3190 = vmatpush.msra.mxu0 %v2012
        %3191 = vmatpush.msra.mxu0 %v1996
        %3192 = vmatpush.msra.mxu0 %v1980
        %3193 = vmatpush.msra.mxu0 %v1964
        %3194 = vmatpush.msra.mxu0 %v1948
        %3195 = vmatpush.msra.mxu0 %v1932
        %3196 = vmatpush.msra.mxu0 %v1916
        %3197 = vmatpush.msra.mxu0 %v1900
        %3198 = vmatpush.msra.mxu0 %v1884
        %3199 = vmatpush.msra.mxu0 %v1868
        %3200 = vmatpush.msra.mxu0 %v1852
        %3201 = vmatpush.msra.mxu0 %v1836
        %3202 = vmatmul.f32.gmra.mxu0 %v2803
        %v3203 = vpop.f32.mrf.mxu0
        %v3204 = vadd.f32 %v3184, %v3203
        %3205 = vdwg.mxu0
        %3206 = vmatpush.msra.mxu0 %v1821
        %3207 = vmatpush.msra.mxu0 %v1805
        %3208 = vmatpush.msra.mxu0 %v1789
        %3209 = vmatpush.msra.mxu0 %v1773
        %3210 = vmatpush.msra.mxu0 %v1757
        %3211 = vmatpush.msra.mxu0 %v1741
        %3212 = vmatpush.msra.mxu0 %v1725
        %3213 = vmatpush.msra.mxu0 %v1709
        %3214 = vmatpush.msra.mxu0 %v1693
        %3215 = vmatpush.msra.mxu0 %v1677
        %3216 = vmatpush.msra.mxu0 %v1661
        %3217 = vmatpush.msra.mxu0 %v1645
        %3218 = vmatpush.msra.mxu0 %v1629
        %3219 = vmatpush.msra.mxu0 %v1613
        %3220 = vmatpush.msra.mxu0 %v1597
        %3221 = vmatpush.msra.mxu0 %v1581
        %3222 = vmatmul.f32.gmra.mxu0 %v2802
        %v3223 = vpop.f32.mrf.mxu0
        %v3224 = vadd.f32 %v2779, %v3223
        %3225 = vdwg.mxu0
        %3226 = vmatpush.msra.mxu0 %v2077
        %3227 = vmatpush.msra.mxu0 %v2061
        %3228 = vmatpush.msra.mxu0 %v2045
        %3229 = vmatpush.msra.mxu0 %v2029
        %3230 = vmatpush.msra.mxu0 %v2013
        %3231 = vmatpush.msra.mxu0 %v1997
        %3232 = vmatpush.msra.mxu0 %v1981
        %3233 = vmatpush.msra.mxu0 %v1965
        %3234 = vmatpush.msra.mxu0 %v1949
        %3235 = vmatpush.msra.mxu0 %v1933
        %3236 = vmatpush.msra.mxu0 %v1917
        %3237 = vmatpush.msra.mxu0 %v1901
        %3238 = vmatpush.msra.mxu0 %v1885
        %3239 = vmatpush.msra.mxu0 %v1869
        %3240 = vmatpush.msra.mxu0 %v1853
        %3241 = vmatpush.msra.mxu0 %v1837
        %3242 = vmatmul.f32.gmra.mxu0 %v2803
        %v3243 = vpop.f32.mrf.mxu0
        %v3244 = vadd.f32 %v3224, %v3243
        %3245 = vdwg.mxu0
        %3246 = vmatpush.msra.mxu0 %v1822
        %3247 = vmatpush.msra.mxu0 %v1806
        %3248 = vmatpush.msra.mxu0 %v1790
        %3249 = vmatpush.msra.mxu0 %v1774
        %3250 = vmatpush.msra.mxu0 %v1758
        %3251 = vmatpush.msra.mxu0 %v1742
        %3252 = vmatpush.msra.mxu0 %v1726
        %3253 = vmatpush.msra.mxu0 %v1710
        %3254 = vmatpush.msra.mxu0 %v1694
        %3255 = vmatpush.msra.mxu0 %v1678
        %3256 = vmatpush.msra.mxu0 %v1662
        %3257 = vmatpush.msra.mxu0 %v1646
        %3258 = vmatpush.msra.mxu0 %v1630
        %3259 = vmatpush.msra.mxu0 %v1614
        %3260 = vmatpush.msra.mxu0 %v1598
        %3261 = vmatpush.msra.mxu0 %v1582
        %3262 = vmatmul.f32.gmra.mxu0 %v2802
        %v3263 = vpop.f32.mrf.mxu0
        %v3264 = vadd.f32 %v2780, %v3263
        %3265 = vdwg.mxu0
        %3266 = vmatpush.msra.mxu0 %v2078
        %3267 = vmatpush.msra.mxu0 %v2062
        %3268 = vmatpush.msra.mxu0 %v2046
        %3269 = vmatpush.msra.mxu0 %v2030
        %3270 = vmatpush.msra.mxu0 %v2014
        %3271 = vmatpush.msra.mxu0 %v1998
        %3272 = vmatpush.msra.mxu0 %v1982
        %3273 = vmatpush.msra.mxu0 %v1966
        %3274 = vmatpush.msra.mxu0 %v1950
        %3275 = vmatpush.msra.mxu0 %v1934
        %3276 = vmatpush.msra.mxu0 %v1918
        %3277 = vmatpush.msra.mxu0 %v1902
        %3278 = vmatpush.msra.mxu0 %v1886
        %3279 = vmatpush.msra.mxu0 %v1870
        %3280 = vmatpush.msra.mxu0 %v1854
        %3281 = vmatpush.msra.mxu0 %v1838
        %3282 = vmatmul.f32.gmra.mxu0 %v2803
        %v3283 = vpop.f32.mrf.mxu0
        %v3284 = vadd.f32 %v3264, %v3283
        %3285 = vdwg.mxu0
        %3286 = vmatpush.msra.mxu0 %v1823
        %3287 = vmatpush.msra.mxu0 %v1807
        %3288 = vmatpush.msra.mxu0 %v1791
        %3289 = vmatpush.msra.mxu0 %v1775
        %3290 = vmatpush.msra.mxu0 %v1759
        %3291 = vmatpush.msra.mxu0 %v1743
        %3292 = vmatpush.msra.mxu0 %v1727
        %3293 = vmatpush.msra.mxu0 %v1711
        %3294 = vmatpush.msra.mxu0 %v1695
        %3295 = vmatpush.msra.mxu0 %v1679
        %3296 = vmatpush.msra.mxu0 %v1663
        %3297 = vmatpush.msra.mxu0 %v1647
        %3298 = vmatpush.msra.mxu0 %v1631
        %3299 = vmatpush.msra.mxu0 %v1615
        %3300 = vmatpush.msra.mxu0 %v1599
        %3301 = vmatpush.msra.mxu0 %v1583
        %3302 = vmatmul.f32.gmra.mxu0 %v2802
        %v3303 = vpop.f32.mrf.mxu0
        %v3304 = vadd.f32 %v2781, %v3303
        %3305 = vdwg.mxu0
        %3306 = vmatpush.msra.mxu0 %v2079
        %3307 = vmatpush.msra.mxu0 %v2063
        %3308 = vmatpush.msra.mxu0 %v2047
        %3309 = vmatpush.msra.mxu0 %v2031
        %3310 = vmatpush.msra.mxu0 %v2015
        %3311 = vmatpush.msra.mxu0 %v1999
        %3312 = vmatpush.msra.mxu0 %v1983
        %3313 = vmatpush.msra.mxu0 %v1967
        %3314 = vmatpush.msra.mxu0 %v1951
        %3315 = vmatpush.msra.mxu0 %v1935
        %3316 = vmatpush.msra.mxu0 %v1919
        %3317 = vmatpush.msra.mxu0 %v1903
        %3318 = vmatpush.msra.mxu0 %v1887
        %3319 = vmatpush.msra.mxu0 %v1871
        %3320 = vmatpush.msra.mxu0 %v1855
        %3321 = vmatpush.msra.mxu0 %v1839
        %3322 = vmatmul.f32.gmra.mxu0 %v2803
        %v3323 = vpop.f32.mrf.mxu0
        %v3324 = vadd.f32 %v3304, %v3323
        %3325 = vdwg.mxu0
        %3326 = vmatpush.msra.mxu0 %v1824
        %3327 = vmatpush.msra.mxu0 %v1808
        %3328 = vmatpush.msra.mxu0 %v1792
        %3329 = vmatpush.msra.mxu0 %v1776
        %3330 = vmatpush.msra.mxu0 %v1760
        %3331 = vmatpush.msra.mxu0 %v1744
        %3332 = vmatpush.msra.mxu0 %v1728
        %3333 = vmatpush.msra.mxu0 %v1712
        %3334 = vmatpush.msra.mxu0 %v1696
        %3335 = vmatpush.msra.mxu0 %v1680
        %3336 = vmatpush.msra.mxu0 %v1664
        %3337 = vmatpush.msra.mxu0 %v1648
        %3338 = vmatpush.msra.mxu0 %v1632
        %3339 = vmatpush.msra.mxu0 %v1616
        %3340 = vmatpush.msra.mxu0 %v1600
        %3341 = vmatpush.msra.mxu0 %v1584
        %3342 = vmatmul.f32.gmra.mxu0 %v2802
        %v3343 = vpop.f32.mrf.mxu0
        %v3344 = vadd.f32 %v2782, %v3343
        %3345 = vdwg.mxu0
        %3346 = vmatpush.msra.mxu0 %v2080
        %3347 = vmatpush.msra.mxu0 %v2064
        %3348 = vmatpush.msra.mxu0 %v2048
        %3349 = vmatpush.msra.mxu0 %v2032
        %3350 = vmatpush.msra.mxu0 %v2016
        %3351 = vmatpush.msra.mxu0 %v2000
        %3352 = vmatpush.msra.mxu0 %v1984
        %3353 = vmatpush.msra.mxu0 %v1968
        %3354 = vmatpush.msra.mxu0 %v1952
        %3355 = vmatpush.msra.mxu0 %v1936
        %3356 = vmatpush.msra.mxu0 %v1920
        %3357 = vmatpush.msra.mxu0 %v1904
        %3358 = vmatpush.msra.mxu0 %v1888
        %3359 = vmatpush.msra.mxu0 %v1872
        %3360 = vmatpush.msra.mxu0 %v1856
        %3361 = vmatpush.msra.mxu0 %v1840
        %3362 = vmatmul.f32.gmra.mxu0 %v2803
        %v3363 = vpop.f32.mrf.mxu0
        %v3364 = vadd.f32 %v3344, %v3363
        %3365 = vdwg.mxu0
        %3366 = vmatpush.msra.mxu0 %v1825
        %3367 = vmatpush.msra.mxu0 %v1809
        %3368 = vmatpush.msra.mxu0 %v1793
        %3369 = vmatpush.msra.mxu0 %v1777
        %3370 = vmatpush.msra.mxu0 %v1761
        %3371 = vmatpush.msra.mxu0 %v1745
        %3372 = vmatpush.msra.mxu0 %v1729
        %3373 = vmatpush.msra.mxu0 %v1713
        %3374 = vmatpush.msra.mxu0 %v1697
        %3375 = vmatpush.msra.mxu0 %v1681
        %3376 = vmatpush.msra.mxu0 %v1665
        %3377 = vmatpush.msra.mxu0 %v1649
        %3378 = vmatpush.msra.mxu0 %v1633
        %3379 = vmatpush.msra.mxu0 %v1617
        %3380 = vmatpush.msra.mxu0 %v1601
        %3381 = vmatpush.msra.mxu0 %v1585
        %3382 = vmatmul.f32.gmra.mxu0 %v2802
        %v3383 = vpop.f32.mrf.mxu0
        %v3384 = vadd.f32 %v2783, %v3383
        %3385 = vdwg.mxu0
        %3386 = vmatpush.msra.mxu0 %v2081
        %3387 = vmatpush.msra.mxu0 %v2065
        %3388 = vmatpush.msra.mxu0 %v2049
        %3389 = vmatpush.msra.mxu0 %v2033
        %3390 = vmatpush.msra.mxu0 %v2017
        %3391 = vmatpush.msra.mxu0 %v2001
        %3392 = vmatpush.msra.mxu0 %v1985
        %3393 = vmatpush.msra.mxu0 %v1969
        %3394 = vmatpush.msra.mxu0 %v1953
        %3395 = vmatpush.msra.mxu0 %v1937
        %3396 = vmatpush.msra.mxu0 %v1921
        %3397 = vmatpush.msra.mxu0 %v1905
        %3398 = vmatpush.msra.mxu0 %v1889
        %3399 = vmatpush.msra.mxu0 %v1873
        %3400 = vmatpush.msra.mxu0 %v1857
        %3401 = vmatpush.msra.mxu0 %v1841
        %3402 = vmatmul.f32.gmra.mxu0 %v2803
        %v3403 = vpop.f32.mrf.mxu0
        %v3404 = vadd.f32 %v3384, %v3403
        %3405 = vdwg.mxu0
        %3406 = vmatpush.msra.mxu0 %v1826
        %3407 = vmatpush.msra.mxu0 %v1810
        %3408 = vmatpush.msra.mxu0 %v1794
        %3409 = vmatpush.msra.mxu0 %v1778
        %3410 = vmatpush.msra.mxu0 %v1762
        %3411 = vmatpush.msra.mxu0 %v1746
        %3412 = vmatpush.msra.mxu0 %v1730
        %3413 = vmatpush.msra.mxu0 %v1714
        %3414 = vmatpush.msra.mxu0 %v1698
        %3415 = vmatpush.msra.mxu0 %v1682
        %3416 = vmatpush.msra.mxu0 %v1666
        %3417 = vmatpush.msra.mxu0 %v1650
        %3418 = vmatpush.msra.mxu0 %v1634
        %3419 = vmatpush.msra.mxu0 %v1618
        %3420 = vmatpush.msra.mxu0 %v1602
        %3421 = vmatpush.msra.mxu0 %v1586
        %3422 = vmatmul.f32.gmra.mxu0 %v2802
        %v3423 = vpop.f32.mrf.mxu0
        %v3424 = vadd.f32 %v2784, %v3423
        %3425 = vdwg.mxu0
        %3426 = vmatpush.msra.mxu0 %v2082
        %3427 = vmatpush.msra.mxu0 %v2066
        %3428 = vmatpush.msra.mxu0 %v2050
        %3429 = vmatpush.msra.mxu0 %v2034
        %3430 = vmatpush.msra.mxu0 %v2018
        %3431 = vmatpush.msra.mxu0 %v2002
        %3432 = vmatpush.msra.mxu0 %v1986
        %3433 = vmatpush.msra.mxu0 %v1970
        %3434 = vmatpush.msra.mxu0 %v1954
        %3435 = vmatpush.msra.mxu0 %v1938
        %3436 = vmatpush.msra.mxu0 %v1922
        %3437 = vmatpush.msra.mxu0 %v1906
        %3438 = vmatpush.msra.mxu0 %v1890
        %3439 = vmatpush.msra.mxu0 %v1874
        %3440 = vmatpush.msra.mxu0 %v1858
        %3441 = vmatpush.msra.mxu0 %v1842
        %3442 = vmatmul.f32.gmra.mxu0 %v2803
        %v3443 = vpop.f32.mrf.mxu0
        %v3444 = vadd.f32 %v3424, %v3443
        %3445 = vdwg.mxu0
        %v3446 = vmul.f32 %v2844, 0.5
        %v3447 = vmul.f32 %v2884, 0.5
        %v3448 = vmul.f32 %v2924, 0.5
        %v3449 = vmul.f32 %v2964, 0.5
        %v3450 = vmul.f32 %v3004, 0.5
        %v3451 = vmul.f32 %v3044, 0.5
        %v3452 = vmul.f32 %v3084, 0.5
        %v3453 = vmul.f32 %v3124, 0.5
        %v3454 = vmul.f32 %v3164, 0.5
        %v3455 = vmul.f32 %v3204, 0.5
        %v3456 = vmul.f32 %v3244, 0.5
        %v3457 = vmul.f32 %v3284, 0.5
        %v3458 = vmul.f32 %v3324, 0.5
        %v3459 = vmul.f32 %v3364, 0.5
        %v3460 = vmul.f32 %v3404, 0.5
        %v3461 = vmul.f32 %v3444, 0.5
        %v3462 = vmul.f32 %v3446, 1.442695
        %v3463 = vpow.pop %v3462
        %v3464 = vmul.f32 %v3447, 1.442695
        %v3465 = vpow.pop %v3464
        %v3466 = vmul.f32 %v3448, 1.442695
        %v3467 = vpow.pop %v3466
        %v3468 = vmul.f32 %v3449, 1.442695
        %v3469 = vpow.pop %v3468
        %v3470 = vmul.f32 %v3450, 1.442695
        %v3471 = vpow.pop %v3470
        %v3472 = vmul.f32 %v3451, 1.442695
        %v3473 = vpow.pop %v3472
        %v3474 = vmul.f32 %v3452, 1.442695
        %v3475 = vpow.pop %v3474
        %v3476 = vmul.f32 %v3453, 1.442695
        %v3477 = vpow.pop %v3476
        %v3478 = vmul.f32 %v3454, 1.442695
        %v3479 = vpow.pop %v3478
        %v3480 = vmul.f32 %v3455, 1.442695
        %v3481 = vpow.pop %v3480
        %v3482 = vmul.f32 %v3456, 1.442695
        %v3483 = vpow.pop %v3482
        %v3484 = vmul.f32 %v3457, 1.442695
        %v3485 = vpow.pop %v3484
        %v3486 = vmul.f32 %v3458, 1.442695
        %v3487 = vpow.pop %v3486
        %v3488 = vmul.f32 %v3459, 1.442695
        %v3489 = vpow.pop %v3488
        %v3490 = vmul.f32 %v3460, 1.442695
        %v3491 = vpow.pop %v3490
        %v3492 = vmul.f32 %v3461, 1.442695
        %v3493 = vpow.pop %v3492
        %v3494 = vld [vmem:[%s461] sm:$0xff]
        %v3495 = vld [vmem:[%s461 + $0x8] sm:$0xff]
        %v3496 = vld [vmem:[%s461 + $0x10] sm:$0xff]
        %v3497 = vld [vmem:[%s461 + $0x18] sm:$0xff]
        %3502 = vst [vmem:[#allocation1] ss:$4 sm:$0xff] %v3494
        %s3503 = scalar_lea.vmem [#allocation1], 32
        %3504 = vst [vmem:[%s3503] ss:$4 sm:$0xff] %v3495
        %v3505 = vld.sshfl [vmem:[#allocation1] sm:$0xff pattern:$0x73625140]
        %v3506 = vld.sshfl [vmem:[#allocation1 + $0x8] sm:$0xff pattern:$0x73625140]
        %v3507 = vld.sshfl [vmem:[#allocation1 + $0x10] sm:$0xff pattern:$0x73625140]
        %v3508 = vld.sshfl [vmem:[#allocation1 + $0x18] sm:$0xff pattern:$0x73625140]
        %v3509 = vld.sshfl [vmem:[#allocation1 + $0x20] sm:$0xff pattern:$0x73625140]
        %v3510 = vld.sshfl [vmem:[#allocation1 + $0x28] sm:$0xff pattern:$0x73625140]
        %v3511 = vld.sshfl [vmem:[#allocation1 + $0x30] sm:$0xff pattern:$0x73625140]
        %v3512 = vld.sshfl [vmem:[#allocation1 + $0x38] sm:$0xff pattern:$0x73625140]
        %3513 = vst [vmem:[#allocation1] ss:$4 sm:$0xff] %v3496
        %3514 = vst [vmem:[%s3503] ss:$4 sm:$0xff] %v3497
        %v3515 = vld.sshfl [vmem:[#allocation1] sm:$0xff pattern:$0x73625140]
        %v3516 = vld.sshfl [vmem:[#allocation1 + $0x8] sm:$0xff pattern:$0x73625140]
        %v3517 = vld.sshfl [vmem:[#allocation1 + $0x10] sm:$0xff pattern:$0x73625140]
        %v3518 = vld.sshfl [vmem:[#allocation1 + $0x18] sm:$0xff pattern:$0x73625140]
        %v3519 = vld.sshfl [vmem:[#allocation1 + $0x20] sm:$0xff pattern:$0x73625140]
        %v3520 = vld.sshfl [vmem:[#allocation1 + $0x28] sm:$0xff pattern:$0x73625140]
        %v3521 = vld.sshfl [vmem:[#allocation1 + $0x30] sm:$0xff pattern:$0x73625140]
        %v3522 = vld.sshfl [vmem:[#allocation1 + $0x38] sm:$0xff pattern:$0x73625140]
        %v3539 = vmul.f32 %v3463, %v3505
        %v3540 = vmul.f32 %v3465, %v3506
        %v3541 = vmul.f32 %v3467, %v3507
        %v3542 = vmul.f32 %v3469, %v3508
        %v3543 = vmul.f32 %v3471, %v3509
        %v3544 = vmul.f32 %v3473, %v3510
        %v3545 = vmul.f32 %v3475, %v3511
        %v3546 = vmul.f32 %v3477, %v3512
        %v3547 = vmul.f32 %v3479, %v3515
        %v3548 = vmul.f32 %v3481, %v3516
        %v3549 = vmul.f32 %v3483, %v3517
        %v3550 = vmul.f32 %v3485, %v3518
        %v3551 = vmul.f32 %v3487, %v3519
        %v3552 = vmul.f32 %v3489, %v3520
        %v3553 = vmul.f32 %v3491, %v3521
        %v3554 = vmul.f32 %v3493, %v3522
        %v3555 = vadd.f32 %v2163, %v3539
        %v3556 = vadd.f32 %v2203, %v3540
        %v3557 = vadd.f32 %v2243, %v3541
        %v3558 = vadd.f32 %v2283, %v3542
        %v3559 = vadd.f32 %v2323, %v3543
        %v3560 = vadd.f32 %v2363, %v3544
        %v3561 = vadd.f32 %v2403, %v3545
        %v3562 = vadd.f32 %v2443, %v3546
        %v3563 = vadd.f32 %v2483, %v3547
        %v3564 = vadd.f32 %v2523, %v3548
        %v3565 = vadd.f32 %v2563, %v3549
        %v3566 = vadd.f32 %v2603, %v3550
        %v3567 = vadd.f32 %v2643, %v3551
        %v3568 = vadd.f32 %v2683, %v3552
        %v3569 = vadd.f32 %v2723, %v3553
        %v3570 = vadd.f32 %v2763, %v3554
        %v3587 = vrot.slane %v3556, 6
        %v3588 = vrot.slane %v3557, 4
        %v3589 = vrot.slane %v3558, 2
        %v3590 = vrot.slane %v3560, 6
        %v3591 = vrot.slane %v3561, 4
        %v3592 = vrot.slane %v3562, 2
        %v3593 = vrot.slane %v3564, 6
        %v3594 = vrot.slane %v3565, 4
        %v3595 = vrot.slane %v3566, 2
        %v3596 = vrot.slane %v3568, 6
        %v3597 = vrot.slane %v3569, 4
        %v3598 = vrot.slane %v3570, 2
        %vm3599 = vcmask 1041408
        %v3600 = vsel %vm3599, %v3555, %v3587
        %vm3601 = vcmask 1045508
        %v3602 = vsel %vm3601, %v3588, %v3589
        %vm3603 = vcmask 1043456
        %v3604 = vsel %vm3603, %v3600, %v3602
        %v3605 = vsel %vm3599, %v3559, %v3590
        %v3606 = vsel %vm3601, %v3591, %v3592
        %v3607 = vsel %vm3603, %v3605, %v3606
        %v3608 = vsel %vm3599, %v3563, %v3593
        %v3609 = vsel %vm3601, %v3594, %v3595
        %v3610 = vsel %vm3603, %v3608, %v3609
        %v3611 = vsel %vm3599, %v3567, %v3596
        %v3612 = vsel %vm3601, %v3597, %v3598
        %v3613 = vsel %vm3603, %v3611, %v3612
        %3618 = vst [vmem:[%s539] sm:$0xff] %v3604
        %3619 = vst [vmem:[%s539 + $0x8] sm:$0xff] %v3607
        %3620 = vst [vmem:[%s539 + $0x10] sm:$0xff] %v3610
        %3621 = vst [vmem:[%s539 + $0x18] sm:$0xff] %v3613
        %v3638 = vrot.slane %v2203, 6
        %v3639 = vrot.slane %v2243, 4
        %v3640 = vrot.slane %v2283, 2
        %v3641 = vrot.slane %v2363, 6
        %v3642 = vrot.slane %v2403, 4
        %v3643 = vrot.slane %v2443, 2
        %v3644 = vrot.slane %v2523, 6
        %v3645 = vrot.slane %v2563, 4
        %v3646 = vrot.slane %v2603, 2
        %v3647 = vrot.slane %v2683, 6
        %v3648 = vrot.slane %v2723, 4
        %v3649 = vrot.slane %v2763, 2
        %v3650 = vsel %vm3599, %v2163, %v3638
        %v3651 = vsel %vm3601, %v3639, %v3640
        %v3652 = vsel %vm3603, %v3650, %v3651
        %v3653 = vsel %vm3599, %v2323, %v3641
        %v3654 = vsel %vm3601, %v3642, %v3643
        %v3655 = vsel %vm3603, %v3653, %v3654
        %v3656 = vsel %vm3599, %v2483, %v3644
        %v3657 = vsel %vm3601, %v3645, %v3646
        %v3658 = vsel %vm3603, %v3656, %v3657
        %v3659 = vsel %vm3599, %v2643, %v3647
        %v3660 = vsel %vm3601, %v3648, %v3649
        %v3661 = vsel %vm3603, %v3659, %v3660
        %3666 = vst [vmem:[%s517] sm:$0xff] %v3652
        %3667 = vst [vmem:[%s517 + $0x8] sm:$0xff] %v3655
        %3668 = vst [vmem:[%s517 + $0x10] sm:$0xff] %v3658
        %3669 = vst [vmem:[%s517 + $0x18] sm:$0xff] %v3661
        %v3686 = vrot.slane %v2884, 6
        %v3687 = vrot.slane %v2924, 4
        %v3688 = vrot.slane %v2964, 2
        %v3689 = vrot.slane %v3044, 6
        %v3690 = vrot.slane %v3084, 4
        %v3691 = vrot.slane %v3124, 2
        %v3692 = vrot.slane %v3204, 6
        %v3693 = vrot.slane %v3244, 4
        %v3694 = vrot.slane %v3284, 2
        %v3695 = vrot.slane %v3364, 6
        %v3696 = vrot.slane %v3404, 4
        %v3697 = vrot.slane %v3444, 2
        %v3698 = vsel %vm3599, %v2844, %v3686
        %v3699 = vsel %vm3601, %v3687, %v3688
        %v3700 = vsel %vm3603, %v3698, %v3699
        %v3701 = vsel %vm3599, %v3004, %v3689
        %v3702 = vsel %vm3601, %v3690, %v3691
        %v3703 = vsel %vm3603, %v3701, %v3702
        %v3704 = vsel %vm3599, %v3164, %v3692
        %v3705 = vsel %vm3601, %v3693, %v3694
        %v3706 = vsel %vm3603, %v3704, %v3705
        %v3707 = vsel %vm3599, %v3324, %v3695
        %v3708 = vsel %vm3601, %v3696, %v3697
        %v3709 = vsel %vm3603, %v3707, %v3708
        %3714 = vst [vmem:[%s524] sm:$0xff] %v3700
        %3715 = vst [vmem:[%s524 + $0x8] sm:$0xff] %v3703
        %3716 = vst [vmem:[%s524 + $0x10] sm:$0xff] %v3706
        %3717 = vst [vmem:[%s524 + $0x18] sm:$0xff] %v3709
        %v3718 = vadd.f32 %v2844, 1.0
        %v3719 = vadd.f32 %v2884, 1.0
        %v3720 = vadd.f32 %v2924, 1.0
        %v3721 = vadd.f32 %v2964, 1.0
        %v3722 = vadd.f32 %v3004, 1.0
        %v3723 = vadd.f32 %v3044, 1.0
        %v3724 = vadd.f32 %v3084, 1.0
        %v3725 = vadd.f32 %v3124, 1.0
        %v3726 = vadd.f32 %v3164, 1.0
        %v3727 = vadd.f32 %v3204, 1.0
        %v3728 = vadd.f32 %v3244, 1.0
        %v3729 = vadd.f32 %v3284, 1.0
        %v3730 = vadd.f32 %v3324, 1.0
        %v3731 = vadd.f32 %v3364, 1.0
        %v3732 = vadd.f32 %v3404, 1.0
        %v3733 = vadd.f32 %v3444, 1.0
        %v3734 = vmul.f32 %v2163, %v2163
        %v3735 = vmul.f32 %v2203, %v2203
        %v3736 = vmul.f32 %v2243, %v2243
        %v3737 = vmul.f32 %v2283, %v2283
        %v3738 = vmul.f32 %v2323, %v2323
        %v3739 = vmul.f32 %v2363, %v2363
        %v3740 = vmul.f32 %v2403, %v2403
        %v3741 = vmul.f32 %v2443, %v2443
        %v3742 = vmul.f32 %v2483, %v2483
        %v3743 = vmul.f32 %v2523, %v2523
        %v3744 = vmul.f32 %v2563, %v2563
        %v3745 = vmul.f32 %v2603, %v2603
        %v3746 = vmul.f32 %v2643, %v2643
        %v3747 = vmul.f32 %v2683, %v2683
        %v3748 = vmul.f32 %v2723, %v2723
        %v3749 = vmul.f32 %v2763, %v2763
        %v3750 = vsub.f32 %v3718, %v3734
        %v3751 = vsub.f32 %v3719, %v3735
        %v3752 = vsub.f32 %v3720, %v3736
        %v3753 = vsub.f32 %v3721, %v3737
        %v3754 = vsub.f32 %v3722, %v3738
        %v3755 = vsub.f32 %v3723, %v3739
        %v3756 = vsub.f32 %v3724, %v3740
        %v3757 = vsub.f32 %v3725, %v3741
        %v3758 = vsub.f32 %v3726, %v3742
        %v3759 = vsub.f32 %v3727, %v3743
        %v3760 = vsub.f32 %v3728, %v3744
        %v3761 = vsub.f32 %v3729, %v3745
        %v3762 = vsub.f32 %v3730, %v3746
        %v3763 = vsub.f32 %v3731, %v3747
        %v3764 = vsub.f32 %v3732, %v3748
        %v3765 = vsub.f32 %v3733, %v3749
        %v3766 = vmul.f32 %v3463, %v3463
        %v3767 = vmul.f32 %v3465, %v3465
        %v3768 = vmul.f32 %v3467, %v3467
        %v3769 = vmul.f32 %v3469, %v3469
        %v3770 = vmul.f32 %v3471, %v3471
        %v3771 = vmul.f32 %v3473, %v3473
        %v3772 = vmul.f32 %v3475, %v3475
        %v3773 = vmul.f32 %v3477, %v3477
        %v3774 = vmul.f32 %v3479, %v3479
        %v3775 = vmul.f32 %v3481, %v3481
        %v3776 = vmul.f32 %v3483, %v3483
        %v3777 = vmul.f32 %v3485, %v3485
        %v3778 = vmul.f32 %v3487, %v3487
        %v3779 = vmul.f32 %v3489, %v3489
        %v3780 = vmul.f32 %v3491, %v3491
        %v3781 = vmul.f32 %v3493, %v3493
        %v3782 = vsub.f32 %v3750, %v3766
        %v3783 = vsub.f32 %v3751, %v3767
        %v3784 = vsub.f32 %v3752, %v3768
        %v3785 = vsub.f32 %v3753, %v3769
        %v3786 = vsub.f32 %v3754, %v3770
        %v3787 = vsub.f32 %v3755, %v3771
        %v3788 = vsub.f32 %v3756, %v3772
        %v3789 = vsub.f32 %v3757, %v3773
        %v3790 = vsub.f32 %v3758, %v3774
        %v3791 = vsub.f32 %v3759, %v3775
        %v3792 = vsub.f32 %v3760, %v3776
        %v3793 = vsub.f32 %v3761, %v3777
        %v3794 = vsub.f32 %v3762, %v3778
        %v3795 = vsub.f32 %v3763, %v3779
        %v3796 = vsub.f32 %v3764, %v3780
        %v3797 = vsub.f32 %v3765, %v3781
        %v3798 = vmul.f32 %v3782, -0.5
        %v3799 = vmul.f32 %v3783, -0.5
        %v3800 = vmul.f32 %v3784, -0.5
        %v3801 = vmul.f32 %v3785, -0.5
        %v3802 = vmul.f32 %v3786, -0.5
        %v3803 = vmul.f32 %v3787, -0.5
        %v3804 = vmul.f32 %v3788, -0.5
        %v3805 = vmul.f32 %v3789, -0.5
        %v3806 = vmul.f32 %v3790, -0.5
        %v3807 = vmul.f32 %v3791, -0.5
        %v3808 = vmul.f32 %v3792, -0.5
        %v3809 = vmul.f32 %v3793, -0.5
        %v3810 = vmul.f32 %v3794, -0.5
        %v3811 = vmul.f32 %v3795, -0.5
        %v3812 = vmul.f32 %v3796, -0.5
        %v3813 = vmul.f32 %v3797, -0.5
        %v3814 = vsel %vm3599, %v3798, 0.0
        %v3815 = vsel %vm3599, %v3799, 0.0
        %v3816 = vadd.f32 %v3814, %v3815
        %v3817 = vsel %vm3599, %v3800, 0.0
        %v3818 = vadd.f32 %v3816, %v3817
        %v3819 = vsel %vm3599, %v3801, 0.0
        %v3820 = vadd.f32 %v3818, %v3819
        %v3821 = vsel %vm3599, %v3802, 0.0
        %v3822 = vadd.f32 %v3820, %v3821
        %v3823 = vsel %vm3599, %v3803, 0.0
        %v3824 = vadd.f32 %v3822, %v3823
        %v3825 = vsel %vm3599, %v3804, 0.0
        %v3826 = vadd.f32 %v3824, %v3825
        %v3827 = vsel %vm3599, %v3805, 0.0
        %v3828 = vadd.f32 %v3826, %v3827
        %v3829 = vsel %vm3599, %v3806, 0.0
        %v3830 = vadd.f32 %v3828, %v3829
        %v3831 = vsel %vm3599, %v3807, 0.0
        %v3832 = vadd.f32 %v3830, %v3831
        %v3833 = vsel %vm3599, %v3808, 0.0
        %v3834 = vadd.f32 %v3832, %v3833
        %v3835 = vsel %vm3599, %v3809, 0.0
        %v3836 = vadd.f32 %v3834, %v3835
        %v3837 = vsel %vm3599, %v3810, 0.0
        %v3838 = vadd.f32 %v3836, %v3837
        %v3839 = vsel %vm3599, %v3811, 0.0
        %v3840 = vadd.f32 %v3838, %v3839
        %v3841 = vsel %vm3599, %v3812, 0.0
        %v3842 = vadd.f32 %v3840, %v3841
        %v3843 = vsel %vm3599, %v3813, 0.0
        %v3844 = vadd.f32 %v3842, %v3843
        %3845 = vadd.xlane.f32.xlu0 %v3844
        %v3846 = vpop.xlane.xlu0 %3845
        %v3847 = vsel %vm3599, %v3846, 0.0
        %v3848 = vrot.slane %v3847, 4
        %v3849 = vadd.f32 %v3847, %v3848
        %v3850 = vrot.slane %v3849, 2
        %v3851 = vadd.f32 %v3849, %v3850
        %v3852 = vrot.slane %v3851, 1
        %v3853 = vadd.f32 %v3851, %v3852
        %v3854 = vmul.f32 %v3853, 0.5
        %3855 = vst [vmem:[%s545] sm:$0x1] %v3854
        %s3856 = smul.u32 16, %s36
        %p3857 = scmp.lt.s32.totalorder %s3856, 31
        %s3858 = scalar_select %p3857, %s3856, 31
        %s3859 = smul.addr %s3858, 2
        %s3860 = scalar_lea.vmem %s6, %s3859
        %s3861 = sand.u32 %s221, 1
        %s3862 = scalar_lea.sflag [#allocation4], %s3861
        %s3863 = sand.u32 %s221, 1
        %s3864 = smul.addr %s3863, 32
        %s3865 = scalar_lea.vmem [#allocation11], %s3864
        %s3866 = sand.u32 %s247, 1
        %s3867 = scalar_lea.sflag [#allocation13], %s3866
        %s3868 = sand.u32 %s247, 1
        %s3869 = smul.addr %s3868, 32
        %s3870 = scalar_lea.vmem [#allocation12], %s3869
        %p3871 = scmp.lt.s32.totalorder %s36, 1
        %s3872 = scalar_select %p3871, %s36, 1
        %s3873 = scalar_lea.vmem %s9, %s3872
        // Predicated region
        $region65: #{betavae_h_forward.3} parent=43 // pred_check
          %p3874 = pneg %p205
        $region66: #{betavae_h_forward.3} parent=43 // pred_check_branch
          %3876 = sbr.rel (%p3874) target = $region68
        $region67: #{betavae_h_forward.3} parent=43 // pred_region
          %s3877 = smul.u32 16, %s36
        $region68: #{betavae_h_forward.3} parent=43 // pred_fallthru
          _
        // Predicated region
        $region69: #{betavae_h_forward.3} parent=43 // pred_check
          %p3878 = pneg %p231
        $region70: #{betavae_h_forward.3} parent=43 // pred_check_branch
          %3880 = sbr.rel (%p3878) target = $region72
        $region71: #{betavae_h_forward.3} parent=43 // pred_region
          %s3881 = smul.u32 16, %s36
          %3883 = vsyncadd %s3862, 0
          %s3884 = smul.addr %s3881, 2
          %s3885 = scalar_lea.hbm %s7, %s3884
          %s3887 = sshll.u32 %s3865, 4
          %s3888 = int_to_ptr.vmem [resolvable:$true] %s3887
          %s3889 = sshll.u32 %s3885, 4
          %s3890 = int_to_ptr.hbm [resolvable:$true] %s3889
          %3892 = dma.vmem_to_hbm [thread:$0]  %s3888, 512, %s3890, %s3862
        $region72: #{betavae_h_forward.3} parent=43 // pred_fallthru
          _
        // Predicated region
        $region73: #{betavae_h_forward.3} parent=43 // pred_check
          %p3893 = pneg %p257
        $region74: #{betavae_h_forward.3} parent=43 // pred_check_branch
          %3895 = sbr.rel (%p3893) target = $region76
        $region75: #{betavae_h_forward.3} parent=43 // pred_region
          %s3896 = smul.u32 16, %s36
          %3898 = vsyncadd %s3867, 0
          %s3899 = smul.addr %s3896, 2
          %s3900 = scalar_lea.hbm %s8, %s3899
          %s3902 = sshll.u32 %s3870, 4
          %s3903 = int_to_ptr.vmem [resolvable:$true] %s3902
          %s3904 = sshll.u32 %s3900, 4
          %s3905 = int_to_ptr.hbm [resolvable:$true] %s3904
          %3907 = dma.vmem_to_hbm [thread:$0]  %s3903, 512, %s3905, %s3867
        $region76: #{betavae_h_forward.3} parent=43 // pred_fallthru
          _
        // Predicated region
        $region77: #{betavae_h_forward.3} parent=43 // pred_check
          %p3908 = pneg %p283
        $region78: #{betavae_h_forward.3} parent=43 // pred_check_branch
          %3910 = sbr.rel (%p3908) target = $region80
        $region79: #{betavae_h_forward.3} parent=43 // pred_region
          _
        $region80: #{betavae_h_forward.3} parent=43 // pred_fallthru
          _
      $region44: #{betavae_h_forward.3} parent=5 // pred_fallthru
        _
      %p3911 = scmp.le.s32.totalorder 2, %s31
      // Predicated region
      $region81: #{betavae_h_forward.3} parent=5 // pred_check
        %p3912 = pneg %p3911
      $region82: #{betavae_h_forward.3} parent=5 // pred_check_branch
        %3914 = sbr.rel (%p3912) target = $region84
      $region83: #{betavae_h_forward.3} parent=5 // pred_region
        %s3915 = ssub.s32 %s31, 2
        // Predicated region
        $region85: #{betavae_h_forward.3} parent=83 // pred_check
          %p3916 = pneg %p211
        $region86: #{betavae_h_forward.3} parent=83 // pred_check_branch
          %3918 = sbr.rel (%p3916) target = $region88
        $region87: #{betavae_h_forward.3} parent=83 // pred_region
          %s3919 = smul.u32 16, %s37
          %p3920 = scmp.lt.s32.totalorder %s3919, 31
          %s3921 = scalar_select %p3920, %s3919, 31
          %s3922 = smul.addr %s3921, 2
          %s3923 = scalar_lea.vmem %s6, %s3922
        $region88: #{betavae_h_forward.3} parent=83 // pred_fallthru
          _
        // Predicated region
        $region89: #{betavae_h_forward.3} parent=83 // pred_check
          %p3924 = pneg %p237
        $region90: #{betavae_h_forward.3} parent=83 // pred_check_branch
          %3926 = sbr.rel (%p3924) target = $region92
        $region91: #{betavae_h_forward.3} parent=83 // pred_region
          %s3927 = sand.u32 %s222, 1
          %s3928 = scalar_lea.sflag [#allocation4], %s3927
          %s3929 = sand.u32 %s222, 1
          %s3930 = smul.addr %s3929, 32
          %s3931 = scalar_lea.vmem [#allocation11], %s3930
          %3933 = dma.done %s3928, 512
        $region92: #{betavae_h_forward.3} parent=83 // pred_fallthru
          _
        // Predicated region
        $region93: #{betavae_h_forward.3} parent=83 // pred_check
          %p3934 = pneg %p263
        $region94: #{betavae_h_forward.3} parent=83 // pred_check_branch
          %3936 = sbr.rel (%p3934) target = $region96
        $region95: #{betavae_h_forward.3} parent=83 // pred_region
          %s3937 = sand.u32 %s248, 1
          %s3938 = scalar_lea.sflag [#allocation13], %s3937
          %s3939 = sand.u32 %s248, 1
          %s3940 = smul.addr %s3939, 32
          %s3941 = scalar_lea.vmem [#allocation12], %s3940
          %3943 = dma.done %s3938, 512
        $region96: #{betavae_h_forward.3} parent=83 // pred_fallthru
          _
        // Predicated region
        $region97: #{betavae_h_forward.3} parent=83 // pred_check
          %p3944 = pneg %p289
        $region98: #{betavae_h_forward.3} parent=83 // pred_check_branch
          %3946 = sbr.rel (%p3944) target = $region100
        $region99: #{betavae_h_forward.3} parent=83 // pred_region
          %p3947 = scmp.lt.s32.totalorder %s37, 1
          %s3948 = scalar_select %p3947, %s37, 1
          %s3949 = scalar_lea.vmem %s9, %s3948
        $region100: #{betavae_h_forward.3} parent=83 // pred_fallthru
          _
      $region84: #{betavae_h_forward.3} parent=5 // pred_fallthru
        _
    $region6: #{betavae_h_forward.3} parent=1 // loop_footer
      %s35 = sadd.s32 1, %s31
    $region7: #{betavae_h_forward.3} parent=1 // loop_footer_branch
      %30 = sbr.rel target = $region3
    $region8: #{betavae_h_forward.3} parent=1 // loop_exit
      _
    %3950 = vsyncpa [#allocation3], 1
    %s3951 = scalar_lea.sflag [#allocation3], 1
    %3952 = vsyncpa %s3951, 1
    %3953 = vsyncpa [#allocation6], 1
    %s3954 = scalar_lea.sflag [#allocation6], 1
    %3955 = vsyncpa %s3954, 1
    %3956 = vsyncpa [#allocation9], 1
    %s3957 = scalar_lea.sflag [#allocation9], 1
    %3958 = vsyncpa %s3957, 1
    %3959 = vsyncpa [#allocation4], 1
    %s3960 = scalar_lea.sflag [#allocation4], 1
    %3961 = vsyncpa %s3960, 1
    %3962 = vsyncpa [#allocation13], 1
    %s3963 = scalar_lea.sflag [#allocation13], 1
    %3964 = vsyncpa %s3963, 1

// kernel: betavae_h_forward.2
$region0: #{betavae_h_forward.2}
  #allocation0 [shape = 'u32[]', space=smem, size = 0x4, offset = 0x4, fixed_abs, tag = 'smem constant byte address 0x4 - core index']
  #allocation1 [shape = 'u32[72,128]{1,0:T(1,128)}', space=vmem, size = 0x9000, scoped, tag = 'internal scratch']
  %s0 = inlined_call_operand.vmem [shape: f32[64,128], index: 0, kind: input, shape index: {}]
  %s1 = inlined_call_operand.hbm [shape: f32[4,16,32], index: 1, kind: input, shape index: {}]
  %s2 = inlined_call_operand.hbm [shape: bf16[512,512], index: 2, kind: input, shape index: {}]
  %s3 = inlined_call_operand.hbm [shape: f32[1,512], index: 3, kind: input, shape index: {}]
  %s4 = inlined_call_operand.hbm [shape: f32[4,8,16], index: 4, kind: input, shape index: {}]
  %s5 = inlined_call_operand.hbm [shape: bf16[2048,256], index: 5, kind: input, shape index: {}]
  %s6 = inlined_call_operand.hbm [shape: f32[1,256], index: 6, kind: input, shape index: {}]
  %s7 = inlined_call_operand.hbm [shape: f32[4,4,8], index: 7, kind: input, shape index: {}]
  %s8 = inlined_call_operand.hbm [shape: bf16[1024,256], index: 8, kind: input, shape index: {}]
  %s9 = inlined_call_operand.hbm [shape: f32[1,256], index: 9, kind: input, shape index: {}]
  %s10 = inlined_call_operand.hbm [shape: f32[4,1,4], index: 10, kind: input, shape index: {}]
  %s11 = inlined_call_operand.hbm [shape: bf16[1024,256], index: 11, kind: input, shape index: {}]
  %s12 = inlined_call_operand.hbm [shape: f32[1,256], index: 12, kind: input, shape index: {}]
  %s13 = inlined_call_operand.vmem [shape: f32[1,512], index: 13, kind: output, shape index: {}]
  %s14 = sld [smem:[#allocation0]]
  $region133: #{betavae_h_forward.2} parent=0
    _
  %s16 = ssub.s32 1, %s14
  %s17 = scalar_select 0, %s16, %s14
  $region1: #{betavae_h_forward.2} parent=0
    #allocation2 [shape = 'u8[32768]{0}', space=vmem, size = 0x8000, scoped, tag = 'input window, operand 1, single buffered']
    #allocation3 [shape = 's32[2]{0}', space=sflag, size = 0x8, scoped, tag = 'scoped memory for betavae_h_forward.2']
    #allocation4 [shape = 'u8[524288]{0}', space=vmem, size = 0x80000, scoped, tag = 'input window, operand 2, single buffered']
    #allocation5 [shape = 's32[1]{0}', space=sflag, size = 0x4, scoped, tag = 'scoped memory for betavae_h_forward.2']
    #allocation6 [shape = 'u8[2048]{0}', space=vmem, size = 0x800, scoped, tag = 'input window, operand 3, single buffered']
    #allocation7 [shape = 'u8[16384]{0}', space=vmem, size = 0x4000, scoped, tag = 'input window, operand 4, single buffered']
    #allocation8 [shape = 's32[1]{0}', space=sflag, size = 0x4, scoped, tag = 'scoped memory for betavae_h_forward.2']
    #allocation9 [shape = 'u8[1048576]{0}', space=vmem, size = 0x100000, scoped, tag = 'input window, operand 5, single buffered']
    #allocation10 [shape = 'u8[1024]{0}', space=vmem, size = 0x400, scoped, tag = 'input window, operand 6, single buffered']
    #allocation11 [shape = 's32[1]{0}', space=sflag, size = 0x4, scoped, tag = 'scoped memory for betavae_h_forward.2']
    #allocation12 [shape = 'u8[8192]{0}', space=vmem, size = 0x2000, scoped, tag = 'input window, operand 7, single buffered']
    #allocation13 [shape = 'u8[524288]{0}', space=vmem, size = 0x80000, scoped, tag = 'input window, operand 8, single buffered']
    #allocation14 [shape = 's32[1]{0}', space=sflag, size = 0x4, scoped, tag = 'scoped memory for betavae_h_forward.2']
    #allocation15 [shape = 'u8[1024]{0}', space=vmem, size = 0x400, scoped, tag = 'input window, operand 9, single buffered']
    #allocation16 [shape = 'u8[2048]{0}', space=vmem, size = 0x800, scoped, tag = 'input window, operand 10, single buffered']
    #allocation17 [shape = 's32[1]{0}', space=sflag, size = 0x4, scoped, tag = 'scoped memory for betavae_h_forward.2']
    #allocation18 [shape = 'u8[524288]{0}', space=vmem, size = 0x80000, scoped, tag = 'input window, operand 11, single buffered']
    #allocation19 [shape = 'u8[1024]{0}', space=vmem, size = 0x400, scoped, tag = 'input window, operand 12, single buffered']
    #allocation20 [shape = 's32[1]{0}', space=sflag, size = 0x4, scoped, tag = 'scoped memory for betavae_h_forward.2']
    %18 = vsyncpa [#allocation3], 0
    %19 = vsyncpa [#allocation5], 0
    %20 = vsyncpa [#allocation8], 0
    %21 = vsyncpa [#allocation11], 0
    %22 = vsyncpa [#allocation14], 0
    %23 = vsyncpa [#allocation17], 0
    %24 = vsyncpa [#allocation20], 0
    loop: start=0, step=1, limit=4
    $region2: #{betavae_h_forward.2} parent=1 // loop_pre_header
      _
    $region3: #{betavae_h_forward.2} parent=1 // loop_header
      %s26 = sphi 0, %s30
      %p27 = scmp.ge.s32.totalorder %s26, 4
      %s36 = sphi 0, %s38
      %s39 = sphi 0, %s36
      %s40 = sphi 0, %s39
      %s56 = sphi 0, %s40
      %s60 = sphi 0, %s60
      %s62 = sphi 0, %s60
      %s63 = sphi 0, %s62
      %s77 = sphi 0, %s63
      %s81 = sphi 0, %s81
      %s83 = sphi 0, %s81
      %s84 = sphi 0, %s83
      %s98 = sphi 0, %s84
      %s102 = sphi 0, %s102
      %s104 = sphi 0, %s102
      %s105 = sphi 0, %s104
      %s119 = sphi 0, %s105
      %s123 = sphi 0, %s123
      %s125 = sphi 0, %s123
      %s126 = sphi 0, %s125
      %s140 = sphi 0, %s126
      %s144 = sphi 0, %s144
      %s146 = sphi 0, %s144
      %s147 = sphi 0, %s146
      %s161 = sphi 0, %s147
      %s165 = sphi 0, %s165
      %s167 = sphi 0, %s165
      %s168 = sphi 0, %s167
      %s182 = sphi 0, %s168
      %s186 = sphi 0, %s186
      %s188 = sphi 0, %s186
      %s189 = sphi 0, %s188
      %s203 = sphi 0, %s189
      %s207 = sphi 0, %s207
      %s209 = sphi 0, %s207
      %s210 = sphi 0, %s209
      %s224 = sphi 0, %s210
      %s228 = sphi 0, %s228
      %s230 = sphi 0, %s228
      %s231 = sphi 0, %s230
      %s245 = sphi 0, %s231
      %s249 = sphi 0, %s249
      %s251 = sphi 0, %s249
      %s252 = sphi 0, %s251
      %s266 = sphi 0, %s252
      %s270 = sphi 0, %s270
      %s272 = sphi 0, %s270
      %s273 = sphi 0, %s272
      %s287 = sphi 0, %s273
      %s291 = sphi 0, %s291
      %s293 = sphi 0, %s291
      %s294 = sphi 0, %s293
      %s308 = sphi 0, %s294
      %s314 = sphi 0, %s316
      %s317 = sphi 0, %s314
      %s318 = sphi 0, %s317
      %s334 = sphi 0, %s318
    $region4: #{betavae_h_forward.2} parent=1 // loop_header_branch
      %29 = sbr.rel (%p27) target = $region8
    $region5: #{betavae_h_forward.2} parent=1 // loop_body
      %s31 = ssub.s32 %s26, 1
      %s32 = ssub.s32 %s26, 2
      %s33 = sadd.s32 %s26, 1
      %s34 = ssub.s32 %s26, %s33
      %p35 = scmp.eq.s32.totalorder %s34, 0
      %s37 = sadd.s32 %s36, 1
      %s38 = scalar_select %p35, %s36, %s37
      %p41 = pneg %p35
      %p42 = scmp.eq.s32.totalorder %s26, 1
      %p43 = por %p41, %p42
      %p44 = scmp.ne.s32.totalorder %s36, %s39
      %p45 = scmp.eq.s32.totalorder %s26, 0
      %p46 = por %p44, %p45
      %p47 = scmp.ne.s32.totalorder %s36, %s39
      %p48 = scmp.eq.s32.totalorder %s31, 1
      %p49 = por %p47, %p48
      %p50 = scmp.ne.s32.totalorder %s39, %s40
      %p51 = scmp.eq.s32.totalorder %s31, 0
      %p52 = por %p50, %p51
      %p53 = scmp.ne.s32.totalorder %s39, %s40
      %p54 = scmp.eq.s32.totalorder %s32, 1
      %p55 = por %p53, %p54
      %p57 = scmp.ne.s32.totalorder %s40, %s56
      %p58 = scmp.eq.s32.totalorder %s32, 0
      %p59 = por %p57, %p58
      %s61 = sadd.s32 %s60, 1
      %p64 = scmp.eq.s32.totalorder %s26, 1
      %p65 = scmp.ne.s32.totalorder %s60, %s62
      %p66 = scmp.eq.s32.totalorder %s26, 0
      %p67 = por %p65, %p66
      %p68 = scmp.ne.s32.totalorder %s60, %s62
      %p69 = scmp.eq.s32.totalorder %s31, 1
      %p70 = por %p68, %p69
      %p71 = scmp.ne.s32.totalorder %s62, %s63
      %p72 = scmp.eq.s32.totalorder %s31, 0
      %p73 = por %p71, %p72
      %p74 = scmp.ne.s32.totalorder %s62, %s63
      %p75 = scmp.eq.s32.totalorder %s32, 1
      %p76 = por %p74, %p75
      %p78 = scmp.ne.s32.totalorder %s63, %s77
      %p79 = scmp.eq.s32.totalorder %s32, 0
      %p80 = por %p78, %p79
      %s82 = sadd.s32 %s81, 1
      %p85 = scmp.eq.s32.totalorder %s26, 1
      %p86 = scmp.ne.s32.totalorder %s81, %s83
      %p87 = scmp.eq.s32.totalorder %s26, 0
      %p88 = por %p86, %p87
      %p89 = scmp.ne.s32.totalorder %s81, %s83
      %p90 = scmp.eq.s32.totalorder %s31, 1
      %p91 = por %p89, %p90
      %p92 = scmp.ne.s32.totalorder %s83, %s84
      %p93 = scmp.eq.s32.totalorder %s31, 0
      %p94 = por %p92, %p93
      %p95 = scmp.ne.s32.totalorder %s83, %s84
      %p96 = scmp.eq.s32.totalorder %s32, 1
      %p97 = por %p95, %p96
      %p99 = scmp.ne.s32.totalorder %s84, %s98
      %p100 = scmp.eq.s32.totalorder %s32, 0
      %p101 = por %p99, %p100
      %s103 = sadd.s32 %s102, 1
      %p106 = scmp.eq.s32.totalorder %s26, 1
      %p107 = scmp.ne.s32.totalorder %s102, %s104
      %p108 = scmp.eq.s32.totalorder %s26, 0
      %p109 = por %p107, %p108
      %p110 = scmp.ne.s32.totalorder %s102, %s104
      %p111 = scmp.eq.s32.totalorder %s31, 1
      %p112 = por %p110, %p111
      %p113 = scmp.ne.s32.totalorder %s104, %s105
      %p114 = scmp.eq.s32.totalorder %s31, 0
      %p115 = por %p113, %p114
      %p116 = scmp.ne.s32.totalorder %s104, %s105
      %p117 = scmp.eq.s32.totalorder %s32, 1
      %p118 = por %p116, %p117
      %p120 = scmp.ne.s32.totalorder %s105, %s119
      %p121 = scmp.eq.s32.totalorder %s32, 0
      %p122 = por %p120, %p121
      %s124 = sadd.s32 %s123, 1
      %p127 = scmp.eq.s32.totalorder %s26, 1
      %p128 = scmp.ne.s32.totalorder %s123, %s125
      %p129 = scmp.eq.s32.totalorder %s26, 0
      %p130 = por %p128, %p129
      %p131 = scmp.ne.s32.totalorder %s123, %s125
      %p132 = scmp.eq.s32.totalorder %s31, 1
      %p133 = por %p131, %p132
      %p134 = scmp.ne.s32.totalorder %s125, %s126
      %p135 = scmp.eq.s32.totalorder %s31, 0
      %p136 = por %p134, %p135
      %p137 = scmp.ne.s32.totalorder %s125, %s126
      %p138 = scmp.eq.s32.totalorder %s32, 1
      %p139 = por %p137, %p138
      %p141 = scmp.ne.s32.totalorder %s126, %s140
      %p142 = scmp.eq.s32.totalorder %s32, 0
      %p143 = por %p141, %p142
      %s145 = sadd.s32 %s144, 1
      %p148 = scmp.eq.s32.totalorder %s26, 1
      %p149 = scmp.ne.s32.totalorder %s144, %s146
      %p150 = scmp.eq.s32.totalorder %s26, 0
      %p151 = por %p149, %p150
      %p152 = scmp.ne.s32.totalorder %s144, %s146
      %p153 = scmp.eq.s32.totalorder %s31, 1
      %p154 = por %p152, %p153
      %p155 = scmp.ne.s32.totalorder %s146, %s147
      %p156 = scmp.eq.s32.totalorder %s31, 0
      %p157 = por %p155, %p156
      %p158 = scmp.ne.s32.totalorder %s146, %s147
      %p159 = scmp.eq.s32.totalorder %s32, 1
      %p160 = por %p158, %p159
      %p162 = scmp.ne.s32.totalorder %s147, %s161
      %p163 = scmp.eq.s32.totalorder %s32, 0
      %p164 = por %p162, %p163
      %s166 = sadd.s32 %s165, 1
      %p169 = scmp.eq.s32.totalorder %s26, 1
      %p170 = scmp.ne.s32.totalorder %s165, %s167
      %p171 = scmp.eq.s32.totalorder %s26, 0
      %p172 = por %p170, %p171
      %p173 = scmp.ne.s32.totalorder %s165, %s167
      %p174 = scmp.eq.s32.totalorder %s31, 1
      %p175 = por %p173, %p174
      %p176 = scmp.ne.s32.totalorder %s167, %s168
      %p177 = scmp.eq.s32.totalorder %s31, 0
      %p178 = por %p176, %p177
      %p179 = scmp.ne.s32.totalorder %s167, %s168
      %p180 = scmp.eq.s32.totalorder %s32, 1
      %p181 = por %p179, %p180
      %p183 = scmp.ne.s32.totalorder %s168, %s182
      %p184 = scmp.eq.s32.totalorder %s32, 0
      %p185 = por %p183, %p184
      %s187 = sadd.s32 %s186, 1
      %p190 = scmp.eq.s32.totalorder %s26, 1
      %p191 = scmp.ne.s32.totalorder %s186, %s188
      %p192 = scmp.eq.s32.totalorder %s26, 0
      %p193 = por %p191, %p192
      %p194 = scmp.ne.s32.totalorder %s186, %s188
      %p195 = scmp.eq.s32.totalorder %s31, 1
      %p196 = por %p194, %p195
      %p197 = scmp.ne.s32.totalorder %s188, %s189
      %p198 = scmp.eq.s32.totalorder %s31, 0
      %p199 = por %p197, %p198
      %p200 = scmp.ne.s32.totalorder %s188, %s189
      %p201 = scmp.eq.s32.totalorder %s32, 1
      %p202 = por %p200, %p201
      %p204 = scmp.ne.s32.totalorder %s189, %s203
      %p205 = scmp.eq.s32.totalorder %s32, 0
      %p206 = por %p204, %p205
      %s208 = sadd.s32 %s207, 1
      %p211 = scmp.eq.s32.totalorder %s26, 1
      %p212 = scmp.ne.s32.totalorder %s207, %s209
      %p213 = scmp.eq.s32.totalorder %s26, 0
      %p214 = por %p212, %p213
      %p215 = scmp.ne.s32.totalorder %s207, %s209
      %p216 = scmp.eq.s32.totalorder %s31, 1
      %p217 = por %p215, %p216
      %p218 = scmp.ne.s32.totalorder %s209, %s210
      %p219 = scmp.eq.s32.totalorder %s31, 0
      %p220 = por %p218, %p219
      %p221 = scmp.ne.s32.totalorder %s209, %s210
      %p222 = scmp.eq.s32.totalorder %s32, 1
      %p223 = por %p221, %p222
      %p225 = scmp.ne.s32.totalorder %s210, %s224
      %p226 = scmp.eq.s32.totalorder %s32, 0
      %p227 = por %p225, %p226
      %s229 = sadd.s32 %s228, 1
      %p232 = scmp.eq.s32.totalorder %s26, 1
      %p233 = scmp.ne.s32.totalorder %s228, %s230
      %p234 = scmp.eq.s32.totalorder %s26, 0
      %p235 = por %p233, %p234
      %p236 = scmp.ne.s32.totalorder %s228, %s230
      %p237 = scmp.eq.s32.totalorder %s31, 1
      %p238 = por %p236, %p237
      %p239 = scmp.ne.s32.totalorder %s230, %s231
      %p240 = scmp.eq.s32.totalorder %s31, 0
      %p241 = por %p239, %p240
      %p242 = scmp.ne.s32.totalorder %s230, %s231
      %p243 = scmp.eq.s32.totalorder %s32, 1
      %p244 = por %p242, %p243
      %p246 = scmp.ne.s32.totalorder %s231, %s245
      %p247 = scmp.eq.s32.totalorder %s32, 0
      %p248 = por %p246, %p247
      %s250 = sadd.s32 %s249, 1
      %p253 = scmp.eq.s32.totalorder %s26, 1
      %p254 = scmp.ne.s32.totalorder %s249, %s251
      %p255 = scmp.eq.s32.totalorder %s26, 0
      %p256 = por %p254, %p255
      %p257 = scmp.ne.s32.totalorder %s249, %s251
      %p258 = scmp.eq.s32.totalorder %s31, 1
      %p259 = por %p257, %p258
      %p260 = scmp.ne.s32.totalorder %s251, %s252
      %p261 = scmp.eq.s32.totalorder %s31, 0
      %p262 = por %p260, %p261
      %p263 = scmp.ne.s32.totalorder %s251, %s252
      %p264 = scmp.eq.s32.totalorder %s32, 1
      %p265 = por %p263, %p264
      %p267 = scmp.ne.s32.totalorder %s252, %s266
      %p268 = scmp.eq.s32.totalorder %s32, 0
      %p269 = por %p267, %p268
      %s271 = sadd.s32 %s270, 1
      %p274 = scmp.eq.s32.totalorder %s26, 1
      %p275 = scmp.ne.s32.totalorder %s270, %s272
      %p276 = scmp.eq.s32.totalorder %s26, 0
      %p277 = por %p275, %p276
      %p278 = scmp.ne.s32.totalorder %s270, %s272
      %p279 = scmp.eq.s32.totalorder %s31, 1
      %p280 = por %p278, %p279
      %p281 = scmp.ne.s32.totalorder %s272, %s273
      %p282 = scmp.eq.s32.totalorder %s31, 0
      %p283 = por %p281, %p282
      %p284 = scmp.ne.s32.totalorder %s272, %s273
      %p285 = scmp.eq.s32.totalorder %s32, 1
      %p286 = por %p284, %p285
      %p288 = scmp.ne.s32.totalorder %s273, %s287
      %p289 = scmp.eq.s32.totalorder %s32, 0
      %p290 = por %p288, %p289
      %s292 = sadd.s32 %s291, 1
      %p295 = scmp.eq.s32.totalorder %s26, 1
      %p296 = scmp.ne.s32.totalorder %s291, %s293
      %p297 = scmp.eq.s32.totalorder %s26, 0
      %p298 = por %p296, %p297
      %p299 = scmp.ne.s32.totalorder %s291, %s293
      %p300 = scmp.eq.s32.totalorder %s31, 1
      %p301 = por %p299, %p300
      %p302 = scmp.ne.s32.totalorder %s293, %s294
      %p303 = scmp.eq.s32.totalorder %s31, 0
      %p304 = por %p302, %p303
      %p305 = scmp.ne.s32.totalorder %s293, %s294
      %p306 = scmp.eq.s32.totalorder %s32, 1
      %p307 = por %p305, %p306
      %p309 = scmp.ne.s32.totalorder %s294, %s308
      %p310 = scmp.eq.s32.totalorder %s32, 0
      %p311 = por %p309, %p310
      %s312 = ssub.s32 %s26, %s33
      %p313 = scmp.eq.s32.totalorder %s312, 0
      %s315 = sadd.s32 %s314, 1
      %s316 = scalar_select %p313, %s314, %s315
      %p319 = pneg %p313
      %p320 = scmp.eq.s32.totalorder %s26, 1
      %p321 = por %p319, %p320
      %p322 = scmp.ne.s32.totalorder %s314, %s317
      %p323 = scmp.eq.s32.totalorder %s26, 0
      %p324 = por %p322, %p323
      %p325 = scmp.ne.s32.totalorder %s314, %s317
      %p326 = scmp.eq.s32.totalorder %s31, 1
      %p327 = por %p325, %p326
      %p328 = scmp.ne.s32.totalorder %s317, %s318
      %p329 = scmp.eq.s32.totalorder %s31, 0
      %p330 = por %p328, %p329
      %p331 = scmp.ne.s32.totalorder %s317, %s318
      %p332 = scmp.eq.s32.totalorder %s32, 1
      %p333 = por %p331, %p332
      %p335 = scmp.ne.s32.totalorder %s318, %s334
      %p336 = scmp.eq.s32.totalorder %s32, 0
      %p337 = por %p335, %p336
      %p338 = scmp.le.s32.totalorder 1, %s26
      %p339 = scmp.lt.s32.totalorder %s26, 3
      %p340 = pnand %p338, %p339
      %p341 = pneg %p340
      // Predicated region
      $region9: #{betavae_h_forward.2} parent=5 // pred_check
        _
      $region10: #{betavae_h_forward.2} parent=5 // pred_check_branch
        %343 = sbr.rel (%p340) target = $region12
      $region11: #{betavae_h_forward.2} parent=5 // pred_region
        %s344 = ssub.s32 %s26, 1
        // Predicated region
        $region13: #{betavae_h_forward.2} parent=11 // pred_check
          %p345 = pneg %p73
        $region14: #{betavae_h_forward.2} parent=11 // pred_check_branch
          %347 = sbr.rel (%p345) target = $region16
        $region15: #{betavae_h_forward.2} parent=11 // pred_region
          %349 = vsyncadd [#allocation3], 0
          %s350 = sshll.u32 %s1, 4
          %s351 = int_to_ptr.hbm [resolvable:$true] %s350
          %s352 = sshll.u32 [#allocation2], 4
          %s353 = int_to_ptr.vmem [resolvable:$true] %s352
          %358 = dma.hbm_to_vmem [thread:$0]  %s351, 1024, %s353, [#allocation3], 128, 128, 8
        $region16: #{betavae_h_forward.2} parent=11 // pred_fallthru
          _
        // Predicated region
        $region17: #{betavae_h_forward.2} parent=11 // pred_check
          %p359 = pneg %p94
        $region18: #{betavae_h_forward.2} parent=11 // pred_check_branch
          %361 = sbr.rel (%p359) target = $region20
        $region19: #{betavae_h_forward.2} parent=11 // pred_region
          %363 = vsyncadd [#allocation5], 0
          %s364 = sshll.u32 %s2, 4
          %s365 = int_to_ptr.hbm [resolvable:$true] %s364
          %s366 = sshll.u32 [#allocation4], 4
          %s367 = int_to_ptr.vmem [resolvable:$true] %s366
          %372 = dma.hbm_to_vmem [thread:$0]  %s365, 16384, %s367, [#allocation5], 256, 256, 16
        $region20: #{betavae_h_forward.2} parent=11 // pred_fallthru
          _
        // Predicated region
        $region21: #{betavae_h_forward.2} parent=11 // pred_check
          %p373 = pneg %p115
        $region22: #{betavae_h_forward.2} parent=11 // pred_check_branch
          %375 = sbr.rel (%p373) target = $region24
        $region23: #{betavae_h_forward.2} parent=11 // pred_region
          %377 = vsyncadd [#allocation5], 0
          %s379 = sshll.u32 %s3, 4
          %s380 = int_to_ptr.hbm [resolvable:$true] %s379
          %s381 = sshll.u32 [#allocation6], 4
          %s382 = int_to_ptr.vmem [resolvable:$true] %s381
          %384 = dma.hbm_to_vmem [thread:$0]  %s380, 64, %s382, [#allocation5]
        $region24: #{betavae_h_forward.2} parent=11 // pred_fallthru
          _
        // Predicated region
        $region25: #{betavae_h_forward.2} parent=11 // pred_check
          %p385 = pneg %p136
        $region26: #{betavae_h_forward.2} parent=11 // pred_check_branch
          %387 = sbr.rel (%p385) target = $region28
        $region27: #{betavae_h_forward.2} parent=11 // pred_region
          %389 = vsyncadd [#allocation8], 0
          %s390 = sshll.u32 %s4, 4
          %s391 = int_to_ptr.hbm [resolvable:$true] %s390
          %s392 = sshll.u32 [#allocation7], 4
          %s393 = int_to_ptr.vmem [resolvable:$true] %s392
          %398 = dma.hbm_to_vmem [thread:$0]  %s391, 512, %s393, [#allocation8], 128, 128, 8
        $region28: #{betavae_h_forward.2} parent=11 // pred_fallthru
          _
        // Predicated region
        $region29: #{betavae_h_forward.2} parent=11 // pred_check
          %p399 = pneg %p157
        $region30: #{betavae_h_forward.2} parent=11 // pred_check_branch
          %401 = sbr.rel (%p399) target = $region32
        $region31: #{betavae_h_forward.2} parent=11 // pred_region
          %403 = vsyncadd [#allocation8], 0
          %s404 = sshll.u32 %s5, 4
          %s405 = int_to_ptr.hbm [resolvable:$true] %s404
          %s406 = sshll.u32 [#allocation9], 4
          %s407 = int_to_ptr.vmem [resolvable:$true] %s406
          %412 = dma.hbm_to_vmem [thread:$0]  %s405, 32768, %s407, [#allocation8], 128, 128, 8
        $region32: #{betavae_h_forward.2} parent=11 // pred_fallthru
          _
        // Predicated region
        $region33: #{betavae_h_forward.2} parent=11 // pred_check
          %p413 = pneg %p178
        $region34: #{betavae_h_forward.2} parent=11 // pred_check_branch
          %415 = sbr.rel (%p413) target = $region36
        $region35: #{betavae_h_forward.2} parent=11 // pred_region
          %417 = vsyncadd [#allocation11], 0
          %s419 = sshll.u32 %s6, 4
          %s420 = int_to_ptr.hbm [resolvable:$true] %s419
          %s421 = sshll.u32 [#allocation10], 4
          %s422 = int_to_ptr.vmem [resolvable:$true] %s421
          %424 = dma.hbm_to_vmem [thread:$0]  %s420, 32, %s422, [#allocation11]
        $region36: #{betavae_h_forward.2} parent=11 // pred_fallthru
          _
        // Predicated region
        $region37: #{betavae_h_forward.2} parent=11 // pred_check
          %p425 = pneg %p199
        $region38: #{betavae_h_forward.2} parent=11 // pred_check_branch
          %427 = sbr.rel (%p425) target = $region40
        $region39: #{betavae_h_forward.2} parent=11 // pred_region
          %429 = vsyncadd [#allocation11], 0
          %s430 = sshll.u32 %s7, 4
          %s431 = int_to_ptr.hbm [resolvable:$true] %s430
          %s432 = sshll.u32 [#allocation12], 4
          %s433 = int_to_ptr.vmem [resolvable:$true] %s432
          %438 = dma.hbm_to_vmem [thread:$0]  %s431, 256, %s433, [#allocation11], 64, 64, 4
        $region40: #{betavae_h_forward.2} parent=11 // pred_fallthru
          _
        // Predicated region
        $region41: #{betavae_h_forward.2} parent=11 // pred_check
          %p439 = pneg %p220
        $region42: #{betavae_h_forward.2} parent=11 // pred_check_branch
          %441 = sbr.rel (%p439) target = $region44
        $region43: #{betavae_h_forward.2} parent=11 // pred_region
          %443 = vsyncadd [#allocation14], 0
          %s444 = sshll.u32 %s8, 4
          %s445 = int_to_ptr.hbm [resolvable:$true] %s444
          %s446 = sshll.u32 [#allocation13], 4
          %s447 = int_to_ptr.vmem [resolvable:$true] %s446
          %452 = dma.hbm_to_vmem [thread:$0]  %s445, 16384, %s447, [#allocation14], 128, 128, 8
        $region44: #{betavae_h_forward.2} parent=11 // pred_fallthru
          _
        // Predicated region
        $region45: #{betavae_h_forward.2} parent=11 // pred_check
          %p453 = pneg %p241
        $region46: #{betavae_h_forward.2} parent=11 // pred_check_branch
          %455 = sbr.rel (%p453) target = $region48
        $region47: #{betavae_h_forward.2} parent=11 // pred_region
          %457 = vsyncadd [#allocation14], 0
          %s459 = sshll.u32 %s9, 4
          %s460 = int_to_ptr.hbm [resolvable:$true] %s459
          %s461 = sshll.u32 [#allocation15], 4
          %s462 = int_to_ptr.vmem [resolvable:$true] %s461
          %464 = dma.hbm_to_vmem [thread:$0]  %s460, 32, %s462, [#allocation14]
        $region48: #{betavae_h_forward.2} parent=11 // pred_fallthru
          _
        // Predicated region
        $region49: #{betavae_h_forward.2} parent=11 // pred_check
          %p465 = pneg %p262
        $region50: #{betavae_h_forward.2} parent=11 // pred_check_branch
          %467 = sbr.rel (%p465) target = $region52
        $region51: #{betavae_h_forward.2} parent=11 // pred_region
          %469 = vsyncadd [#allocation17], 0
          %s470 = sshll.u32 %s10, 4
          %s471 = int_to_ptr.hbm [resolvable:$true] %s470
          %s472 = sshll.u32 [#allocation16], 4
          %s473 = int_to_ptr.vmem [resolvable:$true] %s472
          %478 = dma.hbm_to_vmem [thread:$0]  %s471, 64, %s473, [#allocation17], 16, 16, 1
        $region52: #{betavae_h_forward.2} parent=11 // pred_fallthru
          _
        // Predicated region
        $region53: #{betavae_h_forward.2} parent=11 // pred_check
          %p479 = pneg %p283
        $region54: #{betavae_h_forward.2} parent=11 // pred_check_branch
          %481 = sbr.rel (%p479) target = $region56
        $region55: #{betavae_h_forward.2} parent=11 // pred_region
          %483 = vsyncadd [#allocation17], 0
          %s484 = sshll.u32 %s11, 4
          %s485 = int_to_ptr.hbm [resolvable:$true] %s484
          %s486 = sshll.u32 [#allocation18], 4
          %s487 = int_to_ptr.vmem [resolvable:$true] %s486
          %492 = dma.hbm_to_vmem [thread:$0]  %s485, 16384, %s487, [#allocation17], 128, 128, 8
        $region56: #{betavae_h_forward.2} parent=11 // pred_fallthru
          _
        // Predicated region
        $region57: #{betavae_h_forward.2} parent=11 // pred_check
          %p493 = pneg %p304
        $region58: #{betavae_h_forward.2} parent=11 // pred_check_branch
          %495 = sbr.rel (%p493) target = $region60
        $region59: #{betavae_h_forward.2} parent=11 // pred_region
          %497 = vsyncadd [#allocation20], 0
          %s499 = sshll.u32 %s12, 4
          %s500 = int_to_ptr.hbm [resolvable:$true] %s499
          %s501 = sshll.u32 [#allocation19], 4
          %s502 = int_to_ptr.vmem [resolvable:$true] %s501
          %504 = dma.hbm_to_vmem [thread:$0]  %s500, 32, %s502, [#allocation20]
        $region60: #{betavae_h_forward.2} parent=11 // pred_fallthru
          _
      $region12: #{betavae_h_forward.2} parent=5 // pred_fallthru
        _
      %p505 = scmp.lt.s32.totalorder %s26, 2
      // Predicated region
      $region61: #{betavae_h_forward.2} parent=5 // pred_check
        %p506 = pneg %p505
      $region62: #{betavae_h_forward.2} parent=5 // pred_check_branch
        %508 = sbr.rel (%p506) target = $region64
      $region63: #{betavae_h_forward.2} parent=5 // pred_region
        // Predicated region
        $region65: #{betavae_h_forward.2} parent=63 // pred_check
          %p509 = pneg %p46
        $region66: #{betavae_h_forward.2} parent=63 // pred_check_branch
          %511 = sbr.rel (%p509) target = $region68
        $region67: #{betavae_h_forward.2} parent=63 // pred_region
          %s512 = smul.u32 4, %s26
          %p513 = scmp.lt.s32.totalorder %s512, 7
          %s514 = scalar_select %p513, %s512, 7
          %s515 = smul.addr %s514, 8
          %s516 = scalar_lea.vmem %s0, %s515
          %s517 = smul.u32 4, %s26
        $region68: #{betavae_h_forward.2} parent=63 // pred_fallthru
          _
      $region64: #{betavae_h_forward.2} parent=5 // pred_fallthru
        _
      %p518 = scmp.le.s32.totalorder 1, %s26
      %p519 = scmp.lt.s32.totalorder %s26, 3
      %p520 = pnand %p518, %p519
      %p521 = pneg %p520
      // Predicated region
      $region69: #{betavae_h_forward.2} parent=5 // pred_check
        _
      $region70: #{betavae_h_forward.2} parent=5 // pred_check_branch
        %523 = sbr.rel (%p520) target = $region72
      $region71: #{betavae_h_forward.2} parent=5 // pred_region
        %s524 = ssub.s32 %s26, 1
        // Predicated region
        $region73: #{betavae_h_forward.2} parent=71 // pred_check
          %p525 = pneg %p73
        $region74: #{betavae_h_forward.2} parent=71 // pred_check_branch
          %527 = sbr.rel (%p525) target = $region76
        $region75: #{betavae_h_forward.2} parent=71 // pred_region
          %529 = dma.done [#allocation3], 1024
        $region76: #{betavae_h_forward.2} parent=71 // pred_fallthru
          _
        // Predicated region
        $region77: #{betavae_h_forward.2} parent=71 // pred_check
          %p530 = pneg %p94
        $region78: #{betavae_h_forward.2} parent=71 // pred_check_branch
          %532 = sbr.rel (%p530) target = $region80
        $region79: #{betavae_h_forward.2} parent=71 // pred_region
          %534 = dma.done [#allocation5], 16384
        $region80: #{betavae_h_forward.2} parent=71 // pred_fallthru
          _
        // Predicated region
        $region81: #{betavae_h_forward.2} parent=71 // pred_check
          %p535 = pneg %p115
        $region82: #{betavae_h_forward.2} parent=71 // pred_check_branch
          %537 = sbr.rel (%p535) target = $region84
        $region83: #{betavae_h_forward.2} parent=71 // pred_region
          %539 = dma.done [#allocation5], 64
        $region84: #{betavae_h_forward.2} parent=71 // pred_fallthru
          _
        // Predicated region
        $region85: #{betavae_h_forward.2} parent=71 // pred_check
          %p540 = pneg %p136
        $region86: #{betavae_h_forward.2} parent=71 // pred_check_branch
          %542 = sbr.rel (%p540) target = $region88
        $region87: #{betavae_h_forward.2} parent=71 // pred_region
          %544 = dma.done [#allocation8], 512
        $region88: #{betavae_h_forward.2} parent=71 // pred_fallthru
          _
        // Predicated region
        $region89: #{betavae_h_forward.2} parent=71 // pred_check
          %p545 = pneg %p157
        $region90: #{betavae_h_forward.2} parent=71 // pred_check_branch
          %547 = sbr.rel (%p545) target = $region92
        $region91: #{betavae_h_forward.2} parent=71 // pred_region
          %549 = dma.done [#allocation8], 32768
        $region92: #{betavae_h_forward.2} parent=71 // pred_fallthru
          _
        // Predicated region
        $region93: #{betavae_h_forward.2} parent=71 // pred_check
          %p550 = pneg %p178
        $region94: #{betavae_h_forward.2} parent=71 // pred_check_branch
          %552 = sbr.rel (%p550) target = $region96
        $region95: #{betavae_h_forward.2} parent=71 // pred_region
          %554 = dma.done [#allocation11], 32
        $region96: #{betavae_h_forward.2} parent=71 // pred_fallthru
          _
        // Predicated region
        $region97: #{betavae_h_forward.2} parent=71 // pred_check
          %p555 = pneg %p199
        $region98: #{betavae_h_forward.2} parent=71 // pred_check_branch
          %557 = sbr.rel (%p555) target = $region100
        $region99: #{betavae_h_forward.2} parent=71 // pred_region
          %559 = dma.done [#allocation11], 256
        $region100: #{betavae_h_forward.2} parent=71 // pred_fallthru
          _
        // Predicated region
        $region101: #{betavae_h_forward.2} parent=71 // pred_check
          %p560 = pneg %p220
        $region102: #{betavae_h_forward.2} parent=71 // pred_check_branch
          %562 = sbr.rel (%p560) target = $region104
        $region103: #{betavae_h_forward.2} parent=71 // pred_region
          %564 = dma.done [#allocation14], 16384
        $region104: #{betavae_h_forward.2} parent=71 // pred_fallthru
          _
        // Predicated region
        $region105: #{betavae_h_forward.2} parent=71 // pred_check
          %p565 = pneg %p241
        $region106: #{betavae_h_forward.2} parent=71 // pred_check_branch
          %567 = sbr.rel (%p565) target = $region108
        $region107: #{betavae_h_forward.2} parent=71 // pred_region
          %569 = dma.done [#allocation14], 32
        $region108: #{betavae_h_forward.2} parent=71 // pred_fallthru
          _
        // Predicated region
        $region109: #{betavae_h_forward.2} parent=71 // pred_check
          %p570 = pneg %p262
        $region110: #{betavae_h_forward.2} parent=71 // pred_check_branch
          %572 = sbr.rel (%p570) target = $region112
        $region111: #{betavae_h_forward.2} parent=71 // pred_region
          %574 = dma.done [#allocation17], 64
        $region112: #{betavae_h_forward.2} parent=71 // pred_fallthru
          _
        // Predicated region
        $region113: #{betavae_h_forward.2} parent=71 // pred_check
          %p575 = pneg %p283
        $region114: #{betavae_h_forward.2} parent=71 // pred_check_branch
          %577 = sbr.rel (%p575) target = $region116
        $region115: #{betavae_h_forward.2} parent=71 // pred_region
          %579 = dma.done [#allocation17], 16384
        $region116: #{betavae_h_forward.2} parent=71 // pred_fallthru
          _
        // Predicated region
        $region117: #{betavae_h_forward.2} parent=71 // pred_check
          %p580 = pneg %p304
        $region118: #{betavae_h_forward.2} parent=71 // pred_check_branch
          %582 = sbr.rel (%p580) target = $region120
        $region119: #{betavae_h_forward.2} parent=71 // pred_region
          %584 = dma.done [#allocation20], 32
        $region120: #{betavae_h_forward.2} parent=71 // pred_fallthru
          _
        %s585 = smul.u32 4, %s31
        %p586 = scmp.lt.s32.totalorder %s585, 7
        %s587 = scalar_select %p586, %s585, 7
        %s588 = smul.addr %s587, 8
        %s589 = scalar_lea.vmem %s0, %s588
        %p590 = pneg %p52
        %p591 = pneg %p49
        %p592 = pneg %p73
        %p593 = pneg %p70
        %p594 = pneg %p94
        %p595 = pneg %p91
        %p596 = pneg %p115
        %p597 = pneg %p112
        %p598 = pneg %p136
        %p599 = pneg %p133
        %p600 = pneg %p157
        %p601 = pneg %p154
        %p602 = pneg %p178
        %p603 = pneg %p175
        %p604 = pneg %p199
        %p605 = pneg %p196
        %p606 = pneg %p220
        %p607 = pneg %p217
        %p608 = pneg %p241
        %p609 = pneg %p238
        %p610 = pneg %p262
        %p611 = pneg %p259
        %p612 = pneg %p283
        %p613 = pneg %p280
        %p614 = pneg %p304
        %p615 = pneg %p301
        %p616 = pneg %p330
        %p617 = pneg %p327
        %s618 = smul.u32 2, %s31
        %p619 = scmp.lt.s32.totalorder %s618, 3
        %s620 = scalar_select %p619, %s618, 3
        %s621 = scalar_lea.vmem %s13, %s620
        %s622 = smul.u32 4, %s31
        %p623 = scmp.lt.s32.totalorder %s622, 7
        %s624 = scalar_select %p623, %s622, 7
        %s625 = smul.addr %s624, 8
        %s626 = scalar_lea.vmem %s0, %s625
        %s627 = smul.u32 4, %s31
        %s628 = smul.u32 2, %s31
        %p629 = scmp.lt.s32.totalorder %s628, 3
        %s630 = scalar_select %p629, %s628, 3
        %s631 = scalar_lea.vmem %s13, %s630
        %s632 = smul.u32 2, %s31
        %v633 = vld [vmem:[%s626] sm:$0xff]
        %v634 = vld [vmem:[%s626 + $0x8] sm:$0xff]
        %v635 = vld [vmem:[%s626 + $0x10] sm:$0xff]
        %v636 = vld [vmem:[%s626 + $0x18] sm:$0xff]
        %v637 = vld [vmem:[#allocation2] sm:$0xff]
        %v638 = vld [vmem:[#allocation2 + $0x8] sm:$0xff]
        %vm639 = vcmask 261120
        %v641 = vsel %vm639, %v637, 0
        %v644 = vsel %vm639, %v638, 0
        %646 = vmatpush.msra.mxu0 0.0
        %647 = vmatpush.msra.mxu0 0.0
        %648 = vmatpush.msra.mxu0 0.0
        %649 = vmatpush.msra.mxu0 0.0
        %650 = vmatpush.msra.mxu0 0.0
        %651 = vmatpush.msra.mxu0 0.0
        %652 = vmatpush.msra.mxu0 0.0
        %653 = vmatpush.msra.mxu0 0.0
        %654 = vmatpush.msra.mxu0 0.0
        %655 = vmatpush.msra.mxu0 0.0
        %656 = vmatpush.msra.mxu0 0.0
        %657 = vmatpush.msra.mxu0 0.0
        %658 = vmatpush.msra.mxu0 %v636
        %659 = vmatpush.msra.mxu0 %v635
        %660 = vmatpush.msra.mxu0 %v634
        %661 = vmatpush.msra.mxu0 %v633
        %662 = vmatmul.f32.gmra.mxu0 %v641
        %v663 = vpop.f32.mrf.mxu0
        %v664 = vadd.f32 0.0, %v663
        %665 = vmatmul.f32.gmra.mxu0 %v644
        %v666 = vpop.f32.mrf.mxu0
        %v667 = vadd.f32 0.0, %v666
        %668 = vdwg.mxu0
        %s669 = scalar_lea.vmem [#allocation2], 16
        %v670 = vld [vmem:[%s669] sm:$0xff]
        %v671 = vld [vmem:[%s669 + $0x8] sm:$0xff]
        %v673 = vsel %vm639, %v670, 0
        %v676 = vsel %vm639, %v671, 0
        %678 = vmatpush.msra.mxu0 0.0
        %679 = vmatpush.msra.mxu0 0.0
        %680 = vmatpush.msra.mxu0 0.0
        %681 = vmatpush.msra.mxu0 0.0
        %682 = vmatpush.msra.mxu0 0.0
        %683 = vmatpush.msra.mxu0 0.0
        %684 = vmatpush.msra.mxu0 0.0
        %685 = vmatpush.msra.mxu0 0.0
        %686 = vmatpush.msra.mxu0 0.0
        %687 = vmatpush.msra.mxu0 0.0
        %688 = vmatpush.msra.mxu0 0.0
        %689 = vmatpush.msra.mxu0 0.0
        %690 = vmatpush.msra.mxu0 %v636
        %691 = vmatpush.msra.mxu0 %v635
        %692 = vmatpush.msra.mxu0 %v634
        %693 = vmatpush.msra.mxu0 %v633
        %694 = vmatmul.f32.gmra.mxu0 %v673
        %v695 = vpop.f32.mrf.mxu0
        %v696 = vadd.f32 0.0, %v695
        %697 = vmatmul.f32.gmra.mxu0 %v676
        %v698 = vpop.f32.mrf.mxu0
        %v699 = vadd.f32 0.0, %v698
        %700 = vdwg.mxu0
        %s701 = scalar_lea.vmem [#allocation2], 32
        %v702 = vld [vmem:[%s701] sm:$0xff]
        %v703 = vld [vmem:[%s701 + $0x8] sm:$0xff]
        %v705 = vsel %vm639, %v702, 0
        %v708 = vsel %vm639, %v703, 0
        %710 = vmatpush.msra.mxu0 0.0
        %711 = vmatpush.msra.mxu0 0.0
        %712 = vmatpush.msra.mxu0 0.0
        %713 = vmatpush.msra.mxu0 0.0
        %714 = vmatpush.msra.mxu0 0.0
        %715 = vmatpush.msra.mxu0 0.0
        %716 = vmatpush.msra.mxu0 0.0
        %717 = vmatpush.msra.mxu0 0.0
        %718 = vmatpush.msra.mxu0 0.0
        %719 = vmatpush.msra.mxu0 0.0
        %720 = vmatpush.msra.mxu0 0.0
        %721 = vmatpush.msra.mxu0 0.0
        %722 = vmatpush.msra.mxu0 %v636
        %723 = vmatpush.msra.mxu0 %v635
        %724 = vmatpush.msra.mxu0 %v634
        %725 = vmatpush.msra.mxu0 %v633
        %726 = vmatmul.f32.gmra.mxu0 %v705
        %v727 = vpop.f32.mrf.mxu0
        %v728 = vadd.f32 0.0, %v727
        %729 = vmatmul.f32.gmra.mxu0 %v708
        %v730 = vpop.f32.mrf.mxu0
        %v731 = vadd.f32 0.0, %v730
        %732 = vdwg.mxu0
        %s733 = scalar_lea.vmem [#allocation2], 48
        %v734 = vld [vmem:[%s733] sm:$0xff]
        %v735 = vld [vmem:[%s733 + $0x8] sm:$0xff]
        %v737 = vsel %vm639, %v734, 0
        %v740 = vsel %vm639, %v735, 0
        %742 = vmatpush.msra.mxu0 0.0
        %743 = vmatpush.msra.mxu0 0.0
        %744 = vmatpush.msra.mxu0 0.0
        %745 = vmatpush.msra.mxu0 0.0
        %746 = vmatpush.msra.mxu0 0.0
        %747 = vmatpush.msra.mxu0 0.0
        %748 = vmatpush.msra.mxu0 0.0
        %749 = vmatpush.msra.mxu0 0.0
        %750 = vmatpush.msra.mxu0 0.0
        %751 = vmatpush.msra.mxu0 0.0
        %752 = vmatpush.msra.mxu0 0.0
        %753 = vmatpush.msra.mxu0 0.0
        %754 = vmatpush.msra.mxu0 %v636
        %755 = vmatpush.msra.mxu0 %v635
        %756 = vmatpush.msra.mxu0 %v634
        %757 = vmatpush.msra.mxu0 %v633
        %758 = vmatmul.f32.gmra.mxu0 %v737
        %v759 = vpop.f32.mrf.mxu0
        %v760 = vadd.f32 0.0, %v759
        %761 = vmatmul.f32.gmra.mxu0 %v740
        %v762 = vpop.f32.mrf.mxu0
        %v763 = vadd.f32 0.0, %v762
        %764 = vdwg.mxu0
        %v765 = vld [vmem:[#allocation4] sm:$0xff]
        %v766 = vld [vmem:[#allocation4 + $0x8] sm:$0xff]
        %v767 = vld [vmem:[#allocation4 + $0x10] sm:$0xff]
        %v768 = vld [vmem:[#allocation4 + $0x18] sm:$0xff]
        %v769 = vld [vmem:[#allocation4 + $0x20] sm:$0xff]
        %v770 = vld [vmem:[#allocation4 + $0x28] sm:$0xff]
        %v771 = vld [vmem:[#allocation4 + $0x30] sm:$0xff]
        %v772 = vld [vmem:[#allocation4 + $0x38] sm:$0xff]
        %v773 = vld [vmem:[#allocation4 + $0x40] sm:$0xff]
        %v774 = vld [vmem:[#allocation4 + $0x48] sm:$0xff]
        %v775 = vld [vmem:[#allocation4 + $0x50] sm:$0xff]
        %v776 = vld [vmem:[#allocation4 + $0x58] sm:$0xff]
        %v777 = vld [vmem:[#allocation4 + $0x60] sm:$0xff]
        %v778 = vld [vmem:[#allocation4 + $0x68] sm:$0xff]
        %v779 = vld [vmem:[#allocation4 + $0x70] sm:$0xff]
        %v780 = vld [vmem:[#allocation4 + $0x78] sm:$0xff]
        %v781 = vld [vmem:[#allocation4 + $0x80] sm:$0xff]
        %v782 = vld [vmem:[#allocation4 + $0x88] sm:$0xff]
        %v783 = vld [vmem:[#allocation4 + $0x90] sm:$0xff]
        %v784 = vld [vmem:[#allocation4 + $0x98] sm:$0xff]
        %v785 = vld [vmem:[#allocation4 + $0xa0] sm:$0xff]
        %v786 = vld [vmem:[#allocation4 + $0xa8] sm:$0xff]
        %v787 = vld [vmem:[#allocation4 + $0xb0] sm:$0xff]
        %v788 = vld [vmem:[#allocation4 + $0xb8] sm:$0xff]
        %v789 = vld [vmem:[#allocation4 + $0xc0] sm:$0xff]
        %v790 = vld [vmem:[#allocation4 + $0xc8] sm:$0xff]
        %v791 = vld [vmem:[#allocation4 + $0xd0] sm:$0xff]
        %v792 = vld [vmem:[#allocation4 + $0xd8] sm:$0xff]
        %v793 = vld [vmem:[#allocation4 + $0xe0] sm:$0xff]
        %v794 = vld [vmem:[#allocation4 + $0xe8] sm:$0xff]
        %v795 = vld [vmem:[#allocation4 + $0xf0] sm:$0xff]
        %v796 = vld [vmem:[#allocation4 + $0xf8] sm:$0xff]
        %v797 = vld [vmem:[#allocation4 + $0x100] sm:$0xff]
        %v798 = vld [vmem:[#allocation4 + $0x108] sm:$0xff]
        %v799 = vld [vmem:[#allocation4 + $0x110] sm:$0xff]
        %v800 = vld [vmem:[#allocation4 + $0x118] sm:$0xff]
        %v801 = vld [vmem:[#allocation4 + $0x120] sm:$0xff]
        %v802 = vld [vmem:[#allocation4 + $0x128] sm:$0xff]
        %v803 = vld [vmem:[#allocation4 + $0x130] sm:$0xff]
        %v804 = vld [vmem:[#allocation4 + $0x138] sm:$0xff]
        %v805 = vld [vmem:[#allocation4 + $0x140] sm:$0xff]
        %v806 = vld [vmem:[#allocation4 + $0x148] sm:$0xff]
        %v807 = vld [vmem:[#allocation4 + $0x150] sm:$0xff]
        %v808 = vld [vmem:[#allocation4 + $0x158] sm:$0xff]
        %v809 = vld [vmem:[#allocation4 + $0x160] sm:$0xff]
        %v810 = vld [vmem:[#allocation4 + $0x168] sm:$0xff]
        %v811 = vld [vmem:[#allocation4 + $0x170] sm:$0xff]
        %v812 = vld [vmem:[#allocation4 + $0x178] sm:$0xff]
        %v813 = vld [vmem:[#allocation4 + $0x180] sm:$0xff]
        %v814 = vld [vmem:[#allocation4 + $0x188] sm:$0xff]
        %v815 = vld [vmem:[#allocation4 + $0x190] sm:$0xff]
        %v816 = vld [vmem:[#allocation4 + $0x198] sm:$0xff]
        %v817 = vld [vmem:[#allocation4 + $0x1a0] sm:$0xff]
        %v818 = vld [vmem:[#allocation4 + $0x1a8] sm:$0xff]
        %v819 = vld [vmem:[#allocation4 + $0x1b0] sm:$0xff]
        %v820 = vld [vmem:[#allocation4 + $0x1b8] sm:$0xff]
        %v821 = vld [vmem:[#allocation4 + $0x1c0] sm:$0xff]
        %v822 = vld [vmem:[#allocation4 + $0x1c8] sm:$0xff]
        %v823 = vld [vmem:[#allocation4 + $0x1d0] sm:$0xff]
        %v824 = vld [vmem:[#allocation4 + $0x1d8] sm:$0xff]
        %v825 = vld [vmem:[#allocation4 + $0x1e0] sm:$0xff]
        %v826 = vld [vmem:[#allocation4 + $0x1e8] sm:$0xff]
        %v827 = vld [vmem:[#allocation4 + $0x1f0] sm:$0xff]
        %v828 = vld [vmem:[#allocation4 + $0x1f8] sm:$0xff]
        %v829 = vld [vmem:[#allocation4 + $0x200] sm:$0xff]
        %v830 = vld [vmem:[#allocation4 + $0x208] sm:$0xff]
        %v831 = vld [vmem:[#allocation4 + $0x210] sm:$0xff]
        %v832 = vld [vmem:[#allocation4 + $0x218] sm:$0xff]
        %v833 = vld [vmem:[#allocation4 + $0x220] sm:$0xff]
        %v834 = vld [vmem:[#allocation4 + $0x228] sm:$0xff]
        %v835 = vld [vmem:[#allocation4 + $0x230] sm:$0xff]
        %v836 = vld [vmem:[#allocation4 + $0x238] sm:$0xff]
        %v837 = vld [vmem:[#allocation4 + $0x240] sm:$0xff]
        %v838 = vld [vmem:[#allocation4 + $0x248] sm:$0xff]
        %v839 = vld [vmem:[#allocation4 + $0x250] sm:$0xff]
        %v840 = vld [vmem:[#allocation4 + $0x258] sm:$0xff]
        %v841 = vld [vmem:[#allocation4 + $0x260] sm:$0xff]
        %v842 = vld [vmem:[#allocation4 + $0x268] sm:$0xff]
        %v843 = vld [vmem:[#allocation4 + $0x270] sm:$0xff]
        %v844 = vld [vmem:[#allocation4 + $0x278] sm:$0xff]
        %v845 = vld [vmem:[#allocation4 + $0x280] sm:$0xff]
        %v846 = vld [vmem:[#allocation4 + $0x288] sm:$0xff]
        %v847 = vld [vmem:[#allocation4 + $0x290] sm:$0xff]
        %v848 = vld [vmem:[#allocation4 + $0x298] sm:$0xff]
        %v849 = vld [vmem:[#allocation4 + $0x2a0] sm:$0xff]
        %v850 = vld [vmem:[#allocation4 + $0x2a8] sm:$0xff]
        %v851 = vld [vmem:[#allocation4 + $0x2b0] sm:$0xff]
        %v852 = vld [vmem:[#allocation4 + $0x2b8] sm:$0xff]
        %v853 = vld [vmem:[#allocation4 + $0x2c0] sm:$0xff]
        %v854 = vld [vmem:[#allocation4 + $0x2c8] sm:$0xff]
        %v855 = vld [vmem:[#allocation4 + $0x2d0] sm:$0xff]
        %v856 = vld [vmem:[#allocation4 + $0x2d8] sm:$0xff]
        %v857 = vld [vmem:[#allocation4 + $0x2e0] sm:$0xff]
        %v858 = vld [vmem:[#allocation4 + $0x2e8] sm:$0xff]
        %v859 = vld [vmem:[#allocation4 + $0x2f0] sm:$0xff]
        %v860 = vld [vmem:[#allocation4 + $0x2f8] sm:$0xff]
        %v861 = vld [vmem:[#allocation4 + $0x300] sm:$0xff]
        %v862 = vld [vmem:[#allocation4 + $0x308] sm:$0xff]
        %v863 = vld [vmem:[#allocation4 + $0x310] sm:$0xff]
        %v864 = vld [vmem:[#allocation4 + $0x318] sm:$0xff]
        %v865 = vld [vmem:[#allocation4 + $0x320] sm:$0xff]
        %v866 = vld [vmem:[#allocation4 + $0x328] sm:$0xff]
        %v867 = vld [vmem:[#allocation4 + $0x330] sm:$0xff]
        %v868 = vld [vmem:[#allocation4 + $0x338] sm:$0xff]
        %v869 = vld [vmem:[#allocation4 + $0x340] sm:$0xff]
        %v870 = vld [vmem:[#allocation4 + $0x348] sm:$0xff]
        %v871 = vld [vmem:[#allocation4 + $0x350] sm:$0xff]
        %v872 = vld [vmem:[#allocation4 + $0x358] sm:$0xff]
        %v873 = vld [vmem:[#allocation4 + $0x360] sm:$0xff]
        %v874 = vld [vmem:[#allocation4 + $0x368] sm:$0xff]
        %v875 = vld [vmem:[#allocation4 + $0x370] sm:$0xff]
        %v876 = vld [vmem:[#allocation4 + $0x378] sm:$0xff]
        %v877 = vld [vmem:[#allocation4 + $0x380] sm:$0xff]
        %v878 = vld [vmem:[#allocation4 + $0x388] sm:$0xff]
        %v879 = vld [vmem:[#allocation4 + $0x390] sm:$0xff]
        %v880 = vld [vmem:[#allocation4 + $0x398] sm:$0xff]
        %v881 = vld [vmem:[#allocation4 + $0x3a0] sm:$0xff]
        %v882 = vld [vmem:[#allocation4 + $0x3a8] sm:$0xff]
        %v883 = vld [vmem:[#allocation4 + $0x3b0] sm:$0xff]
        %v884 = vld [vmem:[#allocation4 + $0x3b8] sm:$0xff]
        %v885 = vld [vmem:[#allocation4 + $0x3c0] sm:$0xff]
        %v886 = vld [vmem:[#allocation4 + $0x3c8] sm:$0xff]
        %v887 = vld [vmem:[#allocation4 + $0x3d0] sm:$0xff]
        %v888 = vld [vmem:[#allocation4 + $0x3d8] sm:$0xff]
        %v889 = vld [vmem:[#allocation4 + $0x3e0] sm:$0xff]
        %v890 = vld [vmem:[#allocation4 + $0x3e8] sm:$0xff]
        %v891 = vld [vmem:[#allocation4 + $0x3f0] sm:$0xff]
        %v892 = vld [vmem:[#allocation4 + $0x3f8] sm:$0xff]
        %v893 = vunpack.c.l.bf16 %v765
        %v894 = vunpack.c.h.bf16 %v765
        %v895 = vunpack.c.l.bf16 %v766
        %v896 = vunpack.c.h.bf16 %v766
        %v897 = vunpack.c.l.bf16 %v767
        %v898 = vunpack.c.h.bf16 %v767
        %v899 = vunpack.c.l.bf16 %v768
        %v900 = vunpack.c.h.bf16 %v768
        %v901 = vunpack.c.l.bf16 %v769
        %v902 = vunpack.c.h.bf16 %v769
        %v903 = vunpack.c.l.bf16 %v770
        %v904 = vunpack.c.h.bf16 %v770
        %v905 = vunpack.c.l.bf16 %v771
        %v906 = vunpack.c.h.bf16 %v771
        %v907 = vunpack.c.l.bf16 %v772
        %v908 = vunpack.c.h.bf16 %v772
        %v909 = vunpack.c.l.bf16 %v773
        %v910 = vunpack.c.h.bf16 %v773
        %v911 = vunpack.c.l.bf16 %v774
        %v912 = vunpack.c.h.bf16 %v774
        %v913 = vunpack.c.l.bf16 %v775
        %v914 = vunpack.c.h.bf16 %v775
        %v915 = vunpack.c.l.bf16 %v776
        %v916 = vunpack.c.h.bf16 %v776
        %v917 = vunpack.c.l.bf16 %v777
        %v918 = vunpack.c.h.bf16 %v777
        %v919 = vunpack.c.l.bf16 %v778
        %v920 = vunpack.c.h.bf16 %v778
        %v921 = vunpack.c.l.bf16 %v779
        %v922 = vunpack.c.h.bf16 %v779
        %v923 = vunpack.c.l.bf16 %v780
        %v924 = vunpack.c.h.bf16 %v780
        %v925 = vunpack.c.l.bf16 %v781
        %v926 = vunpack.c.h.bf16 %v781
        %v927 = vunpack.c.l.bf16 %v782
        %v928 = vunpack.c.h.bf16 %v782
        %v929 = vunpack.c.l.bf16 %v783
        %v930 = vunpack.c.h.bf16 %v783
        %v931 = vunpack.c.l.bf16 %v784
        %v932 = vunpack.c.h.bf16 %v784
        %v933 = vunpack.c.l.bf16 %v785
        %v934 = vunpack.c.h.bf16 %v785
        %v935 = vunpack.c.l.bf16 %v786
        %v936 = vunpack.c.h.bf16 %v786
        %v937 = vunpack.c.l.bf16 %v787
        %v938 = vunpack.c.h.bf16 %v787
        %v939 = vunpack.c.l.bf16 %v788
        %v940 = vunpack.c.h.bf16 %v788
        %v941 = vunpack.c.l.bf16 %v789
        %v942 = vunpack.c.h.bf16 %v789
        %v943 = vunpack.c.l.bf16 %v790
        %v944 = vunpack.c.h.bf16 %v790
        %v945 = vunpack.c.l.bf16 %v791
        %v946 = vunpack.c.h.bf16 %v791
        %v947 = vunpack.c.l.bf16 %v792
        %v948 = vunpack.c.h.bf16 %v792
        %v949 = vunpack.c.l.bf16 %v793
        %v950 = vunpack.c.h.bf16 %v793
        %v951 = vunpack.c.l.bf16 %v794
        %v952 = vunpack.c.h.bf16 %v794
        %v953 = vunpack.c.l.bf16 %v795
        %v954 = vunpack.c.h.bf16 %v795
        %v955 = vunpack.c.l.bf16 %v796
        %v956 = vunpack.c.h.bf16 %v796
        %v957 = vunpack.c.l.bf16 %v797
        %v958 = vunpack.c.h.bf16 %v797
        %v959 = vunpack.c.l.bf16 %v798
        %v960 = vunpack.c.h.bf16 %v798
        %v961 = vunpack.c.l.bf16 %v799
        %v962 = vunpack.c.h.bf16 %v799
        %v963 = vunpack.c.l.bf16 %v800
        %v964 = vunpack.c.h.bf16 %v800
        %v965 = vunpack.c.l.bf16 %v801
        %v966 = vunpack.c.h.bf16 %v801
        %v967 = vunpack.c.l.bf16 %v802
        %v968 = vunpack.c.h.bf16 %v802
        %v969 = vunpack.c.l.bf16 %v803
        %v970 = vunpack.c.h.bf16 %v803
        %v971 = vunpack.c.l.bf16 %v804
        %v972 = vunpack.c.h.bf16 %v804
        %v973 = vunpack.c.l.bf16 %v805
        %v974 = vunpack.c.h.bf16 %v805
        %v975 = vunpack.c.l.bf16 %v806
        %v976 = vunpack.c.h.bf16 %v806
        %v977 = vunpack.c.l.bf16 %v807
        %v978 = vunpack.c.h.bf16 %v807
        %v979 = vunpack.c.l.bf16 %v808
        %v980 = vunpack.c.h.bf16 %v808
        %v981 = vunpack.c.l.bf16 %v809
        %v982 = vunpack.c.h.bf16 %v809
        %v983 = vunpack.c.l.bf16 %v810
        %v984 = vunpack.c.h.bf16 %v810
        %v985 = vunpack.c.l.bf16 %v811
        %v986 = vunpack.c.h.bf16 %v811
        %v987 = vunpack.c.l.bf16 %v812
        %v988 = vunpack.c.h.bf16 %v812
        %v989 = vunpack.c.l.bf16 %v813
        %v990 = vunpack.c.h.bf16 %v813
        %v991 = vunpack.c.l.bf16 %v814
        %v992 = vunpack.c.h.bf16 %v814
        %v993 = vunpack.c.l.bf16 %v815
        %v994 = vunpack.c.h.bf16 %v815
        %v995 = vunpack.c.l.bf16 %v816
        %v996 = vunpack.c.h.bf16 %v816
        %v997 = vunpack.c.l.bf16 %v817
        %v998 = vunpack.c.h.bf16 %v817
        %v999 = vunpack.c.l.bf16 %v818
        %v1000 = vunpack.c.h.bf16 %v818
        %v1001 = vunpack.c.l.bf16 %v819
        %v1002 = vunpack.c.h.bf16 %v819
        %v1003 = vunpack.c.l.bf16 %v820
        %v1004 = vunpack.c.h.bf16 %v820
        %v1005 = vunpack.c.l.bf16 %v821
        %v1006 = vunpack.c.h.bf16 %v821
        %v1007 = vunpack.c.l.bf16 %v822
        %v1008 = vunpack.c.h.bf16 %v822
        %v1009 = vunpack.c.l.bf16 %v823
        %v1010 = vunpack.c.h.bf16 %v823
        %v1011 = vunpack.c.l.bf16 %v824
        %v1012 = vunpack.c.h.bf16 %v824
        %v1013 = vunpack.c.l.bf16 %v825
        %v1014 = vunpack.c.h.bf16 %v825
        %v1015 = vunpack.c.l.bf16 %v826
        %v1016 = vunpack.c.h.bf16 %v826
        %v1017 = vunpack.c.l.bf16 %v827
        %v1018 = vunpack.c.h.bf16 %v827
        %v1019 = vunpack.c.l.bf16 %v828
        %v1020 = vunpack.c.h.bf16 %v828
        %v1021 = vunpack.c.l.bf16 %v829
        %v1022 = vunpack.c.h.bf16 %v829
        %v1023 = vunpack.c.l.bf16 %v830
        %v1024 = vunpack.c.h.bf16 %v830
        %v1025 = vunpack.c.l.bf16 %v831
        %v1026 = vunpack.c.h.bf16 %v831
        %v1027 = vunpack.c.l.bf16 %v832
        %v1028 = vunpack.c.h.bf16 %v832
        %v1029 = vunpack.c.l.bf16 %v833
        %v1030 = vunpack.c.h.bf16 %v833
        %v1031 = vunpack.c.l.bf16 %v834
        %v1032 = vunpack.c.h.bf16 %v834
        %v1033 = vunpack.c.l.bf16 %v835
        %v1034 = vunpack.c.h.bf16 %v835
        %v1035 = vunpack.c.l.bf16 %v836
        %v1036 = vunpack.c.h.bf16 %v836
        %v1037 = vunpack.c.l.bf16 %v837
        %v1038 = vunpack.c.h.bf16 %v837
        %v1039 = vunpack.c.l.bf16 %v838
        %v1040 = vunpack.c.h.bf16 %v838
        %v1041 = vunpack.c.l.bf16 %v839
        %v1042 = vunpack.c.h.bf16 %v839
        %v1043 = vunpack.c.l.bf16 %v840
        %v1044 = vunpack.c.h.bf16 %v840
        %v1045 = vunpack.c.l.bf16 %v841
        %v1046 = vunpack.c.h.bf16 %v841
        %v1047 = vunpack.c.l.bf16 %v842
        %v1048 = vunpack.c.h.bf16 %v842
        %v1049 = vunpack.c.l.bf16 %v843
        %v1050 = vunpack.c.h.bf16 %v843
        %v1051 = vunpack.c.l.bf16 %v844
        %v1052 = vunpack.c.h.bf16 %v844
        %v1053 = vunpack.c.l.bf16 %v845
        %v1054 = vunpack.c.h.bf16 %v845
        %v1055 = vunpack.c.l.bf16 %v846
        %v1056 = vunpack.c.h.bf16 %v846
        %v1057 = vunpack.c.l.bf16 %v847
        %v1058 = vunpack.c.h.bf16 %v847
        %v1059 = vunpack.c.l.bf16 %v848
        %v1060 = vunpack.c.h.bf16 %v848
        %v1061 = vunpack.c.l.bf16 %v849
        %v1062 = vunpack.c.h.bf16 %v849
        %v1063 = vunpack.c.l.bf16 %v850
        %v1064 = vunpack.c.h.bf16 %v850
        %v1065 = vunpack.c.l.bf16 %v851
        %v1066 = vunpack.c.h.bf16 %v851
        %v1067 = vunpack.c.l.bf16 %v852
        %v1068 = vunpack.c.h.bf16 %v852
        %v1069 = vunpack.c.l.bf16 %v853
        %v1070 = vunpack.c.h.bf16 %v853
        %v1071 = vunpack.c.l.bf16 %v854
        %v1072 = vunpack.c.h.bf16 %v854
        %v1073 = vunpack.c.l.bf16 %v855
        %v1074 = vunpack.c.h.bf16 %v855
        %v1075 = vunpack.c.l.bf16 %v856
        %v1076 = vunpack.c.h.bf16 %v856
        %v1077 = vunpack.c.l.bf16 %v857
        %v1078 = vunpack.c.h.bf16 %v857
        %v1079 = vunpack.c.l.bf16 %v858
        %v1080 = vunpack.c.h.bf16 %v858
        %v1081 = vunpack.c.l.bf16 %v859
        %v1082 = vunpack.c.h.bf16 %v859
        %v1083 = vunpack.c.l.bf16 %v860
        %v1084 = vunpack.c.h.bf16 %v860
        %v1085 = vunpack.c.l.bf16 %v861
        %v1086 = vunpack.c.h.bf16 %v861
        %v1087 = vunpack.c.l.bf16 %v862
        %v1088 = vunpack.c.h.bf16 %v862
        %v1089 = vunpack.c.l.bf16 %v863
        %v1090 = vunpack.c.h.bf16 %v863
        %v1091 = vunpack.c.l.bf16 %v864
        %v1092 = vunpack.c.h.bf16 %v864
        %v1093 = vunpack.c.l.bf16 %v865
        %v1094 = vunpack.c.h.bf16 %v865
        %v1095 = vunpack.c.l.bf16 %v866
        %v1096 = vunpack.c.h.bf16 %v866
        %v1097 = vunpack.c.l.bf16 %v867
        %v1098 = vunpack.c.h.bf16 %v867
        %v1099 = vunpack.c.l.bf16 %v868
        %v1100 = vunpack.c.h.bf16 %v868
        %v1101 = vunpack.c.l.bf16 %v869
        %v1102 = vunpack.c.h.bf16 %v869
        %v1103 = vunpack.c.l.bf16 %v870
        %v1104 = vunpack.c.h.bf16 %v870
        %v1105 = vunpack.c.l.bf16 %v871
        %v1106 = vunpack.c.h.bf16 %v871
        %v1107 = vunpack.c.l.bf16 %v872
        %v1108 = vunpack.c.h.bf16 %v872
        %v1109 = vunpack.c.l.bf16 %v873
        %v1110 = vunpack.c.h.bf16 %v873
        %v1111 = vunpack.c.l.bf16 %v874
        %v1112 = vunpack.c.h.bf16 %v874
        %v1113 = vunpack.c.l.bf16 %v875
        %v1114 = vunpack.c.h.bf16 %v875
        %v1115 = vunpack.c.l.bf16 %v876
        %v1116 = vunpack.c.h.bf16 %v876
        %v1117 = vunpack.c.l.bf16 %v877
        %v1118 = vunpack.c.h.bf16 %v877
        %v1119 = vunpack.c.l.bf16 %v878
        %v1120 = vunpack.c.h.bf16 %v878
        %v1121 = vunpack.c.l.bf16 %v879
        %v1122 = vunpack.c.h.bf16 %v879
        %v1123 = vunpack.c.l.bf16 %v880
        %v1124 = vunpack.c.h.bf16 %v880
        %v1125 = vunpack.c.l.bf16 %v881
        %v1126 = vunpack.c.h.bf16 %v881
        %v1127 = vunpack.c.l.bf16 %v882
        %v1128 = vunpack.c.h.bf16 %v882
        %v1129 = vunpack.c.l.bf16 %v883
        %v1130 = vunpack.c.h.bf16 %v883
        %v1131 = vunpack.c.l.bf16 %v884
        %v1132 = vunpack.c.h.bf16 %v884
        %v1133 = vunpack.c.l.bf16 %v885
        %v1134 = vunpack.c.h.bf16 %v885
        %v1135 = vunpack.c.l.bf16 %v886
        %v1136 = vunpack.c.h.bf16 %v886
        %v1137 = vunpack.c.l.bf16 %v887
        %v1138 = vunpack.c.h.bf16 %v887
        %v1139 = vunpack.c.l.bf16 %v888
        %v1140 = vunpack.c.h.bf16 %v888
        %v1141 = vunpack.c.l.bf16 %v889
        %v1142 = vunpack.c.h.bf16 %v889
        %v1143 = vunpack.c.l.bf16 %v890
        %v1144 = vunpack.c.h.bf16 %v890
        %v1145 = vunpack.c.l.bf16 %v891
        %v1146 = vunpack.c.h.bf16 %v891
        %v1147 = vunpack.c.l.bf16 %v892
        %v1148 = vunpack.c.h.bf16 %v892
        %v1149 = vld [vmem:[#allocation6] sm:$0xf]
        %v1151 = vperm.slane %v1149, 0
        %v1152 = vperm.slane %v1149, 1
        %v1153 = vperm.slane %v1149, 2
        %v1154 = vperm.slane %v1149, 3
        %1159 = vmatpush.msra.mxu0 %v953
        %1160 = vmatpush.msra.mxu0 %v949
        %1161 = vmatpush.msra.mxu0 %v945
        %1162 = vmatpush.msra.mxu0 %v941
        %1163 = vmatpush.msra.mxu0 %v937
        %1164 = vmatpush.msra.mxu0 %v933
        %1165 = vmatpush.msra.mxu0 %v929
        %1166 = vmatpush.msra.mxu0 %v925
        %1167 = vmatpush.msra.mxu0 %v921
        %1168 = vmatpush.msra.mxu0 %v917
        %1169 = vmatpush.msra.mxu0 %v913
        %1170 = vmatpush.msra.mxu0 %v909
        %1171 = vmatpush.msra.mxu0 %v905
        %1172 = vmatpush.msra.mxu0 %v901
        %1173 = vmatpush.msra.mxu0 %v897
        %1174 = vmatpush.msra.mxu0 %v893
        %1175 = vmatmul.f32.gmra.mxu0 %v664
        %v1176 = vpop.f32.mrf.mxu0
        %v1177 = vadd.f32 %v1151, %v1176
        %1178 = vmatmul.f32.gmra.mxu0 %v667
        %v1179 = vpop.f32.mrf.mxu0
        %v1180 = vadd.f32 %v1151, %v1179
        %1181 = vdwg.mxu0
        %1182 = vmatpush.msra.mxu0 %v1017
        %1183 = vmatpush.msra.mxu0 %v1013
        %1184 = vmatpush.msra.mxu0 %v1009
        %1185 = vmatpush.msra.mxu0 %v1005
        %1186 = vmatpush.msra.mxu0 %v1001
        %1187 = vmatpush.msra.mxu0 %v997
        %1188 = vmatpush.msra.mxu0 %v993
        %1189 = vmatpush.msra.mxu0 %v989
        %1190 = vmatpush.msra.mxu0 %v985
        %1191 = vmatpush.msra.mxu0 %v981
        %1192 = vmatpush.msra.mxu0 %v977
        %1193 = vmatpush.msra.mxu0 %v973
        %1194 = vmatpush.msra.mxu0 %v969
        %1195 = vmatpush.msra.mxu0 %v965
        %1196 = vmatpush.msra.mxu0 %v961
        %1197 = vmatpush.msra.mxu0 %v957
        %1198 = vmatmul.f32.gmra.mxu0 %v696
        %v1199 = vpop.f32.mrf.mxu0
        %v1200 = vadd.f32 %v1177, %v1199
        %1201 = vmatmul.f32.gmra.mxu0 %v699
        %v1202 = vpop.f32.mrf.mxu0
        %v1203 = vadd.f32 %v1180, %v1202
        %1204 = vdwg.mxu0
        %1205 = vmatpush.msra.mxu0 %v1081
        %1206 = vmatpush.msra.mxu0 %v1077
        %1207 = vmatpush.msra.mxu0 %v1073
        %1208 = vmatpush.msra.mxu0 %v1069
        %1209 = vmatpush.msra.mxu0 %v1065
        %1210 = vmatpush.msra.mxu0 %v1061
        %1211 = vmatpush.msra.mxu0 %v1057
        %1212 = vmatpush.msra.mxu0 %v1053
        %1213 = vmatpush.msra.mxu0 %v1049
        %1214 = vmatpush.msra.mxu0 %v1045
        %1215 = vmatpush.msra.mxu0 %v1041
        %1216 = vmatpush.msra.mxu0 %v1037
        %1217 = vmatpush.msra.mxu0 %v1033
        %1218 = vmatpush.msra.mxu0 %v1029
        %1219 = vmatpush.msra.mxu0 %v1025
        %1220 = vmatpush.msra.mxu0 %v1021
        %1221 = vmatmul.f32.gmra.mxu0 %v728
        %v1222 = vpop.f32.mrf.mxu0
        %v1223 = vadd.f32 %v1200, %v1222
        %1224 = vmatmul.f32.gmra.mxu0 %v731
        %v1225 = vpop.f32.mrf.mxu0
        %v1226 = vadd.f32 %v1203, %v1225
        %1227 = vdwg.mxu0
        %1228 = vmatpush.msra.mxu0 %v1145
        %1229 = vmatpush.msra.mxu0 %v1141
        %1230 = vmatpush.msra.mxu0 %v1137
        %1231 = vmatpush.msra.mxu0 %v1133
        %1232 = vmatpush.msra.mxu0 %v1129
        %1233 = vmatpush.msra.mxu0 %v1125
        %1234 = vmatpush.msra.mxu0 %v1121
        %1235 = vmatpush.msra.mxu0 %v1117
        %1236 = vmatpush.msra.mxu0 %v1113
        %1237 = vmatpush.msra.mxu0 %v1109
        %1238 = vmatpush.msra.mxu0 %v1105
        %1239 = vmatpush.msra.mxu0 %v1101
        %1240 = vmatpush.msra.mxu0 %v1097
        %1241 = vmatpush.msra.mxu0 %v1093
        %1242 = vmatpush.msra.mxu0 %v1089
        %1243 = vmatpush.msra.mxu0 %v1085
        %1244 = vmatmul.f32.gmra.mxu0 %v760
        %v1245 = vpop.f32.mrf.mxu0
        %v1246 = vadd.f32 %v1223, %v1245
        %1247 = vmatmul.f32.gmra.mxu0 %v763
        %v1248 = vpop.f32.mrf.mxu0
        %v1249 = vadd.f32 %v1226, %v1248
        %1250 = vdwg.mxu0
        %1251 = vmatpush.msra.mxu0 %v954
        %1252 = vmatpush.msra.mxu0 %v950
        %1253 = vmatpush.msra.mxu0 %v946
        %1254 = vmatpush.msra.mxu0 %v942
        %1255 = vmatpush.msra.mxu0 %v938
        %1256 = vmatpush.msra.mxu0 %v934
        %1257 = vmatpush.msra.mxu0 %v930
        %1258 = vmatpush.msra.mxu0 %v926
        %1259 = vmatpush.msra.mxu0 %v922
        %1260 = vmatpush.msra.mxu0 %v918
        %1261 = vmatpush.msra.mxu0 %v914
        %1262 = vmatpush.msra.mxu0 %v910
        %1263 = vmatpush.msra.mxu0 %v906
        %1264 = vmatpush.msra.mxu0 %v902
        %1265 = vmatpush.msra.mxu0 %v898
        %1266 = vmatpush.msra.mxu0 %v894
        %1267 = vmatmul.f32.gmra.mxu0 %v664
        %v1268 = vpop.f32.mrf.mxu0
        %v1269 = vadd.f32 %v1152, %v1268
        %1270 = vmatmul.f32.gmra.mxu0 %v667
        %v1271 = vpop.f32.mrf.mxu0
        %v1272 = vadd.f32 %v1152, %v1271
        %1273 = vdwg.mxu0
        %1274 = vmatpush.msra.mxu0 %v1018
        %1275 = vmatpush.msra.mxu0 %v1014
        %1276 = vmatpush.msra.mxu0 %v1010
        %1277 = vmatpush.msra.mxu0 %v1006
        %1278 = vmatpush.msra.mxu0 %v1002
        %1279 = vmatpush.msra.mxu0 %v998
        %1280 = vmatpush.msra.mxu0 %v994
        %1281 = vmatpush.msra.mxu0 %v990
        %1282 = vmatpush.msra.mxu0 %v986
        %1283 = vmatpush.msra.mxu0 %v982
        %1284 = vmatpush.msra.mxu0 %v978
        %1285 = vmatpush.msra.mxu0 %v974
        %1286 = vmatpush.msra.mxu0 %v970
        %1287 = vmatpush.msra.mxu0 %v966
        %1288 = vmatpush.msra.mxu0 %v962
        %1289 = vmatpush.msra.mxu0 %v958
        %1290 = vmatmul.f32.gmra.mxu0 %v696
        %v1291 = vpop.f32.mrf.mxu0
        %v1292 = vadd.f32 %v1269, %v1291
        %1293 = vmatmul.f32.gmra.mxu0 %v699
        %v1294 = vpop.f32.mrf.mxu0
        %v1295 = vadd.f32 %v1272, %v1294
        %1296 = vdwg.mxu0
        %1297 = vmatpush.msra.mxu0 %v1082
        %1298 = vmatpush.msra.mxu0 %v1078
        %1299 = vmatpush.msra.mxu0 %v1074
        %1300 = vmatpush.msra.mxu0 %v1070
        %1301 = vmatpush.msra.mxu0 %v1066
        %1302 = vmatpush.msra.mxu0 %v1062
        %1303 = vmatpush.msra.mxu0 %v1058
        %1304 = vmatpush.msra.mxu0 %v1054
        %1305 = vmatpush.msra.mxu0 %v1050
        %1306 = vmatpush.msra.mxu0 %v1046
        %1307 = vmatpush.msra.mxu0 %v1042
        %1308 = vmatpush.msra.mxu0 %v1038
        %1309 = vmatpush.msra.mxu0 %v1034
        %1310 = vmatpush.msra.mxu0 %v1030
        %1311 = vmatpush.msra.mxu0 %v1026
        %1312 = vmatpush.msra.mxu0 %v1022
        %1313 = vmatmul.f32.gmra.mxu0 %v728
        %v1314 = vpop.f32.mrf.mxu0
        %v1315 = vadd.f32 %v1292, %v1314
        %1316 = vmatmul.f32.gmra.mxu0 %v731
        %v1317 = vpop.f32.mrf.mxu0
        %v1318 = vadd.f32 %v1295, %v1317
        %1319 = vdwg.mxu0
        %1320 = vmatpush.msra.mxu0 %v1146
        %1321 = vmatpush.msra.mxu0 %v1142
        %1322 = vmatpush.msra.mxu0 %v1138
        %1323 = vmatpush.msra.mxu0 %v1134
        %1324 = vmatpush.msra.mxu0 %v1130
        %1325 = vmatpush.msra.mxu0 %v1126
        %1326 = vmatpush.msra.mxu0 %v1122
        %1327 = vmatpush.msra.mxu0 %v1118
        %1328 = vmatpush.msra.mxu0 %v1114
        %1329 = vmatpush.msra.mxu0 %v1110
        %1330 = vmatpush.msra.mxu0 %v1106
        %1331 = vmatpush.msra.mxu0 %v1102
        %1332 = vmatpush.msra.mxu0 %v1098
        %1333 = vmatpush.msra.mxu0 %v1094
        %1334 = vmatpush.msra.mxu0 %v1090
        %1335 = vmatpush.msra.mxu0 %v1086
        %1336 = vmatmul.f32.gmra.mxu0 %v760
        %v1337 = vpop.f32.mrf.mxu0
        %v1338 = vadd.f32 %v1315, %v1337
        %1339 = vmatmul.f32.gmra.mxu0 %v763
        %v1340 = vpop.f32.mrf.mxu0
        %v1341 = vadd.f32 %v1318, %v1340
        %1342 = vdwg.mxu0
        %1343 = vmatpush.msra.mxu0 %v955
        %1344 = vmatpush.msra.mxu0 %v951
        %1345 = vmatpush.msra.mxu0 %v947
        %1346 = vmatpush.msra.mxu0 %v943
        %1347 = vmatpush.msra.mxu0 %v939
        %1348 = vmatpush.msra.mxu0 %v935
        %1349 = vmatpush.msra.mxu0 %v931
        %1350 = vmatpush.msra.mxu0 %v927
        %1351 = vmatpush.msra.mxu0 %v923
        %1352 = vmatpush.msra.mxu0 %v919
        %1353 = vmatpush.msra.mxu0 %v915
        %1354 = vmatpush.msra.mxu0 %v911
        %1355 = vmatpush.msra.mxu0 %v907
        %1356 = vmatpush.msra.mxu0 %v903
        %1357 = vmatpush.msra.mxu0 %v899
        %1358 = vmatpush.msra.mxu0 %v895
        %1359 = vmatmul.f32.gmra.mxu0 %v664
        %v1360 = vpop.f32.mrf.mxu0
        %v1361 = vadd.f32 %v1153, %v1360
        %1362 = vmatmul.f32.gmra.mxu0 %v667
        %v1363 = vpop.f32.mrf.mxu0
        %v1364 = vadd.f32 %v1153, %v1363
        %1365 = vdwg.mxu0
        %1366 = vmatpush.msra.mxu0 %v1019
        %1367 = vmatpush.msra.mxu0 %v1015
        %1368 = vmatpush.msra.mxu0 %v1011
        %1369 = vmatpush.msra.mxu0 %v1007
        %1370 = vmatpush.msra.mxu0 %v1003
        %1371 = vmatpush.msra.mxu0 %v999
        %1372 = vmatpush.msra.mxu0 %v995
        %1373 = vmatpush.msra.mxu0 %v991
        %1374 = vmatpush.msra.mxu0 %v987
        %1375 = vmatpush.msra.mxu0 %v983
        %1376 = vmatpush.msra.mxu0 %v979
        %1377 = vmatpush.msra.mxu0 %v975
        %1378 = vmatpush.msra.mxu0 %v971
        %1379 = vmatpush.msra.mxu0 %v967
        %1380 = vmatpush.msra.mxu0 %v963
        %1381 = vmatpush.msra.mxu0 %v959
        %1382 = vmatmul.f32.gmra.mxu0 %v696
        %v1383 = vpop.f32.mrf.mxu0
        %v1384 = vadd.f32 %v1361, %v1383
        %1385 = vmatmul.f32.gmra.mxu0 %v699
        %v1386 = vpop.f32.mrf.mxu0
        %v1387 = vadd.f32 %v1364, %v1386
        %1388 = vdwg.mxu0
        %1389 = vmatpush.msra.mxu0 %v1083
        %1390 = vmatpush.msra.mxu0 %v1079
        %1391 = vmatpush.msra.mxu0 %v1075
        %1392 = vmatpush.msra.mxu0 %v1071
        %1393 = vmatpush.msra.mxu0 %v1067
        %1394 = vmatpush.msra.mxu0 %v1063
        %1395 = vmatpush.msra.mxu0 %v1059
        %1396 = vmatpush.msra.mxu0 %v1055
        %1397 = vmatpush.msra.mxu0 %v1051
        %1398 = vmatpush.msra.mxu0 %v1047
        %1399 = vmatpush.msra.mxu0 %v1043
        %1400 = vmatpush.msra.mxu0 %v1039
        %1401 = vmatpush.msra.mxu0 %v1035
        %1402 = vmatpush.msra.mxu0 %v1031
        %1403 = vmatpush.msra.mxu0 %v1027
        %1404 = vmatpush.msra.mxu0 %v1023
        %1405 = vmatmul.f32.gmra.mxu0 %v728
        %v1406 = vpop.f32.mrf.mxu0
        %v1407 = vadd.f32 %v1384, %v1406
        %1408 = vmatmul.f32.gmra.mxu0 %v731
        %v1409 = vpop.f32.mrf.mxu0
        %v1410 = vadd.f32 %v1387, %v1409
        %1411 = vdwg.mxu0
        %1412 = vmatpush.msra.mxu0 %v1147
        %1413 = vmatpush.msra.mxu0 %v1143
        %1414 = vmatpush.msra.mxu0 %v1139
        %1415 = vmatpush.msra.mxu0 %v1135
        %1416 = vmatpush.msra.mxu0 %v1131
        %1417 = vmatpush.msra.mxu0 %v1127
        %1418 = vmatpush.msra.mxu0 %v1123
        %1419 = vmatpush.msra.mxu0 %v1119
        %1420 = vmatpush.msra.mxu0 %v1115
        %1421 = vmatpush.msra.mxu0 %v1111
        %1422 = vmatpush.msra.mxu0 %v1107
        %1423 = vmatpush.msra.mxu0 %v1103
        %1424 = vmatpush.msra.mxu0 %v1099
        %1425 = vmatpush.msra.mxu0 %v1095
        %1426 = vmatpush.msra.mxu0 %v1091
        %1427 = vmatpush.msra.mxu0 %v1087
        %1428 = vmatmul.f32.gmra.mxu0 %v760
        %v1429 = vpop.f32.mrf.mxu0
        %v1430 = vadd.f32 %v1407, %v1429
        %1431 = vmatmul.f32.gmra.mxu0 %v763
        %v1432 = vpop.f32.mrf.mxu0
        %v1433 = vadd.f32 %v1410, %v1432
        %1434 = vdwg.mxu0
        %1435 = vmatpush.msra.mxu0 %v956
        %1436 = vmatpush.msra.mxu0 %v952
        %1437 = vmatpush.msra.mxu0 %v948
        %1438 = vmatpush.msra.mxu0 %v944
        %1439 = vmatpush.msra.mxu0 %v940
        %1440 = vmatpush.msra.mxu0 %v936
        %1441 = vmatpush.msra.mxu0 %v932
        %1442 = vmatpush.msra.mxu0 %v928
        %1443 = vmatpush.msra.mxu0 %v924
        %1444 = vmatpush.msra.mxu0 %v920
        %1445 = vmatpush.msra.mxu0 %v916
        %1446 = vmatpush.msra.mxu0 %v912
        %1447 = vmatpush.msra.mxu0 %v908
        %1448 = vmatpush.msra.mxu0 %v904
        %1449 = vmatpush.msra.mxu0 %v900
        %1450 = vmatpush.msra.mxu0 %v896
        %1451 = vmatmul.f32.gmra.mxu0 %v664
        %v1452 = vpop.f32.mrf.mxu0
        %v1453 = vadd.f32 %v1154, %v1452
        %1454 = vmatmul.f32.gmra.mxu0 %v667
        %v1455 = vpop.f32.mrf.mxu0
        %v1456 = vadd.f32 %v1154, %v1455
        %1457 = vdwg.mxu0
        %1458 = vmatpush.msra.mxu0 %v1020
        %1459 = vmatpush.msra.mxu0 %v1016
        %1460 = vmatpush.msra.mxu0 %v1012
        %1461 = vmatpush.msra.mxu0 %v1008
        %1462 = vmatpush.msra.mxu0 %v1004
        %1463 = vmatpush.msra.mxu0 %v1000
        %1464 = vmatpush.msra.mxu0 %v996
        %1465 = vmatpush.msra.mxu0 %v992
        %1466 = vmatpush.msra.mxu0 %v988
        %1467 = vmatpush.msra.mxu0 %v984
        %1468 = vmatpush.msra.mxu0 %v980
        %1469 = vmatpush.msra.mxu0 %v976
        %1470 = vmatpush.msra.mxu0 %v972
        %1471 = vmatpush.msra.mxu0 %v968
        %1472 = vmatpush.msra.mxu0 %v964
        %1473 = vmatpush.msra.mxu0 %v960
        %1474 = vmatmul.f32.gmra.mxu0 %v696
        %v1475 = vpop.f32.mrf.mxu0
        %v1476 = vadd.f32 %v1453, %v1475
        %1477 = vmatmul.f32.gmra.mxu0 %v699
        %v1478 = vpop.f32.mrf.mxu0
        %v1479 = vadd.f32 %v1456, %v1478
        %1480 = vdwg.mxu0
        %1481 = vmatpush.msra.mxu0 %v1084
        %1482 = vmatpush.msra.mxu0 %v1080
        %1483 = vmatpush.msra.mxu0 %v1076
        %1484 = vmatpush.msra.mxu0 %v1072
        %1485 = vmatpush.msra.mxu0 %v1068
        %1486 = vmatpush.msra.mxu0 %v1064
        %1487 = vmatpush.msra.mxu0 %v1060
        %1488 = vmatpush.msra.mxu0 %v1056
        %1489 = vmatpush.msra.mxu0 %v1052
        %1490 = vmatpush.msra.mxu0 %v1048
        %1491 = vmatpush.msra.mxu0 %v1044
        %1492 = vmatpush.msra.mxu0 %v1040
        %1493 = vmatpush.msra.mxu0 %v1036
        %1494 = vmatpush.msra.mxu0 %v1032
        %1495 = vmatpush.msra.mxu0 %v1028
        %1496 = vmatpush.msra.mxu0 %v1024
        %1497 = vmatmul.f32.gmra.mxu0 %v728
        %v1498 = vpop.f32.mrf.mxu0
        %v1499 = vadd.f32 %v1476, %v1498
        %1500 = vmatmul.f32.gmra.mxu0 %v731
        %v1501 = vpop.f32.mrf.mxu0
        %v1502 = vadd.f32 %v1479, %v1501
        %1503 = vdwg.mxu0
        %1504 = vmatpush.msra.mxu0 %v1148
        %1505 = vmatpush.msra.mxu0 %v1144
        %1506 = vmatpush.msra.mxu0 %v1140
        %1507 = vmatpush.msra.mxu0 %v1136
        %1508 = vmatpush.msra.mxu0 %v1132
        %1509 = vmatpush.msra.mxu0 %v1128
        %1510 = vmatpush.msra.mxu0 %v1124
        %1511 = vmatpush.msra.mxu0 %v1120
        %1512 = vmatpush.msra.mxu0 %v1116
        %1513 = vmatpush.msra.mxu0 %v1112
        %1514 = vmatpush.msra.mxu0 %v1108
        %1515 = vmatpush.msra.mxu0 %v1104
        %1516 = vmatpush.msra.mxu0 %v1100
        %1517 = vmatpush.msra.mxu0 %v1096
        %1518 = vmatpush.msra.mxu0 %v1092
        %1519 = vmatpush.msra.mxu0 %v1088
        %1520 = vmatmul.f32.gmra.mxu0 %v760
        %v1521 = vpop.f32.mrf.mxu0
        %v1522 = vadd.f32 %v1499, %v1521
        %1523 = vmatmul.f32.gmra.mxu0 %v763
        %v1524 = vpop.f32.mrf.mxu0
        %v1525 = vadd.f32 %v1502, %v1524
        %1526 = vdwg.mxu0
        %v1527 = vmax.f32 %v1246, 0.0
        %v1528 = vmax.f32 %v1338, 0.0
        %v1529 = vmax.f32 %v1430, 0.0
        %v1530 = vmax.f32 %v1522, 0.0
        %v1531 = vmax.f32 %v1249, 0.0
        %v1532 = vmax.f32 %v1341, 0.0
        %v1533 = vmax.f32 %v1433, 0.0
        %v1534 = vmax.f32 %v1525, 0.0
        %v1535 = vld [vmem:[#allocation7] sm:$0xff]
        %vm1536 = vcmask 130048
        %v1538 = vsel %vm1536, %v1535, 0
        %1540 = vmatpush.msra.mxu0 0.0
        %1541 = vmatpush.msra.mxu0 0.0
        %1542 = vmatpush.msra.mxu0 0.0
        %1543 = vmatpush.msra.mxu0 0.0
        %1544 = vmatpush.msra.mxu0 0.0
        %1545 = vmatpush.msra.mxu0 0.0
        %1546 = vmatpush.msra.mxu0 0.0
        %1547 = vmatpush.msra.mxu0 0.0
        %1548 = vmatpush.msra.mxu0 0.0
        %1549 = vmatpush.msra.mxu0 0.0
        %1550 = vmatpush.msra.mxu0 0.0
        %1551 = vmatpush.msra.mxu0 0.0
        %1552 = vmatpush.msra.mxu0 0.0
        %1553 = vmatpush.msra.mxu0 0.0
        %1554 = vmatpush.msra.mxu0 %v1531
        %1555 = vmatpush.msra.mxu0 %v1527
        %1556 = vmatmul.f32.gmra.mxu0 %v1538
        %v1557 = vpop.f32.mrf.mxu0
        %v1558 = vadd.f32 0.0, %v1557
        %1559 = vdwg.mxu0
        %1560 = vmatpush.msra.mxu0 0.0
        %1561 = vmatpush.msra.mxu0 0.0
        %1562 = vmatpush.msra.mxu0 0.0
        %1563 = vmatpush.msra.mxu0 0.0
        %1564 = vmatpush.msra.mxu0 0.0
        %1565 = vmatpush.msra.mxu0 0.0
        %1566 = vmatpush.msra.mxu0 0.0
        %1567 = vmatpush.msra.mxu0 0.0
        %1568 = vmatpush.msra.mxu0 0.0
        %1569 = vmatpush.msra.mxu0 0.0
        %1570 = vmatpush.msra.mxu0 0.0
        %1571 = vmatpush.msra.mxu0 0.0
        %1572 = vmatpush.msra.mxu0 0.0
        %1573 = vmatpush.msra.mxu0 0.0
        %1574 = vmatpush.msra.mxu0 %v1532
        %1575 = vmatpush.msra.mxu0 %v1528
        %1576 = vmatmul.f32.gmra.mxu0 %v1538
        %v1577 = vpop.f32.mrf.mxu0
        %v1578 = vadd.f32 0.0, %v1577
        %1579 = vdwg.mxu0
        %1580 = vmatpush.msra.mxu0 0.0
        %1581 = vmatpush.msra.mxu0 0.0
        %1582 = vmatpush.msra.mxu0 0.0
        %1583 = vmatpush.msra.mxu0 0.0
        %1584 = vmatpush.msra.mxu0 0.0
        %1585 = vmatpush.msra.mxu0 0.0
        %1586 = vmatpush.msra.mxu0 0.0
        %1587 = vmatpush.msra.mxu0 0.0
        %1588 = vmatpush.msra.mxu0 0.0
        %1589 = vmatpush.msra.mxu0 0.0
        %1590 = vmatpush.msra.mxu0 0.0
        %1591 = vmatpush.msra.mxu0 0.0
        %1592 = vmatpush.msra.mxu0 0.0
        %1593 = vmatpush.msra.mxu0 0.0
        %1594 = vmatpush.msra.mxu0 %v1533
        %1595 = vmatpush.msra.mxu0 %v1529
        %1596 = vmatmul.f32.gmra.mxu0 %v1538
        %v1597 = vpop.f32.mrf.mxu0
        %v1598 = vadd.f32 0.0, %v1597
        %1599 = vdwg.mxu0
        %1600 = vmatpush.msra.mxu0 0.0
        %1601 = vmatpush.msra.mxu0 0.0
        %1602 = vmatpush.msra.mxu0 0.0
        %1603 = vmatpush.msra.mxu0 0.0
        %1604 = vmatpush.msra.mxu0 0.0
        %1605 = vmatpush.msra.mxu0 0.0
        %1606 = vmatpush.msra.mxu0 0.0
        %1607 = vmatpush.msra.mxu0 0.0
        %1608 = vmatpush.msra.mxu0 0.0
        %1609 = vmatpush.msra.mxu0 0.0
        %1610 = vmatpush.msra.mxu0 0.0
        %1611 = vmatpush.msra.mxu0 0.0
        %1612 = vmatpush.msra.mxu0 0.0
        %1613 = vmatpush.msra.mxu0 0.0
        %1614 = vmatpush.msra.mxu0 %v1534
        %1615 = vmatpush.msra.mxu0 %v1530
        %1616 = vmatmul.f32.gmra.mxu0 %v1538
        %v1617 = vpop.f32.mrf.mxu0
        %v1618 = vadd.f32 0.0, %v1617
        %1619 = vdwg.mxu0
        %s1620 = scalar_lea.vmem [#allocation7], 8
        %v1621 = vld [vmem:[%s1620] sm:$0xff]
        %v1623 = vsel %vm1536, %v1621, 0
        %1625 = vmatpush.msra.mxu0 0.0
        %1626 = vmatpush.msra.mxu0 0.0
        %1627 = vmatpush.msra.mxu0 0.0
        %1628 = vmatpush.msra.mxu0 0.0
        %1629 = vmatpush.msra.mxu0 0.0
        %1630 = vmatpush.msra.mxu0 0.0
        %1631 = vmatpush.msra.mxu0 0.0
        %1632 = vmatpush.msra.mxu0 0.0
        %1633 = vmatpush.msra.mxu0 0.0
        %1634 = vmatpush.msra.mxu0 0.0
        %1635 = vmatpush.msra.mxu0 0.0
        %1636 = vmatpush.msra.mxu0 0.0
        %1637 = vmatpush.msra.mxu0 0.0
        %1638 = vmatpush.msra.mxu0 0.0
        %1639 = vmatpush.msra.mxu0 %v1531
        %1640 = vmatpush.msra.mxu0 %v1527
        %1641 = vmatmul.f32.gmra.mxu0 %v1623
        %v1642 = vpop.f32.mrf.mxu0
        %v1643 = vadd.f32 0.0, %v1642
        %1644 = vdwg.mxu0
        %1645 = vmatpush.msra.mxu0 0.0
        %1646 = vmatpush.msra.mxu0 0.0
        %1647 = vmatpush.msra.mxu0 0.0
        %1648 = vmatpush.msra.mxu0 0.0
        %1649 = vmatpush.msra.mxu0 0.0
        %1650 = vmatpush.msra.mxu0 0.0
        %1651 = vmatpush.msra.mxu0 0.0
        %1652 = vmatpush.msra.mxu0 0.0
        %1653 = vmatpush.msra.mxu0 0.0
        %1654 = vmatpush.msra.mxu0 0.0
        %1655 = vmatpush.msra.mxu0 0.0
        %1656 = vmatpush.msra.mxu0 0.0
        %1657 = vmatpush.msra.mxu0 0.0
        %1658 = vmatpush.msra.mxu0 0.0
        %1659 = vmatpush.msra.mxu0 %v1532
        %1660 = vmatpush.msra.mxu0 %v1528
        %1661 = vmatmul.f32.gmra.mxu0 %v1623
        %v1662 = vpop.f32.mrf.mxu0
        %v1663 = vadd.f32 0.0, %v1662
        %1664 = vdwg.mxu0
        %1665 = vmatpush.msra.mxu0 0.0
        %1666 = vmatpush.msra.mxu0 0.0
        %1667 = vmatpush.msra.mxu0 0.0
        %1668 = vmatpush.msra.mxu0 0.0
        %1669 = vmatpush.msra.mxu0 0.0
        %1670 = vmatpush.msra.mxu0 0.0
        %1671 = vmatpush.msra.mxu0 0.0
        %1672 = vmatpush.msra.mxu0 0.0
        %1673 = vmatpush.msra.mxu0 0.0
        %1674 = vmatpush.msra.mxu0 0.0
        %1675 = vmatpush.msra.mxu0 0.0
        %1676 = vmatpush.msra.mxu0 0.0
        %1677 = vmatpush.msra.mxu0 0.0
        %1678 = vmatpush.msra.mxu0 0.0
        %1679 = vmatpush.msra.mxu0 %v1533
        %1680 = vmatpush.msra.mxu0 %v1529
        %1681 = vmatmul.f32.gmra.mxu0 %v1623
        %v1682 = vpop.f32.mrf.mxu0
        %v1683 = vadd.f32 0.0, %v1682
        %1684 = vdwg.mxu0
        %1685 = vmatpush.msra.mxu0 0.0
        %1686 = vmatpush.msra.mxu0 0.0
        %1687 = vmatpush.msra.mxu0 0.0
        %1688 = vmatpush.msra.mxu0 0.0
        %1689 = vmatpush.msra.mxu0 0.0
        %1690 = vmatpush.msra.mxu0 0.0
        %1691 = vmatpush.msra.mxu0 0.0
        %1692 = vmatpush.msra.mxu0 0.0
        %1693 = vmatpush.msra.mxu0 0.0
        %1694 = vmatpush.msra.mxu0 0.0
        %1695 = vmatpush.msra.mxu0 0.0
        %1696 = vmatpush.msra.mxu0 0.0
        %1697 = vmatpush.msra.mxu0 0.0
        %1698 = vmatpush.msra.mxu0 0.0
        %1699 = vmatpush.msra.mxu0 %v1534
        %1700 = vmatpush.msra.mxu0 %v1530
        %1701 = vmatmul.f32.gmra.mxu0 %v1623
        %v1702 = vpop.f32.mrf.mxu0
        %v1703 = vadd.f32 0.0, %v1702
        %1704 = vdwg.mxu0
        %s1705 = scalar_lea.vmem [#allocation7], 16
        %v1706 = vld [vmem:[%s1705] sm:$0xff]
        %v1708 = vsel %vm1536, %v1706, 0
        %1710 = vmatpush.msra.mxu0 0.0
        %1711 = vmatpush.msra.mxu0 0.0
        %1712 = vmatpush.msra.mxu0 0.0
        %1713 = vmatpush.msra.mxu0 0.0
        %1714 = vmatpush.msra.mxu0 0.0
        %1715 = vmatpush.msra.mxu0 0.0
        %1716 = vmatpush.msra.mxu0 0.0
        %1717 = vmatpush.msra.mxu0 0.0
        %1718 = vmatpush.msra.mxu0 0.0
        %1719 = vmatpush.msra.mxu0 0.0
        %1720 = vmatpush.msra.mxu0 0.0
        %1721 = vmatpush.msra.mxu0 0.0
        %1722 = vmatpush.msra.mxu0 0.0
        %1723 = vmatpush.msra.mxu0 0.0
        %1724 = vmatpush.msra.mxu0 %v1531
        %1725 = vmatpush.msra.mxu0 %v1527
        %1726 = vmatmul.f32.gmra.mxu0 %v1708
        %v1727 = vpop.f32.mrf.mxu0
        %v1728 = vadd.f32 0.0, %v1727
        %1729 = vdwg.mxu0
        %1730 = vmatpush.msra.mxu0 0.0
        %1731 = vmatpush.msra.mxu0 0.0
        %1732 = vmatpush.msra.mxu0 0.0
        %1733 = vmatpush.msra.mxu0 0.0
        %1734 = vmatpush.msra.mxu0 0.0
        %1735 = vmatpush.msra.mxu0 0.0
        %1736 = vmatpush.msra.mxu0 0.0
        %1737 = vmatpush.msra.mxu0 0.0
        %1738 = vmatpush.msra.mxu0 0.0
        %1739 = vmatpush.msra.mxu0 0.0
        %1740 = vmatpush.msra.mxu0 0.0
        %1741 = vmatpush.msra.mxu0 0.0
        %1742 = vmatpush.msra.mxu0 0.0
        %1743 = vmatpush.msra.mxu0 0.0
        %1744 = vmatpush.msra.mxu0 %v1532
        %1745 = vmatpush.msra.mxu0 %v1528
        %1746 = vmatmul.f32.gmra.mxu0 %v1708
        %v1747 = vpop.f32.mrf.mxu0
        %v1748 = vadd.f32 0.0, %v1747
        %1749 = vdwg.mxu0
        %1750 = vmatpush.msra.mxu0 0.0
        %1751 = vmatpush.msra.mxu0 0.0
        %1752 = vmatpush.msra.mxu0 0.0
        %1753 = vmatpush.msra.mxu0 0.0
        %1754 = vmatpush.msra.mxu0 0.0
        %1755 = vmatpush.msra.mxu0 0.0
        %1756 = vmatpush.msra.mxu0 0.0
        %1757 = vmatpush.msra.mxu0 0.0
        %1758 = vmatpush.msra.mxu0 0.0
        %1759 = vmatpush.msra.mxu0 0.0
        %1760 = vmatpush.msra.mxu0 0.0
        %1761 = vmatpush.msra.mxu0 0.0
        %1762 = vmatpush.msra.mxu0 0.0
        %1763 = vmatpush.msra.mxu0 0.0
        %1764 = vmatpush.msra.mxu0 %v1533
        %1765 = vmatpush.msra.mxu0 %v1529
        %1766 = vmatmul.f32.gmra.mxu0 %v1708
        %v1767 = vpop.f32.mrf.mxu0
        %v1768 = vadd.f32 0.0, %v1767
        %1769 = vdwg.mxu0
        %1770 = vmatpush.msra.mxu0 0.0
        %1771 = vmatpush.msra.mxu0 0.0
        %1772 = vmatpush.msra.mxu0 0.0
        %1773 = vmatpush.msra.mxu0 0.0
        %1774 = vmatpush.msra.mxu0 0.0
        %1775 = vmatpush.msra.mxu0 0.0
        %1776 = vmatpush.msra.mxu0 0.0
        %1777 = vmatpush.msra.mxu0 0.0
        %1778 = vmatpush.msra.mxu0 0.0
        %1779 = vmatpush.msra.mxu0 0.0
        %1780 = vmatpush.msra.mxu0 0.0
        %1781 = vmatpush.msra.mxu0 0.0
        %1782 = vmatpush.msra.mxu0 0.0
        %1783 = vmatpush.msra.mxu0 0.0
        %1784 = vmatpush.msra.mxu0 %v1534
        %1785 = vmatpush.msra.mxu0 %v1530
        %1786 = vmatmul.f32.gmra.mxu0 %v1708
        %v1787 = vpop.f32.mrf.mxu0
        %v1788 = vadd.f32 0.0, %v1787
        %1789 = vdwg.mxu0
        %s1790 = scalar_lea.vmem [#allocation7], 24
        %v1791 = vld [vmem:[%s1790] sm:$0xff]
        %v1793 = vsel %vm1536, %v1791, 0
        %1795 = vmatpush.msra.mxu0 0.0
        %1796 = vmatpush.msra.mxu0 0.0
        %1797 = vmatpush.msra.mxu0 0.0
        %1798 = vmatpush.msra.mxu0 0.0
        %1799 = vmatpush.msra.mxu0 0.0
        %1800 = vmatpush.msra.mxu0 0.0
        %1801 = vmatpush.msra.mxu0 0.0
        %1802 = vmatpush.msra.mxu0 0.0
        %1803 = vmatpush.msra.mxu0 0.0
        %1804 = vmatpush.msra.mxu0 0.0
        %1805 = vmatpush.msra.mxu0 0.0
        %1806 = vmatpush.msra.mxu0 0.0
        %1807 = vmatpush.msra.mxu0 0.0
        %1808 = vmatpush.msra.mxu0 0.0
        %1809 = vmatpush.msra.mxu0 %v1531
        %1810 = vmatpush.msra.mxu0 %v1527
        %1811 = vmatmul.f32.gmra.mxu0 %v1793
        %v1812 = vpop.f32.mrf.mxu0
        %v1813 = vadd.f32 0.0, %v1812
        %1814 = vdwg.mxu0
        %1815 = vmatpush.msra.mxu0 0.0
        %1816 = vmatpush.msra.mxu0 0.0
        %1817 = vmatpush.msra.mxu0 0.0
        %1818 = vmatpush.msra.mxu0 0.0
        %1819 = vmatpush.msra.mxu0 0.0
        %1820 = vmatpush.msra.mxu0 0.0
        %1821 = vmatpush.msra.mxu0 0.0
        %1822 = vmatpush.msra.mxu0 0.0
        %1823 = vmatpush.msra.mxu0 0.0
        %1824 = vmatpush.msra.mxu0 0.0
        %1825 = vmatpush.msra.mxu0 0.0
        %1826 = vmatpush.msra.mxu0 0.0
        %1827 = vmatpush.msra.mxu0 0.0
        %1828 = vmatpush.msra.mxu0 0.0
        %1829 = vmatpush.msra.mxu0 %v1532
        %1830 = vmatpush.msra.mxu0 %v1528
        %1831 = vmatmul.f32.gmra.mxu0 %v1793
        %v1832 = vpop.f32.mrf.mxu0
        %v1833 = vadd.f32 0.0, %v1832
        %1834 = vdwg.mxu0
        %1835 = vmatpush.msra.mxu0 0.0
        %1836 = vmatpush.msra.mxu0 0.0
        %1837 = vmatpush.msra.mxu0 0.0
        %1838 = vmatpush.msra.mxu0 0.0
        %1839 = vmatpush.msra.mxu0 0.0
        %1840 = vmatpush.msra.mxu0 0.0
        %1841 = vmatpush.msra.mxu0 0.0
        %1842 = vmatpush.msra.mxu0 0.0
        %1843 = vmatpush.msra.mxu0 0.0
        %1844 = vmatpush.msra.mxu0 0.0
        %1845 = vmatpush.msra.mxu0 0.0
        %1846 = vmatpush.msra.mxu0 0.0
        %1847 = vmatpush.msra.mxu0 0.0
        %1848 = vmatpush.msra.mxu0 0.0
        %1849 = vmatpush.msra.mxu0 %v1533
        %1850 = vmatpush.msra.mxu0 %v1529
        %1851 = vmatmul.f32.gmra.mxu0 %v1793
        %v1852 = vpop.f32.mrf.mxu0
        %v1853 = vadd.f32 0.0, %v1852
        %1854 = vdwg.mxu0
        %1855 = vmatpush.msra.mxu0 0.0
        %1856 = vmatpush.msra.mxu0 0.0
        %1857 = vmatpush.msra.mxu0 0.0
        %1858 = vmatpush.msra.mxu0 0.0
        %1859 = vmatpush.msra.mxu0 0.0
        %1860 = vmatpush.msra.mxu0 0.0
        %1861 = vmatpush.msra.mxu0 0.0
        %1862 = vmatpush.msra.mxu0 0.0
        %1863 = vmatpush.msra.mxu0 0.0
        %1864 = vmatpush.msra.mxu0 0.0
        %1865 = vmatpush.msra.mxu0 0.0
        %1866 = vmatpush.msra.mxu0 0.0
        %1867 = vmatpush.msra.mxu0 0.0
        %1868 = vmatpush.msra.mxu0 0.0
        %1869 = vmatpush.msra.mxu0 %v1534
        %1870 = vmatpush.msra.mxu0 %v1530
        %1871 = vmatmul.f32.gmra.mxu0 %v1793
        %v1872 = vpop.f32.mrf.mxu0
        %v1873 = vadd.f32 0.0, %v1872
        %1874 = vdwg.mxu0
        %v1875 = vld [vmem:[#allocation9] sm:$0xff]
        %v1876 = vld [vmem:[#allocation9 + $0x8] sm:$0xff]
        %v1877 = vld [vmem:[#allocation9 + $0x10] sm:$0xff]
        %v1878 = vld [vmem:[#allocation9 + $0x18] sm:$0xff]
        %v1879 = vld [vmem:[#allocation9 + $0x20] sm:$0xff]
        %v1880 = vld [vmem:[#allocation9 + $0x28] sm:$0xff]
        %v1881 = vld [vmem:[#allocation9 + $0x30] sm:$0xff]
        %v1882 = vld [vmem:[#allocation9 + $0x38] sm:$0xff]
        %v1883 = vld [vmem:[#allocation9 + $0x40] sm:$0xff]
        %v1884 = vld [vmem:[#allocation9 + $0x48] sm:$0xff]
        %v1885 = vld [vmem:[#allocation9 + $0x50] sm:$0xff]
        %v1886 = vld [vmem:[#allocation9 + $0x58] sm:$0xff]
        %v1887 = vld [vmem:[#allocation9 + $0x60] sm:$0xff]
        %v1888 = vld [vmem:[#allocation9 + $0x68] sm:$0xff]
        %v1889 = vld [vmem:[#allocation9 + $0x70] sm:$0xff]
        %v1890 = vld [vmem:[#allocation9 + $0x78] sm:$0xff]
        %v1891 = vld [vmem:[#allocation9 + $0x80] sm:$0xff]
        %v1892 = vld [vmem:[#allocation9 + $0x88] sm:$0xff]
        %v1893 = vld [vmem:[#allocation9 + $0x90] sm:$0xff]
        %v1894 = vld [vmem:[#allocation9 + $0x98] sm:$0xff]
        %v1895 = vld [vmem:[#allocation9 + $0xa0] sm:$0xff]
        %v1896 = vld [vmem:[#allocation9 + $0xa8] sm:$0xff]
        %v1897 = vld [vmem:[#allocation9 + $0xb0] sm:$0xff]
        %v1898 = vld [vmem:[#allocation9 + $0xb8] sm:$0xff]
        %v1899 = vld [vmem:[#allocation9 + $0xc0] sm:$0xff]
        %v1900 = vld [vmem:[#allocation9 + $0xc8] sm:$0xff]
        %v1901 = vld [vmem:[#allocation9 + $0xd0] sm:$0xff]
        %v1902 = vld [vmem:[#allocation9 + $0xd8] sm:$0xff]
        %v1903 = vld [vmem:[#allocation9 + $0xe0] sm:$0xff]
        %v1904 = vld [vmem:[#allocation9 + $0xe8] sm:$0xff]
        %v1905 = vld [vmem:[#allocation9 + $0xf0] sm:$0xff]
        %v1906 = vld [vmem:[#allocation9 + $0xf8] sm:$0xff]
        %v1907 = vld [vmem:[#allocation9 + $0x100] sm:$0xff]
        %v1908 = vld [vmem:[#allocation9 + $0x108] sm:$0xff]
        %v1909 = vld [vmem:[#allocation9 + $0x110] sm:$0xff]
        %v1910 = vld [vmem:[#allocation9 + $0x118] sm:$0xff]
        %v1911 = vld [vmem:[#allocation9 + $0x120] sm:$0xff]
        %v1912 = vld [vmem:[#allocation9 + $0x128] sm:$0xff]
        %v1913 = vld [vmem:[#allocation9 + $0x130] sm:$0xff]
        %v1914 = vld [vmem:[#allocation9 + $0x138] sm:$0xff]
        %v1915 = vld [vmem:[#allocation9 + $0x140] sm:$0xff]
        %v1916 = vld [vmem:[#allocation9 + $0x148] sm:$0xff]
        %v1917 = vld [vmem:[#allocation9 + $0x150] sm:$0xff]
        %v1918 = vld [vmem:[#allocation9 + $0x158] sm:$0xff]
        %v1919 = vld [vmem:[#allocation9 + $0x160] sm:$0xff]
        %v1920 = vld [vmem:[#allocation9 + $0x168] sm:$0xff]
        %v1921 = vld [vmem:[#allocation9 + $0x170] sm:$0xff]
        %v1922 = vld [vmem:[#allocation9 + $0x178] sm:$0xff]
        %v1923 = vld [vmem:[#allocation9 + $0x180] sm:$0xff]
        %v1924 = vld [vmem:[#allocation9 + $0x188] sm:$0xff]
        %v1925 = vld [vmem:[#allocation9 + $0x190] sm:$0xff]
        %v1926 = vld [vmem:[#allocation9 + $0x198] sm:$0xff]
        %v1927 = vld [vmem:[#allocation9 + $0x1a0] sm:$0xff]
        %v1928 = vld [vmem:[#allocation9 + $0x1a8] sm:$0xff]
        %v1929 = vld [vmem:[#allocation9 + $0x1b0] sm:$0xff]
        %v1930 = vld [vmem:[#allocation9 + $0x1b8] sm:$0xff]
        %v1931 = vld [vmem:[#allocation9 + $0x1c0] sm:$0xff]
        %v1932 = vld [vmem:[#allocation9 + $0x1c8] sm:$0xff]
        %v1933 = vld [vmem:[#allocation9 + $0x1d0] sm:$0xff]
        %v1934 = vld [vmem:[#allocation9 + $0x1d8] sm:$0xff]
        %v1935 = vld [vmem:[#allocation9 + $0x1e0] sm:$0xff]
        %v1936 = vld [vmem:[#allocation9 + $0x1e8] sm:$0xff]
        %v1937 = vld [vmem:[#allocation9 + $0x1f0] sm:$0xff]
        %v1938 = vld [vmem:[#allocation9 + $0x1f8] sm:$0xff]
        %v1939 = vld [vmem:[#allocation9 + $0x200] sm:$0xff]
        %v1940 = vld [vmem:[#allocation9 + $0x208] sm:$0xff]
        %v1941 = vld [vmem:[#allocation9 + $0x210] sm:$0xff]
        %v1942 = vld [vmem:[#allocation9 + $0x218] sm:$0xff]
        %v1943 = vld [vmem:[#allocation9 + $0x220] sm:$0xff]
        %v1944 = vld [vmem:[#allocation9 + $0x228] sm:$0xff]
        %v1945 = vld [vmem:[#allocation9 + $0x230] sm:$0xff]
        %v1946 = vld [vmem:[#allocation9 + $0x238] sm:$0xff]
        %v1947 = vld [vmem:[#allocation9 + $0x240] sm:$0xff]
        %v1948 = vld [vmem:[#allocation9 + $0x248] sm:$0xff]
        %v1949 = vld [vmem:[#allocation9 + $0x250] sm:$0xff]
        %v1950 = vld [vmem:[#allocation9 + $0x258] sm:$0xff]
        %v1951 = vld [vmem:[#allocation9 + $0x260] sm:$0xff]
        %v1952 = vld [vmem:[#allocation9 + $0x268] sm:$0xff]
        %v1953 = vld [vmem:[#allocation9 + $0x270] sm:$0xff]
        %v1954 = vld [vmem:[#allocation9 + $0x278] sm:$0xff]
        %v1955 = vld [vmem:[#allocation9 + $0x280] sm:$0xff]
        %v1956 = vld [vmem:[#allocation9 + $0x288] sm:$0xff]
        %v1957 = vld [vmem:[#allocation9 + $0x290] sm:$0xff]
        %v1958 = vld [vmem:[#allocation9 + $0x298] sm:$0xff]
        %v1959 = vld [vmem:[#allocation9 + $0x2a0] sm:$0xff]
        %v1960 = vld [vmem:[#allocation9 + $0x2a8] sm:$0xff]
        %v1961 = vld [vmem:[#allocation9 + $0x2b0] sm:$0xff]
        %v1962 = vld [vmem:[#allocation9 + $0x2b8] sm:$0xff]
        %v1963 = vld [vmem:[#allocation9 + $0x2c0] sm:$0xff]
        %v1964 = vld [vmem:[#allocation9 + $0x2c8] sm:$0xff]
        %v1965 = vld [vmem:[#allocation9 + $0x2d0] sm:$0xff]
        %v1966 = vld [vmem:[#allocation9 + $0x2d8] sm:$0xff]
        %v1967 = vld [vmem:[#allocation9 + $0x2e0] sm:$0xff]
        %v1968 = vld [vmem:[#allocation9 + $0x2e8] sm:$0xff]
        %v1969 = vld [vmem:[#allocation9 + $0x2f0] sm:$0xff]
        %v1970 = vld [vmem:[#allocation9 + $0x2f8] sm:$0xff]
        %v1971 = vld [vmem:[#allocation9 + $0x300] sm:$0xff]
        %v1972 = vld [vmem:[#allocation9 + $0x308] sm:$0xff]
        %v1973 = vld [vmem:[#allocation9 + $0x310] sm:$0xff]
        %v1974 = vld [vmem:[#allocation9 + $0x318] sm:$0xff]
        %v1975 = vld [vmem:[#allocation9 + $0x320] sm:$0xff]
        %v1976 = vld [vmem:[#allocation9 + $0x328] sm:$0xff]
        %v1977 = vld [vmem:[#allocation9 + $0x330] sm:$0xff]
        %v1978 = vld [vmem:[#allocation9 + $0x338] sm:$0xff]
        %v1979 = vld [vmem:[#allocation9 + $0x340] sm:$0xff]
        %v1980 = vld [vmem:[#allocation9 + $0x348] sm:$0xff]
        %v1981 = vld [vmem:[#allocation9 + $0x350] sm:$0xff]
        %v1982 = vld [vmem:[#allocation9 + $0x358] sm:$0xff]
        %v1983 = vld [vmem:[#allocation9 + $0x360] sm:$0xff]
        %v1984 = vld [vmem:[#allocation9 + $0x368] sm:$0xff]
        %v1985 = vld [vmem:[#allocation9 + $0x370] sm:$0xff]
        %v1986 = vld [vmem:[#allocation9 + $0x378] sm:$0xff]
        %v1987 = vld [vmem:[#allocation9 + $0x380] sm:$0xff]
        %v1988 = vld [vmem:[#allocation9 + $0x388] sm:$0xff]
        %v1989 = vld [vmem:[#allocation9 + $0x390] sm:$0xff]
        %v1990 = vld [vmem:[#allocation9 + $0x398] sm:$0xff]
        %v1991 = vld [vmem:[#allocation9 + $0x3a0] sm:$0xff]
        %v1992 = vld [vmem:[#allocation9 + $0x3a8] sm:$0xff]
        %v1993 = vld [vmem:[#allocation9 + $0x3b0] sm:$0xff]
        %v1994 = vld [vmem:[#allocation9 + $0x3b8] sm:$0xff]
        %v1995 = vld [vmem:[#allocation9 + $0x3c0] sm:$0xff]
        %v1996 = vld [vmem:[#allocation9 + $0x3c8] sm:$0xff]
        %v1997 = vld [vmem:[#allocation9 + $0x3d0] sm:$0xff]
        %v1998 = vld [vmem:[#allocation9 + $0x3d8] sm:$0xff]
        %v1999 = vld [vmem:[#allocation9 + $0x3e0] sm:$0xff]
        %v2000 = vld [vmem:[#allocation9 + $0x3e8] sm:$0xff]
        %v2001 = vld [vmem:[#allocation9 + $0x3f0] sm:$0xff]
        %v2002 = vld [vmem:[#allocation9 + $0x3f8] sm:$0xff]
        %v2003 = vld [vmem:[#allocation9 + $0x400] sm:$0xff]
        %v2004 = vld [vmem:[#allocation9 + $0x408] sm:$0xff]
        %v2005 = vld [vmem:[#allocation9 + $0x410] sm:$0xff]
        %v2006 = vld [vmem:[#allocation9 + $0x418] sm:$0xff]
        %v2007 = vld [vmem:[#allocation9 + $0x420] sm:$0xff]
        %v2008 = vld [vmem:[#allocation9 + $0x428] sm:$0xff]
        %v2009 = vld [vmem:[#allocation9 + $0x430] sm:$0xff]
        %v2010 = vld [vmem:[#allocation9 + $0x438] sm:$0xff]
        %v2011 = vld [vmem:[#allocation9 + $0x440] sm:$0xff]
        %v2012 = vld [vmem:[#allocation9 + $0x448] sm:$0xff]
        %v2013 = vld [vmem:[#allocation9 + $0x450] sm:$0xff]
        %v2014 = vld [vmem:[#allocation9 + $0x458] sm:$0xff]
        %v2015 = vld [vmem:[#allocation9 + $0x460] sm:$0xff]
        %v2016 = vld [vmem:[#allocation9 + $0x468] sm:$0xff]
        %v2017 = vld [vmem:[#allocation9 + $0x470] sm:$0xff]
        %v2018 = vld [vmem:[#allocation9 + $0x478] sm:$0xff]
        %v2019 = vld [vmem:[#allocation9 + $0x480] sm:$0xff]
        %v2020 = vld [vmem:[#allocation9 + $0x488] sm:$0xff]
        %v2021 = vld [vmem:[#allocation9 + $0x490] sm:$0xff]
        %v2022 = vld [vmem:[#allocation9 + $0x498] sm:$0xff]
        %v2023 = vld [vmem:[#allocation9 + $0x4a0] sm:$0xff]
        %v2024 = vld [vmem:[#allocation9 + $0x4a8] sm:$0xff]
        %v2025 = vld [vmem:[#allocation9 + $0x4b0] sm:$0xff]
        %v2026 = vld [vmem:[#allocation9 + $0x4b8] sm:$0xff]
        %v2027 = vld [vmem:[#allocation9 + $0x4c0] sm:$0xff]
        %v2028 = vld [vmem:[#allocation9 + $0x4c8] sm:$0xff]
        %v2029 = vld [vmem:[#allocation9 + $0x4d0] sm:$0xff]
        %v2030 = vld [vmem:[#allocation9 + $0x4d8] sm:$0xff]
        %v2031 = vld [vmem:[#allocation9 + $0x4e0] sm:$0xff]
        %v2032 = vld [vmem:[#allocation9 + $0x4e8] sm:$0xff]
        %v2033 = vld [vmem:[#allocation9 + $0x4f0] sm:$0xff]
        %v2034 = vld [vmem:[#allocation9 + $0x4f8] sm:$0xff]
        %v2035 = vld [vmem:[#allocation9 + $0x500] sm:$0xff]
        %v2036 = vld [vmem:[#allocation9 + $0x508] sm:$0xff]
        %v2037 = vld [vmem:[#allocation9 + $0x510] sm:$0xff]
        %v2038 = vld [vmem:[#allocation9 + $0x518] sm:$0xff]
        %v2039 = vld [vmem:[#allocation9 + $0x520] sm:$0xff]
        %v2040 = vld [vmem:[#allocation9 + $0x528] sm:$0xff]
        %v2041 = vld [vmem:[#allocation9 + $0x530] sm:$0xff]
        %v2042 = vld [vmem:[#allocation9 + $0x538] sm:$0xff]
        %v2043 = vld [vmem:[#allocation9 + $0x540] sm:$0xff]
        %v2044 = vld [vmem:[#allocation9 + $0x548] sm:$0xff]
        %v2045 = vld [vmem:[#allocation9 + $0x550] sm:$0xff]
        %v2046 = vld [vmem:[#allocation9 + $0x558] sm:$0xff]
        %v2047 = vld [vmem:[#allocation9 + $0x560] sm:$0xff]
        %v2048 = vld [vmem:[#allocation9 + $0x568] sm:$0xff]
        %v2049 = vld [vmem:[#allocation9 + $0x570] sm:$0xff]
        %v2050 = vld [vmem:[#allocation9 + $0x578] sm:$0xff]
        %v2051 = vld [vmem:[#allocation9 + $0x580] sm:$0xff]
        %v2052 = vld [vmem:[#allocation9 + $0x588] sm:$0xff]
        %v2053 = vld [vmem:[#allocation9 + $0x590] sm:$0xff]
        %v2054 = vld [vmem:[#allocation9 + $0x598] sm:$0xff]
        %v2055 = vld [vmem:[#allocation9 + $0x5a0] sm:$0xff]
        %v2056 = vld [vmem:[#allocation9 + $0x5a8] sm:$0xff]
        %v2057 = vld [vmem:[#allocation9 + $0x5b0] sm:$0xff]
        %v2058 = vld [vmem:[#allocation9 + $0x5b8] sm:$0xff]
        %v2059 = vld [vmem:[#allocation9 + $0x5c0] sm:$0xff]
        %v2060 = vld [vmem:[#allocation9 + $0x5c8] sm:$0xff]
        %v2061 = vld [vmem:[#allocation9 + $0x5d0] sm:$0xff]
        %v2062 = vld [vmem:[#allocation9 + $0x5d8] sm:$0xff]
        %v2063 = vld [vmem:[#allocation9 + $0x5e0] sm:$0xff]
        %v2064 = vld [vmem:[#allocation9 + $0x5e8] sm:$0xff]
        %v2065 = vld [vmem:[#allocation9 + $0x5f0] sm:$0xff]
        %v2066 = vld [vmem:[#allocation9 + $0x5f8] sm:$0xff]
        %v2067 = vld [vmem:[#allocation9 + $0x600] sm:$0xff]
        %v2068 = vld [vmem:[#allocation9 + $0x608] sm:$0xff]
        %v2069 = vld [vmem:[#allocation9 + $0x610] sm:$0xff]
        %v2070 = vld [vmem:[#allocation9 + $0x618] sm:$0xff]
        %v2071 = vld [vmem:[#allocation9 + $0x620] sm:$0xff]
        %v2072 = vld [vmem:[#allocation9 + $0x628] sm:$0xff]
        %v2073 = vld [vmem:[#allocation9 + $0x630] sm:$0xff]
        %v2074 = vld [vmem:[#allocation9 + $0x638] sm:$0xff]
        %v2075 = vld [vmem:[#allocation9 + $0x640] sm:$0xff]
        %v2076 = vld [vmem:[#allocation9 + $0x648] sm:$0xff]
        %v2077 = vld [vmem:[#allocation9 + $0x650] sm:$0xff]
        %v2078 = vld [vmem:[#allocation9 + $0x658] sm:$0xff]
        %v2079 = vld [vmem:[#allocation9 + $0x660] sm:$0xff]
        %v2080 = vld [vmem:[#allocation9 + $0x668] sm:$0xff]
        %v2081 = vld [vmem:[#allocation9 + $0x670] sm:$0xff]
        %v2082 = vld [vmem:[#allocation9 + $0x678] sm:$0xff]
        %v2083 = vld [vmem:[#allocation9 + $0x680] sm:$0xff]
        %v2084 = vld [vmem:[#allocation9 + $0x688] sm:$0xff]
        %v2085 = vld [vmem:[#allocation9 + $0x690] sm:$0xff]
        %v2086 = vld [vmem:[#allocation9 + $0x698] sm:$0xff]
        %v2087 = vld [vmem:[#allocation9 + $0x6a0] sm:$0xff]
        %v2088 = vld [vmem:[#allocation9 + $0x6a8] sm:$0xff]
        %v2089 = vld [vmem:[#allocation9 + $0x6b0] sm:$0xff]
        %v2090 = vld [vmem:[#allocation9 + $0x6b8] sm:$0xff]
        %v2091 = vld [vmem:[#allocation9 + $0x6c0] sm:$0xff]
        %v2092 = vld [vmem:[#allocation9 + $0x6c8] sm:$0xff]
        %v2093 = vld [vmem:[#allocation9 + $0x6d0] sm:$0xff]
        %v2094 = vld [vmem:[#allocation9 + $0x6d8] sm:$0xff]
        %v2095 = vld [vmem:[#allocation9 + $0x6e0] sm:$0xff]
        %v2096 = vld [vmem:[#allocation9 + $0x6e8] sm:$0xff]
        %v2097 = vld [vmem:[#allocation9 + $0x6f0] sm:$0xff]
        %v2098 = vld [vmem:[#allocation9 + $0x6f8] sm:$0xff]
        %v2099 = vld [vmem:[#allocation9 + $0x700] sm:$0xff]
        %v2100 = vld [vmem:[#allocation9 + $0x708] sm:$0xff]
        %v2101 = vld [vmem:[#allocation9 + $0x710] sm:$0xff]
        %v2102 = vld [vmem:[#allocation9 + $0x718] sm:$0xff]
        %v2103 = vld [vmem:[#allocation9 + $0x720] sm:$0xff]
        %v2104 = vld [vmem:[#allocation9 + $0x728] sm:$0xff]
        %v2105 = vld [vmem:[#allocation9 + $0x730] sm:$0xff]
        %v2106 = vld [vmem:[#allocation9 + $0x738] sm:$0xff]
        %v2107 = vld [vmem:[#allocation9 + $0x740] sm:$0xff]
        %v2108 = vld [vmem:[#allocation9 + $0x748] sm:$0xff]
        %v2109 = vld [vmem:[#allocation9 + $0x750] sm:$0xff]
        %v2110 = vld [vmem:[#allocation9 + $0x758] sm:$0xff]
        %v2111 = vld [vmem:[#allocation9 + $0x760] sm:$0xff]
        %v2112 = vld [vmem:[#allocation9 + $0x768] sm:$0xff]
        %v2113 = vld [vmem:[#allocation9 + $0x770] sm:$0xff]
        %v2114 = vld [vmem:[#allocation9 + $0x778] sm:$0xff]
        %v2115 = vld [vmem:[#allocation9 + $0x780] sm:$0xff]
        %v2116 = vld [vmem:[#allocation9 + $0x788] sm:$0xff]
        %v2117 = vld [vmem:[#allocation9 + $0x790] sm:$0xff]
        %v2118 = vld [vmem:[#allocation9 + $0x798] sm:$0xff]
        %v2119 = vld [vmem:[#allocation9 + $0x7a0] sm:$0xff]
        %v2120 = vld [vmem:[#allocation9 + $0x7a8] sm:$0xff]
        %v2121 = vld [vmem:[#allocation9 + $0x7b0] sm:$0xff]
        %v2122 = vld [vmem:[#allocation9 + $0x7b8] sm:$0xff]
        %v2123 = vld [vmem:[#allocation9 + $0x7c0] sm:$0xff]
        %v2124 = vld [vmem:[#allocation9 + $0x7c8] sm:$0xff]
        %v2125 = vld [vmem:[#allocation9 + $0x7d0] sm:$0xff]
        %v2126 = vld [vmem:[#allocation9 + $0x7d8] sm:$0xff]
        %v2127 = vld [vmem:[#allocation9 + $0x7e0] sm:$0xff]
        %v2128 = vld [vmem:[#allocation9 + $0x7e8] sm:$0xff]
        %v2129 = vld [vmem:[#allocation9 + $0x7f0] sm:$0xff]
        %v2130 = vld [vmem:[#allocation9 + $0x7f8] sm:$0xff]
        %v2131 = vunpack.c.l.bf16 %v1875
        %v2132 = vunpack.c.h.bf16 %v1875
        %v2133 = vunpack.c.l.bf16 %v1876
        %v2134 = vunpack.c.h.bf16 %v1876
        %v2135 = vunpack.c.l.bf16 %v1877
        %v2136 = vunpack.c.h.bf16 %v1877
        %v2137 = vunpack.c.l.bf16 %v1878
        %v2138 = vunpack.c.h.bf16 %v1878
        %v2139 = vunpack.c.l.bf16 %v1879
        %v2140 = vunpack.c.h.bf16 %v1879
        %v2141 = vunpack.c.l.bf16 %v1880
        %v2142 = vunpack.c.h.bf16 %v1880
        %v2143 = vunpack.c.l.bf16 %v1881
        %v2144 = vunpack.c.h.bf16 %v1881
        %v2145 = vunpack.c.l.bf16 %v1882
        %v2146 = vunpack.c.h.bf16 %v1882
        %v2147 = vunpack.c.l.bf16 %v1883
        %v2148 = vunpack.c.h.bf16 %v1883
        %v2149 = vunpack.c.l.bf16 %v1884
        %v2150 = vunpack.c.h.bf16 %v1884
        %v2151 = vunpack.c.l.bf16 %v1885
        %v2152 = vunpack.c.h.bf16 %v1885
        %v2153 = vunpack.c.l.bf16 %v1886
        %v2154 = vunpack.c.h.bf16 %v1886
        %v2155 = vunpack.c.l.bf16 %v1887
        %v2156 = vunpack.c.h.bf16 %v1887
        %v2157 = vunpack.c.l.bf16 %v1888
        %v2158 = vunpack.c.h.bf16 %v1888
        %v2159 = vunpack.c.l.bf16 %v1889
        %v2160 = vunpack.c.h.bf16 %v1889
        %v2161 = vunpack.c.l.bf16 %v1890
        %v2162 = vunpack.c.h.bf16 %v1890
        %v2163 = vunpack.c.l.bf16 %v1891
        %v2164 = vunpack.c.h.bf16 %v1891
        %v2165 = vunpack.c.l.bf16 %v1892
        %v2166 = vunpack.c.h.bf16 %v1892
        %v2167 = vunpack.c.l.bf16 %v1893
        %v2168 = vunpack.c.h.bf16 %v1893
        %v2169 = vunpack.c.l.bf16 %v1894
        %v2170 = vunpack.c.h.bf16 %v1894
        %v2171 = vunpack.c.l.bf16 %v1895
        %v2172 = vunpack.c.h.bf16 %v1895
        %v2173 = vunpack.c.l.bf16 %v1896
        %v2174 = vunpack.c.h.bf16 %v1896
        %v2175 = vunpack.c.l.bf16 %v1897
        %v2176 = vunpack.c.h.bf16 %v1897
        %v2177 = vunpack.c.l.bf16 %v1898
        %v2178 = vunpack.c.h.bf16 %v1898
        %v2179 = vunpack.c.l.bf16 %v1899
        %v2180 = vunpack.c.h.bf16 %v1899
        %v2181 = vunpack.c.l.bf16 %v1900
        %v2182 = vunpack.c.h.bf16 %v1900
        %v2183 = vunpack.c.l.bf16 %v1901
        %v2184 = vunpack.c.h.bf16 %v1901
        %v2185 = vunpack.c.l.bf16 %v1902
        %v2186 = vunpack.c.h.bf16 %v1902
        %v2187 = vunpack.c.l.bf16 %v1903
        %v2188 = vunpack.c.h.bf16 %v1903
        %v2189 = vunpack.c.l.bf16 %v1904
        %v2190 = vunpack.c.h.bf16 %v1904
        %v2191 = vunpack.c.l.bf16 %v1905
        %v2192 = vunpack.c.h.bf16 %v1905
        %v2193 = vunpack.c.l.bf16 %v1906
        %v2194 = vunpack.c.h.bf16 %v1906
        %v2195 = vunpack.c.l.bf16 %v1907
        %v2196 = vunpack.c.h.bf16 %v1907
        %v2197 = vunpack.c.l.bf16 %v1908
        %v2198 = vunpack.c.h.bf16 %v1908
        %v2199 = vunpack.c.l.bf16 %v1909
        %v2200 = vunpack.c.h.bf16 %v1909
        %v2201 = vunpack.c.l.bf16 %v1910
        %v2202 = vunpack.c.h.bf16 %v1910
        %v2203 = vunpack.c.l.bf16 %v1911
        %v2204 = vunpack.c.h.bf16 %v1911
        %v2205 = vunpack.c.l.bf16 %v1912
        %v2206 = vunpack.c.h.bf16 %v1912
        %v2207 = vunpack.c.l.bf16 %v1913
        %v2208 = vunpack.c.h.bf16 %v1913
        %v2209 = vunpack.c.l.bf16 %v1914
        %v2210 = vunpack.c.h.bf16 %v1914
        %v2211 = vunpack.c.l.bf16 %v1915
        %v2212 = vunpack.c.h.bf16 %v1915
        %v2213 = vunpack.c.l.bf16 %v1916
        %v2214 = vunpack.c.h.bf16 %v1916
        %v2215 = vunpack.c.l.bf16 %v1917
        %v2216 = vunpack.c.h.bf16 %v1917
        %v2217 = vunpack.c.l.bf16 %v1918
        %v2218 = vunpack.c.h.bf16 %v1918
        %v2219 = vunpack.c.l.bf16 %v1919
        %v2220 = vunpack.c.h.bf16 %v1919
        %v2221 = vunpack.c.l.bf16 %v1920
        %v2222 = vunpack.c.h.bf16 %v1920
        %v2223 = vunpack.c.l.bf16 %v1921
        %v2224 = vunpack.c.h.bf16 %v1921
        %v2225 = vunpack.c.l.bf16 %v1922
        %v2226 = vunpack.c.h.bf16 %v1922
        %v2227 = vunpack.c.l.bf16 %v1923
        %v2228 = vunpack.c.h.bf16 %v1923
        %v2229 = vunpack.c.l.bf16 %v1924
        %v2230 = vunpack.c.h.bf16 %v1924
        %v2231 = vunpack.c.l.bf16 %v1925
        %v2232 = vunpack.c.h.bf16 %v1925
        %v2233 = vunpack.c.l.bf16 %v1926
        %v2234 = vunpack.c.h.bf16 %v1926
        %v2235 = vunpack.c.l.bf16 %v1927
        %v2236 = vunpack.c.h.bf16 %v1927
        %v2237 = vunpack.c.l.bf16 %v1928
        %v2238 = vunpack.c.h.bf16 %v1928
        %v2239 = vunpack.c.l.bf16 %v1929
        %v2240 = vunpack.c.h.bf16 %v1929
        %v2241 = vunpack.c.l.bf16 %v1930
        %v2242 = vunpack.c.h.bf16 %v1930
        %v2243 = vunpack.c.l.bf16 %v1931
        %v2244 = vunpack.c.h.bf16 %v1931
        %v2245 = vunpack.c.l.bf16 %v1932
        %v2246 = vunpack.c.h.bf16 %v1932
        %v2247 = vunpack.c.l.bf16 %v1933
        %v2248 = vunpack.c.h.bf16 %v1933
        %v2249 = vunpack.c.l.bf16 %v1934
        %v2250 = vunpack.c.h.bf16 %v1934
        %v2251 = vunpack.c.l.bf16 %v1935
        %v2252 = vunpack.c.h.bf16 %v1935
        %v2253 = vunpack.c.l.bf16 %v1936
        %v2254 = vunpack.c.h.bf16 %v1936
        %v2255 = vunpack.c.l.bf16 %v1937
        %v2256 = vunpack.c.h.bf16 %v1937
        %v2257 = vunpack.c.l.bf16 %v1938
        %v2258 = vunpack.c.h.bf16 %v1938
        %v2259 = vunpack.c.l.bf16 %v1939
        %v2260 = vunpack.c.h.bf16 %v1939
        %v2261 = vunpack.c.l.bf16 %v1940
        %v2262 = vunpack.c.h.bf16 %v1940
        %v2263 = vunpack.c.l.bf16 %v1941
        %v2264 = vunpack.c.h.bf16 %v1941
        %v2265 = vunpack.c.l.bf16 %v1942
        %v2266 = vunpack.c.h.bf16 %v1942
        %v2267 = vunpack.c.l.bf16 %v1943
        %v2268 = vunpack.c.h.bf16 %v1943
        %v2269 = vunpack.c.l.bf16 %v1944
        %v2270 = vunpack.c.h.bf16 %v1944
        %v2271 = vunpack.c.l.bf16 %v1945
        %v2272 = vunpack.c.h.bf16 %v1945
        %v2273 = vunpack.c.l.bf16 %v1946
        %v2274 = vunpack.c.h.bf16 %v1946
        %v2275 = vunpack.c.l.bf16 %v1947
        %v2276 = vunpack.c.h.bf16 %v1947
        %v2277 = vunpack.c.l.bf16 %v1948
        %v2278 = vunpack.c.h.bf16 %v1948
        %v2279 = vunpack.c.l.bf16 %v1949
        %v2280 = vunpack.c.h.bf16 %v1949
        %v2281 = vunpack.c.l.bf16 %v1950
        %v2282 = vunpack.c.h.bf16 %v1950
        %v2283 = vunpack.c.l.bf16 %v1951
        %v2284 = vunpack.c.h.bf16 %v1951
        %v2285 = vunpack.c.l.bf16 %v1952
        %v2286 = vunpack.c.h.bf16 %v1952
        %v2287 = vunpack.c.l.bf16 %v1953
        %v2288 = vunpack.c.h.bf16 %v1953
        %v2289 = vunpack.c.l.bf16 %v1954
        %v2290 = vunpack.c.h.bf16 %v1954
        %v2291 = vunpack.c.l.bf16 %v1955
        %v2292 = vunpack.c.h.bf16 %v1955
        %v2293 = vunpack.c.l.bf16 %v1956
        %v2294 = vunpack.c.h.bf16 %v1956
        %v2295 = vunpack.c.l.bf16 %v1957
        %v2296 = vunpack.c.h.bf16 %v1957
        %v2297 = vunpack.c.l.bf16 %v1958
        %v2298 = vunpack.c.h.bf16 %v1958
        %v2299 = vunpack.c.l.bf16 %v1959
        %v2300 = vunpack.c.h.bf16 %v1959
        %v2301 = vunpack.c.l.bf16 %v1960
        %v2302 = vunpack.c.h.bf16 %v1960
        %v2303 = vunpack.c.l.bf16 %v1961
        %v2304 = vunpack.c.h.bf16 %v1961
        %v2305 = vunpack.c.l.bf16 %v1962
        %v2306 = vunpack.c.h.bf16 %v1962
        %v2307 = vunpack.c.l.bf16 %v1963
        %v2308 = vunpack.c.h.bf16 %v1963
        %v2309 = vunpack.c.l.bf16 %v1964
        %v2310 = vunpack.c.h.bf16 %v1964
        %v2311 = vunpack.c.l.bf16 %v1965
        %v2312 = vunpack.c.h.bf16 %v1965
        %v2313 = vunpack.c.l.bf16 %v1966
        %v2314 = vunpack.c.h.bf16 %v1966
        %v2315 = vunpack.c.l.bf16 %v1967
        %v2316 = vunpack.c.h.bf16 %v1967
        %v2317 = vunpack.c.l.bf16 %v1968
        %v2318 = vunpack.c.h.bf16 %v1968
        %v2319 = vunpack.c.l.bf16 %v1969
        %v2320 = vunpack.c.h.bf16 %v1969
        %v2321 = vunpack.c.l.bf16 %v1970
        %v2322 = vunpack.c.h.bf16 %v1970
        %v2323 = vunpack.c.l.bf16 %v1971
        %v2324 = vunpack.c.h.bf16 %v1971
        %v2325 = vunpack.c.l.bf16 %v1972
        %v2326 = vunpack.c.h.bf16 %v1972
        %v2327 = vunpack.c.l.bf16 %v1973
        %v2328 = vunpack.c.h.bf16 %v1973
        %v2329 = vunpack.c.l.bf16 %v1974
        %v2330 = vunpack.c.h.bf16 %v1974
        %v2331 = vunpack.c.l.bf16 %v1975
        %v2332 = vunpack.c.h.bf16 %v1975
        %v2333 = vunpack.c.l.bf16 %v1976
        %v2334 = vunpack.c.h.bf16 %v1976
        %v2335 = vunpack.c.l.bf16 %v1977
        %v2336 = vunpack.c.h.bf16 %v1977
        %v2337 = vunpack.c.l.bf16 %v1978
        %v2338 = vunpack.c.h.bf16 %v1978
        %v2339 = vunpack.c.l.bf16 %v1979
        %v2340 = vunpack.c.h.bf16 %v1979
        %v2341 = vunpack.c.l.bf16 %v1980
        %v2342 = vunpack.c.h.bf16 %v1980
        %v2343 = vunpack.c.l.bf16 %v1981
        %v2344 = vunpack.c.h.bf16 %v1981
        %v2345 = vunpack.c.l.bf16 %v1982
        %v2346 = vunpack.c.h.bf16 %v1982
        %v2347 = vunpack.c.l.bf16 %v1983
        %v2348 = vunpack.c.h.bf16 %v1983
        %v2349 = vunpack.c.l.bf16 %v1984
        %v2350 = vunpack.c.h.bf16 %v1984
        %v2351 = vunpack.c.l.bf16 %v1985
        %v2352 = vunpack.c.h.bf16 %v1985
        %v2353 = vunpack.c.l.bf16 %v1986
        %v2354 = vunpack.c.h.bf16 %v1986
        %v2355 = vunpack.c.l.bf16 %v1987
        %v2356 = vunpack.c.h.bf16 %v1987
        %v2357 = vunpack.c.l.bf16 %v1988
        %v2358 = vunpack.c.h.bf16 %v1988
        %v2359 = vunpack.c.l.bf16 %v1989
        %v2360 = vunpack.c.h.bf16 %v1989
        %v2361 = vunpack.c.l.bf16 %v1990
        %v2362 = vunpack.c.h.bf16 %v1990
        %v2363 = vunpack.c.l.bf16 %v1991
        %v2364 = vunpack.c.h.bf16 %v1991
        %v2365 = vunpack.c.l.bf16 %v1992
        %v2366 = vunpack.c.h.bf16 %v1992
        %v2367 = vunpack.c.l.bf16 %v1993
        %v2368 = vunpack.c.h.bf16 %v1993
        %v2369 = vunpack.c.l.bf16 %v1994
        %v2370 = vunpack.c.h.bf16 %v1994
        %v2371 = vunpack.c.l.bf16 %v1995
        %v2372 = vunpack.c.h.bf16 %v1995
        %v2373 = vunpack.c.l.bf16 %v1996
        %v2374 = vunpack.c.h.bf16 %v1996
        %v2375 = vunpack.c.l.bf16 %v1997
        %v2376 = vunpack.c.h.bf16 %v1997
        %v2377 = vunpack.c.l.bf16 %v1998
        %v2378 = vunpack.c.h.bf16 %v1998
        %v2379 = vunpack.c.l.bf16 %v1999
        %v2380 = vunpack.c.h.bf16 %v1999
        %v2381 = vunpack.c.l.bf16 %v2000
        %v2382 = vunpack.c.h.bf16 %v2000
        %v2383 = vunpack.c.l.bf16 %v2001
        %v2384 = vunpack.c.h.bf16 %v2001
        %v2385 = vunpack.c.l.bf16 %v2002
        %v2386 = vunpack.c.h.bf16 %v2002
        %v2387 = vunpack.c.l.bf16 %v2003
        %v2388 = vunpack.c.h.bf16 %v2003
        %v2389 = vunpack.c.l.bf16 %v2004
        %v2390 = vunpack.c.h.bf16 %v2004
        %v2391 = vunpack.c.l.bf16 %v2005
        %v2392 = vunpack.c.h.bf16 %v2005
        %v2393 = vunpack.c.l.bf16 %v2006
        %v2394 = vunpack.c.h.bf16 %v2006
        %v2395 = vunpack.c.l.bf16 %v2007
        %v2396 = vunpack.c.h.bf16 %v2007
        %v2397 = vunpack.c.l.bf16 %v2008
        %v2398 = vunpack.c.h.bf16 %v2008
        %v2399 = vunpack.c.l.bf16 %v2009
        %v2400 = vunpack.c.h.bf16 %v2009
        %v2401 = vunpack.c.l.bf16 %v2010
        %v2402 = vunpack.c.h.bf16 %v2010
        %v2403 = vunpack.c.l.bf16 %v2011
        %v2404 = vunpack.c.h.bf16 %v2011
        %v2405 = vunpack.c.l.bf16 %v2012
        %v2406 = vunpack.c.h.bf16 %v2012
        %v2407 = vunpack.c.l.bf16 %v2013
        %v2408 = vunpack.c.h.bf16 %v2013
        %v2409 = vunpack.c.l.bf16 %v2014
        %v2410 = vunpack.c.h.bf16 %v2014
        %v2411 = vunpack.c.l.bf16 %v2015
        %v2412 = vunpack.c.h.bf16 %v2015
        %v2413 = vunpack.c.l.bf16 %v2016
        %v2414 = vunpack.c.h.bf16 %v2016
        %v2415 = vunpack.c.l.bf16 %v2017
        %v2416 = vunpack.c.h.bf16 %v2017
        %v2417 = vunpack.c.l.bf16 %v2018
        %v2418 = vunpack.c.h.bf16 %v2018
        %v2419 = vunpack.c.l.bf16 %v2019
        %v2420 = vunpack.c.h.bf16 %v2019
        %v2421 = vunpack.c.l.bf16 %v2020
        %v2422 = vunpack.c.h.bf16 %v2020
        %v2423 = vunpack.c.l.bf16 %v2021
        %v2424 = vunpack.c.h.bf16 %v2021
        %v2425 = vunpack.c.l.bf16 %v2022
        %v2426 = vunpack.c.h.bf16 %v2022
        %v2427 = vunpack.c.l.bf16 %v2023
        %v2428 = vunpack.c.h.bf16 %v2023
        %v2429 = vunpack.c.l.bf16 %v2024
        %v2430 = vunpack.c.h.bf16 %v2024
        %v2431 = vunpack.c.l.bf16 %v2025
        %v2432 = vunpack.c.h.bf16 %v2025
        %v2433 = vunpack.c.l.bf16 %v2026
        %v2434 = vunpack.c.h.bf16 %v2026
        %v2435 = vunpack.c.l.bf16 %v2027
        %v2436 = vunpack.c.h.bf16 %v2027
        %v2437 = vunpack.c.l.bf16 %v2028
        %v2438 = vunpack.c.h.bf16 %v2028
        %v2439 = vunpack.c.l.bf16 %v2029
        %v2440 = vunpack.c.h.bf16 %v2029
        %v2441 = vunpack.c.l.bf16 %v2030
        %v2442 = vunpack.c.h.bf16 %v2030
        %v2443 = vunpack.c.l.bf16 %v2031
        %v2444 = vunpack.c.h.bf16 %v2031
        %v2445 = vunpack.c.l.bf16 %v2032
        %v2446 = vunpack.c.h.bf16 %v2032
        %v2447 = vunpack.c.l.bf16 %v2033
        %v2448 = vunpack.c.h.bf16 %v2033
        %v2449 = vunpack.c.l.bf16 %v2034
        %v2450 = vunpack.c.h.bf16 %v2034
        %v2451 = vunpack.c.l.bf16 %v2035
        %v2452 = vunpack.c.h.bf16 %v2035
        %v2453 = vunpack.c.l.bf16 %v2036
        %v2454 = vunpack.c.h.bf16 %v2036
        %v2455 = vunpack.c.l.bf16 %v2037
        %v2456 = vunpack.c.h.bf16 %v2037
        %v2457 = vunpack.c.l.bf16 %v2038
        %v2458 = vunpack.c.h.bf16 %v2038
        %v2459 = vunpack.c.l.bf16 %v2039
        %v2460 = vunpack.c.h.bf16 %v2039
        %v2461 = vunpack.c.l.bf16 %v2040
        %v2462 = vunpack.c.h.bf16 %v2040
        %v2463 = vunpack.c.l.bf16 %v2041
        %v2464 = vunpack.c.h.bf16 %v2041
        %v2465 = vunpack.c.l.bf16 %v2042
        %v2466 = vunpack.c.h.bf16 %v2042
        %v2467 = vunpack.c.l.bf16 %v2043
        %v2468 = vunpack.c.h.bf16 %v2043
        %v2469 = vunpack.c.l.bf16 %v2044
        %v2470 = vunpack.c.h.bf16 %v2044
        %v2471 = vunpack.c.l.bf16 %v2045
        %v2472 = vunpack.c.h.bf16 %v2045
        %v2473 = vunpack.c.l.bf16 %v2046
        %v2474 = vunpack.c.h.bf16 %v2046
        %v2475 = vunpack.c.l.bf16 %v2047
        %v2476 = vunpack.c.h.bf16 %v2047
        %v2477 = vunpack.c.l.bf16 %v2048
        %v2478 = vunpack.c.h.bf16 %v2048
        %v2479 = vunpack.c.l.bf16 %v2049
        %v2480 = vunpack.c.h.bf16 %v2049
        %v2481 = vunpack.c.l.bf16 %v2050
        %v2482 = vunpack.c.h.bf16 %v2050
        %v2483 = vunpack.c.l.bf16 %v2051
        %v2484 = vunpack.c.h.bf16 %v2051
        %v2485 = vunpack.c.l.bf16 %v2052
        %v2486 = vunpack.c.h.bf16 %v2052
        %v2487 = vunpack.c.l.bf16 %v2053
        %v2488 = vunpack.c.h.bf16 %v2053
        %v2489 = vunpack.c.l.bf16 %v2054
        %v2490 = vunpack.c.h.bf16 %v2054
        %v2491 = vunpack.c.l.bf16 %v2055
        %v2492 = vunpack.c.h.bf16 %v2055
        %v2493 = vunpack.c.l.bf16 %v2056
        %v2494 = vunpack.c.h.bf16 %v2056
        %v2495 = vunpack.c.l.bf16 %v2057
        %v2496 = vunpack.c.h.bf16 %v2057
        %v2497 = vunpack.c.l.bf16 %v2058
        %v2498 = vunpack.c.h.bf16 %v2058
        %v2499 = vunpack.c.l.bf16 %v2059
        %v2500 = vunpack.c.h.bf16 %v2059
        %v2501 = vunpack.c.l.bf16 %v2060
        %v2502 = vunpack.c.h.bf16 %v2060
        %v2503 = vunpack.c.l.bf16 %v2061
        %v2504 = vunpack.c.h.bf16 %v2061
        %v2505 = vunpack.c.l.bf16 %v2062
        %v2506 = vunpack.c.h.bf16 %v2062
        %v2507 = vunpack.c.l.bf16 %v2063
        %v2508 = vunpack.c.h.bf16 %v2063
        %v2509 = vunpack.c.l.bf16 %v2064
        %v2510 = vunpack.c.h.bf16 %v2064
        %v2511 = vunpack.c.l.bf16 %v2065
        %v2512 = vunpack.c.h.bf16 %v2065
        %v2513 = vunpack.c.l.bf16 %v2066
        %v2514 = vunpack.c.h.bf16 %v2066
        %v2515 = vunpack.c.l.bf16 %v2067
        %v2516 = vunpack.c.h.bf16 %v2067
        %v2517 = vunpack.c.l.bf16 %v2068
        %v2518 = vunpack.c.h.bf16 %v2068
        %v2519 = vunpack.c.l.bf16 %v2069
        %v2520 = vunpack.c.h.bf16 %v2069
        %v2521 = vunpack.c.l.bf16 %v2070
        %v2522 = vunpack.c.h.bf16 %v2070
        %v2523 = vunpack.c.l.bf16 %v2071
        %v2524 = vunpack.c.h.bf16 %v2071
        %v2525 = vunpack.c.l.bf16 %v2072
        %v2526 = vunpack.c.h.bf16 %v2072
        %v2527 = vunpack.c.l.bf16 %v2073
        %v2528 = vunpack.c.h.bf16 %v2073
        %v2529 = vunpack.c.l.bf16 %v2074
        %v2530 = vunpack.c.h.bf16 %v2074
        %v2531 = vunpack.c.l.bf16 %v2075
        %v2532 = vunpack.c.h.bf16 %v2075
        %v2533 = vunpack.c.l.bf16 %v2076
        %v2534 = vunpack.c.h.bf16 %v2076
        %v2535 = vunpack.c.l.bf16 %v2077
        %v2536 = vunpack.c.h.bf16 %v2077
        %v2537 = vunpack.c.l.bf16 %v2078
        %v2538 = vunpack.c.h.bf16 %v2078
        %v2539 = vunpack.c.l.bf16 %v2079
        %v2540 = vunpack.c.h.bf16 %v2079
        %v2541 = vunpack.c.l.bf16 %v2080
        %v2542 = vunpack.c.h.bf16 %v2080
        %v2543 = vunpack.c.l.bf16 %v2081
        %v2544 = vunpack.c.h.bf16 %v2081
        %v2545 = vunpack.c.l.bf16 %v2082
        %v2546 = vunpack.c.h.bf16 %v2082
        %v2547 = vunpack.c.l.bf16 %v2083
        %v2548 = vunpack.c.h.bf16 %v2083
        %v2549 = vunpack.c.l.bf16 %v2084
        %v2550 = vunpack.c.h.bf16 %v2084
        %v2551 = vunpack.c.l.bf16 %v2085
        %v2552 = vunpack.c.h.bf16 %v2085
        %v2553 = vunpack.c.l.bf16 %v2086
        %v2554 = vunpack.c.h.bf16 %v2086
        %v2555 = vunpack.c.l.bf16 %v2087
        %v2556 = vunpack.c.h.bf16 %v2087
        %v2557 = vunpack.c.l.bf16 %v2088
        %v2558 = vunpack.c.h.bf16 %v2088
        %v2559 = vunpack.c.l.bf16 %v2089
        %v2560 = vunpack.c.h.bf16 %v2089
        %v2561 = vunpack.c.l.bf16 %v2090
        %v2562 = vunpack.c.h.bf16 %v2090
        %v2563 = vunpack.c.l.bf16 %v2091
        %v2564 = vunpack.c.h.bf16 %v2091
        %v2565 = vunpack.c.l.bf16 %v2092
        %v2566 = vunpack.c.h.bf16 %v2092
        %v2567 = vunpack.c.l.bf16 %v2093
        %v2568 = vunpack.c.h.bf16 %v2093
        %v2569 = vunpack.c.l.bf16 %v2094
        %v2570 = vunpack.c.h.bf16 %v2094
        %v2571 = vunpack.c.l.bf16 %v2095
        %v2572 = vunpack.c.h.bf16 %v2095
        %v2573 = vunpack.c.l.bf16 %v2096
        %v2574 = vunpack.c.h.bf16 %v2096
        %v2575 = vunpack.c.l.bf16 %v2097
        %v2576 = vunpack.c.h.bf16 %v2097
        %v2577 = vunpack.c.l.bf16 %v2098
        %v2578 = vunpack.c.h.bf16 %v2098
        %v2579 = vunpack.c.l.bf16 %v2099
        %v2580 = vunpack.c.h.bf16 %v2099
        %v2581 = vunpack.c.l.bf16 %v2100
        %v2582 = vunpack.c.h.bf16 %v2100
        %v2583 = vunpack.c.l.bf16 %v2101
        %v2584 = vunpack.c.h.bf16 %v2101
        %v2585 = vunpack.c.l.bf16 %v2102
        %v2586 = vunpack.c.h.bf16 %v2102
        %v2587 = vunpack.c.l.bf16 %v2103
        %v2588 = vunpack.c.h.bf16 %v2103
        %v2589 = vunpack.c.l.bf16 %v2104
        %v2590 = vunpack.c.h.bf16 %v2104
        %v2591 = vunpack.c.l.bf16 %v2105
        %v2592 = vunpack.c.h.bf16 %v2105
        %v2593 = vunpack.c.l.bf16 %v2106
        %v2594 = vunpack.c.h.bf16 %v2106
        %v2595 = vunpack.c.l.bf16 %v2107
        %v2596 = vunpack.c.h.bf16 %v2107
        %v2597 = vunpack.c.l.bf16 %v2108
        %v2598 = vunpack.c.h.bf16 %v2108
        %v2599 = vunpack.c.l.bf16 %v2109
        %v2600 = vunpack.c.h.bf16 %v2109
        %v2601 = vunpack.c.l.bf16 %v2110
        %v2602 = vunpack.c.h.bf16 %v2110
        %v2603 = vunpack.c.l.bf16 %v2111
        %v2604 = vunpack.c.h.bf16 %v2111
        %v2605 = vunpack.c.l.bf16 %v2112
        %v2606 = vunpack.c.h.bf16 %v2112
        %v2607 = vunpack.c.l.bf16 %v2113
        %v2608 = vunpack.c.h.bf16 %v2113
        %v2609 = vunpack.c.l.bf16 %v2114
        %v2610 = vunpack.c.h.bf16 %v2114
        %v2611 = vunpack.c.l.bf16 %v2115
        %v2612 = vunpack.c.h.bf16 %v2115
        %v2613 = vunpack.c.l.bf16 %v2116
        %v2614 = vunpack.c.h.bf16 %v2116
        %v2615 = vunpack.c.l.bf16 %v2117
        %v2616 = vunpack.c.h.bf16 %v2117
        %v2617 = vunpack.c.l.bf16 %v2118
        %v2618 = vunpack.c.h.bf16 %v2118
        %v2619 = vunpack.c.l.bf16 %v2119
        %v2620 = vunpack.c.h.bf16 %v2119
        %v2621 = vunpack.c.l.bf16 %v2120
        %v2622 = vunpack.c.h.bf16 %v2120
        %v2623 = vunpack.c.l.bf16 %v2121
        %v2624 = vunpack.c.h.bf16 %v2121
        %v2625 = vunpack.c.l.bf16 %v2122
        %v2626 = vunpack.c.h.bf16 %v2122
        %v2627 = vunpack.c.l.bf16 %v2123
        %v2628 = vunpack.c.h.bf16 %v2123
        %v2629 = vunpack.c.l.bf16 %v2124
        %v2630 = vunpack.c.h.bf16 %v2124
        %v2631 = vunpack.c.l.bf16 %v2125
        %v2632 = vunpack.c.h.bf16 %v2125
        %v2633 = vunpack.c.l.bf16 %v2126
        %v2634 = vunpack.c.h.bf16 %v2126
        %v2635 = vunpack.c.l.bf16 %v2127
        %v2636 = vunpack.c.h.bf16 %v2127
        %v2637 = vunpack.c.l.bf16 %v2128
        %v2638 = vunpack.c.h.bf16 %v2128
        %v2639 = vunpack.c.l.bf16 %v2129
        %v2640 = vunpack.c.h.bf16 %v2129
        %v2641 = vunpack.c.l.bf16 %v2130
        %v2642 = vunpack.c.h.bf16 %v2130
        %v2643 = vld [vmem:[#allocation10] sm:$0x3]
        %v2645 = vperm.slane %v2643, 0
        %v2646 = vperm.slane %v2643, 1
        %2649 = vmatpush.msra.mxu0 %v2161
        %2650 = vmatpush.msra.mxu0 %v2159
        %2651 = vmatpush.msra.mxu0 %v2157
        %2652 = vmatpush.msra.mxu0 %v2155
        %2653 = vmatpush.msra.mxu0 %v2153
        %2654 = vmatpush.msra.mxu0 %v2151
        %2655 = vmatpush.msra.mxu0 %v2149
        %2656 = vmatpush.msra.mxu0 %v2147
        %2657 = vmatpush.msra.mxu0 %v2145
        %2658 = vmatpush.msra.mxu0 %v2143
        %2659 = vmatpush.msra.mxu0 %v2141
        %2660 = vmatpush.msra.mxu0 %v2139
        %2661 = vmatpush.msra.mxu0 %v2137
        %2662 = vmatpush.msra.mxu0 %v2135
        %2663 = vmatpush.msra.mxu0 %v2133
        %2664 = vmatpush.msra.mxu0 %v2131
        %2665 = vmatmul.f32.gmra.mxu0 %v1558
        %v2666 = vpop.f32.mrf.mxu0
        %v2667 = vadd.f32 %v2645, %v2666
        %2668 = vdwg.mxu0
        %2669 = vmatpush.msra.mxu0 %v2193
        %2670 = vmatpush.msra.mxu0 %v2191
        %2671 = vmatpush.msra.mxu0 %v2189
        %2672 = vmatpush.msra.mxu0 %v2187
        %2673 = vmatpush.msra.mxu0 %v2185
        %2674 = vmatpush.msra.mxu0 %v2183
        %2675 = vmatpush.msra.mxu0 %v2181
        %2676 = vmatpush.msra.mxu0 %v2179
        %2677 = vmatpush.msra.mxu0 %v2177
        %2678 = vmatpush.msra.mxu0 %v2175
        %2679 = vmatpush.msra.mxu0 %v2173
        %2680 = vmatpush.msra.mxu0 %v2171
        %2681 = vmatpush.msra.mxu0 %v2169
        %2682 = vmatpush.msra.mxu0 %v2167
        %2683 = vmatpush.msra.mxu0 %v2165
        %2684 = vmatpush.msra.mxu0 %v2163
        %2685 = vmatmul.f32.gmra.mxu0 %v1578
        %v2686 = vpop.f32.mrf.mxu0
        %v2687 = vadd.f32 %v2667, %v2686
        %2688 = vdwg.mxu0
        %2689 = vmatpush.msra.mxu0 %v2225
        %2690 = vmatpush.msra.mxu0 %v2223
        %2691 = vmatpush.msra.mxu0 %v2221
        %2692 = vmatpush.msra.mxu0 %v2219
        %2693 = vmatpush.msra.mxu0 %v2217
        %2694 = vmatpush.msra.mxu0 %v2215
        %2695 = vmatpush.msra.mxu0 %v2213
        %2696 = vmatpush.msra.mxu0 %v2211
        %2697 = vmatpush.msra.mxu0 %v2209
        %2698 = vmatpush.msra.mxu0 %v2207
        %2699 = vmatpush.msra.mxu0 %v2205
        %2700 = vmatpush.msra.mxu0 %v2203
        %2701 = vmatpush.msra.mxu0 %v2201
        %2702 = vmatpush.msra.mxu0 %v2199
        %2703 = vmatpush.msra.mxu0 %v2197
        %2704 = vmatpush.msra.mxu0 %v2195
        %2705 = vmatmul.f32.gmra.mxu0 %v1598
        %v2706 = vpop.f32.mrf.mxu0
        %v2707 = vadd.f32 %v2687, %v2706
        %2708 = vdwg.mxu0
        %2709 = vmatpush.msra.mxu0 %v2257
        %2710 = vmatpush.msra.mxu0 %v2255
        %2711 = vmatpush.msra.mxu0 %v2253
        %2712 = vmatpush.msra.mxu0 %v2251
        %2713 = vmatpush.msra.mxu0 %v2249
        %2714 = vmatpush.msra.mxu0 %v2247
        %2715 = vmatpush.msra.mxu0 %v2245
        %2716 = vmatpush.msra.mxu0 %v2243
        %2717 = vmatpush.msra.mxu0 %v2241
        %2718 = vmatpush.msra.mxu0 %v2239
        %2719 = vmatpush.msra.mxu0 %v2237
        %2720 = vmatpush.msra.mxu0 %v2235
        %2721 = vmatpush.msra.mxu0 %v2233
        %2722 = vmatpush.msra.mxu0 %v2231
        %2723 = vmatpush.msra.mxu0 %v2229
        %2724 = vmatpush.msra.mxu0 %v2227
        %2725 = vmatmul.f32.gmra.mxu0 %v1618
        %v2726 = vpop.f32.mrf.mxu0
        %v2727 = vadd.f32 %v2707, %v2726
        %2728 = vdwg.mxu0
        %2729 = vmatpush.msra.mxu0 %v2289
        %2730 = vmatpush.msra.mxu0 %v2287
        %2731 = vmatpush.msra.mxu0 %v2285
        %2732 = vmatpush.msra.mxu0 %v2283
        %2733 = vmatpush.msra.mxu0 %v2281
        %2734 = vmatpush.msra.mxu0 %v2279
        %2735 = vmatpush.msra.mxu0 %v2277
        %2736 = vmatpush.msra.mxu0 %v2275
        %2737 = vmatpush.msra.mxu0 %v2273
        %2738 = vmatpush.msra.mxu0 %v2271
        %2739 = vmatpush.msra.mxu0 %v2269
        %2740 = vmatpush.msra.mxu0 %v2267
        %2741 = vmatpush.msra.mxu0 %v2265
        %2742 = vmatpush.msra.mxu0 %v2263
        %2743 = vmatpush.msra.mxu0 %v2261
        %2744 = vmatpush.msra.mxu0 %v2259
        %2745 = vmatmul.f32.gmra.mxu0 %v1643
        %v2746 = vpop.f32.mrf.mxu0
        %v2747 = vadd.f32 %v2727, %v2746
        %2748 = vdwg.mxu0
        %2749 = vmatpush.msra.mxu0 %v2321
        %2750 = vmatpush.msra.mxu0 %v2319
        %2751 = vmatpush.msra.mxu0 %v2317
        %2752 = vmatpush.msra.mxu0 %v2315
        %2753 = vmatpush.msra.mxu0 %v2313
        %2754 = vmatpush.msra.mxu0 %v2311
        %2755 = vmatpush.msra.mxu0 %v2309
        %2756 = vmatpush.msra.mxu0 %v2307
        %2757 = vmatpush.msra.mxu0 %v2305
        %2758 = vmatpush.msra.mxu0 %v2303
        %2759 = vmatpush.msra.mxu0 %v2301
        %2760 = vmatpush.msra.mxu0 %v2299
        %2761 = vmatpush.msra.mxu0 %v2297
        %2762 = vmatpush.msra.mxu0 %v2295
        %2763 = vmatpush.msra.mxu0 %v2293
        %2764 = vmatpush.msra.mxu0 %v2291
        %2765 = vmatmul.f32.gmra.mxu0 %v1663
        %v2766 = vpop.f32.mrf.mxu0
        %v2767 = vadd.f32 %v2747, %v2766
        %2768 = vdwg.mxu0
        %2769 = vmatpush.msra.mxu0 %v2353
        %2770 = vmatpush.msra.mxu0 %v2351
        %2771 = vmatpush.msra.mxu0 %v2349
        %2772 = vmatpush.msra.mxu0 %v2347
        %2773 = vmatpush.msra.mxu0 %v2345
        %2774 = vmatpush.msra.mxu0 %v2343
        %2775 = vmatpush.msra.mxu0 %v2341
        %2776 = vmatpush.msra.mxu0 %v2339
        %2777 = vmatpush.msra.mxu0 %v2337
        %2778 = vmatpush.msra.mxu0 %v2335
        %2779 = vmatpush.msra.mxu0 %v2333
        %2780 = vmatpush.msra.mxu0 %v2331
        %2781 = vmatpush.msra.mxu0 %v2329
        %2782 = vmatpush.msra.mxu0 %v2327
        %2783 = vmatpush.msra.mxu0 %v2325
        %2784 = vmatpush.msra.mxu0 %v2323
        %2785 = vmatmul.f32.gmra.mxu0 %v1683
        %v2786 = vpop.f32.mrf.mxu0
        %v2787 = vadd.f32 %v2767, %v2786
        %2788 = vdwg.mxu0
        %2789 = vmatpush.msra.mxu0 %v2385
        %2790 = vmatpush.msra.mxu0 %v2383
        %2791 = vmatpush.msra.mxu0 %v2381
        %2792 = vmatpush.msra.mxu0 %v2379
        %2793 = vmatpush.msra.mxu0 %v2377
        %2794 = vmatpush.msra.mxu0 %v2375
        %2795 = vmatpush.msra.mxu0 %v2373
        %2796 = vmatpush.msra.mxu0 %v2371
        %2797 = vmatpush.msra.mxu0 %v2369
        %2798 = vmatpush.msra.mxu0 %v2367
        %2799 = vmatpush.msra.mxu0 %v2365
        %2800 = vmatpush.msra.mxu0 %v2363
        %2801 = vmatpush.msra.mxu0 %v2361
        %2802 = vmatpush.msra.mxu0 %v2359
        %2803 = vmatpush.msra.mxu0 %v2357
        %2804 = vmatpush.msra.mxu0 %v2355
        %2805 = vmatmul.f32.gmra.mxu0 %v1703
        %v2806 = vpop.f32.mrf.mxu0
        %v2807 = vadd.f32 %v2787, %v2806
        %2808 = vdwg.mxu0
        %2809 = vmatpush.msra.mxu0 %v2417
        %2810 = vmatpush.msra.mxu0 %v2415
        %2811 = vmatpush.msra.mxu0 %v2413
        %2812 = vmatpush.msra.mxu0 %v2411
        %2813 = vmatpush.msra.mxu0 %v2409
        %2814 = vmatpush.msra.mxu0 %v2407
        %2815 = vmatpush.msra.mxu0 %v2405
        %2816 = vmatpush.msra.mxu0 %v2403
        %2817 = vmatpush.msra.mxu0 %v2401
        %2818 = vmatpush.msra.mxu0 %v2399
        %2819 = vmatpush.msra.mxu0 %v2397
        %2820 = vmatpush.msra.mxu0 %v2395
        %2821 = vmatpush.msra.mxu0 %v2393
        %2822 = vmatpush.msra.mxu0 %v2391
        %2823 = vmatpush.msra.mxu0 %v2389
        %2824 = vmatpush.msra.mxu0 %v2387
        %2825 = vmatmul.f32.gmra.mxu0 %v1728
        %v2826 = vpop.f32.mrf.mxu0
        %v2827 = vadd.f32 %v2807, %v2826
        %2828 = vdwg.mxu0
        %2829 = vmatpush.msra.mxu0 %v2449
        %2830 = vmatpush.msra.mxu0 %v2447
        %2831 = vmatpush.msra.mxu0 %v2445
        %2832 = vmatpush.msra.mxu0 %v2443
        %2833 = vmatpush.msra.mxu0 %v2441
        %2834 = vmatpush.msra.mxu0 %v2439
        %2835 = vmatpush.msra.mxu0 %v2437
        %2836 = vmatpush.msra.mxu0 %v2435
        %2837 = vmatpush.msra.mxu0 %v2433
        %2838 = vmatpush.msra.mxu0 %v2431
        %2839 = vmatpush.msra.mxu0 %v2429
        %2840 = vmatpush.msra.mxu0 %v2427
        %2841 = vmatpush.msra.mxu0 %v2425
        %2842 = vmatpush.msra.mxu0 %v2423
        %2843 = vmatpush.msra.mxu0 %v2421
        %2844 = vmatpush.msra.mxu0 %v2419
        %2845 = vmatmul.f32.gmra.mxu0 %v1748
        %v2846 = vpop.f32.mrf.mxu0
        %v2847 = vadd.f32 %v2827, %v2846
        %2848 = vdwg.mxu0
        %2849 = vmatpush.msra.mxu0 %v2481
        %2850 = vmatpush.msra.mxu0 %v2479
        %2851 = vmatpush.msra.mxu0 %v2477
        %2852 = vmatpush.msra.mxu0 %v2475
        %2853 = vmatpush.msra.mxu0 %v2473
        %2854 = vmatpush.msra.mxu0 %v2471
        %2855 = vmatpush.msra.mxu0 %v2469
        %2856 = vmatpush.msra.mxu0 %v2467
        %2857 = vmatpush.msra.mxu0 %v2465
        %2858 = vmatpush.msra.mxu0 %v2463
        %2859 = vmatpush.msra.mxu0 %v2461
        %2860 = vmatpush.msra.mxu0 %v2459
        %2861 = vmatpush.msra.mxu0 %v2457
        %2862 = vmatpush.msra.mxu0 %v2455
        %2863 = vmatpush.msra.mxu0 %v2453
        %2864 = vmatpush.msra.mxu0 %v2451
        %2865 = vmatmul.f32.gmra.mxu0 %v1768
        %v2866 = vpop.f32.mrf.mxu0
        %v2867 = vadd.f32 %v2847, %v2866
        %2868 = vdwg.mxu0
        %2869 = vmatpush.msra.mxu0 %v2513
        %2870 = vmatpush.msra.mxu0 %v2511
        %2871 = vmatpush.msra.mxu0 %v2509
        %2872 = vmatpush.msra.mxu0 %v2507
        %2873 = vmatpush.msra.mxu0 %v2505
        %2874 = vmatpush.msra.mxu0 %v2503
        %2875 = vmatpush.msra.mxu0 %v2501
        %2876 = vmatpush.msra.mxu0 %v2499
        %2877 = vmatpush.msra.mxu0 %v2497
        %2878 = vmatpush.msra.mxu0 %v2495
        %2879 = vmatpush.msra.mxu0 %v2493
        %2880 = vmatpush.msra.mxu0 %v2491
        %2881 = vmatpush.msra.mxu0 %v2489
        %2882 = vmatpush.msra.mxu0 %v2487
        %2883 = vmatpush.msra.mxu0 %v2485
        %2884 = vmatpush.msra.mxu0 %v2483
        %2885 = vmatmul.f32.gmra.mxu0 %v1788
        %v2886 = vpop.f32.mrf.mxu0
        %v2887 = vadd.f32 %v2867, %v2886
        %2888 = vdwg.mxu0
        %2889 = vmatpush.msra.mxu0 %v2545
        %2890 = vmatpush.msra.mxu0 %v2543
        %2891 = vmatpush.msra.mxu0 %v2541
        %2892 = vmatpush.msra.mxu0 %v2539
        %2893 = vmatpush.msra.mxu0 %v2537
        %2894 = vmatpush.msra.mxu0 %v2535
        %2895 = vmatpush.msra.mxu0 %v2533
        %2896 = vmatpush.msra.mxu0 %v2531
        %2897 = vmatpush.msra.mxu0 %v2529
        %2898 = vmatpush.msra.mxu0 %v2527
        %2899 = vmatpush.msra.mxu0 %v2525
        %2900 = vmatpush.msra.mxu0 %v2523
        %2901 = vmatpush.msra.mxu0 %v2521
        %2902 = vmatpush.msra.mxu0 %v2519
        %2903 = vmatpush.msra.mxu0 %v2517
        %2904 = vmatpush.msra.mxu0 %v2515
        %2905 = vmatmul.f32.gmra.mxu0 %v1813
        %v2906 = vpop.f32.mrf.mxu0
        %v2907 = vadd.f32 %v2887, %v2906
        %2908 = vdwg.mxu0
        %2909 = vmatpush.msra.mxu0 %v2577
        %2910 = vmatpush.msra.mxu0 %v2575
        %2911 = vmatpush.msra.mxu0 %v2573
        %2912 = vmatpush.msra.mxu0 %v2571
        %2913 = vmatpush.msra.mxu0 %v2569
        %2914 = vmatpush.msra.mxu0 %v2567
        %2915 = vmatpush.msra.mxu0 %v2565
        %2916 = vmatpush.msra.mxu0 %v2563
        %2917 = vmatpush.msra.mxu0 %v2561
        %2918 = vmatpush.msra.mxu0 %v2559
        %2919 = vmatpush.msra.mxu0 %v2557
        %2920 = vmatpush.msra.mxu0 %v2555
        %2921 = vmatpush.msra.mxu0 %v2553
        %2922 = vmatpush.msra.mxu0 %v2551
        %2923 = vmatpush.msra.mxu0 %v2549
        %2924 = vmatpush.msra.mxu0 %v2547
        %2925 = vmatmul.f32.gmra.mxu0 %v1833
        %v2926 = vpop.f32.mrf.mxu0
        %v2927 = vadd.f32 %v2907, %v2926
        %2928 = vdwg.mxu0
        %2929 = vmatpush.msra.mxu0 %v2609
        %2930 = vmatpush.msra.mxu0 %v2607
        %2931 = vmatpush.msra.mxu0 %v2605
        %2932 = vmatpush.msra.mxu0 %v2603
        %2933 = vmatpush.msra.mxu0 %v2601
        %2934 = vmatpush.msra.mxu0 %v2599
        %2935 = vmatpush.msra.mxu0 %v2597
        %2936 = vmatpush.msra.mxu0 %v2595
        %2937 = vmatpush.msra.mxu0 %v2593
        %2938 = vmatpush.msra.mxu0 %v2591
        %2939 = vmatpush.msra.mxu0 %v2589
        %2940 = vmatpush.msra.mxu0 %v2587
        %2941 = vmatpush.msra.mxu0 %v2585
        %2942 = vmatpush.msra.mxu0 %v2583
        %2943 = vmatpush.msra.mxu0 %v2581
        %2944 = vmatpush.msra.mxu0 %v2579
        %2945 = vmatmul.f32.gmra.mxu0 %v1853
        %v2946 = vpop.f32.mrf.mxu0
        %v2947 = vadd.f32 %v2927, %v2946
        %2948 = vdwg.mxu0
        %2949 = vmatpush.msra.mxu0 %v2641
        %2950 = vmatpush.msra.mxu0 %v2639
        %2951 = vmatpush.msra.mxu0 %v2637
        %2952 = vmatpush.msra.mxu0 %v2635
        %2953 = vmatpush.msra.mxu0 %v2633
        %2954 = vmatpush.msra.mxu0 %v2631
        %2955 = vmatpush.msra.mxu0 %v2629
        %2956 = vmatpush.msra.mxu0 %v2627
        %2957 = vmatpush.msra.mxu0 %v2625
        %2958 = vmatpush.msra.mxu0 %v2623
        %2959 = vmatpush.msra.mxu0 %v2621
        %2960 = vmatpush.msra.mxu0 %v2619
        %2961 = vmatpush.msra.mxu0 %v2617
        %2962 = vmatpush.msra.mxu0 %v2615
        %2963 = vmatpush.msra.mxu0 %v2613
        %2964 = vmatpush.msra.mxu0 %v2611
        %2965 = vmatmul.f32.gmra.mxu0 %v1873
        %v2966 = vpop.f32.mrf.mxu0
        %v2967 = vadd.f32 %v2947, %v2966
        %2968 = vdwg.mxu0
        %2969 = vmatpush.msra.mxu0 %v2162
        %2970 = vmatpush.msra.mxu0 %v2160
        %2971 = vmatpush.msra.mxu0 %v2158
        %2972 = vmatpush.msra.mxu0 %v2156
        %2973 = vmatpush.msra.mxu0 %v2154
        %2974 = vmatpush.msra.mxu0 %v2152
        %2975 = vmatpush.msra.mxu0 %v2150
        %2976 = vmatpush.msra.mxu0 %v2148
        %2977 = vmatpush.msra.mxu0 %v2146
        %2978 = vmatpush.msra.mxu0 %v2144
        %2979 = vmatpush.msra.mxu0 %v2142
        %2980 = vmatpush.msra.mxu0 %v2140
        %2981 = vmatpush.msra.mxu0 %v2138
        %2982 = vmatpush.msra.mxu0 %v2136
        %2983 = vmatpush.msra.mxu0 %v2134
        %2984 = vmatpush.msra.mxu0 %v2132
        %2985 = vmatmul.f32.gmra.mxu0 %v1558
        %v2986 = vpop.f32.mrf.mxu0
        %v2987 = vadd.f32 %v2646, %v2986
        %2988 = vdwg.mxu0
        %2989 = vmatpush.msra.mxu0 %v2194
        %2990 = vmatpush.msra.mxu0 %v2192
        %2991 = vmatpush.msra.mxu0 %v2190
        %2992 = vmatpush.msra.mxu0 %v2188
        %2993 = vmatpush.msra.mxu0 %v2186
        %2994 = vmatpush.msra.mxu0 %v2184
        %2995 = vmatpush.msra.mxu0 %v2182
        %2996 = vmatpush.msra.mxu0 %v2180
        %2997 = vmatpush.msra.mxu0 %v2178
        %2998 = vmatpush.msra.mxu0 %v2176
        %2999 = vmatpush.msra.mxu0 %v2174
        %3000 = vmatpush.msra.mxu0 %v2172
        %3001 = vmatpush.msra.mxu0 %v2170
        %3002 = vmatpush.msra.mxu0 %v2168
        %3003 = vmatpush.msra.mxu0 %v2166
        %3004 = vmatpush.msra.mxu0 %v2164
        %3005 = vmatmul.f32.gmra.mxu0 %v1578
        %v3006 = vpop.f32.mrf.mxu0
        %v3007 = vadd.f32 %v2987, %v3006
        %3008 = vdwg.mxu0
        %3009 = vmatpush.msra.mxu0 %v2226
        %3010 = vmatpush.msra.mxu0 %v2224
        %3011 = vmatpush.msra.mxu0 %v2222
        %3012 = vmatpush.msra.mxu0 %v2220
        %3013 = vmatpush.msra.mxu0 %v2218
        %3014 = vmatpush.msra.mxu0 %v2216
        %3015 = vmatpush.msra.mxu0 %v2214
        %3016 = vmatpush.msra.mxu0 %v2212
        %3017 = vmatpush.msra.mxu0 %v2210
        %3018 = vmatpush.msra.mxu0 %v2208
        %3019 = vmatpush.msra.mxu0 %v2206
        %3020 = vmatpush.msra.mxu0 %v2204
        %3021 = vmatpush.msra.mxu0 %v2202
        %3022 = vmatpush.msra.mxu0 %v2200
        %3023 = vmatpush.msra.mxu0 %v2198
        %3024 = vmatpush.msra.mxu0 %v2196
        %3025 = vmatmul.f32.gmra.mxu0 %v1598
        %v3026 = vpop.f32.mrf.mxu0
        %v3027 = vadd.f32 %v3007, %v3026
        %3028 = vdwg.mxu0
        %3029 = vmatpush.msra.mxu0 %v2258
        %3030 = vmatpush.msra.mxu0 %v2256
        %3031 = vmatpush.msra.mxu0 %v2254
        %3032 = vmatpush.msra.mxu0 %v2252
        %3033 = vmatpush.msra.mxu0 %v2250
        %3034 = vmatpush.msra.mxu0 %v2248
        %3035 = vmatpush.msra.mxu0 %v2246
        %3036 = vmatpush.msra.mxu0 %v2244
        %3037 = vmatpush.msra.mxu0 %v2242
        %3038 = vmatpush.msra.mxu0 %v2240
        %3039 = vmatpush.msra.mxu0 %v2238
        %3040 = vmatpush.msra.mxu0 %v2236
        %3041 = vmatpush.msra.mxu0 %v2234
        %3042 = vmatpush.msra.mxu0 %v2232
        %3043 = vmatpush.msra.mxu0 %v2230
        %3044 = vmatpush.msra.mxu0 %v2228
        %3045 = vmatmul.f32.gmra.mxu0 %v1618
        %v3046 = vpop.f32.mrf.mxu0
        %v3047 = vadd.f32 %v3027, %v3046
        %3048 = vdwg.mxu0
        %3049 = vmatpush.msra.mxu0 %v2290
        %3050 = vmatpush.msra.mxu0 %v2288
        %3051 = vmatpush.msra.mxu0 %v2286
        %3052 = vmatpush.msra.mxu0 %v2284
        %3053 = vmatpush.msra.mxu0 %v2282
        %3054 = vmatpush.msra.mxu0 %v2280
        %3055 = vmatpush.msra.mxu0 %v2278
        %3056 = vmatpush.msra.mxu0 %v2276
        %3057 = vmatpush.msra.mxu0 %v2274
        %3058 = vmatpush.msra.mxu0 %v2272
        %3059 = vmatpush.msra.mxu0 %v2270
        %3060 = vmatpush.msra.mxu0 %v2268
        %3061 = vmatpush.msra.mxu0 %v2266
        %3062 = vmatpush.msra.mxu0 %v2264
        %3063 = vmatpush.msra.mxu0 %v2262
        %3064 = vmatpush.msra.mxu0 %v2260
        %3065 = vmatmul.f32.gmra.mxu0 %v1643
        %v3066 = vpop.f32.mrf.mxu0
        %v3067 = vadd.f32 %v3047, %v3066
        %3068 = vdwg.mxu0
        %3069 = vmatpush.msra.mxu0 %v2322
        %3070 = vmatpush.msra.mxu0 %v2320
        %3071 = vmatpush.msra.mxu0 %v2318
        %3072 = vmatpush.msra.mxu0 %v2316
        %3073 = vmatpush.msra.mxu0 %v2314
        %3074 = vmatpush.msra.mxu0 %v2312
        %3075 = vmatpush.msra.mxu0 %v2310
        %3076 = vmatpush.msra.mxu0 %v2308
        %3077 = vmatpush.msra.mxu0 %v2306
        %3078 = vmatpush.msra.mxu0 %v2304
        %3079 = vmatpush.msra.mxu0 %v2302
        %3080 = vmatpush.msra.mxu0 %v2300
        %3081 = vmatpush.msra.mxu0 %v2298
        %3082 = vmatpush.msra.mxu0 %v2296
        %3083 = vmatpush.msra.mxu0 %v2294
        %3084 = vmatpush.msra.mxu0 %v2292
        %3085 = vmatmul.f32.gmra.mxu0 %v1663
        %v3086 = vpop.f32.mrf.mxu0
        %v3087 = vadd.f32 %v3067, %v3086
        %3088 = vdwg.mxu0
        %3089 = vmatpush.msra.mxu0 %v2354
        %3090 = vmatpush.msra.mxu0 %v2352
        %3091 = vmatpush.msra.mxu0 %v2350
        %3092 = vmatpush.msra.mxu0 %v2348
        %3093 = vmatpush.msra.mxu0 %v2346
        %3094 = vmatpush.msra.mxu0 %v2344
        %3095 = vmatpush.msra.mxu0 %v2342
        %3096 = vmatpush.msra.mxu0 %v2340
        %3097 = vmatpush.msra.mxu0 %v2338
        %3098 = vmatpush.msra.mxu0 %v2336
        %3099 = vmatpush.msra.mxu0 %v2334
        %3100 = vmatpush.msra.mxu0 %v2332
        %3101 = vmatpush.msra.mxu0 %v2330
        %3102 = vmatpush.msra.mxu0 %v2328
        %3103 = vmatpush.msra.mxu0 %v2326
        %3104 = vmatpush.msra.mxu0 %v2324
        %3105 = vmatmul.f32.gmra.mxu0 %v1683
        %v3106 = vpop.f32.mrf.mxu0
        %v3107 = vadd.f32 %v3087, %v3106
        %3108 = vdwg.mxu0
        %3109 = vmatpush.msra.mxu0 %v2386
        %3110 = vmatpush.msra.mxu0 %v2384
        %3111 = vmatpush.msra.mxu0 %v2382
        %3112 = vmatpush.msra.mxu0 %v2380
        %3113 = vmatpush.msra.mxu0 %v2378
        %3114 = vmatpush.msra.mxu0 %v2376
        %3115 = vmatpush.msra.mxu0 %v2374
        %3116 = vmatpush.msra.mxu0 %v2372
        %3117 = vmatpush.msra.mxu0 %v2370
        %3118 = vmatpush.msra.mxu0 %v2368
        %3119 = vmatpush.msra.mxu0 %v2366
        %3120 = vmatpush.msra.mxu0 %v2364
        %3121 = vmatpush.msra.mxu0 %v2362
        %3122 = vmatpush.msra.mxu0 %v2360
        %3123 = vmatpush.msra.mxu0 %v2358
        %3124 = vmatpush.msra.mxu0 %v2356
        %3125 = vmatmul.f32.gmra.mxu0 %v1703
        %v3126 = vpop.f32.mrf.mxu0
        %v3127 = vadd.f32 %v3107, %v3126
        %3128 = vdwg.mxu0
        %3129 = vmatpush.msra.mxu0 %v2418
        %3130 = vmatpush.msra.mxu0 %v2416
        %3131 = vmatpush.msra.mxu0 %v2414
        %3132 = vmatpush.msra.mxu0 %v2412
        %3133 = vmatpush.msra.mxu0 %v2410
        %3134 = vmatpush.msra.mxu0 %v2408
        %3135 = vmatpush.msra.mxu0 %v2406
        %3136 = vmatpush.msra.mxu0 %v2404
        %3137 = vmatpush.msra.mxu0 %v2402
        %3138 = vmatpush.msra.mxu0 %v2400
        %3139 = vmatpush.msra.mxu0 %v2398
        %3140 = vmatpush.msra.mxu0 %v2396
        %3141 = vmatpush.msra.mxu0 %v2394
        %3142 = vmatpush.msra.mxu0 %v2392
        %3143 = vmatpush.msra.mxu0 %v2390
        %3144 = vmatpush.msra.mxu0 %v2388
        %3145 = vmatmul.f32.gmra.mxu0 %v1728
        %v3146 = vpop.f32.mrf.mxu0
        %v3147 = vadd.f32 %v3127, %v3146
        %3148 = vdwg.mxu0
        %3149 = vmatpush.msra.mxu0 %v2450
        %3150 = vmatpush.msra.mxu0 %v2448
        %3151 = vmatpush.msra.mxu0 %v2446
        %3152 = vmatpush.msra.mxu0 %v2444
        %3153 = vmatpush.msra.mxu0 %v2442
        %3154 = vmatpush.msra.mxu0 %v2440
        %3155 = vmatpush.msra.mxu0 %v2438
        %3156 = vmatpush.msra.mxu0 %v2436
        %3157 = vmatpush.msra.mxu0 %v2434
        %3158 = vmatpush.msra.mxu0 %v2432
        %3159 = vmatpush.msra.mxu0 %v2430
        %3160 = vmatpush.msra.mxu0 %v2428
        %3161 = vmatpush.msra.mxu0 %v2426
        %3162 = vmatpush.msra.mxu0 %v2424
        %3163 = vmatpush.msra.mxu0 %v2422
        %3164 = vmatpush.msra.mxu0 %v2420
        %3165 = vmatmul.f32.gmra.mxu0 %v1748
        %v3166 = vpop.f32.mrf.mxu0
        %v3167 = vadd.f32 %v3147, %v3166
        %3168 = vdwg.mxu0
        %3169 = vmatpush.msra.mxu0 %v2482
        %3170 = vmatpush.msra.mxu0 %v2480
        %3171 = vmatpush.msra.mxu0 %v2478
        %3172 = vmatpush.msra.mxu0 %v2476
        %3173 = vmatpush.msra.mxu0 %v2474
        %3174 = vmatpush.msra.mxu0 %v2472
        %3175 = vmatpush.msra.mxu0 %v2470
        %3176 = vmatpush.msra.mxu0 %v2468
        %3177 = vmatpush.msra.mxu0 %v2466
        %3178 = vmatpush.msra.mxu0 %v2464
        %3179 = vmatpush.msra.mxu0 %v2462
        %3180 = vmatpush.msra.mxu0 %v2460
        %3181 = vmatpush.msra.mxu0 %v2458
        %3182 = vmatpush.msra.mxu0 %v2456
        %3183 = vmatpush.msra.mxu0 %v2454
        %3184 = vmatpush.msra.mxu0 %v2452
        %3185 = vmatmul.f32.gmra.mxu0 %v1768
        %v3186 = vpop.f32.mrf.mxu0
        %v3187 = vadd.f32 %v3167, %v3186
        %3188 = vdwg.mxu0
        %3189 = vmatpush.msra.mxu0 %v2514
        %3190 = vmatpush.msra.mxu0 %v2512
        %3191 = vmatpush.msra.mxu0 %v2510
        %3192 = vmatpush.msra.mxu0 %v2508
        %3193 = vmatpush.msra.mxu0 %v2506
        %3194 = vmatpush.msra.mxu0 %v2504
        %3195 = vmatpush.msra.mxu0 %v2502
        %3196 = vmatpush.msra.mxu0 %v2500
        %3197 = vmatpush.msra.mxu0 %v2498
        %3198 = vmatpush.msra.mxu0 %v2496
        %3199 = vmatpush.msra.mxu0 %v2494
        %3200 = vmatpush.msra.mxu0 %v2492
        %3201 = vmatpush.msra.mxu0 %v2490
        %3202 = vmatpush.msra.mxu0 %v2488
        %3203 = vmatpush.msra.mxu0 %v2486
        %3204 = vmatpush.msra.mxu0 %v2484
        %3205 = vmatmul.f32.gmra.mxu0 %v1788
        %v3206 = vpop.f32.mrf.mxu0
        %v3207 = vadd.f32 %v3187, %v3206
        %3208 = vdwg.mxu0
        %3209 = vmatpush.msra.mxu0 %v2546
        %3210 = vmatpush.msra.mxu0 %v2544
        %3211 = vmatpush.msra.mxu0 %v2542
        %3212 = vmatpush.msra.mxu0 %v2540
        %3213 = vmatpush.msra.mxu0 %v2538
        %3214 = vmatpush.msra.mxu0 %v2536
        %3215 = vmatpush.msra.mxu0 %v2534
        %3216 = vmatpush.msra.mxu0 %v2532
        %3217 = vmatpush.msra.mxu0 %v2530
        %3218 = vmatpush.msra.mxu0 %v2528
        %3219 = vmatpush.msra.mxu0 %v2526
        %3220 = vmatpush.msra.mxu0 %v2524
        %3221 = vmatpush.msra.mxu0 %v2522
        %3222 = vmatpush.msra.mxu0 %v2520
        %3223 = vmatpush.msra.mxu0 %v2518
        %3224 = vmatpush.msra.mxu0 %v2516
        %3225 = vmatmul.f32.gmra.mxu0 %v1813
        %v3226 = vpop.f32.mrf.mxu0
        %v3227 = vadd.f32 %v3207, %v3226
        %3228 = vdwg.mxu0
        %3229 = vmatpush.msra.mxu0 %v2578
        %3230 = vmatpush.msra.mxu0 %v2576
        %3231 = vmatpush.msra.mxu0 %v2574
        %3232 = vmatpush.msra.mxu0 %v2572
        %3233 = vmatpush.msra.mxu0 %v2570
        %3234 = vmatpush.msra.mxu0 %v2568
        %3235 = vmatpush.msra.mxu0 %v2566
        %3236 = vmatpush.msra.mxu0 %v2564
        %3237 = vmatpush.msra.mxu0 %v2562
        %3238 = vmatpush.msra.mxu0 %v2560
        %3239 = vmatpush.msra.mxu0 %v2558
        %3240 = vmatpush.msra.mxu0 %v2556
        %3241 = vmatpush.msra.mxu0 %v2554
        %3242 = vmatpush.msra.mxu0 %v2552
        %3243 = vmatpush.msra.mxu0 %v2550
        %3244 = vmatpush.msra.mxu0 %v2548
        %3245 = vmatmul.f32.gmra.mxu0 %v1833
        %v3246 = vpop.f32.mrf.mxu0
        %v3247 = vadd.f32 %v3227, %v3246
        %3248 = vdwg.mxu0
        %3249 = vmatpush.msra.mxu0 %v2610
        %3250 = vmatpush.msra.mxu0 %v2608
        %3251 = vmatpush.msra.mxu0 %v2606
        %3252 = vmatpush.msra.mxu0 %v2604
        %3253 = vmatpush.msra.mxu0 %v2602
        %3254 = vmatpush.msra.mxu0 %v2600
        %3255 = vmatpush.msra.mxu0 %v2598
        %3256 = vmatpush.msra.mxu0 %v2596
        %3257 = vmatpush.msra.mxu0 %v2594
        %3258 = vmatpush.msra.mxu0 %v2592
        %3259 = vmatpush.msra.mxu0 %v2590
        %3260 = vmatpush.msra.mxu0 %v2588
        %3261 = vmatpush.msra.mxu0 %v2586
        %3262 = vmatpush.msra.mxu0 %v2584
        %3263 = vmatpush.msra.mxu0 %v2582
        %3264 = vmatpush.msra.mxu0 %v2580
        %3265 = vmatmul.f32.gmra.mxu0 %v1853
        %v3266 = vpop.f32.mrf.mxu0
        %v3267 = vadd.f32 %v3247, %v3266
        %3268 = vdwg.mxu0
        %3269 = vmatpush.msra.mxu0 %v2642
        %3270 = vmatpush.msra.mxu0 %v2640
        %3271 = vmatpush.msra.mxu0 %v2638
        %3272 = vmatpush.msra.mxu0 %v2636
        %3273 = vmatpush.msra.mxu0 %v2634
        %3274 = vmatpush.msra.mxu0 %v2632
        %3275 = vmatpush.msra.mxu0 %v2630
        %3276 = vmatpush.msra.mxu0 %v2628
        %3277 = vmatpush.msra.mxu0 %v2626
        %3278 = vmatpush.msra.mxu0 %v2624
        %3279 = vmatpush.msra.mxu0 %v2622
        %3280 = vmatpush.msra.mxu0 %v2620
        %3281 = vmatpush.msra.mxu0 %v2618
        %3282 = vmatpush.msra.mxu0 %v2616
        %3283 = vmatpush.msra.mxu0 %v2614
        %3284 = vmatpush.msra.mxu0 %v2612
        %3285 = vmatmul.f32.gmra.mxu0 %v1873
        %v3286 = vpop.f32.mrf.mxu0
        %v3287 = vadd.f32 %v3267, %v3286
        %3288 = vdwg.mxu0
        %v3289 = vmax.f32 %v2967, 0.0
        %v3290 = vmax.f32 %v3287, 0.0
        %v3291 = vld [vmem:[#allocation12] sm:$0xf]
        %vm3292 = vcmask 64512
        %v3294 = vsel %vm3292, %v3291, 0
        %3296 = vmatpush.msra.mxu0 0.0
        %3297 = vmatpush.msra.mxu0 0.0
        %3298 = vmatpush.msra.mxu0 0.0
        %3299 = vmatpush.msra.mxu0 0.0
        %3300 = vmatpush.msra.mxu0 0.0
        %3301 = vmatpush.msra.mxu0 0.0
        %3302 = vmatpush.msra.mxu0 0.0
        %3303 = vmatpush.msra.mxu0 0.0
        %3304 = vmatpush.msra.mxu0 0.0
        %3305 = vmatpush.msra.mxu0 0.0
        %3306 = vmatpush.msra.mxu0 0.0
        %3307 = vmatpush.msra.mxu0 0.0
        %3308 = vmatpush.msra.mxu0 0.0
        %3309 = vmatpush.msra.mxu0 0.0
        %3310 = vmatpush.msra.mxu0 0.0
        %3311 = vmatpush.msra.mxu0 %v3289
        %3312 = vmatmul.f32.gmra.mxu0 %v3294
        %v3313 = vpop.f32.mrf.mxu0
        %v3314 = vadd.f32 0.0, %v3313
        %3315 = vdwg.mxu0
        %3316 = vmatpush.msra.mxu0 0.0
        %3317 = vmatpush.msra.mxu0 0.0
        %3318 = vmatpush.msra.mxu0 0.0
        %3319 = vmatpush.msra.mxu0 0.0
        %3320 = vmatpush.msra.mxu0 0.0
        %3321 = vmatpush.msra.mxu0 0.0
        %3322 = vmatpush.msra.mxu0 0.0
        %3323 = vmatpush.msra.mxu0 0.0
        %3324 = vmatpush.msra.mxu0 0.0
        %3325 = vmatpush.msra.mxu0 0.0
        %3326 = vmatpush.msra.mxu0 0.0
        %3327 = vmatpush.msra.mxu0 0.0
        %3328 = vmatpush.msra.mxu0 0.0
        %3329 = vmatpush.msra.mxu0 0.0
        %3330 = vmatpush.msra.mxu0 0.0
        %3331 = vmatpush.msra.mxu0 %v3290
        %3332 = vmatmul.f32.gmra.mxu0 %v3294
        %v3333 = vpop.f32.mrf.mxu0
        %v3334 = vadd.f32 0.0, %v3333
        %3335 = vdwg.mxu0
        %s3336 = scalar_lea.vmem [#allocation12], 4
        %v3337 = vld [vmem:[%s3336] sm:$0xf]
        %v3339 = vsel %vm3292, %v3337, 0
        %3341 = vmatpush.msra.mxu0 0.0
        %3342 = vmatpush.msra.mxu0 0.0
        %3343 = vmatpush.msra.mxu0 0.0
        %3344 = vmatpush.msra.mxu0 0.0
        %3345 = vmatpush.msra.mxu0 0.0
        %3346 = vmatpush.msra.mxu0 0.0
        %3347 = vmatpush.msra.mxu0 0.0
        %3348 = vmatpush.msra.mxu0 0.0
        %3349 = vmatpush.msra.mxu0 0.0
        %3350 = vmatpush.msra.mxu0 0.0
        %3351 = vmatpush.msra.mxu0 0.0
        %3352 = vmatpush.msra.mxu0 0.0
        %3353 = vmatpush.msra.mxu0 0.0
        %3354 = vmatpush.msra.mxu0 0.0
        %3355 = vmatpush.msra.mxu0 0.0
        %3356 = vmatpush.msra.mxu0 %v3289
        %3357 = vmatmul.f32.gmra.mxu0 %v3339
        %v3358 = vpop.f32.mrf.mxu0
        %v3359 = vadd.f32 0.0, %v3358
        %3360 = vdwg.mxu0
        %3361 = vmatpush.msra.mxu0 0.0
        %3362 = vmatpush.msra.mxu0 0.0
        %3363 = vmatpush.msra.mxu0 0.0
        %3364 = vmatpush.msra.mxu0 0.0
        %3365 = vmatpush.msra.mxu0 0.0
        %3366 = vmatpush.msra.mxu0 0.0
        %3367 = vmatpush.msra.mxu0 0.0
        %3368 = vmatpush.msra.mxu0 0.0
        %3369 = vmatpush.msra.mxu0 0.0
        %3370 = vmatpush.msra.mxu0 0.0
        %3371 = vmatpush.msra.mxu0 0.0
        %3372 = vmatpush.msra.mxu0 0.0
        %3373 = vmatpush.msra.mxu0 0.0
        %3374 = vmatpush.msra.mxu0 0.0
        %3375 = vmatpush.msra.mxu0 0.0
        %3376 = vmatpush.msra.mxu0 %v3290
        %3377 = vmatmul.f32.gmra.mxu0 %v3339
        %v3378 = vpop.f32.mrf.mxu0
        %v3379 = vadd.f32 0.0, %v3378
        %3380 = vdwg.mxu0
        %s3381 = scalar_lea.vmem [#allocation12], 8
        %v3382 = vld [vmem:[%s3381] sm:$0xf]
        %v3384 = vsel %vm3292, %v3382, 0
        %3386 = vmatpush.msra.mxu0 0.0
        %3387 = vmatpush.msra.mxu0 0.0
        %3388 = vmatpush.msra.mxu0 0.0
        %3389 = vmatpush.msra.mxu0 0.0
        %3390 = vmatpush.msra.mxu0 0.0
        %3391 = vmatpush.msra.mxu0 0.0
        %3392 = vmatpush.msra.mxu0 0.0
        %3393 = vmatpush.msra.mxu0 0.0
        %3394 = vmatpush.msra.mxu0 0.0
        %3395 = vmatpush.msra.mxu0 0.0
        %3396 = vmatpush.msra.mxu0 0.0
        %3397 = vmatpush.msra.mxu0 0.0
        %3398 = vmatpush.msra.mxu0 0.0
        %3399 = vmatpush.msra.mxu0 0.0
        %3400 = vmatpush.msra.mxu0 0.0
        %3401 = vmatpush.msra.mxu0 %v3289
        %3402 = vmatmul.f32.gmra.mxu0 %v3384
        %v3403 = vpop.f32.mrf.mxu0
        %v3404 = vadd.f32 0.0, %v3403
        %3405 = vdwg.mxu0
        %3406 = vmatpush.msra.mxu0 0.0
        %3407 = vmatpush.msra.mxu0 0.0
        %3408 = vmatpush.msra.mxu0 0.0
        %3409 = vmatpush.msra.mxu0 0.0
        %3410 = vmatpush.msra.mxu0 0.0
        %3411 = vmatpush.msra.mxu0 0.0
        %3412 = vmatpush.msra.mxu0 0.0
        %3413 = vmatpush.msra.mxu0 0.0
        %3414 = vmatpush.msra.mxu0 0.0
        %3415 = vmatpush.msra.mxu0 0.0
        %3416 = vmatpush.msra.mxu0 0.0
        %3417 = vmatpush.msra.mxu0 0.0
        %3418 = vmatpush.msra.mxu0 0.0
        %3419 = vmatpush.msra.mxu0 0.0
        %3420 = vmatpush.msra.mxu0 0.0
        %3421 = vmatpush.msra.mxu0 %v3290
        %3422 = vmatmul.f32.gmra.mxu0 %v3384
        %v3423 = vpop.f32.mrf.mxu0
        %v3424 = vadd.f32 0.0, %v3423
        %3425 = vdwg.mxu0
        %s3426 = scalar_lea.vmem [#allocation12], 12
        %v3427 = vld [vmem:[%s3426] sm:$0xf]
        %v3429 = vsel %vm3292, %v3427, 0
        %3431 = vmatpush.msra.mxu0 0.0
        %3432 = vmatpush.msra.mxu0 0.0
        %3433 = vmatpush.msra.mxu0 0.0
        %3434 = vmatpush.msra.mxu0 0.0
        %3435 = vmatpush.msra.mxu0 0.0
        %3436 = vmatpush.msra.mxu0 0.0
        %3437 = vmatpush.msra.mxu0 0.0
        %3438 = vmatpush.msra.mxu0 0.0
        %3439 = vmatpush.msra.mxu0 0.0
        %3440 = vmatpush.msra.mxu0 0.0
        %3441 = vmatpush.msra.mxu0 0.0
        %3442 = vmatpush.msra.mxu0 0.0
        %3443 = vmatpush.msra.mxu0 0.0
        %3444 = vmatpush.msra.mxu0 0.0
        %3445 = vmatpush.msra.mxu0 0.0
        %3446 = vmatpush.msra.mxu0 %v3289
        %3447 = vmatmul.f32.gmra.mxu0 %v3429
        %v3448 = vpop.f32.mrf.mxu0
        %v3449 = vadd.f32 0.0, %v3448
        %3450 = vdwg.mxu0
        %3451 = vmatpush.msra.mxu0 0.0
        %3452 = vmatpush.msra.mxu0 0.0
        %3453 = vmatpush.msra.mxu0 0.0
        %3454 = vmatpush.msra.mxu0 0.0
        %3455 = vmatpush.msra.mxu0 0.0
        %3456 = vmatpush.msra.mxu0 0.0
        %3457 = vmatpush.msra.mxu0 0.0
        %3458 = vmatpush.msra.mxu0 0.0
        %3459 = vmatpush.msra.mxu0 0.0
        %3460 = vmatpush.msra.mxu0 0.0
        %3461 = vmatpush.msra.mxu0 0.0
        %3462 = vmatpush.msra.mxu0 0.0
        %3463 = vmatpush.msra.mxu0 0.0
        %3464 = vmatpush.msra.mxu0 0.0
        %3465 = vmatpush.msra.mxu0 0.0
        %3466 = vmatpush.msra.mxu0 %v3290
        %3467 = vmatmul.f32.gmra.mxu0 %v3429
        %v3468 = vpop.f32.mrf.mxu0
        %v3469 = vadd.f32 0.0, %v3468
        %3470 = vdwg.mxu0
        %v3471 = vld [vmem:[#allocation13] sm:$0xff]
        %v3472 = vld [vmem:[#allocation13 + $0x8] sm:$0xff]
        %v3473 = vld [vmem:[#allocation13 + $0x10] sm:$0xff]
        %v3474 = vld [vmem:[#allocation13 + $0x18] sm:$0xff]
        %v3475 = vld [vmem:[#allocation13 + $0x20] sm:$0xff]
        %v3476 = vld [vmem:[#allocation13 + $0x28] sm:$0xff]
        %v3477 = vld [vmem:[#allocation13 + $0x30] sm:$0xff]
        %v3478 = vld [vmem:[#allocation13 + $0x38] sm:$0xff]
        %v3479 = vld [vmem:[#allocation13 + $0x40] sm:$0xff]
        %v3480 = vld [vmem:[#allocation13 + $0x48] sm:$0xff]
        %v3481 = vld [vmem:[#allocation13 + $0x50] sm:$0xff]
        %v3482 = vld [vmem:[#allocation13 + $0x58] sm:$0xff]
        %v3483 = vld [vmem:[#allocation13 + $0x60] sm:$0xff]
        %v3484 = vld [vmem:[#allocation13 + $0x68] sm:$0xff]
        %v3485 = vld [vmem:[#allocation13 + $0x70] sm:$0xff]
        %v3486 = vld [vmem:[#allocation13 + $0x78] sm:$0xff]
        %v3487 = vld [vmem:[#allocation13 + $0x80] sm:$0xff]
        %v3488 = vld [vmem:[#allocation13 + $0x88] sm:$0xff]
        %v3489 = vld [vmem:[#allocation13 + $0x90] sm:$0xff]
        %v3490 = vld [vmem:[#allocation13 + $0x98] sm:$0xff]
        %v3491 = vld [vmem:[#allocation13 + $0xa0] sm:$0xff]
        %v3492 = vld [vmem:[#allocation13 + $0xa8] sm:$0xff]
        %v3493 = vld [vmem:[#allocation13 + $0xb0] sm:$0xff]
        %v3494 = vld [vmem:[#allocation13 + $0xb8] sm:$0xff]
        %v3495 = vld [vmem:[#allocation13 + $0xc0] sm:$0xff]
        %v3496 = vld [vmem:[#allocation13 + $0xc8] sm:$0xff]
        %v3497 = vld [vmem:[#allocation13 + $0xd0] sm:$0xff]
        %v3498 = vld [vmem:[#allocation13 + $0xd8] sm:$0xff]
        %v3499 = vld [vmem:[#allocation13 + $0xe0] sm:$0xff]
        %v3500 = vld [vmem:[#allocation13 + $0xe8] sm:$0xff]
        %v3501 = vld [vmem:[#allocation13 + $0xf0] sm:$0xff]
        %v3502 = vld [vmem:[#allocation13 + $0xf8] sm:$0xff]
        %v3503 = vld [vmem:[#allocation13 + $0x100] sm:$0xff]
        %v3504 = vld [vmem:[#allocation13 + $0x108] sm:$0xff]
        %v3505 = vld [vmem:[#allocation13 + $0x110] sm:$0xff]
        %v3506 = vld [vmem:[#allocation13 + $0x118] sm:$0xff]
        %v3507 = vld [vmem:[#allocation13 + $0x120] sm:$0xff]
        %v3508 = vld [vmem:[#allocation13 + $0x128] sm:$0xff]
        %v3509 = vld [vmem:[#allocation13 + $0x130] sm:$0xff]
        %v3510 = vld [vmem:[#allocation13 + $0x138] sm:$0xff]
        %v3511 = vld [vmem:[#allocation13 + $0x140] sm:$0xff]
        %v3512 = vld [vmem:[#allocation13 + $0x148] sm:$0xff]
        %v3513 = vld [vmem:[#allocation13 + $0x150] sm:$0xff]
        %v3514 = vld [vmem:[#allocation13 + $0x158] sm:$0xff]
        %v3515 = vld [vmem:[#allocation13 + $0x160] sm:$0xff]
        %v3516 = vld [vmem:[#allocation13 + $0x168] sm:$0xff]
        %v3517 = vld [vmem:[#allocation13 + $0x170] sm:$0xff]
        %v3518 = vld [vmem:[#allocation13 + $0x178] sm:$0xff]
        %v3519 = vld [vmem:[#allocation13 + $0x180] sm:$0xff]
        %v3520 = vld [vmem:[#allocation13 + $0x188] sm:$0xff]
        %v3521 = vld [vmem:[#allocation13 + $0x190] sm:$0xff]
        %v3522 = vld [vmem:[#allocation13 + $0x198] sm:$0xff]
        %v3523 = vld [vmem:[#allocation13 + $0x1a0] sm:$0xff]
        %v3524 = vld [vmem:[#allocation13 + $0x1a8] sm:$0xff]
        %v3525 = vld [vmem:[#allocation13 + $0x1b0] sm:$0xff]
        %v3526 = vld [vmem:[#allocation13 + $0x1b8] sm:$0xff]
        %v3527 = vld [vmem:[#allocation13 + $0x1c0] sm:$0xff]
        %v3528 = vld [vmem:[#allocation13 + $0x1c8] sm:$0xff]
        %v3529 = vld [vmem:[#allocation13 + $0x1d0] sm:$0xff]
        %v3530 = vld [vmem:[#allocation13 + $0x1d8] sm:$0xff]
        %v3531 = vld [vmem:[#allocation13 + $0x1e0] sm:$0xff]
        %v3532 = vld [vmem:[#allocation13 + $0x1e8] sm:$0xff]
        %v3533 = vld [vmem:[#allocation13 + $0x1f0] sm:$0xff]
        %v3534 = vld [vmem:[#allocation13 + $0x1f8] sm:$0xff]
        %v3535 = vld [vmem:[#allocation13 + $0x200] sm:$0xff]
        %v3536 = vld [vmem:[#allocation13 + $0x208] sm:$0xff]
        %v3537 = vld [vmem:[#allocation13 + $0x210] sm:$0xff]
        %v3538 = vld [vmem:[#allocation13 + $0x218] sm:$0xff]
        %v3539 = vld [vmem:[#allocation13 + $0x220] sm:$0xff]
        %v3540 = vld [vmem:[#allocation13 + $0x228] sm:$0xff]
        %v3541 = vld [vmem:[#allocation13 + $0x230] sm:$0xff]
        %v3542 = vld [vmem:[#allocation13 + $0x238] sm:$0xff]
        %v3543 = vld [vmem:[#allocation13 + $0x240] sm:$0xff]
        %v3544 = vld [vmem:[#allocation13 + $0x248] sm:$0xff]
        %v3545 = vld [vmem:[#allocation13 + $0x250] sm:$0xff]
        %v3546 = vld [vmem:[#allocation13 + $0x258] sm:$0xff]
        %v3547 = vld [vmem:[#allocation13 + $0x260] sm:$0xff]
        %v3548 = vld [vmem:[#allocation13 + $0x268] sm:$0xff]
        %v3549 = vld [vmem:[#allocation13 + $0x270] sm:$0xff]
        %v3550 = vld [vmem:[#allocation13 + $0x278] sm:$0xff]
        %v3551 = vld [vmem:[#allocation13 + $0x280] sm:$0xff]
        %v3552 = vld [vmem:[#allocation13 + $0x288] sm:$0xff]
        %v3553 = vld [vmem:[#allocation13 + $0x290] sm:$0xff]
        %v3554 = vld [vmem:[#allocation13 + $0x298] sm:$0xff]
        %v3555 = vld [vmem:[#allocation13 + $0x2a0] sm:$0xff]
        %v3556 = vld [vmem:[#allocation13 + $0x2a8] sm:$0xff]
        %v3557 = vld [vmem:[#allocation13 + $0x2b0] sm:$0xff]
        %v3558 = vld [vmem:[#allocation13 + $0x2b8] sm:$0xff]
        %v3559 = vld [vmem:[#allocation13 + $0x2c0] sm:$0xff]
        %v3560 = vld [vmem:[#allocation13 + $0x2c8] sm:$0xff]
        %v3561 = vld [vmem:[#allocation13 + $0x2d0] sm:$0xff]
        %v3562 = vld [vmem:[#allocation13 + $0x2d8] sm:$0xff]
        %v3563 = vld [vmem:[#allocation13 + $0x2e0] sm:$0xff]
        %v3564 = vld [vmem:[#allocation13 + $0x2e8] sm:$0xff]
        %v3565 = vld [vmem:[#allocation13 + $0x2f0] sm:$0xff]
        %v3566 = vld [vmem:[#allocation13 + $0x2f8] sm:$0xff]
        %v3567 = vld [vmem:[#allocation13 + $0x300] sm:$0xff]
        %v3568 = vld [vmem:[#allocation13 + $0x308] sm:$0xff]
        %v3569 = vld [vmem:[#allocation13 + $0x310] sm:$0xff]
        %v3570 = vld [vmem:[#allocation13 + $0x318] sm:$0xff]
        %v3571 = vld [vmem:[#allocation13 + $0x320] sm:$0xff]
        %v3572 = vld [vmem:[#allocation13 + $0x328] sm:$0xff]
        %v3573 = vld [vmem:[#allocation13 + $0x330] sm:$0xff]
        %v3574 = vld [vmem:[#allocation13 + $0x338] sm:$0xff]
        %v3575 = vld [vmem:[#allocation13 + $0x340] sm:$0xff]
        %v3576 = vld [vmem:[#allocation13 + $0x348] sm:$0xff]
        %v3577 = vld [vmem:[#allocation13 + $0x350] sm:$0xff]
        %v3578 = vld [vmem:[#allocation13 + $0x358] sm:$0xff]
        %v3579 = vld [vmem:[#allocation13 + $0x360] sm:$0xff]
        %v3580 = vld [vmem:[#allocation13 + $0x368] sm:$0xff]
        %v3581 = vld [vmem:[#allocation13 + $0x370] sm:$0xff]
        %v3582 = vld [vmem:[#allocation13 + $0x378] sm:$0xff]
        %v3583 = vld [vmem:[#allocation13 + $0x380] sm:$0xff]
        %v3584 = vld [vmem:[#allocation13 + $0x388] sm:$0xff]
        %v3585 = vld [vmem:[#allocation13 + $0x390] sm:$0xff]
        %v3586 = vld [vmem:[#allocation13 + $0x398] sm:$0xff]
        %v3587 = vld [vmem:[#allocation13 + $0x3a0] sm:$0xff]
        %v3588 = vld [vmem:[#allocation13 + $0x3a8] sm:$0xff]
        %v3589 = vld [vmem:[#allocation13 + $0x3b0] sm:$0xff]
        %v3590 = vld [vmem:[#allocation13 + $0x3b8] sm:$0xff]
        %v3591 = vld [vmem:[#allocation13 + $0x3c0] sm:$0xff]
        %v3592 = vld [vmem:[#allocation13 + $0x3c8] sm:$0xff]
        %v3593 = vld [vmem:[#allocation13 + $0x3d0] sm:$0xff]
        %v3594 = vld [vmem:[#allocation13 + $0x3d8] sm:$0xff]
        %v3595 = vld [vmem:[#allocation13 + $0x3e0] sm:$0xff]
        %v3596 = vld [vmem:[#allocation13 + $0x3e8] sm:$0xff]
        %v3597 = vld [vmem:[#allocation13 + $0x3f0] sm:$0xff]
        %v3598 = vld [vmem:[#allocation13 + $0x3f8] sm:$0xff]
        %v3599 = vunpack.c.l.bf16 %v3471
        %v3600 = vunpack.c.h.bf16 %v3471
        %v3601 = vunpack.c.l.bf16 %v3472
        %v3602 = vunpack.c.h.bf16 %v3472
        %v3603 = vunpack.c.l.bf16 %v3473
        %v3604 = vunpack.c.h.bf16 %v3473
        %v3605 = vunpack.c.l.bf16 %v3474
        %v3606 = vunpack.c.h.bf16 %v3474
        %v3607 = vunpack.c.l.bf16 %v3475
        %v3608 = vunpack.c.h.bf16 %v3475
        %v3609 = vunpack.c.l.bf16 %v3476
        %v3610 = vunpack.c.h.bf16 %v3476
        %v3611 = vunpack.c.l.bf16 %v3477
        %v3612 = vunpack.c.h.bf16 %v3477
        %v3613 = vunpack.c.l.bf16 %v3478
        %v3614 = vunpack.c.h.bf16 %v3478
        %v3615 = vunpack.c.l.bf16 %v3479
        %v3616 = vunpack.c.h.bf16 %v3479
        %v3617 = vunpack.c.l.bf16 %v3480
        %v3618 = vunpack.c.h.bf16 %v3480
        %v3619 = vunpack.c.l.bf16 %v3481
        %v3620 = vunpack.c.h.bf16 %v3481
        %v3621 = vunpack.c.l.bf16 %v3482
        %v3622 = vunpack.c.h.bf16 %v3482
        %v3623 = vunpack.c.l.bf16 %v3483
        %v3624 = vunpack.c.h.bf16 %v3483
        %v3625 = vunpack.c.l.bf16 %v3484
        %v3626 = vunpack.c.h.bf16 %v3484
        %v3627 = vunpack.c.l.bf16 %v3485
        %v3628 = vunpack.c.h.bf16 %v3485
        %v3629 = vunpack.c.l.bf16 %v3486
        %v3630 = vunpack.c.h.bf16 %v3486
        %v3631 = vunpack.c.l.bf16 %v3487
        %v3632 = vunpack.c.h.bf16 %v3487
        %v3633 = vunpack.c.l.bf16 %v3488
        %v3634 = vunpack.c.h.bf16 %v3488
        %v3635 = vunpack.c.l.bf16 %v3489
        %v3636 = vunpack.c.h.bf16 %v3489
        %v3637 = vunpack.c.l.bf16 %v3490
        %v3638 = vunpack.c.h.bf16 %v3490
        %v3639 = vunpack.c.l.bf16 %v3491
        %v3640 = vunpack.c.h.bf16 %v3491
        %v3641 = vunpack.c.l.bf16 %v3492
        %v3642 = vunpack.c.h.bf16 %v3492
        %v3643 = vunpack.c.l.bf16 %v3493
        %v3644 = vunpack.c.h.bf16 %v3493
        %v3645 = vunpack.c.l.bf16 %v3494
        %v3646 = vunpack.c.h.bf16 %v3494
        %v3647 = vunpack.c.l.bf16 %v3495
        %v3648 = vunpack.c.h.bf16 %v3495
        %v3649 = vunpack.c.l.bf16 %v3496
        %v3650 = vunpack.c.h.bf16 %v3496
        %v3651 = vunpack.c.l.bf16 %v3497
        %v3652 = vunpack.c.h.bf16 %v3497
        %v3653 = vunpack.c.l.bf16 %v3498
        %v3654 = vunpack.c.h.bf16 %v3498
        %v3655 = vunpack.c.l.bf16 %v3499
        %v3656 = vunpack.c.h.bf16 %v3499
        %v3657 = vunpack.c.l.bf16 %v3500
        %v3658 = vunpack.c.h.bf16 %v3500
        %v3659 = vunpack.c.l.bf16 %v3501
        %v3660 = vunpack.c.h.bf16 %v3501
        %v3661 = vunpack.c.l.bf16 %v3502
        %v3662 = vunpack.c.h.bf16 %v3502
        %v3663 = vunpack.c.l.bf16 %v3503
        %v3664 = vunpack.c.h.bf16 %v3503
        %v3665 = vunpack.c.l.bf16 %v3504
        %v3666 = vunpack.c.h.bf16 %v3504
        %v3667 = vunpack.c.l.bf16 %v3505
        %v3668 = vunpack.c.h.bf16 %v3505
        %v3669 = vunpack.c.l.bf16 %v3506
        %v3670 = vunpack.c.h.bf16 %v3506
        %v3671 = vunpack.c.l.bf16 %v3507
        %v3672 = vunpack.c.h.bf16 %v3507
        %v3673 = vunpack.c.l.bf16 %v3508
        %v3674 = vunpack.c.h.bf16 %v3508
        %v3675 = vunpack.c.l.bf16 %v3509
        %v3676 = vunpack.c.h.bf16 %v3509
        %v3677 = vunpack.c.l.bf16 %v3510
        %v3678 = vunpack.c.h.bf16 %v3510
        %v3679 = vunpack.c.l.bf16 %v3511
        %v3680 = vunpack.c.h.bf16 %v3511
        %v3681 = vunpack.c.l.bf16 %v3512
        %v3682 = vunpack.c.h.bf16 %v3512
        %v3683 = vunpack.c.l.bf16 %v3513
        %v3684 = vunpack.c.h.bf16 %v3513
        %v3685 = vunpack.c.l.bf16 %v3514
        %v3686 = vunpack.c.h.bf16 %v3514
        %v3687 = vunpack.c.l.bf16 %v3515
        %v3688 = vunpack.c.h.bf16 %v3515
        %v3689 = vunpack.c.l.bf16 %v3516
        %v3690 = vunpack.c.h.bf16 %v3516
        %v3691 = vunpack.c.l.bf16 %v3517
        %v3692 = vunpack.c.h.bf16 %v3517
        %v3693 = vunpack.c.l.bf16 %v3518
        %v3694 = vunpack.c.h.bf16 %v3518
        %v3695 = vunpack.c.l.bf16 %v3519
        %v3696 = vunpack.c.h.bf16 %v3519
        %v3697 = vunpack.c.l.bf16 %v3520
        %v3698 = vunpack.c.h.bf16 %v3520
        %v3699 = vunpack.c.l.bf16 %v3521
        %v3700 = vunpack.c.h.bf16 %v3521
        %v3701 = vunpack.c.l.bf16 %v3522
        %v3702 = vunpack.c.h.bf16 %v3522
        %v3703 = vunpack.c.l.bf16 %v3523
        %v3704 = vunpack.c.h.bf16 %v3523
        %v3705 = vunpack.c.l.bf16 %v3524
        %v3706 = vunpack.c.h.bf16 %v3524
        %v3707 = vunpack.c.l.bf16 %v3525
        %v3708 = vunpack.c.h.bf16 %v3525
        %v3709 = vunpack.c.l.bf16 %v3526
        %v3710 = vunpack.c.h.bf16 %v3526
        %v3711 = vunpack.c.l.bf16 %v3527
        %v3712 = vunpack.c.h.bf16 %v3527
        %v3713 = vunpack.c.l.bf16 %v3528
        %v3714 = vunpack.c.h.bf16 %v3528
        %v3715 = vunpack.c.l.bf16 %v3529
        %v3716 = vunpack.c.h.bf16 %v3529
        %v3717 = vunpack.c.l.bf16 %v3530
        %v3718 = vunpack.c.h.bf16 %v3530
        %v3719 = vunpack.c.l.bf16 %v3531
        %v3720 = vunpack.c.h.bf16 %v3531
        %v3721 = vunpack.c.l.bf16 %v3532
        %v3722 = vunpack.c.h.bf16 %v3532
        %v3723 = vunpack.c.l.bf16 %v3533
        %v3724 = vunpack.c.h.bf16 %v3533
        %v3725 = vunpack.c.l.bf16 %v3534
        %v3726 = vunpack.c.h.bf16 %v3534
        %v3727 = vunpack.c.l.bf16 %v3535
        %v3728 = vunpack.c.h.bf16 %v3535
        %v3729 = vunpack.c.l.bf16 %v3536
        %v3730 = vunpack.c.h.bf16 %v3536
        %v3731 = vunpack.c.l.bf16 %v3537
        %v3732 = vunpack.c.h.bf16 %v3537
        %v3733 = vunpack.c.l.bf16 %v3538
        %v3734 = vunpack.c.h.bf16 %v3538
        %v3735 = vunpack.c.l.bf16 %v3539
        %v3736 = vunpack.c.h.bf16 %v3539
        %v3737 = vunpack.c.l.bf16 %v3540
        %v3738 = vunpack.c.h.bf16 %v3540
        %v3739 = vunpack.c.l.bf16 %v3541
        %v3740 = vunpack.c.h.bf16 %v3541
        %v3741 = vunpack.c.l.bf16 %v3542
        %v3742 = vunpack.c.h.bf16 %v3542
        %v3743 = vunpack.c.l.bf16 %v3543
        %v3744 = vunpack.c.h.bf16 %v3543
        %v3745 = vunpack.c.l.bf16 %v3544
        %v3746 = vunpack.c.h.bf16 %v3544
        %v3747 = vunpack.c.l.bf16 %v3545
        %v3748 = vunpack.c.h.bf16 %v3545
        %v3749 = vunpack.c.l.bf16 %v3546
        %v3750 = vunpack.c.h.bf16 %v3546
        %v3751 = vunpack.c.l.bf16 %v3547
        %v3752 = vunpack.c.h.bf16 %v3547
        %v3753 = vunpack.c.l.bf16 %v3548
        %v3754 = vunpack.c.h.bf16 %v3548
        %v3755 = vunpack.c.l.bf16 %v3549
        %v3756 = vunpack.c.h.bf16 %v3549
        %v3757 = vunpack.c.l.bf16 %v3550
        %v3758 = vunpack.c.h.bf16 %v3550
        %v3759 = vunpack.c.l.bf16 %v3551
        %v3760 = vunpack.c.h.bf16 %v3551
        %v3761 = vunpack.c.l.bf16 %v3552
        %v3762 = vunpack.c.h.bf16 %v3552
        %v3763 = vunpack.c.l.bf16 %v3553
        %v3764 = vunpack.c.h.bf16 %v3553
        %v3765 = vunpack.c.l.bf16 %v3554
        %v3766 = vunpack.c.h.bf16 %v3554
        %v3767 = vunpack.c.l.bf16 %v3555
        %v3768 = vunpack.c.h.bf16 %v3555
        %v3769 = vunpack.c.l.bf16 %v3556
        %v3770 = vunpack.c.h.bf16 %v3556
        %v3771 = vunpack.c.l.bf16 %v3557
        %v3772 = vunpack.c.h.bf16 %v3557
        %v3773 = vunpack.c.l.bf16 %v3558
        %v3774 = vunpack.c.h.bf16 %v3558
        %v3775 = vunpack.c.l.bf16 %v3559
        %v3776 = vunpack.c.h.bf16 %v3559
        %v3777 = vunpack.c.l.bf16 %v3560
        %v3778 = vunpack.c.h.bf16 %v3560
        %v3779 = vunpack.c.l.bf16 %v3561
        %v3780 = vunpack.c.h.bf16 %v3561
        %v3781 = vunpack.c.l.bf16 %v3562
        %v3782 = vunpack.c.h.bf16 %v3562
        %v3783 = vunpack.c.l.bf16 %v3563
        %v3784 = vunpack.c.h.bf16 %v3563
        %v3785 = vunpack.c.l.bf16 %v3564
        %v3786 = vunpack.c.h.bf16 %v3564
        %v3787 = vunpack.c.l.bf16 %v3565
        %v3788 = vunpack.c.h.bf16 %v3565
        %v3789 = vunpack.c.l.bf16 %v3566
        %v3790 = vunpack.c.h.bf16 %v3566
        %v3791 = vunpack.c.l.bf16 %v3567
        %v3792 = vunpack.c.h.bf16 %v3567
        %v3793 = vunpack.c.l.bf16 %v3568
        %v3794 = vunpack.c.h.bf16 %v3568
        %v3795 = vunpack.c.l.bf16 %v3569
        %v3796 = vunpack.c.h.bf16 %v3569
        %v3797 = vunpack.c.l.bf16 %v3570
        %v3798 = vunpack.c.h.bf16 %v3570
        %v3799 = vunpack.c.l.bf16 %v3571
        %v3800 = vunpack.c.h.bf16 %v3571
        %v3801 = vunpack.c.l.bf16 %v3572
        %v3802 = vunpack.c.h.bf16 %v3572
        %v3803 = vunpack.c.l.bf16 %v3573
        %v3804 = vunpack.c.h.bf16 %v3573
        %v3805 = vunpack.c.l.bf16 %v3574
        %v3806 = vunpack.c.h.bf16 %v3574
        %v3807 = vunpack.c.l.bf16 %v3575
        %v3808 = vunpack.c.h.bf16 %v3575
        %v3809 = vunpack.c.l.bf16 %v3576
        %v3810 = vunpack.c.h.bf16 %v3576
        %v3811 = vunpack.c.l.bf16 %v3577
        %v3812 = vunpack.c.h.bf16 %v3577
        %v3813 = vunpack.c.l.bf16 %v3578
        %v3814 = vunpack.c.h.bf16 %v3578
        %v3815 = vunpack.c.l.bf16 %v3579
        %v3816 = vunpack.c.h.bf16 %v3579
        %v3817 = vunpack.c.l.bf16 %v3580
        %v3818 = vunpack.c.h.bf16 %v3580
        %v3819 = vunpack.c.l.bf16 %v3581
        %v3820 = vunpack.c.h.bf16 %v3581
        %v3821 = vunpack.c.l.bf16 %v3582
        %v3822 = vunpack.c.h.bf16 %v3582
        %v3823 = vunpack.c.l.bf16 %v3583
        %v3824 = vunpack.c.h.bf16 %v3583
        %v3825 = vunpack.c.l.bf16 %v3584
        %v3826 = vunpack.c.h.bf16 %v3584
        %v3827 = vunpack.c.l.bf16 %v3585
        %v3828 = vunpack.c.h.bf16 %v3585
        %v3829 = vunpack.c.l.bf16 %v3586
        %v3830 = vunpack.c.h.bf16 %v3586
        %v3831 = vunpack.c.l.bf16 %v3587
        %v3832 = vunpack.c.h.bf16 %v3587
        %v3833 = vunpack.c.l.bf16 %v3588
        %v3834 = vunpack.c.h.bf16 %v3588
        %v3835 = vunpack.c.l.bf16 %v3589
        %v3836 = vunpack.c.h.bf16 %v3589
        %v3837 = vunpack.c.l.bf16 %v3590
        %v3838 = vunpack.c.h.bf16 %v3590
        %v3839 = vunpack.c.l.bf16 %v3591
        %v3840 = vunpack.c.h.bf16 %v3591
        %v3841 = vunpack.c.l.bf16 %v3592
        %v3842 = vunpack.c.h.bf16 %v3592
        %v3843 = vunpack.c.l.bf16 %v3593
        %v3844 = vunpack.c.h.bf16 %v3593
        %v3845 = vunpack.c.l.bf16 %v3594
        %v3846 = vunpack.c.h.bf16 %v3594
        %v3847 = vunpack.c.l.bf16 %v3595
        %v3848 = vunpack.c.h.bf16 %v3595
        %v3849 = vunpack.c.l.bf16 %v3596
        %v3850 = vunpack.c.h.bf16 %v3596
        %v3851 = vunpack.c.l.bf16 %v3597
        %v3852 = vunpack.c.h.bf16 %v3597
        %v3853 = vunpack.c.l.bf16 %v3598
        %v3854 = vunpack.c.h.bf16 %v3598
        %v3855 = vld [vmem:[#allocation15] sm:$0x3]
        %v3857 = vperm.slane %v3855, 0
        %v3858 = vperm.slane %v3855, 1
        %3861 = vmatpush.msra.mxu0 %v3629
        %3862 = vmatpush.msra.mxu0 %v3627
        %3863 = vmatpush.msra.mxu0 %v3625
        %3864 = vmatpush.msra.mxu0 %v3623
        %3865 = vmatpush.msra.mxu0 %v3621
        %3866 = vmatpush.msra.mxu0 %v3619
        %3867 = vmatpush.msra.mxu0 %v3617
        %3868 = vmatpush.msra.mxu0 %v3615
        %3869 = vmatpush.msra.mxu0 %v3613
        %3870 = vmatpush.msra.mxu0 %v3611
        %3871 = vmatpush.msra.mxu0 %v3609
        %3872 = vmatpush.msra.mxu0 %v3607
        %3873 = vmatpush.msra.mxu0 %v3605
        %3874 = vmatpush.msra.mxu0 %v3603
        %3875 = vmatpush.msra.mxu0 %v3601
        %3876 = vmatpush.msra.mxu0 %v3599
        %3877 = vmatmul.f32.gmra.mxu0 %v3314
        %v3878 = vpop.f32.mrf.mxu0
        %v3879 = vadd.f32 %v3857, %v3878
        %3880 = vdwg.mxu0
        %3881 = vmatpush.msra.mxu0 %v3661
        %3882 = vmatpush.msra.mxu0 %v3659
        %3883 = vmatpush.msra.mxu0 %v3657
        %3884 = vmatpush.msra.mxu0 %v3655
        %3885 = vmatpush.msra.mxu0 %v3653
        %3886 = vmatpush.msra.mxu0 %v3651
        %3887 = vmatpush.msra.mxu0 %v3649
        %3888 = vmatpush.msra.mxu0 %v3647
        %3889 = vmatpush.msra.mxu0 %v3645
        %3890 = vmatpush.msra.mxu0 %v3643
        %3891 = vmatpush.msra.mxu0 %v3641
        %3892 = vmatpush.msra.mxu0 %v3639
        %3893 = vmatpush.msra.mxu0 %v3637
        %3894 = vmatpush.msra.mxu0 %v3635
        %3895 = vmatpush.msra.mxu0 %v3633
        %3896 = vmatpush.msra.mxu0 %v3631
        %3897 = vmatmul.f32.gmra.mxu0 %v3334
        %v3898 = vpop.f32.mrf.mxu0
        %v3899 = vadd.f32 %v3879, %v3898
        %3900 = vdwg.mxu0
        %3901 = vmatpush.msra.mxu0 %v3693
        %3902 = vmatpush.msra.mxu0 %v3691
        %3903 = vmatpush.msra.mxu0 %v3689
        %3904 = vmatpush.msra.mxu0 %v3687
        %3905 = vmatpush.msra.mxu0 %v3685
        %3906 = vmatpush.msra.mxu0 %v3683
        %3907 = vmatpush.msra.mxu0 %v3681
        %3908 = vmatpush.msra.mxu0 %v3679
        %3909 = vmatpush.msra.mxu0 %v3677
        %3910 = vmatpush.msra.mxu0 %v3675
        %3911 = vmatpush.msra.mxu0 %v3673
        %3912 = vmatpush.msra.mxu0 %v3671
        %3913 = vmatpush.msra.mxu0 %v3669
        %3914 = vmatpush.msra.mxu0 %v3667
        %3915 = vmatpush.msra.mxu0 %v3665
        %3916 = vmatpush.msra.mxu0 %v3663
        %3917 = vmatmul.f32.gmra.mxu0 %v3359
        %v3918 = vpop.f32.mrf.mxu0
        %v3919 = vadd.f32 %v3899, %v3918
        %3920 = vdwg.mxu0
        %3921 = vmatpush.msra.mxu0 %v3725
        %3922 = vmatpush.msra.mxu0 %v3723
        %3923 = vmatpush.msra.mxu0 %v3721
        %3924 = vmatpush.msra.mxu0 %v3719
        %3925 = vmatpush.msra.mxu0 %v3717
        %3926 = vmatpush.msra.mxu0 %v3715
        %3927 = vmatpush.msra.mxu0 %v3713
        %3928 = vmatpush.msra.mxu0 %v3711
        %3929 = vmatpush.msra.mxu0 %v3709
        %3930 = vmatpush.msra.mxu0 %v3707
        %3931 = vmatpush.msra.mxu0 %v3705
        %3932 = vmatpush.msra.mxu0 %v3703
        %3933 = vmatpush.msra.mxu0 %v3701
        %3934 = vmatpush.msra.mxu0 %v3699
        %3935 = vmatpush.msra.mxu0 %v3697
        %3936 = vmatpush.msra.mxu0 %v3695
        %3937 = vmatmul.f32.gmra.mxu0 %v3379
        %v3938 = vpop.f32.mrf.mxu0
        %v3939 = vadd.f32 %v3919, %v3938
        %3940 = vdwg.mxu0
        %3941 = vmatpush.msra.mxu0 %v3757
        %3942 = vmatpush.msra.mxu0 %v3755
        %3943 = vmatpush.msra.mxu0 %v3753
        %3944 = vmatpush.msra.mxu0 %v3751
        %3945 = vmatpush.msra.mxu0 %v3749
        %3946 = vmatpush.msra.mxu0 %v3747
        %3947 = vmatpush.msra.mxu0 %v3745
        %3948 = vmatpush.msra.mxu0 %v3743
        %3949 = vmatpush.msra.mxu0 %v3741
        %3950 = vmatpush.msra.mxu0 %v3739
        %3951 = vmatpush.msra.mxu0 %v3737
        %3952 = vmatpush.msra.mxu0 %v3735
        %3953 = vmatpush.msra.mxu0 %v3733
        %3954 = vmatpush.msra.mxu0 %v3731
        %3955 = vmatpush.msra.mxu0 %v3729
        %3956 = vmatpush.msra.mxu0 %v3727
        %3957 = vmatmul.f32.gmra.mxu0 %v3404
        %v3958 = vpop.f32.mrf.mxu0
        %v3959 = vadd.f32 %v3939, %v3958
        %3960 = vdwg.mxu0
        %3961 = vmatpush.msra.mxu0 %v3789
        %3962 = vmatpush.msra.mxu0 %v3787
        %3963 = vmatpush.msra.mxu0 %v3785
        %3964 = vmatpush.msra.mxu0 %v3783
        %3965 = vmatpush.msra.mxu0 %v3781
        %3966 = vmatpush.msra.mxu0 %v3779
        %3967 = vmatpush.msra.mxu0 %v3777
        %3968 = vmatpush.msra.mxu0 %v3775
        %3969 = vmatpush.msra.mxu0 %v3773
        %3970 = vmatpush.msra.mxu0 %v3771
        %3971 = vmatpush.msra.mxu0 %v3769
        %3972 = vmatpush.msra.mxu0 %v3767
        %3973 = vmatpush.msra.mxu0 %v3765
        %3974 = vmatpush.msra.mxu0 %v3763
        %3975 = vmatpush.msra.mxu0 %v3761
        %3976 = vmatpush.msra.mxu0 %v3759
        %3977 = vmatmul.f32.gmra.mxu0 %v3424
        %v3978 = vpop.f32.mrf.mxu0
        %v3979 = vadd.f32 %v3959, %v3978
        %3980 = vdwg.mxu0
        %3981 = vmatpush.msra.mxu0 %v3821
        %3982 = vmatpush.msra.mxu0 %v3819
        %3983 = vmatpush.msra.mxu0 %v3817
        %3984 = vmatpush.msra.mxu0 %v3815
        %3985 = vmatpush.msra.mxu0 %v3813
        %3986 = vmatpush.msra.mxu0 %v3811
        %3987 = vmatpush.msra.mxu0 %v3809
        %3988 = vmatpush.msra.mxu0 %v3807
        %3989 = vmatpush.msra.mxu0 %v3805
        %3990 = vmatpush.msra.mxu0 %v3803
        %3991 = vmatpush.msra.mxu0 %v3801
        %3992 = vmatpush.msra.mxu0 %v3799
        %3993 = vmatpush.msra.mxu0 %v3797
        %3994 = vmatpush.msra.mxu0 %v3795
        %3995 = vmatpush.msra.mxu0 %v3793
        %3996 = vmatpush.msra.mxu0 %v3791
        %3997 = vmatmul.f32.gmra.mxu0 %v3449
        %v3998 = vpop.f32.mrf.mxu0
        %v3999 = vadd.f32 %v3979, %v3998
        %4000 = vdwg.mxu0
        %4001 = vmatpush.msra.mxu0 %v3853
        %4002 = vmatpush.msra.mxu0 %v3851
        %4003 = vmatpush.msra.mxu0 %v3849
        %4004 = vmatpush.msra.mxu0 %v3847
        %4005 = vmatpush.msra.mxu0 %v3845
        %4006 = vmatpush.msra.mxu0 %v3843
        %4007 = vmatpush.msra.mxu0 %v3841
        %4008 = vmatpush.msra.mxu0 %v3839
        %4009 = vmatpush.msra.mxu0 %v3837
        %4010 = vmatpush.msra.mxu0 %v3835
        %4011 = vmatpush.msra.mxu0 %v3833
        %4012 = vmatpush.msra.mxu0 %v3831
        %4013 = vmatpush.msra.mxu0 %v3829
        %4014 = vmatpush.msra.mxu0 %v3827
        %4015 = vmatpush.msra.mxu0 %v3825
        %4016 = vmatpush.msra.mxu0 %v3823
        %4017 = vmatmul.f32.gmra.mxu0 %v3469
        %v4018 = vpop.f32.mrf.mxu0
        %v4019 = vadd.f32 %v3999, %v4018
        %4020 = vdwg.mxu0
        %4021 = vmatpush.msra.mxu0 %v3630
        %4022 = vmatpush.msra.mxu0 %v3628
        %4023 = vmatpush.msra.mxu0 %v3626
        %4024 = vmatpush.msra.mxu0 %v3624
        %4025 = vmatpush.msra.mxu0 %v3622
        %4026 = vmatpush.msra.mxu0 %v3620
        %4027 = vmatpush.msra.mxu0 %v3618
        %4028 = vmatpush.msra.mxu0 %v3616
        %4029 = vmatpush.msra.mxu0 %v3614
        %4030 = vmatpush.msra.mxu0 %v3612
        %4031 = vmatpush.msra.mxu0 %v3610
        %4032 = vmatpush.msra.mxu0 %v3608
        %4033 = vmatpush.msra.mxu0 %v3606
        %4034 = vmatpush.msra.mxu0 %v3604
        %4035 = vmatpush.msra.mxu0 %v3602
        %4036 = vmatpush.msra.mxu0 %v3600
        %4037 = vmatmul.f32.gmra.mxu0 %v3314
        %v4038 = vpop.f32.mrf.mxu0
        %v4039 = vadd.f32 %v3858, %v4038
        %4040 = vdwg.mxu0
        %4041 = vmatpush.msra.mxu0 %v3662
        %4042 = vmatpush.msra.mxu0 %v3660
        %4043 = vmatpush.msra.mxu0 %v3658
        %4044 = vmatpush.msra.mxu0 %v3656
        %4045 = vmatpush.msra.mxu0 %v3654
        %4046 = vmatpush.msra.mxu0 %v3652
        %4047 = vmatpush.msra.mxu0 %v3650
        %4048 = vmatpush.msra.mxu0 %v3648
        %4049 = vmatpush.msra.mxu0 %v3646
        %4050 = vmatpush.msra.mxu0 %v3644
        %4051 = vmatpush.msra.mxu0 %v3642
        %4052 = vmatpush.msra.mxu0 %v3640
        %4053 = vmatpush.msra.mxu0 %v3638
        %4054 = vmatpush.msra.mxu0 %v3636
        %4055 = vmatpush.msra.mxu0 %v3634
        %4056 = vmatpush.msra.mxu0 %v3632
        %4057 = vmatmul.f32.gmra.mxu0 %v3334
        %v4058 = vpop.f32.mrf.mxu0
        %v4059 = vadd.f32 %v4039, %v4058
        %4060 = vdwg.mxu0
        %4061 = vmatpush.msra.mxu0 %v3694
        %4062 = vmatpush.msra.mxu0 %v3692
        %4063 = vmatpush.msra.mxu0 %v3690
        %4064 = vmatpush.msra.mxu0 %v3688
        %4065 = vmatpush.msra.mxu0 %v3686
        %4066 = vmatpush.msra.mxu0 %v3684
        %4067 = vmatpush.msra.mxu0 %v3682
        %4068 = vmatpush.msra.mxu0 %v3680
        %4069 = vmatpush.msra.mxu0 %v3678
        %4070 = vmatpush.msra.mxu0 %v3676
        %4071 = vmatpush.msra.mxu0 %v3674
        %4072 = vmatpush.msra.mxu0 %v3672
        %4073 = vmatpush.msra.mxu0 %v3670
        %4074 = vmatpush.msra.mxu0 %v3668
        %4075 = vmatpush.msra.mxu0 %v3666
        %4076 = vmatpush.msra.mxu0 %v3664
        %4077 = vmatmul.f32.gmra.mxu0 %v3359
        %v4078 = vpop.f32.mrf.mxu0
        %v4079 = vadd.f32 %v4059, %v4078
        %4080 = vdwg.mxu0
        %4081 = vmatpush.msra.mxu0 %v3726
        %4082 = vmatpush.msra.mxu0 %v3724
        %4083 = vmatpush.msra.mxu0 %v3722
        %4084 = vmatpush.msra.mxu0 %v3720
        %4085 = vmatpush.msra.mxu0 %v3718
        %4086 = vmatpush.msra.mxu0 %v3716
        %4087 = vmatpush.msra.mxu0 %v3714
        %4088 = vmatpush.msra.mxu0 %v3712
        %4089 = vmatpush.msra.mxu0 %v3710
        %4090 = vmatpush.msra.mxu0 %v3708
        %4091 = vmatpush.msra.mxu0 %v3706
        %4092 = vmatpush.msra.mxu0 %v3704
        %4093 = vmatpush.msra.mxu0 %v3702
        %4094 = vmatpush.msra.mxu0 %v3700
        %4095 = vmatpush.msra.mxu0 %v3698
        %4096 = vmatpush.msra.mxu0 %v3696
        %4097 = vmatmul.f32.gmra.mxu0 %v3379
        %v4098 = vpop.f32.mrf.mxu0
        %v4099 = vadd.f32 %v4079, %v4098
        %4100 = vdwg.mxu0
        %4101 = vmatpush.msra.mxu0 %v3758
        %4102 = vmatpush.msra.mxu0 %v3756
        %4103 = vmatpush.msra.mxu0 %v3754
        %4104 = vmatpush.msra.mxu0 %v3752
        %4105 = vmatpush.msra.mxu0 %v3750
        %4106 = vmatpush.msra.mxu0 %v3748
        %4107 = vmatpush.msra.mxu0 %v3746
        %4108 = vmatpush.msra.mxu0 %v3744
        %4109 = vmatpush.msra.mxu0 %v3742
        %4110 = vmatpush.msra.mxu0 %v3740
        %4111 = vmatpush.msra.mxu0 %v3738
        %4112 = vmatpush.msra.mxu0 %v3736
        %4113 = vmatpush.msra.mxu0 %v3734
        %4114 = vmatpush.msra.mxu0 %v3732
        %4115 = vmatpush.msra.mxu0 %v3730
        %4116 = vmatpush.msra.mxu0 %v3728
        %4117 = vmatmul.f32.gmra.mxu0 %v3404
        %v4118 = vpop.f32.mrf.mxu0
        %v4119 = vadd.f32 %v4099, %v4118
        %4120 = vdwg.mxu0
        %4121 = vmatpush.msra.mxu0 %v3790
        %4122 = vmatpush.msra.mxu0 %v3788
        %4123 = vmatpush.msra.mxu0 %v3786
        %4124 = vmatpush.msra.mxu0 %v3784
        %4125 = vmatpush.msra.mxu0 %v3782
        %4126 = vmatpush.msra.mxu0 %v3780
        %4127 = vmatpush.msra.mxu0 %v3778
        %4128 = vmatpush.msra.mxu0 %v3776
        %4129 = vmatpush.msra.mxu0 %v3774
        %4130 = vmatpush.msra.mxu0 %v3772
        %4131 = vmatpush.msra.mxu0 %v3770
        %4132 = vmatpush.msra.mxu0 %v3768
        %4133 = vmatpush.msra.mxu0 %v3766
        %4134 = vmatpush.msra.mxu0 %v3764
        %4135 = vmatpush.msra.mxu0 %v3762
        %4136 = vmatpush.msra.mxu0 %v3760
        %4137 = vmatmul.f32.gmra.mxu0 %v3424
        %v4138 = vpop.f32.mrf.mxu0
        %v4139 = vadd.f32 %v4119, %v4138
        %4140 = vdwg.mxu0
        %4141 = vmatpush.msra.mxu0 %v3822
        %4142 = vmatpush.msra.mxu0 %v3820
        %4143 = vmatpush.msra.mxu0 %v3818
        %4144 = vmatpush.msra.mxu0 %v3816
        %4145 = vmatpush.msra.mxu0 %v3814
        %4146 = vmatpush.msra.mxu0 %v3812
        %4147 = vmatpush.msra.mxu0 %v3810
        %4148 = vmatpush.msra.mxu0 %v3808
        %4149 = vmatpush.msra.mxu0 %v3806
        %4150 = vmatpush.msra.mxu0 %v3804
        %4151 = vmatpush.msra.mxu0 %v3802
        %4152 = vmatpush.msra.mxu0 %v3800
        %4153 = vmatpush.msra.mxu0 %v3798
        %4154 = vmatpush.msra.mxu0 %v3796
        %4155 = vmatpush.msra.mxu0 %v3794
        %4156 = vmatpush.msra.mxu0 %v3792
        %4157 = vmatmul.f32.gmra.mxu0 %v3449
        %v4158 = vpop.f32.mrf.mxu0
        %v4159 = vadd.f32 %v4139, %v4158
        %4160 = vdwg.mxu0
        %4161 = vmatpush.msra.mxu0 %v3854
        %4162 = vmatpush.msra.mxu0 %v3852
        %4163 = vmatpush.msra.mxu0 %v3850
        %4164 = vmatpush.msra.mxu0 %v3848
        %4165 = vmatpush.msra.mxu0 %v3846
        %4166 = vmatpush.msra.mxu0 %v3844
        %4167 = vmatpush.msra.mxu0 %v3842
        %4168 = vmatpush.msra.mxu0 %v3840
        %4169 = vmatpush.msra.mxu0 %v3838
        %4170 = vmatpush.msra.mxu0 %v3836
        %4171 = vmatpush.msra.mxu0 %v3834
        %4172 = vmatpush.msra.mxu0 %v3832
        %4173 = vmatpush.msra.mxu0 %v3830
        %4174 = vmatpush.msra.mxu0 %v3828
        %4175 = vmatpush.msra.mxu0 %v3826
        %4176 = vmatpush.msra.mxu0 %v3824
        %4177 = vmatmul.f32.gmra.mxu0 %v3469
        %v4178 = vpop.f32.mrf.mxu0
        %v4179 = vadd.f32 %v4159, %v4178
        %4180 = vdwg.mxu0
        %v4181 = vmax.f32 %v4019, 0.0
        %v4182 = vmax.f32 %v4179, 0.0
        %v4183 = vld [vmem:[#allocation16] sm:$0x1]
        %vm4184 = vcmask 31744
        %v4186 = vsel %vm4184, %v4183, 0
        %vm4188 = vcmask 1043456
        %v4190 = vsel %vm4188, %v4181, 0
        %v4193 = vsel %vm4188, %v4182, 0
        %4195 = vmatpush.msra.mxu0 0.0
        %4196 = vmatpush.msra.mxu0 0.0
        %4197 = vmatpush.msra.mxu0 0.0
        %4198 = vmatpush.msra.mxu0 0.0
        %4199 = vmatpush.msra.mxu0 0.0
        %4200 = vmatpush.msra.mxu0 0.0
        %4201 = vmatpush.msra.mxu0 0.0
        %4202 = vmatpush.msra.mxu0 0.0
        %4203 = vmatpush.msra.mxu0 0.0
        %4204 = vmatpush.msra.mxu0 0.0
        %4205 = vmatpush.msra.mxu0 0.0
        %4206 = vmatpush.msra.mxu0 0.0
        %4207 = vmatpush.msra.mxu0 0.0
        %4208 = vmatpush.msra.mxu0 0.0
        %4209 = vmatpush.msra.mxu0 0.0
        %4210 = vmatpush.msra.mxu0 %v4190
        %4211 = vmatmul.f32.gmra.mxu0 %v4186
        %v4212 = vpop.f32.mrf.mxu0
        %v4213 = vadd.f32 0.0, %v4212
        %4214 = vdwg.mxu0
        %4215 = vmatpush.msra.mxu0 0.0
        %4216 = vmatpush.msra.mxu0 0.0
        %4217 = vmatpush.msra.mxu0 0.0
        %4218 = vmatpush.msra.mxu0 0.0
        %4219 = vmatpush.msra.mxu0 0.0
        %4220 = vmatpush.msra.mxu0 0.0
        %4221 = vmatpush.msra.mxu0 0.0
        %4222 = vmatpush.msra.mxu0 0.0
        %4223 = vmatpush.msra.mxu0 0.0
        %4224 = vmatpush.msra.mxu0 0.0
        %4225 = vmatpush.msra.mxu0 0.0
        %4226 = vmatpush.msra.mxu0 0.0
        %4227 = vmatpush.msra.mxu0 0.0
        %4228 = vmatpush.msra.mxu0 0.0
        %4229 = vmatpush.msra.mxu0 0.0
        %4230 = vmatpush.msra.mxu0 %v4193
        %4231 = vmatmul.f32.gmra.mxu0 %v4186
        %v4232 = vpop.f32.mrf.mxu0
        %v4233 = vadd.f32 0.0, %v4232
        %4234 = vdwg.mxu0
        %s4235 = scalar_lea.vmem [#allocation16], 1
        %v4236 = vld [vmem:[%s4235] sm:$0x1]
        %v4238 = vsel %vm4184, %v4236, 0
        %4240 = vmatpush.msra.mxu0 0.0
        %4241 = vmatpush.msra.mxu0 0.0
        %4242 = vmatpush.msra.mxu0 0.0
        %4243 = vmatpush.msra.mxu0 0.0
        %4244 = vmatpush.msra.mxu0 0.0
        %4245 = vmatpush.msra.mxu0 0.0
        %4246 = vmatpush.msra.mxu0 0.0
        %4247 = vmatpush.msra.mxu0 0.0
        %4248 = vmatpush.msra.mxu0 0.0
        %4249 = vmatpush.msra.mxu0 0.0
        %4250 = vmatpush.msra.mxu0 0.0
        %4251 = vmatpush.msra.mxu0 0.0
        %4252 = vmatpush.msra.mxu0 0.0
        %4253 = vmatpush.msra.mxu0 0.0
        %4254 = vmatpush.msra.mxu0 0.0
        %4255 = vmatpush.msra.mxu0 %v4190
        %4256 = vmatmul.f32.gmra.mxu0 %v4238
        %v4257 = vpop.f32.mrf.mxu0
        %v4258 = vadd.f32 0.0, %v4257
        %4259 = vdwg.mxu0
        %4260 = vmatpush.msra.mxu0 0.0
        %4261 = vmatpush.msra.mxu0 0.0
        %4262 = vmatpush.msra.mxu0 0.0
        %4263 = vmatpush.msra.mxu0 0.0
        %4264 = vmatpush.msra.mxu0 0.0
        %4265 = vmatpush.msra.mxu0 0.0
        %4266 = vmatpush.msra.mxu0 0.0
        %4267 = vmatpush.msra.mxu0 0.0
        %4268 = vmatpush.msra.mxu0 0.0
        %4269 = vmatpush.msra.mxu0 0.0
        %4270 = vmatpush.msra.mxu0 0.0
        %4271 = vmatpush.msra.mxu0 0.0
        %4272 = vmatpush.msra.mxu0 0.0
        %4273 = vmatpush.msra.mxu0 0.0
        %4274 = vmatpush.msra.mxu0 0.0
        %4275 = vmatpush.msra.mxu0 %v4193
        %4276 = vmatmul.f32.gmra.mxu0 %v4238
        %v4277 = vpop.f32.mrf.mxu0
        %v4278 = vadd.f32 0.0, %v4277
        %4279 = vdwg.mxu0
        %s4280 = scalar_lea.vmem [#allocation16], 2
        %v4281 = vld [vmem:[%s4280] sm:$0x1]
        %v4283 = vsel %vm4184, %v4281, 0
        %4285 = vmatpush.msra.mxu0 0.0
        %4286 = vmatpush.msra.mxu0 0.0
        %4287 = vmatpush.msra.mxu0 0.0
        %4288 = vmatpush.msra.mxu0 0.0
        %4289 = vmatpush.msra.mxu0 0.0
        %4290 = vmatpush.msra.mxu0 0.0
        %4291 = vmatpush.msra.mxu0 0.0
        %4292 = vmatpush.msra.mxu0 0.0
        %4293 = vmatpush.msra.mxu0 0.0
        %4294 = vmatpush.msra.mxu0 0.0
        %4295 = vmatpush.msra.mxu0 0.0
        %4296 = vmatpush.msra.mxu0 0.0
        %4297 = vmatpush.msra.mxu0 0.0
        %4298 = vmatpush.msra.mxu0 0.0
        %4299 = vmatpush.msra.mxu0 0.0
        %4300 = vmatpush.msra.mxu0 %v4190
        %4301 = vmatmul.f32.gmra.mxu0 %v4283
        %v4302 = vpop.f32.mrf.mxu0
        %v4303 = vadd.f32 0.0, %v4302
        %4304 = vdwg.mxu0
        %4305 = vmatpush.msra.mxu0 0.0
        %4306 = vmatpush.msra.mxu0 0.0
        %4307 = vmatpush.msra.mxu0 0.0
        %4308 = vmatpush.msra.mxu0 0.0
        %4309 = vmatpush.msra.mxu0 0.0
        %4310 = vmatpush.msra.mxu0 0.0
        %4311 = vmatpush.msra.mxu0 0.0
        %4312 = vmatpush.msra.mxu0 0.0
        %4313 = vmatpush.msra.mxu0 0.0
        %4314 = vmatpush.msra.mxu0 0.0
        %4315 = vmatpush.msra.mxu0 0.0
        %4316 = vmatpush.msra.mxu0 0.0
        %4317 = vmatpush.msra.mxu0 0.0
        %4318 = vmatpush.msra.mxu0 0.0
        %4319 = vmatpush.msra.mxu0 0.0
        %4320 = vmatpush.msra.mxu0 %v4193
        %4321 = vmatmul.f32.gmra.mxu0 %v4283
        %v4322 = vpop.f32.mrf.mxu0
        %v4323 = vadd.f32 0.0, %v4322
        %4324 = vdwg.mxu0
        %s4325 = scalar_lea.vmem [#allocation16], 3
        %v4326 = vld [vmem:[%s4325] sm:$0x1]
        %v4328 = vsel %vm4184, %v4326, 0
        %4330 = vmatpush.msra.mxu0 0.0
        %4331 = vmatpush.msra.mxu0 0.0
        %4332 = vmatpush.msra.mxu0 0.0
        %4333 = vmatpush.msra.mxu0 0.0
        %4334 = vmatpush.msra.mxu0 0.0
        %4335 = vmatpush.msra.mxu0 0.0
        %4336 = vmatpush.msra.mxu0 0.0
        %4337 = vmatpush.msra.mxu0 0.0
        %4338 = vmatpush.msra.mxu0 0.0
        %4339 = vmatpush.msra.mxu0 0.0
        %4340 = vmatpush.msra.mxu0 0.0
        %4341 = vmatpush.msra.mxu0 0.0
        %4342 = vmatpush.msra.mxu0 0.0
        %4343 = vmatpush.msra.mxu0 0.0
        %4344 = vmatpush.msra.mxu0 0.0
        %4345 = vmatpush.msra.mxu0 %v4190
        %4346 = vmatmul.f32.gmra.mxu0 %v4328
        %v4347 = vpop.f32.mrf.mxu0
        %v4348 = vadd.f32 0.0, %v4347
        %4349 = vdwg.mxu0
        %4350 = vmatpush.msra.mxu0 0.0
        %4351 = vmatpush.msra.mxu0 0.0
        %4352 = vmatpush.msra.mxu0 0.0
        %4353 = vmatpush.msra.mxu0 0.0
        %4354 = vmatpush.msra.mxu0 0.0
        %4355 = vmatpush.msra.mxu0 0.0
        %4356 = vmatpush.msra.mxu0 0.0
        %4357 = vmatpush.msra.mxu0 0.0
        %4358 = vmatpush.msra.mxu0 0.0
        %4359 = vmatpush.msra.mxu0 0.0
        %4360 = vmatpush.msra.mxu0 0.0
        %4361 = vmatpush.msra.mxu0 0.0
        %4362 = vmatpush.msra.mxu0 0.0
        %4363 = vmatpush.msra.mxu0 0.0
        %4364 = vmatpush.msra.mxu0 0.0
        %4365 = vmatpush.msra.mxu0 %v4193
        %4366 = vmatmul.f32.gmra.mxu0 %v4328
        %v4367 = vpop.f32.mrf.mxu0
        %v4368 = vadd.f32 0.0, %v4367
        %4369 = vdwg.mxu0
        %v4370 = vld [vmem:[#allocation18] sm:$0xff]
        %v4371 = vld [vmem:[#allocation18 + $0x8] sm:$0xff]
        %v4372 = vld [vmem:[#allocation18 + $0x10] sm:$0xff]
        %v4373 = vld [vmem:[#allocation18 + $0x18] sm:$0xff]
        %v4374 = vld [vmem:[#allocation18 + $0x20] sm:$0xff]
        %v4375 = vld [vmem:[#allocation18 + $0x28] sm:$0xff]
        %v4376 = vld [vmem:[#allocation18 + $0x30] sm:$0xff]
        %v4377 = vld [vmem:[#allocation18 + $0x38] sm:$0xff]
        %v4378 = vld [vmem:[#allocation18 + $0x40] sm:$0xff]
        %v4379 = vld [vmem:[#allocation18 + $0x48] sm:$0xff]
        %v4380 = vld [vmem:[#allocation18 + $0x50] sm:$0xff]
        %v4381 = vld [vmem:[#allocation18 + $0x58] sm:$0xff]
        %v4382 = vld [vmem:[#allocation18 + $0x60] sm:$0xff]
        %v4383 = vld [vmem:[#allocation18 + $0x68] sm:$0xff]
        %v4384 = vld [vmem:[#allocation18 + $0x70] sm:$0xff]
        %v4385 = vld [vmem:[#allocation18 + $0x78] sm:$0xff]
        %v4386 = vld [vmem:[#allocation18 + $0x80] sm:$0xff]
        %v4387 = vld [vmem:[#allocation18 + $0x88] sm:$0xff]
        %v4388 = vld [vmem:[#allocation18 + $0x90] sm:$0xff]
        %v4389 = vld [vmem:[#allocation18 + $0x98] sm:$0xff]
        %v4390 = vld [vmem:[#allocation18 + $0xa0] sm:$0xff]
        %v4391 = vld [vmem:[#allocation18 + $0xa8] sm:$0xff]
        %v4392 = vld [vmem:[#allocation18 + $0xb0] sm:$0xff]
        %v4393 = vld [vmem:[#allocation18 + $0xb8] sm:$0xff]
        %v4394 = vld [vmem:[#allocation18 + $0xc0] sm:$0xff]
        %v4395 = vld [vmem:[#allocation18 + $0xc8] sm:$0xff]
        %v4396 = vld [vmem:[#allocation18 + $0xd0] sm:$0xff]
        %v4397 = vld [vmem:[#allocation18 + $0xd8] sm:$0xff]
        %v4398 = vld [vmem:[#allocation18 + $0xe0] sm:$0xff]
        %v4399 = vld [vmem:[#allocation18 + $0xe8] sm:$0xff]
        %v4400 = vld [vmem:[#allocation18 + $0xf0] sm:$0xff]
        %v4401 = vld [vmem:[#allocation18 + $0xf8] sm:$0xff]
        %v4402 = vld [vmem:[#allocation18 + $0x100] sm:$0xff]
        %v4403 = vld [vmem:[#allocation18 + $0x108] sm:$0xff]
        %v4404 = vld [vmem:[#allocation18 + $0x110] sm:$0xff]
        %v4405 = vld [vmem:[#allocation18 + $0x118] sm:$0xff]
        %v4406 = vld [vmem:[#allocation18 + $0x120] sm:$0xff]
        %v4407 = vld [vmem:[#allocation18 + $0x128] sm:$0xff]
        %v4408 = vld [vmem:[#allocation18 + $0x130] sm:$0xff]
        %v4409 = vld [vmem:[#allocation18 + $0x138] sm:$0xff]
        %v4410 = vld [vmem:[#allocation18 + $0x140] sm:$0xff]
        %v4411 = vld [vmem:[#allocation18 + $0x148] sm:$0xff]
        %v4412 = vld [vmem:[#allocation18 + $0x150] sm:$0xff]
        %v4413 = vld [vmem:[#allocation18 + $0x158] sm:$0xff]
        %v4414 = vld [vmem:[#allocation18 + $0x160] sm:$0xff]
        %v4415 = vld [vmem:[#allocation18 + $0x168] sm:$0xff]
        %v4416 = vld [vmem:[#allocation18 + $0x170] sm:$0xff]
        %v4417 = vld [vmem:[#allocation18 + $0x178] sm:$0xff]
        %v4418 = vld [vmem:[#allocation18 + $0x180] sm:$0xff]
        %v4419 = vld [vmem:[#allocation18 + $0x188] sm:$0xff]
        %v4420 = vld [vmem:[#allocation18 + $0x190] sm:$0xff]
        %v4421 = vld [vmem:[#allocation18 + $0x198] sm:$0xff]
        %v4422 = vld [vmem:[#allocation18 + $0x1a0] sm:$0xff]
        %v4423 = vld [vmem:[#allocation18 + $0x1a8] sm:$0xff]
        %v4424 = vld [vmem:[#allocation18 + $0x1b0] sm:$0xff]
        %v4425 = vld [vmem:[#allocation18 + $0x1b8] sm:$0xff]
        %v4426 = vld [vmem:[#allocation18 + $0x1c0] sm:$0xff]
        %v4427 = vld [vmem:[#allocation18 + $0x1c8] sm:$0xff]
        %v4428 = vld [vmem:[#allocation18 + $0x1d0] sm:$0xff]
        %v4429 = vld [vmem:[#allocation18 + $0x1d8] sm:$0xff]
        %v4430 = vld [vmem:[#allocation18 + $0x1e0] sm:$0xff]
        %v4431 = vld [vmem:[#allocation18 + $0x1e8] sm:$0xff]
        %v4432 = vld [vmem:[#allocation18 + $0x1f0] sm:$0xff]
        %v4433 = vld [vmem:[#allocation18 + $0x1f8] sm:$0xff]
        %v4434 = vld [vmem:[#allocation18 + $0x200] sm:$0xff]
        %v4435 = vld [vmem:[#allocation18 + $0x208] sm:$0xff]
        %v4436 = vld [vmem:[#allocation18 + $0x210] sm:$0xff]
        %v4437 = vld [vmem:[#allocation18 + $0x218] sm:$0xff]
        %v4438 = vld [vmem:[#allocation18 + $0x220] sm:$0xff]
        %v4439 = vld [vmem:[#allocation18 + $0x228] sm:$0xff]
        %v4440 = vld [vmem:[#allocation18 + $0x230] sm:$0xff]
        %v4441 = vld [vmem:[#allocation18 + $0x238] sm:$0xff]
        %v4442 = vld [vmem:[#allocation18 + $0x240] sm:$0xff]
        %v4443 = vld [vmem:[#allocation18 + $0x248] sm:$0xff]
        %v4444 = vld [vmem:[#allocation18 + $0x250] sm:$0xff]
        %v4445 = vld [vmem:[#allocation18 + $0x258] sm:$0xff]
        %v4446 = vld [vmem:[#allocation18 + $0x260] sm:$0xff]
        %v4447 = vld [vmem:[#allocation18 + $0x268] sm:$0xff]
        %v4448 = vld [vmem:[#allocation18 + $0x270] sm:$0xff]
        %v4449 = vld [vmem:[#allocation18 + $0x278] sm:$0xff]
        %v4450 = vld [vmem:[#allocation18 + $0x280] sm:$0xff]
        %v4451 = vld [vmem:[#allocation18 + $0x288] sm:$0xff]
        %v4452 = vld [vmem:[#allocation18 + $0x290] sm:$0xff]
        %v4453 = vld [vmem:[#allocation18 + $0x298] sm:$0xff]
        %v4454 = vld [vmem:[#allocation18 + $0x2a0] sm:$0xff]
        %v4455 = vld [vmem:[#allocation18 + $0x2a8] sm:$0xff]
        %v4456 = vld [vmem:[#allocation18 + $0x2b0] sm:$0xff]
        %v4457 = vld [vmem:[#allocation18 + $0x2b8] sm:$0xff]
        %v4458 = vld [vmem:[#allocation18 + $0x2c0] sm:$0xff]
        %v4459 = vld [vmem:[#allocation18 + $0x2c8] sm:$0xff]
        %v4460 = vld [vmem:[#allocation18 + $0x2d0] sm:$0xff]
        %v4461 = vld [vmem:[#allocation18 + $0x2d8] sm:$0xff]
        %v4462 = vld [vmem:[#allocation18 + $0x2e0] sm:$0xff]
        %v4463 = vld [vmem:[#allocation18 + $0x2e8] sm:$0xff]
        %v4464 = vld [vmem:[#allocation18 + $0x2f0] sm:$0xff]
        %v4465 = vld [vmem:[#allocation18 + $0x2f8] sm:$0xff]
        %v4466 = vld [vmem:[#allocation18 + $0x300] sm:$0xff]
        %v4467 = vld [vmem:[#allocation18 + $0x308] sm:$0xff]
        %v4468 = vld [vmem:[#allocation18 + $0x310] sm:$0xff]
        %v4469 = vld [vmem:[#allocation18 + $0x318] sm:$0xff]
        %v4470 = vld [vmem:[#allocation18 + $0x320] sm:$0xff]
        %v4471 = vld [vmem:[#allocation18 + $0x328] sm:$0xff]
        %v4472 = vld [vmem:[#allocation18 + $0x330] sm:$0xff]
        %v4473 = vld [vmem:[#allocation18 + $0x338] sm:$0xff]
        %v4474 = vld [vmem:[#allocation18 + $0x340] sm:$0xff]
        %v4475 = vld [vmem:[#allocation18 + $0x348] sm:$0xff]
        %v4476 = vld [vmem:[#allocation18 + $0x350] sm:$0xff]
        %v4477 = vld [vmem:[#allocation18 + $0x358] sm:$0xff]
        %v4478 = vld [vmem:[#allocation18 + $0x360] sm:$0xff]
        %v4479 = vld [vmem:[#allocation18 + $0x368] sm:$0xff]
        %v4480 = vld [vmem:[#allocation18 + $0x370] sm:$0xff]
        %v4481 = vld [vmem:[#allocation18 + $0x378] sm:$0xff]
        %v4482 = vld [vmem:[#allocation18 + $0x380] sm:$0xff]
        %v4483 = vld [vmem:[#allocation18 + $0x388] sm:$0xff]
        %v4484 = vld [vmem:[#allocation18 + $0x390] sm:$0xff]
        %v4485 = vld [vmem:[#allocation18 + $0x398] sm:$0xff]
        %v4486 = vld [vmem:[#allocation18 + $0x3a0] sm:$0xff]
        %v4487 = vld [vmem:[#allocation18 + $0x3a8] sm:$0xff]
        %v4488 = vld [vmem:[#allocation18 + $0x3b0] sm:$0xff]
        %v4489 = vld [vmem:[#allocation18 + $0x3b8] sm:$0xff]
        %v4490 = vld [vmem:[#allocation18 + $0x3c0] sm:$0xff]
        %v4491 = vld [vmem:[#allocation18 + $0x3c8] sm:$0xff]
        %v4492 = vld [vmem:[#allocation18 + $0x3d0] sm:$0xff]
        %v4493 = vld [vmem:[#allocation18 + $0x3d8] sm:$0xff]
        %v4494 = vld [vmem:[#allocation18 + $0x3e0] sm:$0xff]
        %v4495 = vld [vmem:[#allocation18 + $0x3e8] sm:$0xff]
        %v4496 = vld [vmem:[#allocation18 + $0x3f0] sm:$0xff]
        %v4497 = vld [vmem:[#allocation18 + $0x3f8] sm:$0xff]
        %v4498 = vunpack.c.l.bf16 %v4370
        %v4499 = vunpack.c.h.bf16 %v4370
        %v4500 = vunpack.c.l.bf16 %v4371
        %v4501 = vunpack.c.h.bf16 %v4371
        %v4502 = vunpack.c.l.bf16 %v4372
        %v4503 = vunpack.c.h.bf16 %v4372
        %v4504 = vunpack.c.l.bf16 %v4373
        %v4505 = vunpack.c.h.bf16 %v4373
        %v4506 = vunpack.c.l.bf16 %v4374
        %v4507 = vunpack.c.h.bf16 %v4374
        %v4508 = vunpack.c.l.bf16 %v4375
        %v4509 = vunpack.c.h.bf16 %v4375
        %v4510 = vunpack.c.l.bf16 %v4376
        %v4511 = vunpack.c.h.bf16 %v4376
        %v4512 = vunpack.c.l.bf16 %v4377
        %v4513 = vunpack.c.h.bf16 %v4377
        %v4514 = vunpack.c.l.bf16 %v4378
        %v4515 = vunpack.c.h.bf16 %v4378
        %v4516 = vunpack.c.l.bf16 %v4379
        %v4517 = vunpack.c.h.bf16 %v4379
        %v4518 = vunpack.c.l.bf16 %v4380
        %v4519 = vunpack.c.h.bf16 %v4380
        %v4520 = vunpack.c.l.bf16 %v4381
        %v4521 = vunpack.c.h.bf16 %v4381
        %v4522 = vunpack.c.l.bf16 %v4382
        %v4523 = vunpack.c.h.bf16 %v4382
        %v4524 = vunpack.c.l.bf16 %v4383
        %v4525 = vunpack.c.h.bf16 %v4383
        %v4526 = vunpack.c.l.bf16 %v4384
        %v4527 = vunpack.c.h.bf16 %v4384
        %v4528 = vunpack.c.l.bf16 %v4385
        %v4529 = vunpack.c.h.bf16 %v4385
        %v4530 = vunpack.c.l.bf16 %v4386
        %v4531 = vunpack.c.h.bf16 %v4386
        %v4532 = vunpack.c.l.bf16 %v4387
        %v4533 = vunpack.c.h.bf16 %v4387
        %v4534 = vunpack.c.l.bf16 %v4388
        %v4535 = vunpack.c.h.bf16 %v4388
        %v4536 = vunpack.c.l.bf16 %v4389
        %v4537 = vunpack.c.h.bf16 %v4389
        %v4538 = vunpack.c.l.bf16 %v4390
        %v4539 = vunpack.c.h.bf16 %v4390
        %v4540 = vunpack.c.l.bf16 %v4391
        %v4541 = vunpack.c.h.bf16 %v4391
        %v4542 = vunpack.c.l.bf16 %v4392
        %v4543 = vunpack.c.h.bf16 %v4392
        %v4544 = vunpack.c.l.bf16 %v4393
        %v4545 = vunpack.c.h.bf16 %v4393
        %v4546 = vunpack.c.l.bf16 %v4394
        %v4547 = vunpack.c.h.bf16 %v4394
        %v4548 = vunpack.c.l.bf16 %v4395
        %v4549 = vunpack.c.h.bf16 %v4395
        %v4550 = vunpack.c.l.bf16 %v4396
        %v4551 = vunpack.c.h.bf16 %v4396
        %v4552 = vunpack.c.l.bf16 %v4397
        %v4553 = vunpack.c.h.bf16 %v4397
        %v4554 = vunpack.c.l.bf16 %v4398
        %v4555 = vunpack.c.h.bf16 %v4398
        %v4556 = vunpack.c.l.bf16 %v4399
        %v4557 = vunpack.c.h.bf16 %v4399
        %v4558 = vunpack.c.l.bf16 %v4400
        %v4559 = vunpack.c.h.bf16 %v4400
        %v4560 = vunpack.c.l.bf16 %v4401
        %v4561 = vunpack.c.h.bf16 %v4401
        %v4562 = vunpack.c.l.bf16 %v4402
        %v4563 = vunpack.c.h.bf16 %v4402
        %v4564 = vunpack.c.l.bf16 %v4403
        %v4565 = vunpack.c.h.bf16 %v4403
        %v4566 = vunpack.c.l.bf16 %v4404
        %v4567 = vunpack.c.h.bf16 %v4404
        %v4568 = vunpack.c.l.bf16 %v4405
        %v4569 = vunpack.c.h.bf16 %v4405
        %v4570 = vunpack.c.l.bf16 %v4406
        %v4571 = vunpack.c.h.bf16 %v4406
        %v4572 = vunpack.c.l.bf16 %v4407
        %v4573 = vunpack.c.h.bf16 %v4407
        %v4574 = vunpack.c.l.bf16 %v4408
        %v4575 = vunpack.c.h.bf16 %v4408
        %v4576 = vunpack.c.l.bf16 %v4409
        %v4577 = vunpack.c.h.bf16 %v4409
        %v4578 = vunpack.c.l.bf16 %v4410
        %v4579 = vunpack.c.h.bf16 %v4410
        %v4580 = vunpack.c.l.bf16 %v4411
        %v4581 = vunpack.c.h.bf16 %v4411
        %v4582 = vunpack.c.l.bf16 %v4412
        %v4583 = vunpack.c.h.bf16 %v4412
        %v4584 = vunpack.c.l.bf16 %v4413
        %v4585 = vunpack.c.h.bf16 %v4413
        %v4586 = vunpack.c.l.bf16 %v4414
        %v4587 = vunpack.c.h.bf16 %v4414
        %v4588 = vunpack.c.l.bf16 %v4415
        %v4589 = vunpack.c.h.bf16 %v4415
        %v4590 = vunpack.c.l.bf16 %v4416
        %v4591 = vunpack.c.h.bf16 %v4416
        %v4592 = vunpack.c.l.bf16 %v4417
        %v4593 = vunpack.c.h.bf16 %v4417
        %v4594 = vunpack.c.l.bf16 %v4418
        %v4595 = vunpack.c.h.bf16 %v4418
        %v4596 = vunpack.c.l.bf16 %v4419
        %v4597 = vunpack.c.h.bf16 %v4419
        %v4598 = vunpack.c.l.bf16 %v4420
        %v4599 = vunpack.c.h.bf16 %v4420
        %v4600 = vunpack.c.l.bf16 %v4421
        %v4601 = vunpack.c.h.bf16 %v4421
        %v4602 = vunpack.c.l.bf16 %v4422
        %v4603 = vunpack.c.h.bf16 %v4422
        %v4604 = vunpack.c.l.bf16 %v4423
        %v4605 = vunpack.c.h.bf16 %v4423
        %v4606 = vunpack.c.l.bf16 %v4424
        %v4607 = vunpack.c.h.bf16 %v4424
        %v4608 = vunpack.c.l.bf16 %v4425
        %v4609 = vunpack.c.h.bf16 %v4425
        %v4610 = vunpack.c.l.bf16 %v4426
        %v4611 = vunpack.c.h.bf16 %v4426
        %v4612 = vunpack.c.l.bf16 %v4427
        %v4613 = vunpack.c.h.bf16 %v4427
        %v4614 = vunpack.c.l.bf16 %v4428
        %v4615 = vunpack.c.h.bf16 %v4428
        %v4616 = vunpack.c.l.bf16 %v4429
        %v4617 = vunpack.c.h.bf16 %v4429
        %v4618 = vunpack.c.l.bf16 %v4430
        %v4619 = vunpack.c.h.bf16 %v4430
        %v4620 = vunpack.c.l.bf16 %v4431
        %v4621 = vunpack.c.h.bf16 %v4431
        %v4622 = vunpack.c.l.bf16 %v4432
        %v4623 = vunpack.c.h.bf16 %v4432
        %v4624 = vunpack.c.l.bf16 %v4433
        %v4625 = vunpack.c.h.bf16 %v4433
        %v4626 = vunpack.c.l.bf16 %v4434
        %v4627 = vunpack.c.h.bf16 %v4434
        %v4628 = vunpack.c.l.bf16 %v4435
        %v4629 = vunpack.c.h.bf16 %v4435
        %v4630 = vunpack.c.l.bf16 %v4436
        %v4631 = vunpack.c.h.bf16 %v4436
        %v4632 = vunpack.c.l.bf16 %v4437
        %v4633 = vunpack.c.h.bf16 %v4437
        %v4634 = vunpack.c.l.bf16 %v4438
        %v4635 = vunpack.c.h.bf16 %v4438
        %v4636 = vunpack.c.l.bf16 %v4439
        %v4637 = vunpack.c.h.bf16 %v4439
        %v4638 = vunpack.c.l.bf16 %v4440
        %v4639 = vunpack.c.h.bf16 %v4440
        %v4640 = vunpack.c.l.bf16 %v4441
        %v4641 = vunpack.c.h.bf16 %v4441
        %v4642 = vunpack.c.l.bf16 %v4442
        %v4643 = vunpack.c.h.bf16 %v4442
        %v4644 = vunpack.c.l.bf16 %v4443
        %v4645 = vunpack.c.h.bf16 %v4443
        %v4646 = vunpack.c.l.bf16 %v4444
        %v4647 = vunpack.c.h.bf16 %v4444
        %v4648 = vunpack.c.l.bf16 %v4445
        %v4649 = vunpack.c.h.bf16 %v4445
        %v4650 = vunpack.c.l.bf16 %v4446
        %v4651 = vunpack.c.h.bf16 %v4446
        %v4652 = vunpack.c.l.bf16 %v4447
        %v4653 = vunpack.c.h.bf16 %v4447
        %v4654 = vunpack.c.l.bf16 %v4448
        %v4655 = vunpack.c.h.bf16 %v4448
        %v4656 = vunpack.c.l.bf16 %v4449
        %v4657 = vunpack.c.h.bf16 %v4449
        %v4658 = vunpack.c.l.bf16 %v4450
        %v4659 = vunpack.c.h.bf16 %v4450
        %v4660 = vunpack.c.l.bf16 %v4451
        %v4661 = vunpack.c.h.bf16 %v4451
        %v4662 = vunpack.c.l.bf16 %v4452
        %v4663 = vunpack.c.h.bf16 %v4452
        %v4664 = vunpack.c.l.bf16 %v4453
        %v4665 = vunpack.c.h.bf16 %v4453
        %v4666 = vunpack.c.l.bf16 %v4454
        %v4667 = vunpack.c.h.bf16 %v4454
        %v4668 = vunpack.c.l.bf16 %v4455
        %v4669 = vunpack.c.h.bf16 %v4455
        %v4670 = vunpack.c.l.bf16 %v4456
        %v4671 = vunpack.c.h.bf16 %v4456
        %v4672 = vunpack.c.l.bf16 %v4457
        %v4673 = vunpack.c.h.bf16 %v4457
        %v4674 = vunpack.c.l.bf16 %v4458
        %v4675 = vunpack.c.h.bf16 %v4458
        %v4676 = vunpack.c.l.bf16 %v4459
        %v4677 = vunpack.c.h.bf16 %v4459
        %v4678 = vunpack.c.l.bf16 %v4460
        %v4679 = vunpack.c.h.bf16 %v4460
        %v4680 = vunpack.c.l.bf16 %v4461
        %v4681 = vunpack.c.h.bf16 %v4461
        %v4682 = vunpack.c.l.bf16 %v4462
        %v4683 = vunpack.c.h.bf16 %v4462
        %v4684 = vunpack.c.l.bf16 %v4463
        %v4685 = vunpack.c.h.bf16 %v4463
        %v4686 = vunpack.c.l.bf16 %v4464
        %v4687 = vunpack.c.h.bf16 %v4464
        %v4688 = vunpack.c.l.bf16 %v4465
        %v4689 = vunpack.c.h.bf16 %v4465
        %v4690 = vunpack.c.l.bf16 %v4466
        %v4691 = vunpack.c.h.bf16 %v4466
        %v4692 = vunpack.c.l.bf16 %v4467
        %v4693 = vunpack.c.h.bf16 %v4467
        %v4694 = vunpack.c.l.bf16 %v4468
        %v4695 = vunpack.c.h.bf16 %v4468
        %v4696 = vunpack.c.l.bf16 %v4469
        %v4697 = vunpack.c.h.bf16 %v4469
        %v4698 = vunpack.c.l.bf16 %v4470
        %v4699 = vunpack.c.h.bf16 %v4470
        %v4700 = vunpack.c.l.bf16 %v4471
        %v4701 = vunpack.c.h.bf16 %v4471
        %v4702 = vunpack.c.l.bf16 %v4472
        %v4703 = vunpack.c.h.bf16 %v4472
        %v4704 = vunpack.c.l.bf16 %v4473
        %v4705 = vunpack.c.h.bf16 %v4473
        %v4706 = vunpack.c.l.bf16 %v4474
        %v4707 = vunpack.c.h.bf16 %v4474
        %v4708 = vunpack.c.l.bf16 %v4475
        %v4709 = vunpack.c.h.bf16 %v4475
        %v4710 = vunpack.c.l.bf16 %v4476
        %v4711 = vunpack.c.h.bf16 %v4476
        %v4712 = vunpack.c.l.bf16 %v4477
        %v4713 = vunpack.c.h.bf16 %v4477
        %v4714 = vunpack.c.l.bf16 %v4478
        %v4715 = vunpack.c.h.bf16 %v4478
        %v4716 = vunpack.c.l.bf16 %v4479
        %v4717 = vunpack.c.h.bf16 %v4479
        %v4718 = vunpack.c.l.bf16 %v4480
        %v4719 = vunpack.c.h.bf16 %v4480
        %v4720 = vunpack.c.l.bf16 %v4481
        %v4721 = vunpack.c.h.bf16 %v4481
        %v4722 = vunpack.c.l.bf16 %v4482
        %v4723 = vunpack.c.h.bf16 %v4482
        %v4724 = vunpack.c.l.bf16 %v4483
        %v4725 = vunpack.c.h.bf16 %v4483
        %v4726 = vunpack.c.l.bf16 %v4484
        %v4727 = vunpack.c.h.bf16 %v4484
        %v4728 = vunpack.c.l.bf16 %v4485
        %v4729 = vunpack.c.h.bf16 %v4485
        %v4730 = vunpack.c.l.bf16 %v4486
        %v4731 = vunpack.c.h.bf16 %v4486
        %v4732 = vunpack.c.l.bf16 %v4487
        %v4733 = vunpack.c.h.bf16 %v4487
        %v4734 = vunpack.c.l.bf16 %v4488
        %v4735 = vunpack.c.h.bf16 %v4488
        %v4736 = vunpack.c.l.bf16 %v4489
        %v4737 = vunpack.c.h.bf16 %v4489
        %v4738 = vunpack.c.l.bf16 %v4490
        %v4739 = vunpack.c.h.bf16 %v4490
        %v4740 = vunpack.c.l.bf16 %v4491
        %v4741 = vunpack.c.h.bf16 %v4491
        %v4742 = vunpack.c.l.bf16 %v4492
        %v4743 = vunpack.c.h.bf16 %v4492
        %v4744 = vunpack.c.l.bf16 %v4493
        %v4745 = vunpack.c.h.bf16 %v4493
        %v4746 = vunpack.c.l.bf16 %v4494
        %v4747 = vunpack.c.h.bf16 %v4494
        %v4748 = vunpack.c.l.bf16 %v4495
        %v4749 = vunpack.c.h.bf16 %v4495
        %v4750 = vunpack.c.l.bf16 %v4496
        %v4751 = vunpack.c.h.bf16 %v4496
        %v4752 = vunpack.c.l.bf16 %v4497
        %v4753 = vunpack.c.h.bf16 %v4497
        %v4754 = vld [vmem:[#allocation19] sm:$0x3]
        %v4756 = vperm.slane %v4754, 0
        %v4757 = vperm.slane %v4754, 1
        %4760 = vmatpush.msra.mxu0 %v4528
        %4761 = vmatpush.msra.mxu0 %v4526
        %4762 = vmatpush.msra.mxu0 %v4524
        %4763 = vmatpush.msra.mxu0 %v4522
        %4764 = vmatpush.msra.mxu0 %v4520
        %4765 = vmatpush.msra.mxu0 %v4518
        %4766 = vmatpush.msra.mxu0 %v4516
        %4767 = vmatpush.msra.mxu0 %v4514
        %4768 = vmatpush.msra.mxu0 %v4512
        %4769 = vmatpush.msra.mxu0 %v4510
        %4770 = vmatpush.msra.mxu0 %v4508
        %4771 = vmatpush.msra.mxu0 %v4506
        %4772 = vmatpush.msra.mxu0 %v4504
        %4773 = vmatpush.msra.mxu0 %v4502
        %4774 = vmatpush.msra.mxu0 %v4500
        %4775 = vmatpush.msra.mxu0 %v4498
        %4776 = vmatmul.f32.gmra.mxu0 %v4213
        %v4777 = vpop.f32.mrf.mxu0
        %v4778 = vadd.f32 %v4756, %v4777
        %4779 = vdwg.mxu0
        %4780 = vmatpush.msra.mxu0 %v4560
        %4781 = vmatpush.msra.mxu0 %v4558
        %4782 = vmatpush.msra.mxu0 %v4556
        %4783 = vmatpush.msra.mxu0 %v4554
        %4784 = vmatpush.msra.mxu0 %v4552
        %4785 = vmatpush.msra.mxu0 %v4550
        %4786 = vmatpush.msra.mxu0 %v4548
        %4787 = vmatpush.msra.mxu0 %v4546
        %4788 = vmatpush.msra.mxu0 %v4544
        %4789 = vmatpush.msra.mxu0 %v4542
        %4790 = vmatpush.msra.mxu0 %v4540
        %4791 = vmatpush.msra.mxu0 %v4538
        %4792 = vmatpush.msra.mxu0 %v4536
        %4793 = vmatpush.msra.mxu0 %v4534
        %4794 = vmatpush.msra.mxu0 %v4532
        %4795 = vmatpush.msra.mxu0 %v4530
        %4796 = vmatmul.f32.gmra.mxu0 %v4233
        %v4797 = vpop.f32.mrf.mxu0
        %v4798 = vadd.f32 %v4778, %v4797
        %4799 = vdwg.mxu0
        %4800 = vmatpush.msra.mxu0 %v4592
        %4801 = vmatpush.msra.mxu0 %v4590
        %4802 = vmatpush.msra.mxu0 %v4588
        %4803 = vmatpush.msra.mxu0 %v4586
        %4804 = vmatpush.msra.mxu0 %v4584
        %4805 = vmatpush.msra.mxu0 %v4582
        %4806 = vmatpush.msra.mxu0 %v4580
        %4807 = vmatpush.msra.mxu0 %v4578
        %4808 = vmatpush.msra.mxu0 %v4576
        %4809 = vmatpush.msra.mxu0 %v4574
        %4810 = vmatpush.msra.mxu0 %v4572
        %4811 = vmatpush.msra.mxu0 %v4570
        %4812 = vmatpush.msra.mxu0 %v4568
        %4813 = vmatpush.msra.mxu0 %v4566
        %4814 = vmatpush.msra.mxu0 %v4564
        %4815 = vmatpush.msra.mxu0 %v4562
        %4816 = vmatmul.f32.gmra.mxu0 %v4258
        %v4817 = vpop.f32.mrf.mxu0
        %v4818 = vadd.f32 %v4798, %v4817
        %4819 = vdwg.mxu0
        %4820 = vmatpush.msra.mxu0 %v4624
        %4821 = vmatpush.msra.mxu0 %v4622
        %4822 = vmatpush.msra.mxu0 %v4620
        %4823 = vmatpush.msra.mxu0 %v4618
        %4824 = vmatpush.msra.mxu0 %v4616
        %4825 = vmatpush.msra.mxu0 %v4614
        %4826 = vmatpush.msra.mxu0 %v4612
        %4827 = vmatpush.msra.mxu0 %v4610
        %4828 = vmatpush.msra.mxu0 %v4608
        %4829 = vmatpush.msra.mxu0 %v4606
        %4830 = vmatpush.msra.mxu0 %v4604
        %4831 = vmatpush.msra.mxu0 %v4602
        %4832 = vmatpush.msra.mxu0 %v4600
        %4833 = vmatpush.msra.mxu0 %v4598
        %4834 = vmatpush.msra.mxu0 %v4596
        %4835 = vmatpush.msra.mxu0 %v4594
        %4836 = vmatmul.f32.gmra.mxu0 %v4278
        %v4837 = vpop.f32.mrf.mxu0
        %v4838 = vadd.f32 %v4818, %v4837
        %4839 = vdwg.mxu0
        %4840 = vmatpush.msra.mxu0 %v4656
        %4841 = vmatpush.msra.mxu0 %v4654
        %4842 = vmatpush.msra.mxu0 %v4652
        %4843 = vmatpush.msra.mxu0 %v4650
        %4844 = vmatpush.msra.mxu0 %v4648
        %4845 = vmatpush.msra.mxu0 %v4646
        %4846 = vmatpush.msra.mxu0 %v4644
        %4847 = vmatpush.msra.mxu0 %v4642
        %4848 = vmatpush.msra.mxu0 %v4640
        %4849 = vmatpush.msra.mxu0 %v4638
        %4850 = vmatpush.msra.mxu0 %v4636
        %4851 = vmatpush.msra.mxu0 %v4634
        %4852 = vmatpush.msra.mxu0 %v4632
        %4853 = vmatpush.msra.mxu0 %v4630
        %4854 = vmatpush.msra.mxu0 %v4628
        %4855 = vmatpush.msra.mxu0 %v4626
        %4856 = vmatmul.f32.gmra.mxu0 %v4303
        %v4857 = vpop.f32.mrf.mxu0
        %v4858 = vadd.f32 %v4838, %v4857
        %4859 = vdwg.mxu0
        %4860 = vmatpush.msra.mxu0 %v4688
        %4861 = vmatpush.msra.mxu0 %v4686
        %4862 = vmatpush.msra.mxu0 %v4684
        %4863 = vmatpush.msra.mxu0 %v4682
        %4864 = vmatpush.msra.mxu0 %v4680
        %4865 = vmatpush.msra.mxu0 %v4678
        %4866 = vmatpush.msra.mxu0 %v4676
        %4867 = vmatpush.msra.mxu0 %v4674
        %4868 = vmatpush.msra.mxu0 %v4672
        %4869 = vmatpush.msra.mxu0 %v4670
        %4870 = vmatpush.msra.mxu0 %v4668
        %4871 = vmatpush.msra.mxu0 %v4666
        %4872 = vmatpush.msra.mxu0 %v4664
        %4873 = vmatpush.msra.mxu0 %v4662
        %4874 = vmatpush.msra.mxu0 %v4660
        %4875 = vmatpush.msra.mxu0 %v4658
        %4876 = vmatmul.f32.gmra.mxu0 %v4323
        %v4877 = vpop.f32.mrf.mxu0
        %v4878 = vadd.f32 %v4858, %v4877
        %4879 = vdwg.mxu0
        %4880 = vmatpush.msra.mxu0 %v4720
        %4881 = vmatpush.msra.mxu0 %v4718
        %4882 = vmatpush.msra.mxu0 %v4716
        %4883 = vmatpush.msra.mxu0 %v4714
        %4884 = vmatpush.msra.mxu0 %v4712
        %4885 = vmatpush.msra.mxu0 %v4710
        %4886 = vmatpush.msra.mxu0 %v4708
        %4887 = vmatpush.msra.mxu0 %v4706
        %4888 = vmatpush.msra.mxu0 %v4704
        %4889 = vmatpush.msra.mxu0 %v4702
        %4890 = vmatpush.msra.mxu0 %v4700
        %4891 = vmatpush.msra.mxu0 %v4698
        %4892 = vmatpush.msra.mxu0 %v4696
        %4893 = vmatpush.msra.mxu0 %v4694
        %4894 = vmatpush.msra.mxu0 %v4692
        %4895 = vmatpush.msra.mxu0 %v4690
        %4896 = vmatmul.f32.gmra.mxu0 %v4348
        %v4897 = vpop.f32.mrf.mxu0
        %v4898 = vadd.f32 %v4878, %v4897
        %4899 = vdwg.mxu0
        %4900 = vmatpush.msra.mxu0 %v4752
        %4901 = vmatpush.msra.mxu0 %v4750
        %4902 = vmatpush.msra.mxu0 %v4748
        %4903 = vmatpush.msra.mxu0 %v4746
        %4904 = vmatpush.msra.mxu0 %v4744
        %4905 = vmatpush.msra.mxu0 %v4742
        %4906 = vmatpush.msra.mxu0 %v4740
        %4907 = vmatpush.msra.mxu0 %v4738
        %4908 = vmatpush.msra.mxu0 %v4736
        %4909 = vmatpush.msra.mxu0 %v4734
        %4910 = vmatpush.msra.mxu0 %v4732
        %4911 = vmatpush.msra.mxu0 %v4730
        %4912 = vmatpush.msra.mxu0 %v4728
        %4913 = vmatpush.msra.mxu0 %v4726
        %4914 = vmatpush.msra.mxu0 %v4724
        %4915 = vmatpush.msra.mxu0 %v4722
        %4916 = vmatmul.f32.gmra.mxu0 %v4368
        %v4917 = vpop.f32.mrf.mxu0
        %v4918 = vadd.f32 %v4898, %v4917
        %4919 = vdwg.mxu0
        %4920 = vmatpush.msra.mxu0 %v4529
        %4921 = vmatpush.msra.mxu0 %v4527
        %4922 = vmatpush.msra.mxu0 %v4525
        %4923 = vmatpush.msra.mxu0 %v4523
        %4924 = vmatpush.msra.mxu0 %v4521
        %4925 = vmatpush.msra.mxu0 %v4519
        %4926 = vmatpush.msra.mxu0 %v4517
        %4927 = vmatpush.msra.mxu0 %v4515
        %4928 = vmatpush.msra.mxu0 %v4513
        %4929 = vmatpush.msra.mxu0 %v4511
        %4930 = vmatpush.msra.mxu0 %v4509
        %4931 = vmatpush.msra.mxu0 %v4507
        %4932 = vmatpush.msra.mxu0 %v4505
        %4933 = vmatpush.msra.mxu0 %v4503
        %4934 = vmatpush.msra.mxu0 %v4501
        %4935 = vmatpush.msra.mxu0 %v4499
        %4936 = vmatmul.f32.gmra.mxu0 %v4213
        %v4937 = vpop.f32.mrf.mxu0
        %v4938 = vadd.f32 %v4757, %v4937
        %4939 = vdwg.mxu0
        %4940 = vmatpush.msra.mxu0 %v4561
        %4941 = vmatpush.msra.mxu0 %v4559
        %4942 = vmatpush.msra.mxu0 %v4557
        %4943 = vmatpush.msra.mxu0 %v4555
        %4944 = vmatpush.msra.mxu0 %v4553
        %4945 = vmatpush.msra.mxu0 %v4551
        %4946 = vmatpush.msra.mxu0 %v4549
        %4947 = vmatpush.msra.mxu0 %v4547
        %4948 = vmatpush.msra.mxu0 %v4545
        %4949 = vmatpush.msra.mxu0 %v4543
        %4950 = vmatpush.msra.mxu0 %v4541
        %4951 = vmatpush.msra.mxu0 %v4539
        %4952 = vmatpush.msra.mxu0 %v4537
        %4953 = vmatpush.msra.mxu0 %v4535
        %4954 = vmatpush.msra.mxu0 %v4533
        %4955 = vmatpush.msra.mxu0 %v4531
        %4956 = vmatmul.f32.gmra.mxu0 %v4233
        %v4957 = vpop.f32.mrf.mxu0
        %v4958 = vadd.f32 %v4938, %v4957
        %4959 = vdwg.mxu0
        %4960 = vmatpush.msra.mxu0 %v4593
        %4961 = vmatpush.msra.mxu0 %v4591
        %4962 = vmatpush.msra.mxu0 %v4589
        %4963 = vmatpush.msra.mxu0 %v4587
        %4964 = vmatpush.msra.mxu0 %v4585
        %4965 = vmatpush.msra.mxu0 %v4583
        %4966 = vmatpush.msra.mxu0 %v4581
        %4967 = vmatpush.msra.mxu0 %v4579
        %4968 = vmatpush.msra.mxu0 %v4577
        %4969 = vmatpush.msra.mxu0 %v4575
        %4970 = vmatpush.msra.mxu0 %v4573
        %4971 = vmatpush.msra.mxu0 %v4571
        %4972 = vmatpush.msra.mxu0 %v4569
        %4973 = vmatpush.msra.mxu0 %v4567
        %4974 = vmatpush.msra.mxu0 %v4565
        %4975 = vmatpush.msra.mxu0 %v4563
        %4976 = vmatmul.f32.gmra.mxu0 %v4258
        %v4977 = vpop.f32.mrf.mxu0
        %v4978 = vadd.f32 %v4958, %v4977
        %4979 = vdwg.mxu0
        %4980 = vmatpush.msra.mxu0 %v4625
        %4981 = vmatpush.msra.mxu0 %v4623
        %4982 = vmatpush.msra.mxu0 %v4621
        %4983 = vmatpush.msra.mxu0 %v4619
        %4984 = vmatpush.msra.mxu0 %v4617
        %4985 = vmatpush.msra.mxu0 %v4615
        %4986 = vmatpush.msra.mxu0 %v4613
        %4987 = vmatpush.msra.mxu0 %v4611
        %4988 = vmatpush.msra.mxu0 %v4609
        %4989 = vmatpush.msra.mxu0 %v4607
        %4990 = vmatpush.msra.mxu0 %v4605
        %4991 = vmatpush.msra.mxu0 %v4603
        %4992 = vmatpush.msra.mxu0 %v4601
        %4993 = vmatpush.msra.mxu0 %v4599
        %4994 = vmatpush.msra.mxu0 %v4597
        %4995 = vmatpush.msra.mxu0 %v4595
        %4996 = vmatmul.f32.gmra.mxu0 %v4278
        %v4997 = vpop.f32.mrf.mxu0
        %v4998 = vadd.f32 %v4978, %v4997
        %4999 = vdwg.mxu0
        %5000 = vmatpush.msra.mxu0 %v4657
        %5001 = vmatpush.msra.mxu0 %v4655
        %5002 = vmatpush.msra.mxu0 %v4653
        %5003 = vmatpush.msra.mxu0 %v4651
        %5004 = vmatpush.msra.mxu0 %v4649
        %5005 = vmatpush.msra.mxu0 %v4647
        %5006 = vmatpush.msra.mxu0 %v4645
        %5007 = vmatpush.msra.mxu0 %v4643
        %5008 = vmatpush.msra.mxu0 %v4641
        %5009 = vmatpush.msra.mxu0 %v4639
        %5010 = vmatpush.msra.mxu0 %v4637
        %5011 = vmatpush.msra.mxu0 %v4635
        %5012 = vmatpush.msra.mxu0 %v4633
        %5013 = vmatpush.msra.mxu0 %v4631
        %5014 = vmatpush.msra.mxu0 %v4629
        %5015 = vmatpush.msra.mxu0 %v4627
        %5016 = vmatmul.f32.gmra.mxu0 %v4303
        %v5017 = vpop.f32.mrf.mxu0
        %v5018 = vadd.f32 %v4998, %v5017
        %5019 = vdwg.mxu0
        %5020 = vmatpush.msra.mxu0 %v4689
        %5021 = vmatpush.msra.mxu0 %v4687
        %5022 = vmatpush.msra.mxu0 %v4685
        %5023 = vmatpush.msra.mxu0 %v4683
        %5024 = vmatpush.msra.mxu0 %v4681
        %5025 = vmatpush.msra.mxu0 %v4679
        %5026 = vmatpush.msra.mxu0 %v4677
        %5027 = vmatpush.msra.mxu0 %v4675
        %5028 = vmatpush.msra.mxu0 %v4673
        %5029 = vmatpush.msra.mxu0 %v4671
        %5030 = vmatpush.msra.mxu0 %v4669
        %5031 = vmatpush.msra.mxu0 %v4667
        %5032 = vmatpush.msra.mxu0 %v4665
        %5033 = vmatpush.msra.mxu0 %v4663
        %5034 = vmatpush.msra.mxu0 %v4661
        %5035 = vmatpush.msra.mxu0 %v4659
        %5036 = vmatmul.f32.gmra.mxu0 %v4323
        %v5037 = vpop.f32.mrf.mxu0
        %v5038 = vadd.f32 %v5018, %v5037
        %5039 = vdwg.mxu0
        %5040 = vmatpush.msra.mxu0 %v4721
        %5041 = vmatpush.msra.mxu0 %v4719
        %5042 = vmatpush.msra.mxu0 %v4717
        %5043 = vmatpush.msra.mxu0 %v4715
        %5044 = vmatpush.msra.mxu0 %v4713
        %5045 = vmatpush.msra.mxu0 %v4711
        %5046 = vmatpush.msra.mxu0 %v4709
        %5047 = vmatpush.msra.mxu0 %v4707
        %5048 = vmatpush.msra.mxu0 %v4705
        %5049 = vmatpush.msra.mxu0 %v4703
        %5050 = vmatpush.msra.mxu0 %v4701
        %5051 = vmatpush.msra.mxu0 %v4699
        %5052 = vmatpush.msra.mxu0 %v4697
        %5053 = vmatpush.msra.mxu0 %v4695
        %5054 = vmatpush.msra.mxu0 %v4693
        %5055 = vmatpush.msra.mxu0 %v4691
        %5056 = vmatmul.f32.gmra.mxu0 %v4348
        %v5057 = vpop.f32.mrf.mxu0
        %v5058 = vadd.f32 %v5038, %v5057
        %5059 = vdwg.mxu0
        %5060 = vmatpush.msra.mxu0 %v4753
        %5061 = vmatpush.msra.mxu0 %v4751
        %5062 = vmatpush.msra.mxu0 %v4749
        %5063 = vmatpush.msra.mxu0 %v4747
        %5064 = vmatpush.msra.mxu0 %v4745
        %5065 = vmatpush.msra.mxu0 %v4743
        %5066 = vmatpush.msra.mxu0 %v4741
        %5067 = vmatpush.msra.mxu0 %v4739
        %5068 = vmatpush.msra.mxu0 %v4737
        %5069 = vmatpush.msra.mxu0 %v4735
        %5070 = vmatpush.msra.mxu0 %v4733
        %5071 = vmatpush.msra.mxu0 %v4731
        %5072 = vmatpush.msra.mxu0 %v4729
        %5073 = vmatpush.msra.mxu0 %v4727
        %5074 = vmatpush.msra.mxu0 %v4725
        %5075 = vmatpush.msra.mxu0 %v4723
        %5076 = vmatmul.f32.gmra.mxu0 %v4368
        %v5077 = vpop.f32.mrf.mxu0
        %v5078 = vadd.f32 %v5058, %v5077
        %5079 = vdwg.mxu0
        %v5080 = vmax.f32 %v4918, 0.0
        %v5081 = vmax.f32 %v5078, 0.0
        %v5084 = vrot.slane %v5081, 7
        %vm5085 = vcmask 1040384
        %v5086 = vsel %vm5085, %v5080, %v5084
        %v5088 = vlaneseq
        %vm5089 = vcmp.ge.s32.totalorder %v5088, 0
        %vm5090 = vcmp.lt.s32.totalorder %v5088, 256
        %vm5091 = vmand %vm5089, %vm5090
        %5092 = vst.msk [vmem:[%s631] sm:$0x3] %vm5091, %v5086
        %s5093 = smul.u32 2, %s31
        %p5094 = scmp.lt.s32.totalorder %s5093, 3
        %s5095 = scalar_select %p5094, %s5093, 3
        %s5096 = scalar_lea.vmem %s13, %s5095
        // Predicated region
        $region121: #{betavae_h_forward.2} parent=71 // pred_check
          %p5097 = pneg %p327
        $region122: #{betavae_h_forward.2} parent=71 // pred_check_branch
          %5099 = sbr.rel (%p5097) target = $region124
        $region123: #{betavae_h_forward.2} parent=71 // pred_region
          %s5100 = smul.u32 2, %s31
        $region124: #{betavae_h_forward.2} parent=71 // pred_fallthru
          _
      $region72: #{betavae_h_forward.2} parent=5 // pred_fallthru
        _
      %p5101 = scmp.le.s32.totalorder 2, %s26
      // Predicated region
      $region125: #{betavae_h_forward.2} parent=5 // pred_check
        %p5102 = pneg %p5101
      $region126: #{betavae_h_forward.2} parent=5 // pred_check_branch
        %5104 = sbr.rel (%p5102) target = $region128
      $region127: #{betavae_h_forward.2} parent=5 // pred_region
        %s5105 = ssub.s32 %s26, 2
        // Predicated region
        $region129: #{betavae_h_forward.2} parent=127 // pred_check
          %p5106 = pneg %p333
        $region130: #{betavae_h_forward.2} parent=127 // pred_check_branch
          %5108 = sbr.rel (%p5106) target = $region132
        $region131: #{betavae_h_forward.2} parent=127 // pred_region
          %s5109 = smul.u32 2, %s32
          %p5110 = scmp.lt.s32.totalorder %s5109, 3
          %s5111 = scalar_select %p5110, %s5109, 3
          %s5112 = scalar_lea.vmem %s13, %s5111
        $region132: #{betavae_h_forward.2} parent=127 // pred_fallthru
          _
      $region128: #{betavae_h_forward.2} parent=5 // pred_fallthru
        _
    $region6: #{betavae_h_forward.2} parent=1 // loop_footer
      %s30 = sadd.s32 1, %s26
    $region7: #{betavae_h_forward.2} parent=1 // loop_footer_branch
      %25 = sbr.rel target = $region3
    $region8: #{betavae_h_forward.2} parent=1 // loop_exit
      _
    %5113 = vsyncpa [#allocation3], 1
    %s5114 = scalar_lea.sflag [#allocation3], 1
    %5115 = vsyncpa %s5114, 1
    %5116 = vsyncpa [#allocation5], 1
    %5117 = vsyncpa [#allocation8], 1
    %5118 = vsyncpa [#allocation11], 1
    %5119 = vsyncpa [#allocation14], 1
    %5120 = vsyncpa [#allocation17], 1
    %5121 = vsyncpa [#allocation20], 1

</llo_original>
